<compile_context>
chip_gen: v6e
topology: v6e:2x2x1
jax: 0.10.0
libtpu: 0.0.40
codegen_flags: <defaults>
</compile_context>

<pallas_src>
import math

import jax
import jax.numpy as jnp
import numpy as np
from jax.experimental import pallas as pl
from jax.experimental.pallas import tpu as pltpu


# ----------------------------- Pallas kernel ------------------------------ #
def rits_kernel(vals_ref, masks_ref, deltas_ref,
                wg_ref, bg_ref, wh_ref, bhr_ref,
                wfr_ref, bfr_ref, wwc1_ref, bwc_ref,
                wm_ref, wih1_ref, bgate_ref,
                imp_ref, loss_ref,
                h_scr, c_scr):
    blk = pl.program_id(0)
    f32 = jnp.float32
    Hp = h_scr.shape[-1]          # lane-padded hidden size (multiple of 128)
    G = 4 * Hp                    # lane-aligned gate block width
    tile_t = vals_ref.shape[0]

    @pl.when(blk == 0)
    def _():
        h_scr[...] = jnp.zeros_like(h_scr)
        c_scr[...] = jnp.zeros_like(c_scr)
        loss_ref[...] = jnp.zeros_like(loss_ref)

    # hoist weight loads out of the timestep loop
    wg = wg_ref[...]       # (F, Hp+F)   = [Wgh_pad | Wgx_diag]
    bg = bg_ref[...]       # (1, Hp+F)
    wh = wh_ref[...]       # (Hp, 4Hp+F) = [Whh_pad | Whr_pad]
    bhr = bhr_ref[...]     # (1, F)
    wfr = wfr_ref[...]     # (F, F)   off-diag masked
    bfr = bfr_ref[...]     # (1, F)
    wwc1 = wwc1_ref[...]   # (F, F)
    bwc = bwc_ref[...]     # (1, F)
    wm = wm_ref[...]       # (F, 4Hp+F) = [Wih2_pad | Wwc2]
    wih1 = wih1_ref[...]   # (F, 4Hp)
    bgate = bgate_ref[...] # (1, 4Hp)   = bih + bhh, gate-padded

    def step(tt, carry):
        h, c, loss = carry
        x = vals_ref[tt]          # (Bp, F)
        m = masks_ref[tt]         # (Bp, F)
        d = deltas_ref[tt]        # (Bp, F)

        # fused TemporalDecay (dense + diag): d @ [Wgh | Wgx]
        g = jnp.exp(-jax.nn.relu(
            jnp.dot(d, wg, preferred_element_type=f32) + bg))
        gamma_h = g[:, :Hp]       # lane-aligned slice
        gamma_x = g[:, Hp:]       # (Bp, F)

        h = h * gamma_h

        # fused h @ [Whh | Whr]: gate contribution + history regression
        hw = jnp.dot(h, wh, preferred_element_type=f32)       # (Bp, 4Hp+F)
        x_h = hw[:, G:] + bhr                                  # (Bp, F)

        x_c = m * x + (1.0 - m) * x_h

        # feature regression (off-diagonal mask folded into wfr)
        z_h = jnp.dot(x_c, wfr, preferred_element_type=f32) + bfr

        # fused m @ [Wih2 | Wwc2]
        mw = jnp.dot(m, wm, preferred_element_type=f32)        # (Bp, 4Hp+F)
        alpha = (jnp.dot(gamma_x, wwc1, preferred_element_type=f32)
                 + mw[:, G:] + bwc)
        c_h = alpha * z_h + (1.0 - alpha) * x_h

        # fold the three masked-L1 terms into one cross-lane reduction
        err = (jnp.abs(x - x_h) + jnp.abs(x - z_h) + jnp.abs(x - c_h)) * m
        loss = loss + jnp.sum(err) / (jnp.sum(m) + 1e-5)

        c_c = m * x + (1.0 - m) * c_h
        imp_ref[tt] = c_c

        # LSTMCell: c_c @ Wih1 + (m @ Wih2) + (h @ Whh) + (bih + bhh)
        gates = (jnp.dot(c_c, wih1, preferred_element_type=f32)
                 + mw[:, :G] + hw[:, :G] + bgate)
        i_g = jax.nn.sigmoid(gates[:, 0:Hp])
        f_g = jax.nn.sigmoid(gates[:, Hp:2 * Hp])
        g_g = jnp.tanh(gates[:, 2 * Hp:3 * Hp])
        o_g = jax.nn.sigmoid(gates[:, 3 * Hp:4 * Hp])
        c = f_g * c + i_g * g_g
        h = o_g * jnp.tanh(c)
        return h, c, loss

    h0 = h_scr[...]
    c0 = c_scr[...]
    h, c, blk_loss = jax.lax.fori_loop(
        0, tile_t, step, (h0, c0, jnp.float32(0.0)), unroll=tile_t <= 16)

    h_scr[...] = h
    c_scr[...] = c
    loss_ref[...] = loss_ref[...] + blk_loss     # one RMW per grid block


# ---------------------- weight fusion / lane padding ----------------------- #
def _pad_cols(a, new_cols):
    pad = new_cols - a.shape[-1]
    if pad == 0:
        return a
    return jnp.pad(a, [(0, 0)] * (a.ndim - 1) + [(0, pad)])


def _pad_gate_cols(w, H, Hp):
    """w: (..., 4H) with 4 gate blocks of width H -> (..., 4Hp), lane-aligned."""
    if H == Hp:
        return w
    parts = [_pad_cols(w[..., k * H:(k + 1) * H], Hp) for k in range(4)]
    return jnp.concatenate(parts, axis=-1)


def fuse_pad_params(p, feature_len, H, Hp):
    F = feature_len
    Wgh_p = _pad_cols(p["Wgh"], Hp)                        # (F, Hp)
    bgh_p = _pad_cols(p["bgh"], Hp)                        # (1, Hp)
    Whh_p = _pad_gate_cols(p["Whh"], H, Hp)                # (H, 4Hp)
    Whh_p = jnp.pad(Whh_p, ((0, Hp - H), (0, 0)))          # (Hp, 4Hp)
    Whr_p = jnp.pad(p["Whr"], ((0, Hp - H), (0, 0)))       # (Hp, F)
    Wih1_p = _pad_gate_cols(p["Wih1"], H, Hp)              # (F, 4Hp)
    Wih2_p = _pad_gate_cols(p["Wih2"], H, Hp)              # (F, 4Hp)
    bgate = _pad_gate_cols(p["bih"] + p["bhh"], H, Hp)     # (1, 4Hp)
    return {
        "Wg": jnp.concatenate([Wgh_p, p["Wgx"]], axis=1),      # (F, Hp+F)
        "bg": jnp.concatenate([bgh_p, p["bgx"]], axis=1),      # (1, Hp+F)
        "Wh": jnp.concatenate([Whh_p, Whr_p], axis=1),         # (Hp, 4Hp+F)
        "bhr": p["bhr"],
        "Wfr": p["Wfr"], "bfr": p["bfr"],
        "Wwc1": p["Wwc1"], "bwc": p["bwc"],
        "Wm": jnp.concatenate([Wih2_p, p["Wwc2"]], axis=1),    # (F, 4Hp+F)
        "Wih1": Wih1_p,                                        # (F, 4Hp)
        "bgate": bgate,                                        # (1, 4Hp)
    }


# ------------------------------- wrapper ----------------------------------- #
def rits_forward_pallas(values, masks, deltas, params, rnn_hid_size, tile_t=None):
    """values/masks/deltas: [B, T, F] float32. Returns (loss_scalar, imputations[B,T,F])."""
    B, T, F = values.shape
    H = rnn_hid_size
    Hp = ((H + 127) // 128) * 128        # lane-aligned gate stride
    Bp = ((B + 7) // 8) * 8              # sublane-aligned batch

    if tile_t is None:
        tile_t = T                       # single grid step for typical BRITS T
    assert T % tile_t == 0
    num_blk = T // tile_t

    kp = fuse_pad_params(params, F, H, Hp)

    # time-major + zero-pad batch (pad masks are 0 -> no loss contribution)
    def prep(a):
        a = jnp.transpose(a, (1, 0, 2))                  # [T, B, F]
        if Bp != B:
            a = jnp.pad(a, ((0, 0), (0, Bp - B), (0, 0)))
        return a

    v, mk, dl = prep(values), prep(masks), prep(deltas)

    weight_order = ["Wg", "bg", "Wh", "bhr", "Wfr", "bfr",
                    "Wwc1", "bwc", "Wm", "Wih1", "bgate"]
    wargs = [kp[k] for k in weight_order]

    def full_spec(shape):
        n = len(shape)
        return pl.BlockSpec(shape, lambda i, _n=n: (0,) * _n)

    seq_spec = pl.BlockSpec((tile_t, Bp, F), lambda i: (i, 0, 0))
    in_specs = [seq_spec, seq_spec, seq_spec] + [full_spec(w.shape) for w in wargs]
    out_specs = [pl.BlockSpec((tile_t, Bp, F), lambda i: (i, 0, 0)),
                 pl.BlockSpec((1, 1), lambda i: (0, 0))]

    grid_spec = pltpu.PrefetchScalarGridSpec(
        num_scalar_prefetch=0,
        grid=(num_blk,),
        in_specs=in_specs,
        out_specs=out_specs,
        scratch_shapes=[pltpu.VMEM((Bp, Hp), jnp.float32),   # h
                        pltpu.VMEM((Bp, Hp), jnp.float32)],  # c
    )

    imp_tbf, loss = pl.pallas_call(
        rits_kernel,
        out_shape=(jax.ShapeDtypeStruct((T, Bp, F), jnp.float32),
                   jax.ShapeDtypeStruct((1, 1), jnp.float32)),
        grid_spec=grid_spec,
        compiler_params=pltpu.CompilerParams(
            dimension_semantics=("arbitrary",)),   # time recurrence: sequential
    )(v, mk, dl, *wargs)

    imputations = jnp.transpose(imp_tbf[:, :B, :], (1, 0, 2))   # back to [B, T, F]
    return loss[0, 0], imputations


def rits_run(data, direct, params, rnn_hid_size):
    """Mirrors RITSModel.forward's returned dict (glue only)."""
    values = data[direct]["values"]
    masks = data[direct]["masks"]
    deltas = data[direct]["deltas"]
    loss, imputations = rits_forward_pallas(values, masks, deltas, params, rnn_hid_size)
    return {
        "loss": loss,
        "predictions": None,
        "imputations": imputations,
        "is_train": data["is_train"].reshape(-1, 1),
        "evals": data[direct]["evals"],
        "eval_masks": data[direct]["eval_masks"],
    }


# --------------------- deterministic parameter setup ----------------------- #
def make_params(key, feature_len, rnn_hid_size):
    F, H = feature_len, rnn_hid_size
    keys = jax.random.split(key, 16)

    def uni(k, shape, stdv):
        return jax.random.uniform(k, shape, jnp.float32, -stdv, stdv)

    s_h, s_f, s_2f = 1.0 / math.sqrt(H), 1.0 / math.sqrt(F), 1.0 / math.sqrt(2 * F)
    W_gh = uni(keys[0], (H, F), s_h);  b_gh = uni(keys[1], (H,), s_h)       # TemporalDecay(F->H)
    W_gx = uni(keys[2], (F, F), s_f);  b_gx = uni(keys[3], (F,), s_f)       # TemporalDecay(F->F, diag)
    W_hr = uni(keys[4], (F, H), s_h);  b_hr = uni(keys[5], (F,), s_h)       # hist_reg Linear(H->F)
    W_fr = uni(keys[6], (F, F), s_f);  b_fr = uni(keys[7], (F,), s_f)       # FeatureRegression(F)
    W_wc = uni(keys[8], (F, 2 * F), s_2f); b_wc = uni(keys[9], (F,), s_2f)  # weight_combine(2F->F)
    W_ih = uni(keys[10], (4 * H, 2 * F), s_h); b_ih = uni(keys[11], (4 * H,), s_h)  # LSTMCell
    W_hh = uni(keys[12], (4 * H, H), s_h);     b_hh = uni(keys[13], (4 * H,), s_h)
    # NOTE: `self.out` and `self.dropout` are defined in build() but unused in forward().

    eye = jnp.eye(F, dtype=jnp.float32)
    Wwc_t = W_wc.T            # [2F, F]
    Wih_t = W_ih.T            # [2F, 4H]

    return {
        "Wgh": W_gh.T,                       # [F, H]
        "bgh": b_gh.reshape(1, H),
        "Wgx": (W_gx * eye).T,               # [F, F], diag mask folded in
        "bgx": b_gx.reshape(1, F),
        "Whr": W_hr.T,                       # [H, F]
        "bhr": b_hr.reshape(1, F),
        "Wfr": (W_fr * (1.0 - eye)).T,       # [F, F], off-diag mask folded in
        "bfr": b_fr.reshape(1, F),
        "Wwc1": Wwc_t[:F], "Wwc2": Wwc_t[F:],
        "bwc": b_wc.reshape(1, F),
        "Wih1": Wih_t[:F], "Wih2": Wih_t[F:],
        "bih": b_ih.reshape(1, 4 * H),
        "Whh": W_hh.T,                       # [H, 4H]
        "bhh": b_hh.reshape(1, 4 * H),
    }


# ----------------------------- pure-JAX reference -------------------------- #
def rits_forward_ref(values, masks, deltas, p, rnn_hid_size):
    B, T, F = values.shape
    H = rnn_hid_size
    h = jnp.zeros((B, H), jnp.float32)
    c = jnp.zeros((B, H), jnp.float32)
    loss = jnp.float32(0.0)
    imps = []
    for t in range(T):
        x, m, d = values[:, t], masks[:, t], deltas[:, t]
        gamma_h = jnp.exp(-jax.nn.relu(d @ p["Wgh"] + p["bgh"]))
        gamma_x = jnp.exp(-jax.nn.relu(d @ p["Wgx"] + p["bgx"]))
        h = h * gamma_h
        x_h = h @ p["Whr"] + p["bhr"]
        inv = 1.0 / (jnp.sum(m) + 1e-5)
        loss = loss + jnp.sum(jnp.abs(x - x_h) * m) * inv
        x_c = m * x + (1.0 - m) * x_h
        z_h = x_c @ p["Wfr"] + p["bfr"]
        loss = loss + jnp.sum(jnp.abs(x - z_h) * m) * inv
        alpha = gamma_x @ p["Wwc1"] + m @ p["Wwc2"] + p["bwc"]
        c_h = alpha * z_h + (1.0 - alpha) * x_h
        loss = loss + jnp.sum(jnp.abs(x - c_h) * m) * inv
        c_c = m * x + (1.0 - m) * c_h
        gates = c_c @ p["Wih1"] + m @ p["Wih2"] + p["bih"] + h @ p["Whh"] + p["bhh"]
        i_g = jax.nn.sigmoid(gates[:, 0:H])
        f_g = jax.nn.sigmoid(gates[:, H:2 * H])
        g_g = jnp.tanh(gates[:, 2 * H:3 * H])
        o_g = jax.nn.sigmoid(gates[:, 3 * H:4 * H])
        c = f_g * c + i_g * g_g
        h = o_g * jnp.tanh(c)
        imps.append(c_c[:, None, :])
    return loss, jnp.concatenate(imps, axis=1)


# --------------------------------- main ------------------------------------ #
if __name__ == "__main__":
    B, T, F, H = 2, 8, 4, 32
    impute_weight = 0.3  # stored but unused in forward

    key = jax.random.PRNGKey(0)
    kp, kv, km, kd, ke, kem, kit = jax.random.split(key, 7)

    params = make_params(kp, F, H)

    values = jax.random.normal(kv, (B, T, F), jnp.float32)
    masks = (jax.random.uniform(km, (B, T, F)) < 0.7).astype(jnp.float32)
    deltas = jax.random.uniform(kd, (B, T, F), jnp.float32, 0.0, 2.0)
    evals = jax.random.normal(ke, (B, T, F), jnp.float32)
    eval_masks = (jax.random.uniform(kem, (B, T, F)) < 0.2).astype(jnp.float32)
    is_train = jnp.ones((B,), jnp.float32)

    data = {
        "forward": {"values": values, "masks": masks, "deltas": deltas,
                    "evals": evals, "eval_masks": eval_masks},
        "is_train": is_train,
    }

    ret = rits_run(data, "forward", params, H)
    loss = jax.block_until_ready(ret["loss"])
    imputations = jax.block_until_ready(ret["imputations"])

    # correctness check vs. pure-JAX reference (unfused / unpadded parameters)
    loss_ref, imp_ref = rits_forward_ref(values, masks, deltas, params, H)
    np.testing.assert_allclose(np.asarray(loss), np.asarray(loss_ref), rtol=1e-4, atol=1e-4)
    np.testing.assert_allclose(np.asarray(imputations), np.asarray(imp_ref), rtol=1e-4, atol=1e-4)

    assert imputations.shape == (B, T, F)
    print("KERNEL_OK")
</pallas_src>

<mosaic_0001>
module attributes {stable_mosaic.version = 11 : i64} {
  func.func @rits_kernel(%arg0: i32, %arg1: memref<8x8x4xf32, #tpu.memory_space<vmem>>, %arg2: memref<8x8x4xf32, #tpu.memory_space<vmem>>, %arg3: memref<8x8x4xf32, #tpu.memory_space<vmem>>, %arg4: memref<4x132xf32, #tpu.memory_space<vmem>>, %arg5: memref<1x132xf32, #tpu.memory_space<vmem>>, %arg6: memref<128x516xf32, #tpu.memory_space<vmem>>, %arg7: memref<1x4xf32, #tpu.memory_space<vmem>>, %arg8: memref<4x4xf32, #tpu.memory_space<vmem>>, %arg9: memref<1x4xf32, #tpu.memory_space<vmem>>, %arg10: memref<4x4xf32, #tpu.memory_space<vmem>>, %arg11: memref<1x4xf32, #tpu.memory_space<vmem>>, %arg12: memref<4x516xf32, #tpu.memory_space<vmem>>, %arg13: memref<4x512xf32, #tpu.memory_space<vmem>>, %arg14: memref<1x512xf32, #tpu.memory_space<vmem>>, %arg15: memref<8x8x4xf32, #tpu.memory_space<vmem>>, %arg16: memref<1x1xf32, #tpu.memory_space<vmem>>, %arg17: memref<8x128xf32, #tpu.memory_space<vmem>>, %arg18: memref<8x128xf32, #tpu.memory_space<vmem>>) attributes {dimension_semantics = [#tpu.dimension_semantics<arbitrary>], iteration_bounds = array<i64: 1>, scalar_prefetch = 0 : i64, scratch_operands = 2 : i64, tpu.core_type = #tpu.core_type<tc>, window_params = [{transform_indices = @transform_0, window_bounds = array<i64: 8, 8, 4>}, {transform_indices = @transform_1, window_bounds = array<i64: 8, 8, 4>}, {transform_indices = @transform_2, window_bounds = array<i64: 8, 8, 4>}, {pipeline_mode = #tpu.pipeline_mode<synchronous>, transform_indices = @transform_3, window_bounds = array<i64: 4, 132>}, {pipeline_mode = #tpu.pipeline_mode<synchronous>, transform_indices = @transform_4, window_bounds = array<i64: 1, 132>}, {pipeline_mode = #tpu.pipeline_mode<synchronous>, transform_indices = @transform_5, window_bounds = array<i64: 128, 516>}, {pipeline_mode = #tpu.pipeline_mode<synchronous>, transform_indices = @transform_6, window_bounds = array<i64: 1, 4>}, {pipeline_mode = #tpu.pipeline_mode<synchronous>, transform_indices = @transform_7, window_bounds = array<i64: 4, 4>}, {pipeline_mode = #tpu.pipeline_mode<synchronous>, transform_indices = @transform_8, window_bounds = array<i64: 1, 4>}, {pipeline_mode = #tpu.pipeline_mode<synchronous>, transform_indices = @transform_9, window_bounds = array<i64: 4, 4>}, {pipeline_mode = #tpu.pipeline_mode<synchronous>, transform_indices = @transform_10, window_bounds = array<i64: 1, 4>}, {pipeline_mode = #tpu.pipeline_mode<synchronous>, transform_indices = @transform_11, window_bounds = array<i64: 4, 516>}, {pipeline_mode = #tpu.pipeline_mode<synchronous>, transform_indices = @transform_12, window_bounds = array<i64: 4, 512>}, {pipeline_mode = #tpu.pipeline_mode<synchronous>, transform_indices = @transform_13, window_bounds = array<i64: 1, 512>}, {transform_indices = @transform_14, window_bounds = array<i64: 8, 8, 4>}, {pipeline_mode = #tpu.pipeline_mode<synchronous>, transform_indices = @transform_15, window_bounds = array<i64: 1, 1>}]} {
    %c0_i32 = arith.constant 0 : i32
    %0 = arith.cmpi eq, %arg0, %c0_i32 : i32
    %1 = arith.extui %0 : i1 to i32
    %c0_i32_0 = arith.constant 0 : i32
    %2 = arith.cmpi ne, %1, %c0_i32_0 : i32
    scf.if %2 {
      %cst_235 = arith.constant 0.000000e+00 : f32
      %854 = vector.broadcast %cst_235 : f32 to vector<8x128xf32>
      %c0_236 = arith.constant 0 : index
      %c0_237 = arith.constant 0 : index
      %855 = vector.load %arg17[%c0_236, %c0_237] : memref<8x128xf32, #tpu.memory_space<vmem>>, vector<8x128xf32>
      tpu.vector_store %arg17[%c0_236, %c0_237], %854 {strides = array<i32>} : memref<8x128xf32, #tpu.memory_space<vmem>>, vector<8x128xf32>,
      %cst_238 = arith.constant 0.000000e+00 : f32
      %856 = vector.broadcast %cst_238 : f32 to vector<8x128xf32>
      %c0_239 = arith.constant 0 : index
      %c0_240 = arith.constant 0 : index
      %857 = vector.load %arg18[%c0_239, %c0_240] : memref<8x128xf32, #tpu.memory_space<vmem>>, vector<8x128xf32>
      tpu.vector_store %arg18[%c0_239, %c0_240], %856 {strides = array<i32>} : memref<8x128xf32, #tpu.memory_space<vmem>>, vector<8x128xf32>,
      %cst_241 = arith.constant 0.000000e+00 : f32
      %858 = vector.broadcast %cst_241 : f32 to vector<1x1xf32>
      %c0_242 = arith.constant 0 : index
      %c0_243 = arith.constant 0 : index
      %859 = vector.load %arg16[%c0_242, %c0_243] : memref<1x1xf32, #tpu.memory_space<vmem>>, vector<1x1xf32>
      tpu.vector_store %arg16[%c0_242, %c0_243], %858 {strides = array<i32>} : memref<1x1xf32, #tpu.memory_space<vmem>>, vector<1x1xf32>,
    } else {
    }
    %c0 = arith.constant 0 : index
    %c0_1 = arith.constant 0 : index
    %3 = vector.load %arg4[%c0, %c0_1] : memref<4x132xf32, #tpu.memory_space<vmem>>, vector<4x132xf32>
    %c0_2 = arith.constant 0 : index
    %c0_3 = arith.constant 0 : index
    %4 = vector.load %arg5[%c0_2, %c0_3] : memref<1x132xf32, #tpu.memory_space<vmem>>, vector<1x132xf32>
    %c0_4 = arith.constant 0 : index
    %c0_5 = arith.constant 0 : index
    %5 = vector.load %arg6[%c0_4, %c0_5] : memref<128x516xf32, #tpu.memory_space<vmem>>, vector<128x516xf32>
    %c0_6 = arith.constant 0 : index
    %c0_7 = arith.constant 0 : index
    %6 = vector.load %arg7[%c0_6, %c0_7] : memref<1x4xf32, #tpu.memory_space<vmem>>, vector<1x4xf32>
    %c0_8 = arith.constant 0 : index
    %c0_9 = arith.constant 0 : index
    %7 = vector.load %arg8[%c0_8, %c0_9] : memref<4x4xf32, #tpu.memory_space<vmem>>, vector<4x4xf32>
    %c0_10 = arith.constant 0 : index
    %c0_11 = arith.constant 0 : index
    %8 = vector.load %arg9[%c0_10, %c0_11] : memref<1x4xf32, #tpu.memory_space<vmem>>, vector<1x4xf32>
    %c0_12 = arith.constant 0 : index
    %c0_13 = arith.constant 0 : index
    %9 = vector.load %arg10[%c0_12, %c0_13] : memref<4x4xf32, #tpu.memory_space<vmem>>, vector<4x4xf32>
    %c0_14 = arith.constant 0 : index
    %c0_15 = arith.constant 0 : index
    %10 = vector.load %arg11[%c0_14, %c0_15] : memref<1x4xf32, #tpu.memory_space<vmem>>, vector<1x4xf32>
    %c0_16 = arith.constant 0 : index
    %c0_17 = arith.constant 0 : index
    %11 = vector.load %arg12[%c0_16, %c0_17] : memref<4x516xf32, #tpu.memory_space<vmem>>, vector<4x516xf32>
    %c0_18 = arith.constant 0 : index
    %c0_19 = arith.constant 0 : index
    %12 = vector.load %arg13[%c0_18, %c0_19] : memref<4x512xf32, #tpu.memory_space<vmem>>, vector<4x512xf32>
    %c0_20 = arith.constant 0 : index
    %c0_21 = arith.constant 0 : index
    %13 = vector.load %arg14[%c0_20, %c0_21] : memref<1x512xf32, #tpu.memory_space<vmem>>, vector<1x512xf32>
    %c0_22 = arith.constant 0 : index
    %c0_23 = arith.constant 0 : index
    %14 = vector.load %arg17[%c0_22, %c0_23] : memref<8x128xf32, #tpu.memory_space<vmem>>, vector<8x128xf32>
    %c0_24 = arith.constant 0 : index
    %c0_25 = arith.constant 0 : index
    %15 = vector.load %arg18[%c0_24, %c0_25] : memref<8x128xf32, #tpu.memory_space<vmem>>, vector<8x128xf32>
    %cst = arith.constant 0.000000e+00 : f32
    %c0_i32_26 = arith.constant 0 : i32
    %16 = arith.index_cast %c0_i32_26 : i32 to index
    %c0_27 = arith.constant 0 : index
    %c0_28 = arith.constant 0 : index
    %17 = vector.load %arg1[%16, %c0_27, %c0_28] : memref<8x8x4xf32, #tpu.memory_space<vmem>>, vector<1x8x4xf32>
    %18 = vector.shape_cast %17 : vector<1x8x4xf32> to vector<8x4xf32>
    %19 = arith.index_cast %c0_i32_26 : i32 to index
    %c0_29 = arith.constant 0 : index
    %c0_30 = arith.constant 0 : index
    %20 = vector.load %arg2[%19, %c0_29, %c0_30] : memref<8x8x4xf32, #tpu.memory_space<vmem>>, vector<1x8x4xf32>
    %21 = vector.shape_cast %20 : vector<1x8x4xf32> to vector<8x4xf32>
    %22 = arith.index_cast %c0_i32_26 : i32 to index
    %c0_31 = arith.constant 0 : index
    %c0_32 = arith.constant 0 : index
    %23 = vector.load %arg3[%22, %c0_31, %c0_32] : memref<8x8x4xf32, #tpu.memory_space<vmem>>, vector<1x8x4xf32>
    %24 = vector.shape_cast %23 : vector<1x8x4xf32> to vector<8x4xf32>
    %cst_33 = arith.constant dense<0.000000e+00> : vector<8x132xf32>
    %25 = tpu.matmul %24, %3, %cst_33 {dimension_numbers = #tpu.dot_dimension_numbers<[1], [0], [0], [1], [0, 0, 1, 1], [], []>} : vector<8x4xf32>, vector<4x132xf32>, vector<8x132xf32> -> vector<8x132xf32>
    %26 = vector.broadcast %4 : vector<1x132xf32> to vector<8x132xf32>
    %27 = arith.addf %25, %26 : vector<8x132xf32>
    %cst_34 = arith.constant 0.000000e+00 : f32
    %28 = vector.broadcast %cst_34 : f32 to vector<8x132xf32>
    %29 = arith.maximumf %27, %28 : vector<8x132xf32>
    %cst_35 = arith.constant 0.000000e+00 : f32
    %30 = vector.broadcast %cst_35 : f32 to vector<8x132xf32>
    %31 = arith.subf %30, %29 : vector<8x132xf32>
    %32 = math.exp %31 : vector<8x132xf32>
    %33 = vector.extract_strided_slice %32 {offsets = [0, 0], sizes = [8, 128], strides = [1, 1]} : vector<8x132xf32> to vector<8x128xf32>
    %34 = vector.extract_strided_slice %32 {offsets = [0, 128], sizes = [8, 4], strides = [1, 1]} : vector<8x132xf32> to vector<8x4xf32>
    %35 = arith.mulf %14, %33 : vector<8x128xf32>
    %cst_36 = arith.constant dense<0.000000e+00> : vector<8x516xf32>
    %36 = tpu.matmul %35, %5, %cst_36 {dimension_numbers = #tpu.dot_dimension_numbers<[1], [0], [0], [1], [0, 0, 1, 1], [], []>} : vector<8x128xf32>, vector<128x516xf32>, vector<8x516xf32> -> vector<8x516xf32>
    %37 = vector.extract_strided_slice %36 {offsets = [0, 512], sizes = [8, 4], strides = [1, 1]} : vector<8x516xf32> to vector<8x4xf32>
    %38 = vector.broadcast %6 : vector<1x4xf32> to vector<8x4xf32>
    %39 = arith.addf %37, %38 : vector<8x4xf32>
    %40 = arith.mulf %21, %18 : vector<8x4xf32>
    %cst_37 = arith.constant 1.000000e+00 : f32
    %41 = vector.broadcast %cst_37 : f32 to vector<8x4xf32>
    %42 = arith.subf %41, %21 : vector<8x4xf32>
    %43 = arith.mulf %42, %39 : vector<8x4xf32>
    %44 = arith.addf %40, %43 : vector<8x4xf32>
    %cst_38 = arith.constant dense<0.000000e+00> : vector<8x4xf32>
    %45 = tpu.matmul %44, %7, %cst_38 {dimension_numbers = #tpu.dot_dimension_numbers<[1], [0], [0], [1], [0, 0, 1, 1], [], []>} : vector<8x4xf32>, vector<4x4xf32>, vector<8x4xf32> -> vector<8x4xf32>
    %46 = vector.broadcast %8 : vector<1x4xf32> to vector<8x4xf32>
    %47 = arith.addf %45, %46 : vector<8x4xf32>
    %cst_39 = arith.constant dense<0.000000e+00> : vector<8x516xf32>
    %48 = tpu.matmul %21, %11, %cst_39 {dimension_numbers = #tpu.dot_dimension_numbers<[1], [0], [0], [1], [0, 0, 1, 1], [], []>} : vector<8x4xf32>, vector<4x516xf32>, vector<8x516xf32> -> vector<8x516xf32>
    %cst_40 = arith.constant dense<0.000000e+00> : vector<8x4xf32>
    %49 = tpu.matmul %34, %9, %cst_40 {dimension_numbers = #tpu.dot_dimension_numbers<[1], [0], [0], [1], [0, 0, 1, 1], [], []>} : vector<8x4xf32>, vector<4x4xf32>, vector<8x4xf32> -> vector<8x4xf32>
    %50 = vector.extract_strided_slice %48 {offsets = [0, 512], sizes = [8, 4], strides = [1, 1]} : vector<8x516xf32> to vector<8x4xf32>
    %51 = arith.addf %49, %50 : vector<8x4xf32>
    %52 = vector.broadcast %10 : vector<1x4xf32> to vector<8x4xf32>
    %53 = arith.addf %51, %52 : vector<8x4xf32>
    %54 = arith.mulf %53, %47 : vector<8x4xf32>
    %cst_41 = arith.constant 1.000000e+00 : f32
    %55 = vector.broadcast %cst_41 : f32 to vector<8x4xf32>
    %56 = arith.subf %55, %53 : vector<8x4xf32>
    %57 = arith.mulf %56, %39 : vector<8x4xf32>
    %58 = arith.addf %54, %57 : vector<8x4xf32>
    %59 = arith.subf %18, %39 : vector<8x4xf32>
    %60 = math.absf %59 : vector<8x4xf32>
    %61 = arith.subf %18, %47 : vector<8x4xf32>
    %62 = math.absf %61 : vector<8x4xf32>
    %63 = arith.addf %60, %62 : vector<8x4xf32>
    %64 = arith.subf %18, %58 : vector<8x4xf32>
    %65 = math.absf %64 : vector<8x4xf32>
    %66 = arith.addf %63, %65 : vector<8x4xf32>
    %67 = arith.mulf %66, %21 : vector<8x4xf32>
    %68 = vector.shape_cast %67 : vector<8x4xf32> to vector<1x8x4xf32>
    %cst_42 = arith.constant dense<0.000000e+00> : vector<1xf32>
    %69 = vector.multi_reduction <add>, %68, %cst_42 [1, 2] : vector<1x8x4xf32> to vector<1xf32>
    %70 = vector.shape_cast %69 : vector<1xf32> to vector<1x1x1xf32>
    %71 = vector.extract %70[0, 0, 0] : f32 from vector<1x1x1xf32>
    %72 = vector.shape_cast %21 : vector<8x4xf32> to vector<1x8x4xf32>
    %cst_43 = arith.constant dense<0.000000e+00> : vector<1xf32>
    %73 = vector.multi_reduction <add>, %72, %cst_43 [1, 2] : vector<1x8x4xf32> to vector<1xf32>
    %74 = vector.shape_cast %73 : vector<1xf32> to vector<1x1x1xf32>
    %75 = vector.extract %74[0, 0, 0] : f32 from vector<1x1x1xf32>
    %cst_44 = arith.constant 9.99999974E-6 : f32
    %76 = arith.addf %75, %cst_44 : f32
    %77 = arith.divf %71, %76 : f32
    %78 = arith.addf %cst, %77 : f32
    %79 = arith.mulf %21, %18 : vector<8x4xf32>
    %cst_45 = arith.constant 1.000000e+00 : f32
    %80 = vector.broadcast %cst_45 : f32 to vector<8x4xf32>
    %81 = arith.subf %80, %21 : vector<8x4xf32>
    %82 = arith.mulf %81, %58 : vector<8x4xf32>
    %83 = arith.addf %79, %82 : vector<8x4xf32>
    %84 = arith.index_cast %c0_i32_26 : i32 to index
    %c0_46 = arith.constant 0 : index
    %c0_47 = arith.constant 0 : index
    %85 = vector.load %arg15[%84, %c0_46, %c0_47] : memref<8x8x4xf32, #tpu.memory_space<vmem>>, vector<1x8x4xf32>
    %86 = vector.shape_cast %85 : vector<1x8x4xf32> to vector<8x4xf32>
    %87 = vector.shape_cast %83 : vector<8x4xf32> to vector<1x8x4xf32>
    tpu.vector_store %arg15[%84, %c0_46, %c0_47], %87 {strides = array<i32>} : memref<8x8x4xf32, #tpu.memory_space<vmem>>, vector<1x8x4xf32>,
    %cst_48 = arith.constant dense<0.000000e+00> : vector<8x512xf32>
    %88 = tpu.matmul %83, %12, %cst_48 {dimension_numbers = #tpu.dot_dimension_numbers<[1], [0], [0], [1], [0, 0, 1, 1], [], []>} : vector<8x4xf32>, vector<4x512xf32>, vector<8x512xf32> -> vector<8x512xf32>
    %89 = vector.extract_strided_slice %48 {offsets = [0, 0], sizes = [8, 512], strides = [1, 1]} : vector<8x516xf32> to vector<8x512xf32>
    %90 = arith.addf %88, %89 : vector<8x512xf32>
    %91 = vector.extract_strided_slice %36 {offsets = [0, 0], sizes = [8, 512], strides = [1, 1]} : vector<8x516xf32> to vector<8x512xf32>
    %92 = arith.addf %90, %91 : vector<8x512xf32>
    %93 = vector.broadcast %13 : vector<1x512xf32> to vector<8x512xf32>
    %94 = arith.addf %92, %93 : vector<8x512xf32>
    %95 = vector.extract_strided_slice %94 {offsets = [0, 0], sizes = [8, 128], strides = [1, 1]} : vector<8x512xf32> to vector<8x128xf32>
    %96 = arith.negf %95 : vector<8x128xf32>
    %97 = math.exp %96 : vector<8x128xf32>
    %cst_49 = arith.constant 1.000000e+00 : f32
    %98 = vector.broadcast %cst_49 : f32 to vector<8x128xf32>
    %99 = arith.addf %98, %97 : vector<8x128xf32>
    %100 = arith.divf %98, %99 : vector<8x128xf32>
    %101 = vector.extract_strided_slice %94 {offsets = [0, 128], sizes = [8, 128], strides = [1, 1]} : vector<8x512xf32> to vector<8x128xf32>
    %102 = arith.negf %101 : vector<8x128xf32>
    %103 = math.exp %102 : vector<8x128xf32>
    %cst_50 = arith.constant 1.000000e+00 : f32
    %104 = vector.broadcast %cst_50 : f32 to vector<8x128xf32>
    %105 = arith.addf %104, %103 : vector<8x128xf32>
    %106 = arith.divf %104, %105 : vector<8x128xf32>
    %107 = vector.extract_strided_slice %94 {offsets = [0, 256], sizes = [8, 128], strides = [1, 1]} : vector<8x512xf32> to vector<8x128xf32>
    %108 = math.tanh %107 : vector<8x128xf32>
    %109 = vector.extract_strided_slice %94 {offsets = [0, 384], sizes = [8, 128], strides = [1, 1]} : vector<8x512xf32> to vector<8x128xf32>
    %110 = arith.negf %109 : vector<8x128xf32>
    %111 = math.exp %110 : vector<8x128xf32>
    %cst_51 = arith.constant 1.000000e+00 : f32
    %112 = vector.broadcast %cst_51 : f32 to vector<8x128xf32>
    %113 = arith.addf %112, %111 : vector<8x128xf32>
    %114 = arith.divf %112, %113 : vector<8x128xf32>
    %115 = arith.mulf %106, %15 : vector<8x128xf32>
    %116 = arith.mulf %100, %108 : vector<8x128xf32>
    %117 = arith.addf %115, %116 : vector<8x128xf32>
    %118 = math.tanh %117 : vector<8x128xf32>
    %119 = arith.mulf %114, %118 : vector<8x128xf32>
    %c1_i32 = arith.constant 1 : i32
    %120 = arith.index_cast %c1_i32 : i32 to index
    %c0_52 = arith.constant 0 : index
    %c0_53 = arith.constant 0 : index
    %121 = vector.load %arg1[%120, %c0_52, %c0_53] : memref<8x8x4xf32, #tpu.memory_space<vmem>>, vector<1x8x4xf32>
    %122 = vector.shape_cast %121 : vector<1x8x4xf32> to vector<8x4xf32>
    %123 = arith.index_cast %c1_i32 : i32 to index
    %c0_54 = arith.constant 0 : index
    %c0_55 = arith.constant 0 : index
    %124 = vector.load %arg2[%123, %c0_54, %c0_55] : memref<8x8x4xf32, #tpu.memory_space<vmem>>, vector<1x8x4xf32>
    %125 = vector.shape_cast %124 : vector<1x8x4xf32> to vector<8x4xf32>
    %126 = arith.index_cast %c1_i32 : i32 to index
    %c0_56 = arith.constant 0 : index
    %c0_57 = arith.constant 0 : index
    %127 = vector.load %arg3[%126, %c0_56, %c0_57] : memref<8x8x4xf32, #tpu.memory_space<vmem>>, vector<1x8x4xf32>
    %128 = vector.shape_cast %127 : vector<1x8x4xf32> to vector<8x4xf32>
    %cst_58 = arith.constant dense<0.000000e+00> : vector<8x132xf32>
    %129 = tpu.matmul %128, %3, %cst_58 {dimension_numbers = #tpu.dot_dimension_numbers<[1], [0], [0], [1], [0, 0, 1, 1], [], []>} : vector<8x4xf32>, vector<4x132xf32>, vector<8x132xf32> -> vector<8x132xf32>
    %130 = vector.broadcast %4 : vector<1x132xf32> to vector<8x132xf32>
    %131 = arith.addf %129, %130 : vector<8x132xf32>
    %cst_59 = arith.constant 0.000000e+00 : f32
    %132 = vector.broadcast %cst_59 : f32 to vector<8x132xf32>
    %133 = arith.maximumf %131, %132 : vector<8x132xf32>
    %cst_60 = arith.constant 0.000000e+00 : f32
    %134 = vector.broadcast %cst_60 : f32 to vector<8x132xf32>
    %135 = arith.subf %134, %133 : vector<8x132xf32>
    %136 = math.exp %135 : vector<8x132xf32>
    %137 = vector.extract_strided_slice %136 {offsets = [0, 0], sizes = [8, 128], strides = [1, 1]} : vector<8x132xf32> to vector<8x128xf32>
    %138 = vector.extract_strided_slice %136 {offsets = [0, 128], sizes = [8, 4], strides = [1, 1]} : vector<8x132xf32> to vector<8x4xf32>
    %139 = arith.mulf %119, %137 : vector<8x128xf32>
    %cst_61 = arith.constant dense<0.000000e+00> : vector<8x516xf32>
    %140 = tpu.matmul %139, %5, %cst_61 {dimension_numbers = #tpu.dot_dimension_numbers<[1], [0], [0], [1], [0, 0, 1, 1], [], []>} : vector<8x128xf32>, vector<128x516xf32>, vector<8x516xf32> -> vector<8x516xf32>
    %141 = vector.extract_strided_slice %140 {offsets = [0, 512], sizes = [8, 4], strides = [1, 1]} : vector<8x516xf32> to vector<8x4xf32>
    %142 = vector.broadcast %6 : vector<1x4xf32> to vector<8x4xf32>
    %143 = arith.addf %141, %142 : vector<8x4xf32>
    %144 = arith.mulf %125, %122 : vector<8x4xf32>
    %cst_62 = arith.constant 1.000000e+00 : f32
    %145 = vector.broadcast %cst_62 : f32 to vector<8x4xf32>
    %146 = arith.subf %145, %125 : vector<8x4xf32>
    %147 = arith.mulf %146, %143 : vector<8x4xf32>
    %148 = arith.addf %144, %147 : vector<8x4xf32>
    %cst_63 = arith.constant dense<0.000000e+00> : vector<8x4xf32>
    %149 = tpu.matmul %148, %7, %cst_63 {dimension_numbers = #tpu.dot_dimension_numbers<[1], [0], [0], [1], [0, 0, 1, 1], [], []>} : vector<8x4xf32>, vector<4x4xf32>, vector<8x4xf32> -> vector<8x4xf32>
    %150 = vector.broadcast %8 : vector<1x4xf32> to vector<8x4xf32>
    %151 = arith.addf %149, %150 : vector<8x4xf32>
    %cst_64 = arith.constant dense<0.000000e+00> : vector<8x516xf32>
    %152 = tpu.matmul %125, %11, %cst_64 {dimension_numbers = #tpu.dot_dimension_numbers<[1], [0], [0], [1], [0, 0, 1, 1], [], []>} : vector<8x4xf32>, vector<4x516xf32>, vector<8x516xf32> -> vector<8x516xf32>
    %cst_65 = arith.constant dense<0.000000e+00> : vector<8x4xf32>
    %153 = tpu.matmul %138, %9, %cst_65 {dimension_numbers = #tpu.dot_dimension_numbers<[1], [0], [0], [1], [0, 0, 1, 1], [], []>} : vector<8x4xf32>, vector<4x4xf32>, vector<8x4xf32> -> vector<8x4xf32>
    %154 = vector.extract_strided_slice %152 {offsets = [0, 512], sizes = [8, 4], strides = [1, 1]} : vector<8x516xf32> to vector<8x4xf32>
    %155 = arith.addf %153, %154 : vector<8x4xf32>
    %156 = vector.broadcast %10 : vector<1x4xf32> to vector<8x4xf32>
    %157 = arith.addf %155, %156 : vector<8x4xf32>
    %158 = arith.mulf %157, %151 : vector<8x4xf32>
    %cst_66 = arith.constant 1.000000e+00 : f32
    %159 = vector.broadcast %cst_66 : f32 to vector<8x4xf32>
    %160 = arith.subf %159, %157 : vector<8x4xf32>
    %161 = arith.mulf %160, %143 : vector<8x4xf32>
    %162 = arith.addf %158, %161 : vector<8x4xf32>
    %163 = arith.subf %122, %143 : vector<8x4xf32>
    %164 = math.absf %163 : vector<8x4xf32>
    %165 = arith.subf %122, %151 : vector<8x4xf32>
    %166 = math.absf %165 : vector<8x4xf32>
    %167 = arith.addf %164, %166 : vector<8x4xf32>
    %168 = arith.subf %122, %162 : vector<8x4xf32>
    %169 = math.absf %168 : vector<8x4xf32>
    %170 = arith.addf %167, %169 : vector<8x4xf32>
    %171 = arith.mulf %170, %125 : vector<8x4xf32>
    %172 = vector.shape_cast %171 : vector<8x4xf32> to vector<1x8x4xf32>
    %cst_67 = arith.constant dense<0.000000e+00> : vector<1xf32>
    %173 = vector.multi_reduction <add>, %172, %cst_67 [1, 2] : vector<1x8x4xf32> to vector<1xf32>
    %174 = vector.shape_cast %173 : vector<1xf32> to vector<1x1x1xf32>
    %175 = vector.extract %174[0, 0, 0] : f32 from vector<1x1x1xf32>
    %176 = vector.shape_cast %125 : vector<8x4xf32> to vector<1x8x4xf32>
    %cst_68 = arith.constant dense<0.000000e+00> : vector<1xf32>
    %177 = vector.multi_reduction <add>, %176, %cst_68 [1, 2] : vector<1x8x4xf32> to vector<1xf32>
    %178 = vector.shape_cast %177 : vector<1xf32> to vector<1x1x1xf32>
    %179 = vector.extract %178[0, 0, 0] : f32 from vector<1x1x1xf32>
    %cst_69 = arith.constant 9.99999974E-6 : f32
    %180 = arith.addf %179, %cst_69 : f32
    %181 = arith.divf %175, %180 : f32
    %182 = arith.addf %78, %181 : f32
    %183 = arith.mulf %125, %122 : vector<8x4xf32>
    %cst_70 = arith.constant 1.000000e+00 : f32
    %184 = vector.broadcast %cst_70 : f32 to vector<8x4xf32>
    %185 = arith.subf %184, %125 : vector<8x4xf32>
    %186 = arith.mulf %185, %162 : vector<8x4xf32>
    %187 = arith.addf %183, %186 : vector<8x4xf32>
    %188 = arith.index_cast %c1_i32 : i32 to index
    %c0_71 = arith.constant 0 : index
    %c0_72 = arith.constant 0 : index
    %189 = vector.load %arg15[%188, %c0_71, %c0_72] : memref<8x8x4xf32, #tpu.memory_space<vmem>>, vector<1x8x4xf32>
    %190 = vector.shape_cast %189 : vector<1x8x4xf32> to vector<8x4xf32>
    %191 = vector.shape_cast %187 : vector<8x4xf32> to vector<1x8x4xf32>
    tpu.vector_store %arg15[%188, %c0_71, %c0_72], %191 {strides = array<i32>} : memref<8x8x4xf32, #tpu.memory_space<vmem>>, vector<1x8x4xf32>,
    %cst_73 = arith.constant dense<0.000000e+00> : vector<8x512xf32>
    %192 = tpu.matmul %187, %12, %cst_73 {dimension_numbers = #tpu.dot_dimension_numbers<[1], [0], [0], [1], [0, 0, 1, 1], [], []>} : vector<8x4xf32>, vector<4x512xf32>, vector<8x512xf32> -> vector<8x512xf32>
    %193 = vector.extract_strided_slice %152 {offsets = [0, 0], sizes = [8, 512], strides = [1, 1]} : vector<8x516xf32> to vector<8x512xf32>
    %194 = arith.addf %192, %193 : vector<8x512xf32>
    %195 = vector.extract_strided_slice %140 {offsets = [0, 0], sizes = [8, 512], strides = [1, 1]} : vector<8x516xf32> to vector<8x512xf32>
    %196 = arith.addf %194, %195 : vector<8x512xf32>
    %197 = vector.broadcast %13 : vector<1x512xf32> to vector<8x512xf32>
    %198 = arith.addf %196, %197 : vector<8x512xf32>
    %199 = vector.extract_strided_slice %198 {offsets = [0, 0], sizes = [8, 128], strides = [1, 1]} : vector<8x512xf32> to vector<8x128xf32>
    %200 = arith.negf %199 : vector<8x128xf32>
    %201 = math.exp %200 : vector<8x128xf32>
    %cst_74 = arith.constant 1.000000e+00 : f32
    %202 = vector.broadcast %cst_74 : f32 to vector<8x128xf32>
    %203 = arith.addf %202, %201 : vector<8x128xf32>
    %204 = arith.divf %202, %203 : vector<8x128xf32>
    %205 = vector.extract_strided_slice %198 {offsets = [0, 128], sizes = [8, 128], strides = [1, 1]} : vector<8x512xf32> to vector<8x128xf32>
    %206 = arith.negf %205 : vector<8x128xf32>
    %207 = math.exp %206 : vector<8x128xf32>
    %cst_75 = arith.constant 1.000000e+00 : f32
    %208 = vector.broadcast %cst_75 : f32 to vector<8x128xf32>
    %209 = arith.addf %208, %207 : vector<8x128xf32>
    %210 = arith.divf %208, %209 : vector<8x128xf32>
    %211 = vector.extract_strided_slice %198 {offsets = [0, 256], sizes = [8, 128], strides = [1, 1]} : vector<8x512xf32> to vector<8x128xf32>
    %212 = math.tanh %211 : vector<8x128xf32>
    %213 = vector.extract_strided_slice %198 {offsets = [0, 384], sizes = [8, 128], strides = [1, 1]} : vector<8x512xf32> to vector<8x128xf32>
    %214 = arith.negf %213 : vector<8x128xf32>
    %215 = math.exp %214 : vector<8x128xf32>
    %cst_76 = arith.constant 1.000000e+00 : f32
    %216 = vector.broadcast %cst_76 : f32 to vector<8x128xf32>
    %217 = arith.addf %216, %215 : vector<8x128xf32>
    %218 = arith.divf %216, %217 : vector<8x128xf32>
    %219 = arith.mulf %210, %117 : vector<8x128xf32>
    %220 = arith.mulf %204, %212 : vector<8x128xf32>
    %221 = arith.addf %219, %220 : vector<8x128xf32>
    %222 = math.tanh %221 : vector<8x128xf32>
    %223 = arith.mulf %218, %222 : vector<8x128xf32>
    %c2_i32 = arith.constant 2 : i32
    %224 = arith.index_cast %c2_i32 : i32 to index
    %c0_77 = arith.constant 0 : index
    %c0_78 = arith.constant 0 : index
    %225 = vector.load %arg1[%224, %c0_77, %c0_78] : memref<8x8x4xf32, #tpu.memory_space<vmem>>, vector<1x8x4xf32>
    %226 = vector.shape_cast %225 : vector<1x8x4xf32> to vector<8x4xf32>
    %227 = arith.index_cast %c2_i32 : i32 to index
    %c0_79 = arith.constant 0 : index
    %c0_80 = arith.constant 0 : index
    %228 = vector.load %arg2[%227, %c0_79, %c0_80] : memref<8x8x4xf32, #tpu.memory_space<vmem>>, vector<1x8x4xf32>
    %229 = vector.shape_cast %228 : vector<1x8x4xf32> to vector<8x4xf32>
    %230 = arith.index_cast %c2_i32 : i32 to index
    %c0_81 = arith.constant 0 : index
    %c0_82 = arith.constant 0 : index
    %231 = vector.load %arg3[%230, %c0_81, %c0_82] : memref<8x8x4xf32, #tpu.memory_space<vmem>>, vector<1x8x4xf32>
    %232 = vector.shape_cast %231 : vector<1x8x4xf32> to vector<8x4xf32>
    %cst_83 = arith.constant dense<0.000000e+00> : vector<8x132xf32>
    %233 = tpu.matmul %232, %3, %cst_83 {dimension_numbers = #tpu.dot_dimension_numbers<[1], [0], [0], [1], [0, 0, 1, 1], [], []>} : vector<8x4xf32>, vector<4x132xf32>, vector<8x132xf32> -> vector<8x132xf32>
    %234 = vector.broadcast %4 : vector<1x132xf32> to vector<8x132xf32>
    %235 = arith.addf %233, %234 : vector<8x132xf32>
    %cst_84 = arith.constant 0.000000e+00 : f32
    %236 = vector.broadcast %cst_84 : f32 to vector<8x132xf32>
    %237 = arith.maximumf %235, %236 : vector<8x132xf32>
    %cst_85 = arith.constant 0.000000e+00 : f32
    %238 = vector.broadcast %cst_85 : f32 to vector<8x132xf32>
    %239 = arith.subf %238, %237 : vector<8x132xf32>
    %240 = math.exp %239 : vector<8x132xf32>
    %241 = vector.extract_strided_slice %240 {offsets = [0, 0], sizes = [8, 128], strides = [1, 1]} : vector<8x132xf32> to vector<8x128xf32>
    %242 = vector.extract_strided_slice %240 {offsets = [0, 128], sizes = [8, 4], strides = [1, 1]} : vector<8x132xf32> to vector<8x4xf32>
    %243 = arith.mulf %223, %241 : vector<8x128xf32>
    %cst_86 = arith.constant dense<0.000000e+00> : vector<8x516xf32>
    %244 = tpu.matmul %243, %5, %cst_86 {dimension_numbers = #tpu.dot_dimension_numbers<[1], [0], [0], [1], [0, 0, 1, 1], [], []>} : vector<8x128xf32>, vector<128x516xf32>, vector<8x516xf32> -> vector<8x516xf32>
    %245 = vector.extract_strided_slice %244 {offsets = [0, 512], sizes = [8, 4], strides = [1, 1]} : vector<8x516xf32> to vector<8x4xf32>
    %246 = vector.broadcast %6 : vector<1x4xf32> to vector<8x4xf32>
    %247 = arith.addf %245, %246 : vector<8x4xf32>
    %248 = arith.mulf %229, %226 : vector<8x4xf32>
    %cst_87 = arith.constant 1.000000e+00 : f32
    %249 = vector.broadcast %cst_87 : f32 to vector<8x4xf32>
    %250 = arith.subf %249, %229 : vector<8x4xf32>
    %251 = arith.mulf %250, %247 : vector<8x4xf32>
    %252 = arith.addf %248, %251 : vector<8x4xf32>
    %cst_88 = arith.constant dense<0.000000e+00> : vector<8x4xf32>
    %253 = tpu.matmul %252, %7, %cst_88 {dimension_numbers = #tpu.dot_dimension_numbers<[1], [0], [0], [1], [0, 0, 1, 1], [], []>} : vector<8x4xf32>, vector<4x4xf32>, vector<8x4xf32> -> vector<8x4xf32>
    %254 = vector.broadcast %8 : vector<1x4xf32> to vector<8x4xf32>
    %255 = arith.addf %253, %254 : vector<8x4xf32>
    %cst_89 = arith.constant dense<0.000000e+00> : vector<8x516xf32>
    %256 = tpu.matmul %229, %11, %cst_89 {dimension_numbers = #tpu.dot_dimension_numbers<[1], [0], [0], [1], [0, 0, 1, 1], [], []>} : vector<8x4xf32>, vector<4x516xf32>, vector<8x516xf32> -> vector<8x516xf32>
    %cst_90 = arith.constant dense<0.000000e+00> : vector<8x4xf32>
    %257 = tpu.matmul %242, %9, %cst_90 {dimension_numbers = #tpu.dot_dimension_numbers<[1], [0], [0], [1], [0, 0, 1, 1], [], []>} : vector<8x4xf32>, vector<4x4xf32>, vector<8x4xf32> -> vector<8x4xf32>
    %258 = vector.extract_strided_slice %256 {offsets = [0, 512], sizes = [8, 4], strides = [1, 1]} : vector<8x516xf32> to vector<8x4xf32>
    %259 = arith.addf %257, %258 : vector<8x4xf32>
    %260 = vector.broadcast %10 : vector<1x4xf32> to vector<8x4xf32>
    %261 = arith.addf %259, %260 : vector<8x4xf32>
    %262 = arith.mulf %261, %255 : vector<8x4xf32>
    %cst_91 = arith.constant 1.000000e+00 : f32
    %263 = vector.broadcast %cst_91 : f32 to vector<8x4xf32>
    %264 = arith.subf %263, %261 : vector<8x4xf32>
    %265 = arith.mulf %264, %247 : vector<8x4xf32>
    %266 = arith.addf %262, %265 : vector<8x4xf32>
    %267 = arith.subf %226, %247 : vector<8x4xf32>
    %268 = math.absf %267 : vector<8x4xf32>
    %269 = arith.subf %226, %255 : vector<8x4xf32>
    %270 = math.absf %269 : vector<8x4xf32>
    %271 = arith.addf %268, %270 : vector<8x4xf32>
    %272 = arith.subf %226, %266 : vector<8x4xf32>
    %273 = math.absf %272 : vector<8x4xf32>
    %274 = arith.addf %271, %273 : vector<8x4xf32>
    %275 = arith.mulf %274, %229 : vector<8x4xf32>
    %276 = vector.shape_cast %275 : vector<8x4xf32> to vector<1x8x4xf32>
    %cst_92 = arith.constant dense<0.000000e+00> : vector<1xf32>
    %277 = vector.multi_reduction <add>, %276, %cst_92 [1, 2] : vector<1x8x4xf32> to vector<1xf32>
    %278 = vector.shape_cast %277 : vector<1xf32> to vector<1x1x1xf32>
    %279 = vector.extract %278[0, 0, 0] : f32 from vector<1x1x1xf32>
    %280 = vector.shape_cast %229 : vector<8x4xf32> to vector<1x8x4xf32>
    %cst_93 = arith.constant dense<0.000000e+00> : vector<1xf32>
    %281 = vector.multi_reduction <add>, %280, %cst_93 [1, 2] : vector<1x8x4xf32> to vector<1xf32>
    %282 = vector.shape_cast %281 : vector<1xf32> to vector<1x1x1xf32>
    %283 = vector.extract %282[0, 0, 0] : f32 from vector<1x1x1xf32>
    %cst_94 = arith.constant 9.99999974E-6 : f32
    %284 = arith.addf %283, %cst_94 : f32
    %285 = arith.divf %279, %284 : f32
    %286 = arith.addf %182, %285 : f32
    %287 = arith.mulf %229, %226 : vector<8x4xf32>
    %cst_95 = arith.constant 1.000000e+00 : f32
    %288 = vector.broadcast %cst_95 : f32 to vector<8x4xf32>
    %289 = arith.subf %288, %229 : vector<8x4xf32>
    %290 = arith.mulf %289, %266 : vector<8x4xf32>
    %291 = arith.addf %287, %290 : vector<8x4xf32>
    %292 = arith.index_cast %c2_i32 : i32 to index
    %c0_96 = arith.constant 0 : index
    %c0_97 = arith.constant 0 : index
    %293 = vector.load %arg15[%292, %c0_96, %c0_97] : memref<8x8x4xf32, #tpu.memory_space<vmem>>, vector<1x8x4xf32>
    %294 = vector.shape_cast %293 : vector<1x8x4xf32> to vector<8x4xf32>
    %295 = vector.shape_cast %291 : vector<8x4xf32> to vector<1x8x4xf32>
    tpu.vector_store %arg15[%292, %c0_96, %c0_97], %295 {strides = array<i32>} : memref<8x8x4xf32, #tpu.memory_space<vmem>>, vector<1x8x4xf32>,
    %cst_98 = arith.constant dense<0.000000e+00> : vector<8x512xf32>
    %296 = tpu.matmul %291, %12, %cst_98 {dimension_numbers = #tpu.dot_dimension_numbers<[1], [0], [0], [1], [0, 0, 1, 1], [], []>} : vector<8x4xf32>, vector<4x512xf32>, vector<8x512xf32> -> vector<8x512xf32>
    %297 = vector.extract_strided_slice %256 {offsets = [0, 0], sizes = [8, 512], strides = [1, 1]} : vector<8x516xf32> to vector<8x512xf32>
    %298 = arith.addf %296, %297 : vector<8x512xf32>
    %299 = vector.extract_strided_slice %244 {offsets = [0, 0], sizes = [8, 512], strides = [1, 1]} : vector<8x516xf32> to vector<8x512xf32>
    %300 = arith.addf %298, %299 : vector<8x512xf32>
    %301 = vector.broadcast %13 : vector<1x512xf32> to vector<8x512xf32>
    %302 = arith.addf %300, %301 : vector<8x512xf32>
    %303 = vector.extract_strided_slice %302 {offsets = [0, 0], sizes = [8, 128], strides = [1, 1]} : vector<8x512xf32> to vector<8x128xf32>
    %304 = arith.negf %303 : vector<8x128xf32>
    %305 = math.exp %304 : vector<8x128xf32>
    %cst_99 = arith.constant 1.000000e+00 : f32
    %306 = vector.broadcast %cst_99 : f32 to vector<8x128xf32>
    %307 = arith.addf %306, %305 : vector<8x128xf32>
    %308 = arith.divf %306, %307 : vector<8x128xf32>
    %309 = vector.extract_strided_slice %302 {offsets = [0, 128], sizes = [8, 128], strides = [1, 1]} : vector<8x512xf32> to vector<8x128xf32>
    %310 = arith.negf %309 : vector<8x128xf32>
    %311 = math.exp %310 : vector<8x128xf32>
    %cst_100 = arith.constant 1.000000e+00 : f32
    %312 = vector.broadcast %cst_100 : f32 to vector<8x128xf32>
    %313 = arith.addf %312, %311 : vector<8x128xf32>
    %314 = arith.divf %312, %313 : vector<8x128xf32>
    %315 = vector.extract_strided_slice %302 {offsets = [0, 256], sizes = [8, 128], strides = [1, 1]} : vector<8x512xf32> to vector<8x128xf32>
    %316 = math.tanh %315 : vector<8x128xf32>
    %317 = vector.extract_strided_slice %302 {offsets = [0, 384], sizes = [8, 128], strides = [1, 1]} : vector<8x512xf32> to vector<8x128xf32>
    %318 = arith.negf %317 : vector<8x128xf32>
    %319 = math.exp %318 : vector<8x128xf32>
    %cst_101 = arith.constant 1.000000e+00 : f32
    %320 = vector.broadcast %cst_101 : f32 to vector<8x128xf32>
    %321 = arith.addf %320, %319 : vector<8x128xf32>
    %322 = arith.divf %320, %321 : vector<8x128xf32>
    %323 = arith.mulf %314, %221 : vector<8x128xf32>
    %324 = arith.mulf %308, %316 : vector<8x128xf32>
    %325 = arith.addf %323, %324 : vector<8x128xf32>
    %326 = math.tanh %325 : vector<8x128xf32>
    %327 = arith.mulf %322, %326 : vector<8x128xf32>
    %c3_i32 = arith.constant 3 : i32
    %328 = arith.index_cast %c3_i32 : i32 to index
    %c0_102 = arith.constant 0 : index
    %c0_103 = arith.constant 0 : index
    %329 = vector.load %arg1[%328, %c0_102, %c0_103] : memref<8x8x4xf32, #tpu.memory_space<vmem>>, vector<1x8x4xf32>
    %330 = vector.shape_cast %329 : vector<1x8x4xf32> to vector<8x4xf32>
    %331 = arith.index_cast %c3_i32 : i32 to index
    %c0_104 = arith.constant 0 : index
    %c0_105 = arith.constant 0 : index
    %332 = vector.load %arg2[%331, %c0_104, %c0_105] : memref<8x8x4xf32, #tpu.memory_space<vmem>>, vector<1x8x4xf32>
    %333 = vector.shape_cast %332 : vector<1x8x4xf32> to vector<8x4xf32>
    %334 = arith.index_cast %c3_i32 : i32 to index
    %c0_106 = arith.constant 0 : index
    %c0_107 = arith.constant 0 : index
    %335 = vector.load %arg3[%334, %c0_106, %c0_107] : memref<8x8x4xf32, #tpu.memory_space<vmem>>, vector<1x8x4xf32>
    %336 = vector.shape_cast %335 : vector<1x8x4xf32> to vector<8x4xf32>
    %cst_108 = arith.constant dense<0.000000e+00> : vector<8x132xf32>
    %337 = tpu.matmul %336, %3, %cst_108 {dimension_numbers = #tpu.dot_dimension_numbers<[1], [0], [0], [1], [0, 0, 1, 1], [], []>} : vector<8x4xf32>, vector<4x132xf32>, vector<8x132xf32> -> vector<8x132xf32>
    %338 = vector.broadcast %4 : vector<1x132xf32> to vector<8x132xf32>
    %339 = arith.addf %337, %338 : vector<8x132xf32>
    %cst_109 = arith.constant 0.000000e+00 : f32
    %340 = vector.broadcast %cst_109 : f32 to vector<8x132xf32>
    %341 = arith.maximumf %339, %340 : vector<8x132xf32>
    %cst_110 = arith.constant 0.000000e+00 : f32
    %342 = vector.broadcast %cst_110 : f32 to vector<8x132xf32>
    %343 = arith.subf %342, %341 : vector<8x132xf32>
    %344 = math.exp %343 : vector<8x132xf32>
    %345 = vector.extract_strided_slice %344 {offsets = [0, 0], sizes = [8, 128], strides = [1, 1]} : vector<8x132xf32> to vector<8x128xf32>
    %346 = vector.extract_strided_slice %344 {offsets = [0, 128], sizes = [8, 4], strides = [1, 1]} : vector<8x132xf32> to vector<8x4xf32>
    %347 = arith.mulf %327, %345 : vector<8x128xf32>
    %cst_111 = arith.constant dense<0.000000e+00> : vector<8x516xf32>
    %348 = tpu.matmul %347, %5, %cst_111 {dimension_numbers = #tpu.dot_dimension_numbers<[1], [0], [0], [1], [0, 0, 1, 1], [], []>} : vector<8x128xf32>, vector<128x516xf32>, vector<8x516xf32> -> vector<8x516xf32>
    %349 = vector.extract_strided_slice %348 {offsets = [0, 512], sizes = [8, 4], strides = [1, 1]} : vector<8x516xf32> to vector<8x4xf32>
    %350 = vector.broadcast %6 : vector<1x4xf32> to vector<8x4xf32>
    %351 = arith.addf %349, %350 : vector<8x4xf32>
    %352 = arith.mulf %333, %330 : vector<8x4xf32>
    %cst_112 = arith.constant 1.000000e+00 : f32
    %353 = vector.broadcast %cst_112 : f32 to vector<8x4xf32>
    %354 = arith.subf %353, %333 : vector<8x4xf32>
    %355 = arith.mulf %354, %351 : vector<8x4xf32>
    %356 = arith.addf %352, %355 : vector<8x4xf32>
    %cst_113 = arith.constant dense<0.000000e+00> : vector<8x4xf32>
    %357 = tpu.matmul %356, %7, %cst_113 {dimension_numbers = #tpu.dot_dimension_numbers<[1], [0], [0], [1], [0, 0, 1, 1], [], []>} : vector<8x4xf32>, vector<4x4xf32>, vector<8x4xf32> -> vector<8x4xf32>
    %358 = vector.broadcast %8 : vector<1x4xf32> to vector<8x4xf32>
    %359 = arith.addf %357, %358 : vector<8x4xf32>
    %cst_114 = arith.constant dense<0.000000e+00> : vector<8x516xf32>
    %360 = tpu.matmul %333, %11, %cst_114 {dimension_numbers = #tpu.dot_dimension_numbers<[1], [0], [0], [1], [0, 0, 1, 1], [], []>} : vector<8x4xf32>, vector<4x516xf32>, vector<8x516xf32> -> vector<8x516xf32>
    %cst_115 = arith.constant dense<0.000000e+00> : vector<8x4xf32>
    %361 = tpu.matmul %346, %9, %cst_115 {dimension_numbers = #tpu.dot_dimension_numbers<[1], [0], [0], [1], [0, 0, 1, 1], [], []>} : vector<8x4xf32>, vector<4x4xf32>, vector<8x4xf32> -> vector<8x4xf32>
    %362 = vector.extract_strided_slice %360 {offsets = [0, 512], sizes = [8, 4], strides = [1, 1]} : vector<8x516xf32> to vector<8x4xf32>
    %363 = arith.addf %361, %362 : vector<8x4xf32>
    %364 = vector.broadcast %10 : vector<1x4xf32> to vector<8x4xf32>
    %365 = arith.addf %363, %364 : vector<8x4xf32>
    %366 = arith.mulf %365, %359 : vector<8x4xf32>
    %cst_116 = arith.constant 1.000000e+00 : f32
    %367 = vector.broadcast %cst_116 : f32 to vector<8x4xf32>
    %368 = arith.subf %367, %365 : vector<8x4xf32>
    %369 = arith.mulf %368, %351 : vector<8x4xf32>
    %370 = arith.addf %366, %369 : vector<8x4xf32>
    %371 = arith.subf %330, %351 : vector<8x4xf32>
    %372 = math.absf %371 : vector<8x4xf32>
    %373 = arith.subf %330, %359 : vector<8x4xf32>
    %374 = math.absf %373 : vector<8x4xf32>
    %375 = arith.addf %372, %374 : vector<8x4xf32>
    %376 = arith.subf %330, %370 : vector<8x4xf32>
    %377 = math.absf %376 : vector<8x4xf32>
    %378 = arith.addf %375, %377 : vector<8x4xf32>
    %379 = arith.mulf %378, %333 : vector<8x4xf32>
    %380 = vector.shape_cast %379 : vector<8x4xf32> to vector<1x8x4xf32>
    %cst_117 = arith.constant dense<0.000000e+00> : vector<1xf32>
    %381 = vector.multi_reduction <add>, %380, %cst_117 [1, 2] : vector<1x8x4xf32> to vector<1xf32>
    %382 = vector.shape_cast %381 : vector<1xf32> to vector<1x1x1xf32>
    %383 = vector.extract %382[0, 0, 0] : f32 from vector<1x1x1xf32>
    %384 = vector.shape_cast %333 : vector<8x4xf32> to vector<1x8x4xf32>
    %cst_118 = arith.constant dense<0.000000e+00> : vector<1xf32>
    %385 = vector.multi_reduction <add>, %384, %cst_118 [1, 2] : vector<1x8x4xf32> to vector<1xf32>
    %386 = vector.shape_cast %385 : vector<1xf32> to vector<1x1x1xf32>
    %387 = vector.extract %386[0, 0, 0] : f32 from vector<1x1x1xf32>
    %cst_119 = arith.constant 9.99999974E-6 : f32
    %388 = arith.addf %387, %cst_119 : f32
    %389 = arith.divf %383, %388 : f32
    %390 = arith.addf %286, %389 : f32
    %391 = arith.mulf %333, %330 : vector<8x4xf32>
    %cst_120 = arith.constant 1.000000e+00 : f32
    %392 = vector.broadcast %cst_120 : f32 to vector<8x4xf32>
    %393 = arith.subf %392, %333 : vector<8x4xf32>
    %394 = arith.mulf %393, %370 : vector<8x4xf32>
    %395 = arith.addf %391, %394 : vector<8x4xf32>
    %396 = arith.index_cast %c3_i32 : i32 to index
    %c0_121 = arith.constant 0 : index
    %c0_122 = arith.constant 0 : index
    %397 = vector.load %arg15[%396, %c0_121, %c0_122] : memref<8x8x4xf32, #tpu.memory_space<vmem>>, vector<1x8x4xf32>
    %398 = vector.shape_cast %397 : vector<1x8x4xf32> to vector<8x4xf32>
    %399 = vector.shape_cast %395 : vector<8x4xf32> to vector<1x8x4xf32>
    tpu.vector_store %arg15[%396, %c0_121, %c0_122], %399 {strides = array<i32>} : memref<8x8x4xf32, #tpu.memory_space<vmem>>, vector<1x8x4xf32>,
    %cst_123 = arith.constant dense<0.000000e+00> : vector<8x512xf32>
    %400 = tpu.matmul %395, %12, %cst_123 {dimension_numbers = #tpu.dot_dimension_numbers<[1], [0], [0], [1], [0, 0, 1, 1], [], []>} : vector<8x4xf32>, vector<4x512xf32>, vector<8x512xf32> -> vector<8x512xf32>
    %401 = vector.extract_strided_slice %360 {offsets = [0, 0], sizes = [8, 512], strides = [1, 1]} : vector<8x516xf32> to vector<8x512xf32>
    %402 = arith.addf %400, %401 : vector<8x512xf32>
    %403 = vector.extract_strided_slice %348 {offsets = [0, 0], sizes = [8, 512], strides = [1, 1]} : vector<8x516xf32> to vector<8x512xf32>
    %404 = arith.addf %402, %403 : vector<8x512xf32>
    %405 = vector.broadcast %13 : vector<1x512xf32> to vector<8x512xf32>
    %406 = arith.addf %404, %405 : vector<8x512xf32>
    %407 = vector.extract_strided_slice %406 {offsets = [0, 0], sizes = [8, 128], strides = [1, 1]} : vector<8x512xf32> to vector<8x128xf32>
    %408 = arith.negf %407 : vector<8x128xf32>
    %409 = math.exp %408 : vector<8x128xf32>
    %cst_124 = arith.constant 1.000000e+00 : f32
    %410 = vector.broadcast %cst_124 : f32 to vector<8x128xf32>
    %411 = arith.addf %410, %409 : vector<8x128xf32>
    %412 = arith.divf %410, %411 : vector<8x128xf32>
    %413 = vector.extract_strided_slice %406 {offsets = [0, 128], sizes = [8, 128], strides = [1, 1]} : vector<8x512xf32> to vector<8x128xf32>
    %414 = arith.negf %413 : vector<8x128xf32>
    %415 = math.exp %414 : vector<8x128xf32>
    %cst_125 = arith.constant 1.000000e+00 : f32
    %416 = vector.broadcast %cst_125 : f32 to vector<8x128xf32>
    %417 = arith.addf %416, %415 : vector<8x128xf32>
    %418 = arith.divf %416, %417 : vector<8x128xf32>
    %419 = vector.extract_strided_slice %406 {offsets = [0, 256], sizes = [8, 128], strides = [1, 1]} : vector<8x512xf32> to vector<8x128xf32>
    %420 = math.tanh %419 : vector<8x128xf32>
    %421 = vector.extract_strided_slice %406 {offsets = [0, 384], sizes = [8, 128], strides = [1, 1]} : vector<8x512xf32> to vector<8x128xf32>
    %422 = arith.negf %421 : vector<8x128xf32>
    %423 = math.exp %422 : vector<8x128xf32>
    %cst_126 = arith.constant 1.000000e+00 : f32
    %424 = vector.broadcast %cst_126 : f32 to vector<8x128xf32>
    %425 = arith.addf %424, %423 : vector<8x128xf32>
    %426 = arith.divf %424, %425 : vector<8x128xf32>
    %427 = arith.mulf %418, %325 : vector<8x128xf32>
    %428 = arith.mulf %412, %420 : vector<8x128xf32>
    %429 = arith.addf %427, %428 : vector<8x128xf32>
    %430 = math.tanh %429 : vector<8x128xf32>
    %431 = arith.mulf %426, %430 : vector<8x128xf32>
    %c4_i32 = arith.constant 4 : i32
    %432 = arith.index_cast %c4_i32 : i32 to index
    %c0_127 = arith.constant 0 : index
    %c0_128 = arith.constant 0 : index
    %433 = vector.load %arg1[%432, %c0_127, %c0_128] : memref<8x8x4xf32, #tpu.memory_space<vmem>>, vector<1x8x4xf32>
    %434 = vector.shape_cast %433 : vector<1x8x4xf32> to vector<8x4xf32>
    %435 = arith.index_cast %c4_i32 : i32 to index
    %c0_129 = arith.constant 0 : index
    %c0_130 = arith.constant 0 : index
    %436 = vector.load %arg2[%435, %c0_129, %c0_130] : memref<8x8x4xf32, #tpu.memory_space<vmem>>, vector<1x8x4xf32>
    %437 = vector.shape_cast %436 : vector<1x8x4xf32> to vector<8x4xf32>
    %438 = arith.index_cast %c4_i32 : i32 to index
    %c0_131 = arith.constant 0 : index
    %c0_132 = arith.constant 0 : index
    %439 = vector.load %arg3[%438, %c0_131, %c0_132] : memref<8x8x4xf32, #tpu.memory_space<vmem>>, vector<1x8x4xf32>
    %440 = vector.shape_cast %439 : vector<1x8x4xf32> to vector<8x4xf32>
    %cst_133 = arith.constant dense<0.000000e+00> : vector<8x132xf32>
    %441 = tpu.matmul %440, %3, %cst_133 {dimension_numbers = #tpu.dot_dimension_numbers<[1], [0], [0], [1], [0, 0, 1, 1], [], []>} : vector<8x4xf32>, vector<4x132xf32>, vector<8x132xf32> -> vector<8x132xf32>
    %442 = vector.broadcast %4 : vector<1x132xf32> to vector<8x132xf32>
    %443 = arith.addf %441, %442 : vector<8x132xf32>
    %cst_134 = arith.constant 0.000000e+00 : f32
    %444 = vector.broadcast %cst_134 : f32 to vector<8x132xf32>
    %445 = arith.maximumf %443, %444 : vector<8x132xf32>
    %cst_135 = arith.constant 0.000000e+00 : f32
    %446 = vector.broadcast %cst_135 : f32 to vector<8x132xf32>
    %447 = arith.subf %446, %445 : vector<8x132xf32>
    %448 = math.exp %447 : vector<8x132xf32>
    %449 = vector.extract_strided_slice %448 {offsets = [0, 0], sizes = [8, 128], strides = [1, 1]} : vector<8x132xf32> to vector<8x128xf32>
    %450 = vector.extract_strided_slice %448 {offsets = [0, 128], sizes = [8, 4], strides = [1, 1]} : vector<8x132xf32> to vector<8x4xf32>
    %451 = arith.mulf %431, %449 : vector<8x128xf32>
    %cst_136 = arith.constant dense<0.000000e+00> : vector<8x516xf32>
    %452 = tpu.matmul %451, %5, %cst_136 {dimension_numbers = #tpu.dot_dimension_numbers<[1], [0], [0], [1], [0, 0, 1, 1], [], []>} : vector<8x128xf32>, vector<128x516xf32>, vector<8x516xf32> -> vector<8x516xf32>
    %453 = vector.extract_strided_slice %452 {offsets = [0, 512], sizes = [8, 4], strides = [1, 1]} : vector<8x516xf32> to vector<8x4xf32>
    %454 = vector.broadcast %6 : vector<1x4xf32> to vector<8x4xf32>
    %455 = arith.addf %453, %454 : vector<8x4xf32>
    %456 = arith.mulf %437, %434 : vector<8x4xf32>
    %cst_137 = arith.constant 1.000000e+00 : f32
    %457 = vector.broadcast %cst_137 : f32 to vector<8x4xf32>
    %458 = arith.subf %457, %437 : vector<8x4xf32>
    %459 = arith.mulf %458, %455 : vector<8x4xf32>
    %460 = arith.addf %456, %459 : vector<8x4xf32>
    %cst_138 = arith.constant dense<0.000000e+00> : vector<8x4xf32>
    %461 = tpu.matmul %460, %7, %cst_138 {dimension_numbers = #tpu.dot_dimension_numbers<[1], [0], [0], [1], [0, 0, 1, 1], [], []>} : vector<8x4xf32>, vector<4x4xf32>, vector<8x4xf32> -> vector<8x4xf32>
    %462 = vector.broadcast %8 : vector<1x4xf32> to vector<8x4xf32>
    %463 = arith.addf %461, %462 : vector<8x4xf32>
    %cst_139 = arith.constant dense<0.000000e+00> : vector<8x516xf32>
    %464 = tpu.matmul %437, %11, %cst_139 {dimension_numbers = #tpu.dot_dimension_numbers<[1], [0], [0], [1], [0, 0, 1, 1], [], []>} : vector<8x4xf32>, vector<4x516xf32>, vector<8x516xf32> -> vector<8x516xf32>
    %cst_140 = arith.constant dense<0.000000e+00> : vector<8x4xf32>
    %465 = tpu.matmul %450, %9, %cst_140 {dimension_numbers = #tpu.dot_dimension_numbers<[1], [0], [0], [1], [0, 0, 1, 1], [], []>} : vector<8x4xf32>, vector<4x4xf32>, vector<8x4xf32> -> vector<8x4xf32>
    %466 = vector.extract_strided_slice %464 {offsets = [0, 512], sizes = [8, 4], strides = [1, 1]} : vector<8x516xf32> to vector<8x4xf32>
    %467 = arith.addf %465, %466 : vector<8x4xf32>
    %468 = vector.broadcast %10 : vector<1x4xf32> to vector<8x4xf32>
    %469 = arith.addf %467, %468 : vector<8x4xf32>
    %470 = arith.mulf %469, %463 : vector<8x4xf32>
    %cst_141 = arith.constant 1.000000e+00 : f32
    %471 = vector.broadcast %cst_141 : f32 to vector<8x4xf32>
    %472 = arith.subf %471, %469 : vector<8x4xf32>
    %473 = arith.mulf %472, %455 : vector<8x4xf32>
    %474 = arith.addf %470, %473 : vector<8x4xf32>
    %475 = arith.subf %434, %455 : vector<8x4xf32>
    %476 = math.absf %475 : vector<8x4xf32>
    %477 = arith.subf %434, %463 : vector<8x4xf32>
    %478 = math.absf %477 : vector<8x4xf32>
    %479 = arith.addf %476, %478 : vector<8x4xf32>
    %480 = arith.subf %434, %474 : vector<8x4xf32>
    %481 = math.absf %480 : vector<8x4xf32>
    %482 = arith.addf %479, %481 : vector<8x4xf32>
    %483 = arith.mulf %482, %437 : vector<8x4xf32>
    %484 = vector.shape_cast %483 : vector<8x4xf32> to vector<1x8x4xf32>
    %cst_142 = arith.constant dense<0.000000e+00> : vector<1xf32>
    %485 = vector.multi_reduction <add>, %484, %cst_142 [1, 2] : vector<1x8x4xf32> to vector<1xf32>
    %486 = vector.shape_cast %485 : vector<1xf32> to vector<1x1x1xf32>
    %487 = vector.extract %486[0, 0, 0] : f32 from vector<1x1x1xf32>
    %488 = vector.shape_cast %437 : vector<8x4xf32> to vector<1x8x4xf32>
    %cst_143 = arith.constant dense<0.000000e+00> : vector<1xf32>
    %489 = vector.multi_reduction <add>, %488, %cst_143 [1, 2] : vector<1x8x4xf32> to vector<1xf32>
    %490 = vector.shape_cast %489 : vector<1xf32> to vector<1x1x1xf32>
    %491 = vector.extract %490[0, 0, 0] : f32 from vector<1x1x1xf32>
    %cst_144 = arith.constant 9.99999974E-6 : f32
    %492 = arith.addf %491, %cst_144 : f32
    %493 = arith.divf %487, %492 : f32
    %494 = arith.addf %390, %493 : f32
    %495 = arith.mulf %437, %434 : vector<8x4xf32>
    %cst_145 = arith.constant 1.000000e+00 : f32
    %496 = vector.broadcast %cst_145 : f32 to vector<8x4xf32>
    %497 = arith.subf %496, %437 : vector<8x4xf32>
    %498 = arith.mulf %497, %474 : vector<8x4xf32>
    %499 = arith.addf %495, %498 : vector<8x4xf32>
    %500 = arith.index_cast %c4_i32 : i32 to index
    %c0_146 = arith.constant 0 : index
    %c0_147 = arith.constant 0 : index
    %501 = vector.load %arg15[%500, %c0_146, %c0_147] : memref<8x8x4xf32, #tpu.memory_space<vmem>>, vector<1x8x4xf32>
    %502 = vector.shape_cast %501 : vector<1x8x4xf32> to vector<8x4xf32>
    %503 = vector.shape_cast %499 : vector<8x4xf32> to vector<1x8x4xf32>
    tpu.vector_store %arg15[%500, %c0_146, %c0_147], %503 {strides = array<i32>} : memref<8x8x4xf32, #tpu.memory_space<vmem>>, vector<1x8x4xf32>,
    %cst_148 = arith.constant dense<0.000000e+00> : vector<8x512xf32>
    %504 = tpu.matmul %499, %12, %cst_148 {dimension_numbers = #tpu.dot_dimension_numbers<[1], [0], [0], [1], [0, 0, 1, 1], [], []>} : vector<8x4xf32>, vector<4x512xf32>, vector<8x512xf32> -> vector<8x512xf32>
    %505 = vector.extract_strided_slice %464 {offsets = [0, 0], sizes = [8, 512], strides = [1, 1]} : vector<8x516xf32> to vector<8x512xf32>
    %506 = arith.addf %504, %505 : vector<8x512xf32>
    %507 = vector.extract_strided_slice %452 {offsets = [0, 0], sizes = [8, 512], strides = [1, 1]} : vector<8x516xf32> to vector<8x512xf32>
    %508 = arith.addf %506, %507 : vector<8x512xf32>
    %509 = vector.broadcast %13 : vector<1x512xf32> to vector<8x512xf32>
    %510 = arith.addf %508, %509 : vector<8x512xf32>
    %511 = vector.extract_strided_slice %510 {offsets = [0, 0], sizes = [8, 128], strides = [1, 1]} : vector<8x512xf32> to vector<8x128xf32>
    %512 = arith.negf %511 : vector<8x128xf32>
    %513 = math.exp %512 : vector<8x128xf32>
    %cst_149 = arith.constant 1.000000e+00 : f32
    %514 = vector.broadcast %cst_149 : f32 to vector<8x128xf32>
    %515 = arith.addf %514, %513 : vector<8x128xf32>
    %516 = arith.divf %514, %515 : vector<8x128xf32>
    %517 = vector.extract_strided_slice %510 {offsets = [0, 128], sizes = [8, 128], strides = [1, 1]} : vector<8x512xf32> to vector<8x128xf32>
    %518 = arith.negf %517 : vector<8x128xf32>
    %519 = math.exp %518 : vector<8x128xf32>
    %cst_150 = arith.constant 1.000000e+00 : f32
    %520 = vector.broadcast %cst_150 : f32 to vector<8x128xf32>
    %521 = arith.addf %520, %519 : vector<8x128xf32>
    %522 = arith.divf %520, %521 : vector<8x128xf32>
    %523 = vector.extract_strided_slice %510 {offsets = [0, 256], sizes = [8, 128], strides = [1, 1]} : vector<8x512xf32> to vector<8x128xf32>
    %524 = math.tanh %523 : vector<8x128xf32>
    %525 = vector.extract_strided_slice %510 {offsets = [0, 384], sizes = [8, 128], strides = [1, 1]} : vector<8x512xf32> to vector<8x128xf32>
    %526 = arith.negf %525 : vector<8x128xf32>
    %527 = math.exp %526 : vector<8x128xf32>
    %cst_151 = arith.constant 1.000000e+00 : f32
    %528 = vector.broadcast %cst_151 : f32 to vector<8x128xf32>
    %529 = arith.addf %528, %527 : vector<8x128xf32>
    %530 = arith.divf %528, %529 : vector<8x128xf32>
    %531 = arith.mulf %522, %429 : vector<8x128xf32>
    %532 = arith.mulf %516, %524 : vector<8x128xf32>
    %533 = arith.addf %531, %532 : vector<8x128xf32>
    %534 = math.tanh %533 : vector<8x128xf32>
    %535 = arith.mulf %530, %534 : vector<8x128xf32>
    %c5_i32 = arith.constant 5 : i32
    %536 = arith.index_cast %c5_i32 : i32 to index
    %c0_152 = arith.constant 0 : index
    %c0_153 = arith.constant 0 : index
    %537 = vector.load %arg1[%536, %c0_152, %c0_153] : memref<8x8x4xf32, #tpu.memory_space<vmem>>, vector<1x8x4xf32>
    %538 = vector.shape_cast %537 : vector<1x8x4xf32> to vector<8x4xf32>
    %539 = arith.index_cast %c5_i32 : i32 to index
    %c0_154 = arith.constant 0 : index
    %c0_155 = arith.constant 0 : index
    %540 = vector.load %arg2[%539, %c0_154, %c0_155] : memref<8x8x4xf32, #tpu.memory_space<vmem>>, vector<1x8x4xf32>
    %541 = vector.shape_cast %540 : vector<1x8x4xf32> to vector<8x4xf32>
    %542 = arith.index_cast %c5_i32 : i32 to index
    %c0_156 = arith.constant 0 : index
    %c0_157 = arith.constant 0 : index
    %543 = vector.load %arg3[%542, %c0_156, %c0_157] : memref<8x8x4xf32, #tpu.memory_space<vmem>>, vector<1x8x4xf32>
    %544 = vector.shape_cast %543 : vector<1x8x4xf32> to vector<8x4xf32>
    %cst_158 = arith.constant dense<0.000000e+00> : vector<8x132xf32>
    %545 = tpu.matmul %544, %3, %cst_158 {dimension_numbers = #tpu.dot_dimension_numbers<[1], [0], [0], [1], [0, 0, 1, 1], [], []>} : vector<8x4xf32>, vector<4x132xf32>, vector<8x132xf32> -> vector<8x132xf32>
    %546 = vector.broadcast %4 : vector<1x132xf32> to vector<8x132xf32>
    %547 = arith.addf %545, %546 : vector<8x132xf32>
    %cst_159 = arith.constant 0.000000e+00 : f32
    %548 = vector.broadcast %cst_159 : f32 to vector<8x132xf32>
    %549 = arith.maximumf %547, %548 : vector<8x132xf32>
    %cst_160 = arith.constant 0.000000e+00 : f32
    %550 = vector.broadcast %cst_160 : f32 to vector<8x132xf32>
    %551 = arith.subf %550, %549 : vector<8x132xf32>
    %552 = math.exp %551 : vector<8x132xf32>
    %553 = vector.extract_strided_slice %552 {offsets = [0, 0], sizes = [8, 128], strides = [1, 1]} : vector<8x132xf32> to vector<8x128xf32>
    %554 = vector.extract_strided_slice %552 {offsets = [0, 128], sizes = [8, 4], strides = [1, 1]} : vector<8x132xf32> to vector<8x4xf32>
    %555 = arith.mulf %535, %553 : vector<8x128xf32>
    %cst_161 = arith.constant dense<0.000000e+00> : vector<8x516xf32>
    %556 = tpu.matmul %555, %5, %cst_161 {dimension_numbers = #tpu.dot_dimension_numbers<[1], [0], [0], [1], [0, 0, 1, 1], [], []>} : vector<8x128xf32>, vector<128x516xf32>, vector<8x516xf32> -> vector<8x516xf32>
    %557 = vector.extract_strided_slice %556 {offsets = [0, 512], sizes = [8, 4], strides = [1, 1]} : vector<8x516xf32> to vector<8x4xf32>
    %558 = vector.broadcast %6 : vector<1x4xf32> to vector<8x4xf32>
    %559 = arith.addf %557, %558 : vector<8x4xf32>
    %560 = arith.mulf %541, %538 : vector<8x4xf32>
    %cst_162 = arith.constant 1.000000e+00 : f32
    %561 = vector.broadcast %cst_162 : f32 to vector<8x4xf32>
    %562 = arith.subf %561, %541 : vector<8x4xf32>
    %563 = arith.mulf %562, %559 : vector<8x4xf32>
    %564 = arith.addf %560, %563 : vector<8x4xf32>
    %cst_163 = arith.constant dense<0.000000e+00> : vector<8x4xf32>
    %565 = tpu.matmul %564, %7, %cst_163 {dimension_numbers = #tpu.dot_dimension_numbers<[1], [0], [0], [1], [0, 0, 1, 1], [], []>} : vector<8x4xf32>, vector<4x4xf32>, vector<8x4xf32> -> vector<8x4xf32>
    %566 = vector.broadcast %8 : vector<1x4xf32> to vector<8x4xf32>
    %567 = arith.addf %565, %566 : vector<8x4xf32>
    %cst_164 = arith.constant dense<0.000000e+00> : vector<8x516xf32>
    %568 = tpu.matmul %541, %11, %cst_164 {dimension_numbers = #tpu.dot_dimension_numbers<[1], [0], [0], [1], [0, 0, 1, 1], [], []>} : vector<8x4xf32>, vector<4x516xf32>, vector<8x516xf32> -> vector<8x516xf32>
    %cst_165 = arith.constant dense<0.000000e+00> : vector<8x4xf32>
    %569 = tpu.matmul %554, %9, %cst_165 {dimension_numbers = #tpu.dot_dimension_numbers<[1], [0], [0], [1], [0, 0, 1, 1], [], []>} : vector<8x4xf32>, vector<4x4xf32>, vector<8x4xf32> -> vector<8x4xf32>
    %570 = vector.extract_strided_slice %568 {offsets = [0, 512], sizes = [8, 4], strides = [1, 1]} : vector<8x516xf32> to vector<8x4xf32>
    %571 = arith.addf %569, %570 : vector<8x4xf32>
    %572 = vector.broadcast %10 : vector<1x4xf32> to vector<8x4xf32>
    %573 = arith.addf %571, %572 : vector<8x4xf32>
    %574 = arith.mulf %573, %567 : vector<8x4xf32>
    %cst_166 = arith.constant 1.000000e+00 : f32
    %575 = vector.broadcast %cst_166 : f32 to vector<8x4xf32>
    %576 = arith.subf %575, %573 : vector<8x4xf32>
    %577 = arith.mulf %576, %559 : vector<8x4xf32>
    %578 = arith.addf %574, %577 : vector<8x4xf32>
    %579 = arith.subf %538, %559 : vector<8x4xf32>
    %580 = math.absf %579 : vector<8x4xf32>
    %581 = arith.subf %538, %567 : vector<8x4xf32>
    %582 = math.absf %581 : vector<8x4xf32>
    %583 = arith.addf %580, %582 : vector<8x4xf32>
    %584 = arith.subf %538, %578 : vector<8x4xf32>
    %585 = math.absf %584 : vector<8x4xf32>
    %586 = arith.addf %583, %585 : vector<8x4xf32>
    %587 = arith.mulf %586, %541 : vector<8x4xf32>
    %588 = vector.shape_cast %587 : vector<8x4xf32> to vector<1x8x4xf32>
    %cst_167 = arith.constant dense<0.000000e+00> : vector<1xf32>
    %589 = vector.multi_reduction <add>, %588, %cst_167 [1, 2] : vector<1x8x4xf32> to vector<1xf32>
    %590 = vector.shape_cast %589 : vector<1xf32> to vector<1x1x1xf32>
    %591 = vector.extract %590[0, 0, 0] : f32 from vector<1x1x1xf32>
    %592 = vector.shape_cast %541 : vector<8x4xf32> to vector<1x8x4xf32>
    %cst_168 = arith.constant dense<0.000000e+00> : vector<1xf32>
    %593 = vector.multi_reduction <add>, %592, %cst_168 [1, 2] : vector<1x8x4xf32> to vector<1xf32>
    %594 = vector.shape_cast %593 : vector<1xf32> to vector<1x1x1xf32>
    %595 = vector.extract %594[0, 0, 0] : f32 from vector<1x1x1xf32>
    %cst_169 = arith.constant 9.99999974E-6 : f32
    %596 = arith.addf %595, %cst_169 : f32
    %597 = arith.divf %591, %596 : f32
    %598 = arith.addf %494, %597 : f32
    %599 = arith.mulf %541, %538 : vector<8x4xf32>
    %cst_170 = arith.constant 1.000000e+00 : f32
    %600 = vector.broadcast %cst_170 : f32 to vector<8x4xf32>
    %601 = arith.subf %600, %541 : vector<8x4xf32>
    %602 = arith.mulf %601, %578 : vector<8x4xf32>
    %603 = arith.addf %599, %602 : vector<8x4xf32>
    %604 = arith.index_cast %c5_i32 : i32 to index
    %c0_171 = arith.constant 0 : index
    %c0_172 = arith.constant 0 : index
    %605 = vector.load %arg15[%604, %c0_171, %c0_172] : memref<8x8x4xf32, #tpu.memory_space<vmem>>, vector<1x8x4xf32>
    %606 = vector.shape_cast %605 : vector<1x8x4xf32> to vector<8x4xf32>
    %607 = vector.shape_cast %603 : vector<8x4xf32> to vector<1x8x4xf32>
    tpu.vector_store %arg15[%604, %c0_171, %c0_172], %607 {strides = array<i32>} : memref<8x8x4xf32, #tpu.memory_space<vmem>>, vector<1x8x4xf32>,
    %cst_173 = arith.constant dense<0.000000e+00> : vector<8x512xf32>
    %608 = tpu.matmul %603, %12, %cst_173 {dimension_numbers = #tpu.dot_dimension_numbers<[1], [0], [0], [1], [0, 0, 1, 1], [], []>} : vector<8x4xf32>, vector<4x512xf32>, vector<8x512xf32> -> vector<8x512xf32>
    %609 = vector.extract_strided_slice %568 {offsets = [0, 0], sizes = [8, 512], strides = [1, 1]} : vector<8x516xf32> to vector<8x512xf32>
    %610 = arith.addf %608, %609 : vector<8x512xf32>
    %611 = vector.extract_strided_slice %556 {offsets = [0, 0], sizes = [8, 512], strides = [1, 1]} : vector<8x516xf32> to vector<8x512xf32>
    %612 = arith.addf %610, %611 : vector<8x512xf32>
    %613 = vector.broadcast %13 : vector<1x512xf32> to vector<8x512xf32>
    %614 = arith.addf %612, %613 : vector<8x512xf32>
    %615 = vector.extract_strided_slice %614 {offsets = [0, 0], sizes = [8, 128], strides = [1, 1]} : vector<8x512xf32> to vector<8x128xf32>
    %616 = arith.negf %615 : vector<8x128xf32>
    %617 = math.exp %616 : vector<8x128xf32>
    %cst_174 = arith.constant 1.000000e+00 : f32
    %618 = vector.broadcast %cst_174 : f32 to vector<8x128xf32>
    %619 = arith.addf %618, %617 : vector<8x128xf32>
    %620 = arith.divf %618, %619 : vector<8x128xf32>
    %621 = vector.extract_strided_slice %614 {offsets = [0, 128], sizes = [8, 128], strides = [1, 1]} : vector<8x512xf32> to vector<8x128xf32>
    %622 = arith.negf %621 : vector<8x128xf32>
    %623 = math.exp %622 : vector<8x128xf32>
    %cst_175 = arith.constant 1.000000e+00 : f32
    %624 = vector.broadcast %cst_175 : f32 to vector<8x128xf32>
    %625 = arith.addf %624, %623 : vector<8x128xf32>
    %626 = arith.divf %624, %625 : vector<8x128xf32>
    %627 = vector.extract_strided_slice %614 {offsets = [0, 256], sizes = [8, 128], strides = [1, 1]} : vector<8x512xf32> to vector<8x128xf32>
    %628 = math.tanh %627 : vector<8x128xf32>
    %629 = vector.extract_strided_slice %614 {offsets = [0, 384], sizes = [8, 128], strides = [1, 1]} : vector<8x512xf32> to vector<8x128xf32>
    %630 = arith.negf %629 : vector<8x128xf32>
    %631 = math.exp %630 : vector<8x128xf32>
    %cst_176 = arith.constant 1.000000e+00 : f32
    %632 = vector.broadcast %cst_176 : f32 to vector<8x128xf32>
    %633 = arith.addf %632, %631 : vector<8x128xf32>
    %634 = arith.divf %632, %633 : vector<8x128xf32>
    %635 = arith.mulf %626, %533 : vector<8x128xf32>
    %636 = arith.mulf %620, %628 : vector<8x128xf32>
    %637 = arith.addf %635, %636 : vector<8x128xf32>
    %638 = math.tanh %637 : vector<8x128xf32>
    %639 = arith.mulf %634, %638 : vector<8x128xf32>
    %c6_i32 = arith.constant 6 : i32
    %640 = arith.index_cast %c6_i32 : i32 to index
    %c0_177 = arith.constant 0 : index
    %c0_178 = arith.constant 0 : index
    %641 = vector.load %arg1[%640, %c0_177, %c0_178] : memref<8x8x4xf32, #tpu.memory_space<vmem>>, vector<1x8x4xf32>
    %642 = vector.shape_cast %641 : vector<1x8x4xf32> to vector<8x4xf32>
    %643 = arith.index_cast %c6_i32 : i32 to index
    %c0_179 = arith.constant 0 : index
    %c0_180 = arith.constant 0 : index
    %644 = vector.load %arg2[%643, %c0_179, %c0_180] : memref<8x8x4xf32, #tpu.memory_space<vmem>>, vector<1x8x4xf32>
    %645 = vector.shape_cast %644 : vector<1x8x4xf32> to vector<8x4xf32>
    %646 = arith.index_cast %c6_i32 : i32 to index
    %c0_181 = arith.constant 0 : index
    %c0_182 = arith.constant 0 : index
    %647 = vector.load %arg3[%646, %c0_181, %c0_182] : memref<8x8x4xf32, #tpu.memory_space<vmem>>, vector<1x8x4xf32>
    %648 = vector.shape_cast %647 : vector<1x8x4xf32> to vector<8x4xf32>
    %cst_183 = arith.constant dense<0.000000e+00> : vector<8x132xf32>
    %649 = tpu.matmul %648, %3, %cst_183 {dimension_numbers = #tpu.dot_dimension_numbers<[1], [0], [0], [1], [0, 0, 1, 1], [], []>} : vector<8x4xf32>, vector<4x132xf32>, vector<8x132xf32> -> vector<8x132xf32>
    %650 = vector.broadcast %4 : vector<1x132xf32> to vector<8x132xf32>
    %651 = arith.addf %649, %650 : vector<8x132xf32>
    %cst_184 = arith.constant 0.000000e+00 : f32
    %652 = vector.broadcast %cst_184 : f32 to vector<8x132xf32>
    %653 = arith.maximumf %651, %652 : vector<8x132xf32>
    %cst_185 = arith.constant 0.000000e+00 : f32
    %654 = vector.broadcast %cst_185 : f32 to vector<8x132xf32>
    %655 = arith.subf %654, %653 : vector<8x132xf32>
    %656 = math.exp %655 : vector<8x132xf32>
    %657 = vector.extract_strided_slice %656 {offsets = [0, 0], sizes = [8, 128], strides = [1, 1]} : vector<8x132xf32> to vector<8x128xf32>
    %658 = vector.extract_strided_slice %656 {offsets = [0, 128], sizes = [8, 4], strides = [1, 1]} : vector<8x132xf32> to vector<8x4xf32>
    %659 = arith.mulf %639, %657 : vector<8x128xf32>
    %cst_186 = arith.constant dense<0.000000e+00> : vector<8x516xf32>
    %660 = tpu.matmul %659, %5, %cst_186 {dimension_numbers = #tpu.dot_dimension_numbers<[1], [0], [0], [1], [0, 0, 1, 1], [], []>} : vector<8x128xf32>, vector<128x516xf32>, vector<8x516xf32> -> vector<8x516xf32>
    %661 = vector.extract_strided_slice %660 {offsets = [0, 512], sizes = [8, 4], strides = [1, 1]} : vector<8x516xf32> to vector<8x4xf32>
    %662 = vector.broadcast %6 : vector<1x4xf32> to vector<8x4xf32>
    %663 = arith.addf %661, %662 : vector<8x4xf32>
    %664 = arith.mulf %645, %642 : vector<8x4xf32>
    %cst_187 = arith.constant 1.000000e+00 : f32
    %665 = vector.broadcast %cst_187 : f32 to vector<8x4xf32>
    %666 = arith.subf %665, %645 : vector<8x4xf32>
    %667 = arith.mulf %666, %663 : vector<8x4xf32>
    %668 = arith.addf %664, %667 : vector<8x4xf32>
    %cst_188 = arith.constant dense<0.000000e+00> : vector<8x4xf32>
    %669 = tpu.matmul %668, %7, %cst_188 {dimension_numbers = #tpu.dot_dimension_numbers<[1], [0], [0], [1], [0, 0, 1, 1], [], []>} : vector<8x4xf32>, vector<4x4xf32>, vector<8x4xf32> -> vector<8x4xf32>
    %670 = vector.broadcast %8 : vector<1x4xf32> to vector<8x4xf32>
    %671 = arith.addf %669, %670 : vector<8x4xf32>
    %cst_189 = arith.constant dense<0.000000e+00> : vector<8x516xf32>
    %672 = tpu.matmul %645, %11, %cst_189 {dimension_numbers = #tpu.dot_dimension_numbers<[1], [0], [0], [1], [0, 0, 1, 1], [], []>} : vector<8x4xf32>, vector<4x516xf32>, vector<8x516xf32> -> vector<8x516xf32>
    %cst_190 = arith.constant dense<0.000000e+00> : vector<8x4xf32>
    %673 = tpu.matmul %658, %9, %cst_190 {dimension_numbers = #tpu.dot_dimension_numbers<[1], [0], [0], [1], [0, 0, 1, 1], [], []>} : vector<8x4xf32>, vector<4x4xf32>, vector<8x4xf32> -> vector<8x4xf32>
    %674 = vector.extract_strided_slice %672 {offsets = [0, 512], sizes = [8, 4], strides = [1, 1]} : vector<8x516xf32> to vector<8x4xf32>
    %675 = arith.addf %673, %674 : vector<8x4xf32>
    %676 = vector.broadcast %10 : vector<1x4xf32> to vector<8x4xf32>
    %677 = arith.addf %675, %676 : vector<8x4xf32>
    %678 = arith.mulf %677, %671 : vector<8x4xf32>
    %cst_191 = arith.constant 1.000000e+00 : f32
    %679 = vector.broadcast %cst_191 : f32 to vector<8x4xf32>
    %680 = arith.subf %679, %677 : vector<8x4xf32>
    %681 = arith.mulf %680, %663 : vector<8x4xf32>
    %682 = arith.addf %678, %681 : vector<8x4xf32>
    %683 = arith.subf %642, %663 : vector<8x4xf32>
    %684 = math.absf %683 : vector<8x4xf32>
    %685 = arith.subf %642, %671 : vector<8x4xf32>
    %686 = math.absf %685 : vector<8x4xf32>
    %687 = arith.addf %684, %686 : vector<8x4xf32>
    %688 = arith.subf %642, %682 : vector<8x4xf32>
    %689 = math.absf %688 : vector<8x4xf32>
    %690 = arith.addf %687, %689 : vector<8x4xf32>
    %691 = arith.mulf %690, %645 : vector<8x4xf32>
    %692 = vector.shape_cast %691 : vector<8x4xf32> to vector<1x8x4xf32>
    %cst_192 = arith.constant dense<0.000000e+00> : vector<1xf32>
    %693 = vector.multi_reduction <add>, %692, %cst_192 [1, 2] : vector<1x8x4xf32> to vector<1xf32>
    %694 = vector.shape_cast %693 : vector<1xf32> to vector<1x1x1xf32>
    %695 = vector.extract %694[0, 0, 0] : f32 from vector<1x1x1xf32>
    %696 = vector.shape_cast %645 : vector<8x4xf32> to vector<1x8x4xf32>
    %cst_193 = arith.constant dense<0.000000e+00> : vector<1xf32>
    %697 = vector.multi_reduction <add>, %696, %cst_193 [1, 2] : vector<1x8x4xf32> to vector<1xf32>
    %698 = vector.shape_cast %697 : vector<1xf32> to vector<1x1x1xf32>
    %699 = vector.extract %698[0, 0, 0] : f32 from vector<1x1x1xf32>
    %cst_194 = arith.constant 9.99999974E-6 : f32
    %700 = arith.addf %699, %cst_194 : f32
    %701 = arith.divf %695, %700 : f32
    %702 = arith.addf %598, %701 : f32
    %703 = arith.mulf %645, %642 : vector<8x4xf32>
    %cst_195 = arith.constant 1.000000e+00 : f32
    %704 = vector.broadcast %cst_195 : f32 to vector<8x4xf32>
    %705 = arith.subf %704, %645 : vector<8x4xf32>
    %706 = arith.mulf %705, %682 : vector<8x4xf32>
    %707 = arith.addf %703, %706 : vector<8x4xf32>
    %708 = arith.index_cast %c6_i32 : i32 to index
    %c0_196 = arith.constant 0 : index
    %c0_197 = arith.constant 0 : index
    %709 = vector.load %arg15[%708, %c0_196, %c0_197] : memref<8x8x4xf32, #tpu.memory_space<vmem>>, vector<1x8x4xf32>
    %710 = vector.shape_cast %709 : vector<1x8x4xf32> to vector<8x4xf32>
    %711 = vector.shape_cast %707 : vector<8x4xf32> to vector<1x8x4xf32>
    tpu.vector_store %arg15[%708, %c0_196, %c0_197], %711 {strides = array<i32>} : memref<8x8x4xf32, #tpu.memory_space<vmem>>, vector<1x8x4xf32>,
    %cst_198 = arith.constant dense<0.000000e+00> : vector<8x512xf32>
    %712 = tpu.matmul %707, %12, %cst_198 {dimension_numbers = #tpu.dot_dimension_numbers<[1], [0], [0], [1], [0, 0, 1, 1], [], []>} : vector<8x4xf32>, vector<4x512xf32>, vector<8x512xf32> -> vector<8x512xf32>
    %713 = vector.extract_strided_slice %672 {offsets = [0, 0], sizes = [8, 512], strides = [1, 1]} : vector<8x516xf32> to vector<8x512xf32>
    %714 = arith.addf %712, %713 : vector<8x512xf32>
    %715 = vector.extract_strided_slice %660 {offsets = [0, 0], sizes = [8, 512], strides = [1, 1]} : vector<8x516xf32> to vector<8x512xf32>
    %716 = arith.addf %714, %715 : vector<8x512xf32>
    %717 = vector.broadcast %13 : vector<1x512xf32> to vector<8x512xf32>
    %718 = arith.addf %716, %717 : vector<8x512xf32>
    %719 = vector.extract_strided_slice %718 {offsets = [0, 0], sizes = [8, 128], strides = [1, 1]} : vector<8x512xf32> to vector<8x128xf32>
    %720 = arith.negf %719 : vector<8x128xf32>
    %721 = math.exp %720 : vector<8x128xf32>
    %cst_199 = arith.constant 1.000000e+00 : f32
    %722 = vector.broadcast %cst_199 : f32 to vector<8x128xf32>
    %723 = arith.addf %722, %721 : vector<8x128xf32>
    %724 = arith.divf %722, %723 : vector<8x128xf32>
    %725 = vector.extract_strided_slice %718 {offsets = [0, 128], sizes = [8, 128], strides = [1, 1]} : vector<8x512xf32> to vector<8x128xf32>
    %726 = arith.negf %725 : vector<8x128xf32>
    %727 = math.exp %726 : vector<8x128xf32>
    %cst_200 = arith.constant 1.000000e+00 : f32
    %728 = vector.broadcast %cst_200 : f32 to vector<8x128xf32>
    %729 = arith.addf %728, %727 : vector<8x128xf32>
    %730 = arith.divf %728, %729 : vector<8x128xf32>
    %731 = vector.extract_strided_slice %718 {offsets = [0, 256], sizes = [8, 128], strides = [1, 1]} : vector<8x512xf32> to vector<8x128xf32>
    %732 = math.tanh %731 : vector<8x128xf32>
    %733 = vector.extract_strided_slice %718 {offsets = [0, 384], sizes = [8, 128], strides = [1, 1]} : vector<8x512xf32> to vector<8x128xf32>
    %734 = arith.negf %733 : vector<8x128xf32>
    %735 = math.exp %734 : vector<8x128xf32>
    %cst_201 = arith.constant 1.000000e+00 : f32
    %736 = vector.broadcast %cst_201 : f32 to vector<8x128xf32>
    %737 = arith.addf %736, %735 : vector<8x128xf32>
    %738 = arith.divf %736, %737 : vector<8x128xf32>
    %739 = arith.mulf %730, %637 : vector<8x128xf32>
    %740 = arith.mulf %724, %732 : vector<8x128xf32>
    %741 = arith.addf %739, %740 : vector<8x128xf32>
    %742 = math.tanh %741 : vector<8x128xf32>
    %743 = arith.mulf %738, %742 : vector<8x128xf32>
    %c7_i32 = arith.constant 7 : i32
    %744 = arith.index_cast %c7_i32 : i32 to index
    %c0_202 = arith.constant 0 : index
    %c0_203 = arith.constant 0 : index
    %745 = vector.load %arg1[%744, %c0_202, %c0_203] : memref<8x8x4xf32, #tpu.memory_space<vmem>>, vector<1x8x4xf32>
    %746 = vector.shape_cast %745 : vector<1x8x4xf32> to vector<8x4xf32>
    %747 = arith.index_cast %c7_i32 : i32 to index
    %c0_204 = arith.constant 0 : index
    %c0_205 = arith.constant 0 : index
    %748 = vector.load %arg2[%747, %c0_204, %c0_205] : memref<8x8x4xf32, #tpu.memory_space<vmem>>, vector<1x8x4xf32>
    %749 = vector.shape_cast %748 : vector<1x8x4xf32> to vector<8x4xf32>
    %750 = arith.index_cast %c7_i32 : i32 to index
    %c0_206 = arith.constant 0 : index
    %c0_207 = arith.constant 0 : index
    %751 = vector.load %arg3[%750, %c0_206, %c0_207] : memref<8x8x4xf32, #tpu.memory_space<vmem>>, vector<1x8x4xf32>
    %752 = vector.shape_cast %751 : vector<1x8x4xf32> to vector<8x4xf32>
    %cst_208 = arith.constant dense<0.000000e+00> : vector<8x132xf32>
    %753 = tpu.matmul %752, %3, %cst_208 {dimension_numbers = #tpu.dot_dimension_numbers<[1], [0], [0], [1], [0, 0, 1, 1], [], []>} : vector<8x4xf32>, vector<4x132xf32>, vector<8x132xf32> -> vector<8x132xf32>
    %754 = vector.broadcast %4 : vector<1x132xf32> to vector<8x132xf32>
    %755 = arith.addf %753, %754 : vector<8x132xf32>
    %cst_209 = arith.constant 0.000000e+00 : f32
    %756 = vector.broadcast %cst_209 : f32 to vector<8x132xf32>
    %757 = arith.maximumf %755, %756 : vector<8x132xf32>
    %cst_210 = arith.constant 0.000000e+00 : f32
    %758 = vector.broadcast %cst_210 : f32 to vector<8x132xf32>
    %759 = arith.subf %758, %757 : vector<8x132xf32>
    %760 = math.exp %759 : vector<8x132xf32>
    %761 = vector.extract_strided_slice %760 {offsets = [0, 0], sizes = [8, 128], strides = [1, 1]} : vector<8x132xf32> to vector<8x128xf32>
    %762 = vector.extract_strided_slice %760 {offsets = [0, 128], sizes = [8, 4], strides = [1, 1]} : vector<8x132xf32> to vector<8x4xf32>
    %763 = arith.mulf %743, %761 : vector<8x128xf32>
    %cst_211 = arith.constant dense<0.000000e+00> : vector<8x516xf32>
    %764 = tpu.matmul %763, %5, %cst_211 {dimension_numbers = #tpu.dot_dimension_numbers<[1], [0], [0], [1], [0, 0, 1, 1], [], []>} : vector<8x128xf32>, vector<128x516xf32>, vector<8x516xf32> -> vector<8x516xf32>
    %765 = vector.extract_strided_slice %764 {offsets = [0, 512], sizes = [8, 4], strides = [1, 1]} : vector<8x516xf32> to vector<8x4xf32>
    %766 = vector.broadcast %6 : vector<1x4xf32> to vector<8x4xf32>
    %767 = arith.addf %765, %766 : vector<8x4xf32>
    %768 = arith.mulf %749, %746 : vector<8x4xf32>
    %cst_212 = arith.constant 1.000000e+00 : f32
    %769 = vector.broadcast %cst_212 : f32 to vector<8x4xf32>
    %770 = arith.subf %769, %749 : vector<8x4xf32>
    %771 = arith.mulf %770, %767 : vector<8x4xf32>
    %772 = arith.addf %768, %771 : vector<8x4xf32>
    %cst_213 = arith.constant dense<0.000000e+00> : vector<8x4xf32>
    %773 = tpu.matmul %772, %7, %cst_213 {dimension_numbers = #tpu.dot_dimension_numbers<[1], [0], [0], [1], [0, 0, 1, 1], [], []>} : vector<8x4xf32>, vector<4x4xf32>, vector<8x4xf32> -> vector<8x4xf32>
    %774 = vector.broadcast %8 : vector<1x4xf32> to vector<8x4xf32>
    %775 = arith.addf %773, %774 : vector<8x4xf32>
    %cst_214 = arith.constant dense<0.000000e+00> : vector<8x516xf32>
    %776 = tpu.matmul %749, %11, %cst_214 {dimension_numbers = #tpu.dot_dimension_numbers<[1], [0], [0], [1], [0, 0, 1, 1], [], []>} : vector<8x4xf32>, vector<4x516xf32>, vector<8x516xf32> -> vector<8x516xf32>
    %cst_215 = arith.constant dense<0.000000e+00> : vector<8x4xf32>
    %777 = tpu.matmul %762, %9, %cst_215 {dimension_numbers = #tpu.dot_dimension_numbers<[1], [0], [0], [1], [0, 0, 1, 1], [], []>} : vector<8x4xf32>, vector<4x4xf32>, vector<8x4xf32> -> vector<8x4xf32>
    %778 = vector.extract_strided_slice %776 {offsets = [0, 512], sizes = [8, 4], strides = [1, 1]} : vector<8x516xf32> to vector<8x4xf32>
    %779 = arith.addf %777, %778 : vector<8x4xf32>
    %780 = vector.broadcast %10 : vector<1x4xf32> to vector<8x4xf32>
    %781 = arith.addf %779, %780 : vector<8x4xf32>
    %782 = arith.mulf %781, %775 : vector<8x4xf32>
    %cst_216 = arith.constant 1.000000e+00 : f32
    %783 = vector.broadcast %cst_216 : f32 to vector<8x4xf32>
    %784 = arith.subf %783, %781 : vector<8x4xf32>
    %785 = arith.mulf %784, %767 : vector<8x4xf32>
    %786 = arith.addf %782, %785 : vector<8x4xf32>
    %787 = arith.subf %746, %767 : vector<8x4xf32>
    %788 = math.absf %787 : vector<8x4xf32>
    %789 = arith.subf %746, %775 : vector<8x4xf32>
    %790 = math.absf %789 : vector<8x4xf32>
    %791 = arith.addf %788, %790 : vector<8x4xf32>
    %792 = arith.subf %746, %786 : vector<8x4xf32>
    %793 = math.absf %792 : vector<8x4xf32>
    %794 = arith.addf %791, %793 : vector<8x4xf32>
    %795 = arith.mulf %794, %749 : vector<8x4xf32>
    %796 = vector.shape_cast %795 : vector<8x4xf32> to vector<1x8x4xf32>
    %cst_217 = arith.constant dense<0.000000e+00> : vector<1xf32>
    %797 = vector.multi_reduction <add>, %796, %cst_217 [1, 2] : vector<1x8x4xf32> to vector<1xf32>
    %798 = vector.shape_cast %797 : vector<1xf32> to vector<1x1x1xf32>
    %799 = vector.extract %798[0, 0, 0] : f32 from vector<1x1x1xf32>
    %800 = vector.shape_cast %749 : vector<8x4xf32> to vector<1x8x4xf32>
    %cst_218 = arith.constant dense<0.000000e+00> : vector<1xf32>
    %801 = vector.multi_reduction <add>, %800, %cst_218 [1, 2] : vector<1x8x4xf32> to vector<1xf32>
    %802 = vector.shape_cast %801 : vector<1xf32> to vector<1x1x1xf32>
    %803 = vector.extract %802[0, 0, 0] : f32 from vector<1x1x1xf32>
    %cst_219 = arith.constant 9.99999974E-6 : f32
    %804 = arith.addf %803, %cst_219 : f32
    %805 = arith.divf %799, %804 : f32
    %806 = arith.addf %702, %805 : f32
    %807 = arith.mulf %749, %746 : vector<8x4xf32>
    %cst_220 = arith.constant 1.000000e+00 : f32
    %808 = vector.broadcast %cst_220 : f32 to vector<8x4xf32>
    %809 = arith.subf %808, %749 : vector<8x4xf32>
    %810 = arith.mulf %809, %786 : vector<8x4xf32>
    %811 = arith.addf %807, %810 : vector<8x4xf32>
    %812 = arith.index_cast %c7_i32 : i32 to index
    %c0_221 = arith.constant 0 : index
    %c0_222 = arith.constant 0 : index
    %813 = vector.load %arg15[%812, %c0_221, %c0_222] : memref<8x8x4xf32, #tpu.memory_space<vmem>>, vector<1x8x4xf32>
    %814 = vector.shape_cast %813 : vector<1x8x4xf32> to vector<8x4xf32>
    %815 = vector.shape_cast %811 : vector<8x4xf32> to vector<1x8x4xf32>
    tpu.vector_store %arg15[%812, %c0_221, %c0_222], %815 {strides = array<i32>} : memref<8x8x4xf32, #tpu.memory_space<vmem>>, vector<1x8x4xf32>,
    %cst_223 = arith.constant dense<0.000000e+00> : vector<8x512xf32>
    %816 = tpu.matmul %811, %12, %cst_223 {dimension_numbers = #tpu.dot_dimension_numbers<[1], [0], [0], [1], [0, 0, 1, 1], [], []>} : vector<8x4xf32>, vector<4x512xf32>, vector<8x512xf32> -> vector<8x512xf32>
    %817 = vector.extract_strided_slice %776 {offsets = [0, 0], sizes = [8, 512], strides = [1, 1]} : vector<8x516xf32> to vector<8x512xf32>
    %818 = arith.addf %816, %817 : vector<8x512xf32>
    %819 = vector.extract_strided_slice %764 {offsets = [0, 0], sizes = [8, 512], strides = [1, 1]} : vector<8x516xf32> to vector<8x512xf32>
    %820 = arith.addf %818, %819 : vector<8x512xf32>
    %821 = vector.broadcast %13 : vector<1x512xf32> to vector<8x512xf32>
    %822 = arith.addf %820, %821 : vector<8x512xf32>
    %823 = vector.extract_strided_slice %822 {offsets = [0, 0], sizes = [8, 128], strides = [1, 1]} : vector<8x512xf32> to vector<8x128xf32>
    %824 = arith.negf %823 : vector<8x128xf32>
    %825 = math.exp %824 : vector<8x128xf32>
    %cst_224 = arith.constant 1.000000e+00 : f32
    %826 = vector.broadcast %cst_224 : f32 to vector<8x128xf32>
    %827 = arith.addf %826, %825 : vector<8x128xf32>
    %828 = arith.divf %826, %827 : vector<8x128xf32>
    %829 = vector.extract_strided_slice %822 {offsets = [0, 128], sizes = [8, 128], strides = [1, 1]} : vector<8x512xf32> to vector<8x128xf32>
    %830 = arith.negf %829 : vector<8x128xf32>
    %831 = math.exp %830 : vector<8x128xf32>
    %cst_225 = arith.constant 1.000000e+00 : f32
    %832 = vector.broadcast %cst_225 : f32 to vector<8x128xf32>
    %833 = arith.addf %832, %831 : vector<8x128xf32>
    %834 = arith.divf %832, %833 : vector<8x128xf32>
    %835 = vector.extract_strided_slice %822 {offsets = [0, 256], sizes = [8, 128], strides = [1, 1]} : vector<8x512xf32> to vector<8x128xf32>
    %836 = math.tanh %835 : vector<8x128xf32>
    %837 = vector.extract_strided_slice %822 {offsets = [0, 384], sizes = [8, 128], strides = [1, 1]} : vector<8x512xf32> to vector<8x128xf32>
    %838 = arith.negf %837 : vector<8x128xf32>
    %839 = math.exp %838 : vector<8x128xf32>
    %cst_226 = arith.constant 1.000000e+00 : f32
    %840 = vector.broadcast %cst_226 : f32 to vector<8x128xf32>
    %841 = arith.addf %840, %839 : vector<8x128xf32>
    %842 = arith.divf %840, %841 : vector<8x128xf32>
    %843 = arith.mulf %834, %741 : vector<8x128xf32>
    %844 = arith.mulf %828, %836 : vector<8x128xf32>
    %845 = arith.addf %843, %844 : vector<8x128xf32>
    %846 = math.tanh %845 : vector<8x128xf32>
    %847 = arith.mulf %842, %846 : vector<8x128xf32>
    %c8_i32 = arith.constant 8 : i32
    %c0_227 = arith.constant 0 : index
    %c0_228 = arith.constant 0 : index
    %848 = vector.load %arg17[%c0_227, %c0_228] : memref<8x128xf32, #tpu.memory_space<vmem>>, vector<8x128xf32>
    tpu.vector_store %arg17[%c0_227, %c0_228], %847 {strides = array<i32>} : memref<8x128xf32, #tpu.memory_space<vmem>>, vector<8x128xf32>,
    %c0_229 = arith.constant 0 : index
    %c0_230 = arith.constant 0 : index
    %849 = vector.load %arg18[%c0_229, %c0_230] : memref<8x128xf32, #tpu.memory_space<vmem>>, vector<8x128xf32>
    tpu.vector_store %arg18[%c0_229, %c0_230], %845 {strides = array<i32>} : memref<8x128xf32, #tpu.memory_space<vmem>>, vector<8x128xf32>,
    %c0_231 = arith.constant 0 : index
    %c0_232 = arith.constant 0 : index
    %850 = vector.load %arg16[%c0_231, %c0_232] : memref<1x1xf32, #tpu.memory_space<vmem>>, vector<1x1xf32>
    %851 = vector.broadcast %806 : f32 to vector<1x1xf32>
    %852 = arith.addf %850, %851 : vector<1x1xf32>
    %c0_233 = arith.constant 0 : index
    %c0_234 = arith.constant 0 : index
    %853 = vector.load %arg16[%c0_233, %c0_234] : memref<1x1xf32, #tpu.memory_space<vmem>>, vector<1x1xf32>
    tpu.vector_store %arg16[%c0_233, %c0_234], %852 {strides = array<i32>} : memref<1x1xf32, #tpu.memory_space<vmem>>, vector<1x1xf32>,
    return
  }
  func.func @transform_0(%arg0: i32) -> (i32, i32, i32) {
    %c0_i32 = arith.constant 0 : i32
    %c0_i32_0 = arith.constant 0 : i32
    %c0_i32_1 = arith.constant 0 : i32
    return %arg0, %c0_i32, %c0_i32_0 : i32, i32, i32
  }
  func.func @transform_1(%arg0: i32) -> (i32, i32, i32) {
    %c0_i32 = arith.constant 0 : i32
    %c0_i32_0 = arith.constant 0 : i32
    %c0_i32_1 = arith.constant 0 : i32
    return %arg0, %c0_i32, %c0_i32_0 : i32, i32, i32
  }
  func.func @transform_2(%arg0: i32) -> (i32, i32, i32) {
    %c0_i32 = arith.constant 0 : i32
    %c0_i32_0 = arith.constant 0 : i32
    %c0_i32_1 = arith.constant 0 : i32
    return %arg0, %c0_i32, %c0_i32_0 : i32, i32, i32
  }
  func.func @transform_3(%arg0: i32) -> (i32, i32) {
    %c0_i32 = arith.constant 0 : i32
    %c0_i32_0 = arith.constant 0 : i32
    %c0_i32_1 = arith.constant 0 : i32
    return %c0_i32, %c0_i32_0 : i32, i32
  }
  func.func @transform_4(%arg0: i32) -> (i32, i32) {
    %c0_i32 = arith.constant 0 : i32
    %c0_i32_0 = arith.constant 0 : i32
    %c0_i32_1 = arith.constant 0 : i32
    return %c0_i32, %c0_i32_0 : i32, i32
  }
  func.func @transform_5(%arg0: i32) -> (i32, i32) {
    %c0_i32 = arith.constant 0 : i32
    %c0_i32_0 = arith.constant 0 : i32
    %c0_i32_1 = arith.constant 0 : i32
    return %c0_i32, %c0_i32_0 : i32, i32
  }
  func.func @transform_6(%arg0: i32) -> (i32, i32) {
    %c0_i32 = arith.constant 0 : i32
    %c0_i32_0 = arith.constant 0 : i32
    %c0_i32_1 = arith.constant 0 : i32
    return %c0_i32, %c0_i32_0 : i32, i32
  }
  func.func @transform_7(%arg0: i32) -> (i32, i32) {
    %c0_i32 = arith.constant 0 : i32
    %c0_i32_0 = arith.constant 0 : i32
    %c0_i32_1 = arith.constant 0 : i32
    return %c0_i32, %c0_i32_0 : i32, i32
  }
  func.func @transform_8(%arg0: i32) -> (i32, i32) {
    %c0_i32 = arith.constant 0 : i32
    %c0_i32_0 = arith.constant 0 : i32
    %c0_i32_1 = arith.constant 0 : i32
    return %c0_i32, %c0_i32_0 : i32, i32
  }
  func.func @transform_9(%arg0: i32) -> (i32, i32) {
    %c0_i32 = arith.constant 0 : i32
    %c0_i32_0 = arith.constant 0 : i32
    %c0_i32_1 = arith.constant 0 : i32
    return %c0_i32, %c0_i32_0 : i32, i32
  }
  func.func @transform_10(%arg0: i32) -> (i32, i32) {
    %c0_i32 = arith.constant 0 : i32
    %c0_i32_0 = arith.constant 0 : i32
    %c0_i32_1 = arith.constant 0 : i32
    return %c0_i32, %c0_i32_0 : i32, i32
  }
  func.func @transform_11(%arg0: i32) -> (i32, i32) {
    %c0_i32 = arith.constant 0 : i32
    %c0_i32_0 = arith.constant 0 : i32
    %c0_i32_1 = arith.constant 0 : i32
    return %c0_i32, %c0_i32_0 : i32, i32
  }
  func.func @transform_12(%arg0: i32) -> (i32, i32) {
    %c0_i32 = arith.constant 0 : i32
    %c0_i32_0 = arith.constant 0 : i32
    %c0_i32_1 = arith.constant 0 : i32
    return %c0_i32, %c0_i32_0 : i32, i32
  }
  func.func @transform_13(%arg0: i32) -> (i32, i32) {
    %c0_i32 = arith.constant 0 : i32
    %c0_i32_0 = arith.constant 0 : i32
    %c0_i32_1 = arith.constant 0 : i32
    return %c0_i32, %c0_i32_0 : i32, i32
  }
  func.func @transform_14(%arg0: i32) -> (i32, i32, i32) {
    %c0_i32 = arith.constant 0 : i32
    %c0_i32_0 = arith.constant 0 : i32
    %c0_i32_1 = arith.constant 0 : i32
    return %arg0, %c0_i32, %c0_i32_0 : i32, i32, i32
  }
  func.func @transform_15(%arg0: i32) -> (i32, i32) {
    %c0_i32 = arith.constant 0 : i32
    %c0_i32_0 = arith.constant 0 : i32
    %c0_i32_1 = arith.constant 0 : i32
    return %c0_i32, %c0_i32_0 : i32, i32
  }
}

</mosaic_0001>

<llo_original>
// kernel: tpu_custom_call.1
$region0: #{tpu_custom_call.1}
  #allocation0 [shape = 'u32[]', space=smem, size = 0x4, offset = 0x4, fixed_abs, tag = 'smem constant byte address 0x4 - core index']
  #allocation1 [shape = 'u32[144,128]{1,0:T(1,128)}', space=vmem, size = 0x12000, scoped, tag = 'internal scratch']
  #allocation2 [shape = 'f32[8,128]{1,0:T(8,128)}', space=vmem, size = 0x1000, scoped, tag = 'scratch operand']
  #allocation3 [shape = 'f32[8,128]{1,0:T(8,128)}', space=vmem, size = 0x1000, scoped, tag = 'scratch operand']
  %s0 = inlined_call_operand.vmem [shape: f32[8,8,4], index: 0, kind: input, shape index: {}]
  %s1 = inlined_call_operand.vmem [shape: f32[8,8,4], index: 1, kind: input, shape index: {}]
  %s2 = inlined_call_operand.vmem [shape: f32[8,8,4], index: 2, kind: input, shape index: {}]
  %s3 = inlined_call_operand.vmem [shape: f32[4,132], index: 3, kind: input, shape index: {}]
  %s4 = inlined_call_operand.vmem [shape: f32[1,132], index: 4, kind: input, shape index: {}]
  %s5 = inlined_call_operand.vmem [shape: f32[128,516], index: 5, kind: input, shape index: {}]
  %s6 = inlined_call_operand.vmem [shape: f32[1,4], index: 6, kind: input, shape index: {}]
  %s7 = inlined_call_operand.vmem [shape: f32[4,4], index: 7, kind: input, shape index: {}]
  %s8 = inlined_call_operand.vmem [shape: f32[1,4], index: 8, kind: input, shape index: {}]
  %s9 = inlined_call_operand.vmem [shape: f32[4,4], index: 9, kind: input, shape index: {}]
  %s10 = inlined_call_operand.vmem [shape: f32[1,4], index: 10, kind: input, shape index: {}]
  %s11 = inlined_call_operand.vmem [shape: f32[4,516], index: 11, kind: input, shape index: {}]
  %s12 = inlined_call_operand.vmem [shape: f32[4,512], index: 12, kind: input, shape index: {}]
  %s13 = inlined_call_operand.vmem [shape: f32[1,512], index: 13, kind: input, shape index: {}]
  %s14 = inlined_call_operand.vmem [shape: f32[8,8,4], index: 14, kind: output, shape index: {0}]
  %s15 = inlined_call_operand.hbm [shape: f32[1,1], index: 15, kind: output, shape index: {1}]
  %16 = xla_tuple %s14, %s15
  %s17 = sld [smem:[#allocation0]]
  $region78: #{tpu_custom_call.1} parent=0
    _
  %s19 = ssub.s32 1, %s17
  %s20 = scalar_select 0, %s19, %s17
  $region1: #{tpu_custom_call.1} parent=0
    #allocation4 [shape = 'u8[512]{0}', space=vmem, size = 0x400, scoped, tag = 'output window, operand 1, single buffered']
    #allocation5 [shape = 's32[1]{0}', space=sflag, size = 0x4, scoped, tag = 'scoped memory for tpu_custom_call.1']
    %21 = vsyncpa [#allocation5], 0
    // Predicated region
    $region2: #{tpu_custom_call.1} parent=1 // pred_check
      _
    $region3: #{tpu_custom_call.1} parent=1 // pred_check_branch
      %23 = sbr.rel (0) target = $region5
    $region4: #{tpu_custom_call.1} parent=1 // pred_region
      _
    $region5: #{tpu_custom_call.1} parent=1 // pred_fallthru
      _
    // Predicated region
    $region6: #{tpu_custom_call.1} parent=1 // pred_check
      _
    $region7: #{tpu_custom_call.1} parent=1 // pred_check_branch
      %25 = sbr.rel (0) target = $region9
    $region8: #{tpu_custom_call.1} parent=1 // pred_region
      _
    $region9: #{tpu_custom_call.1} parent=1 // pred_fallthru
      _
    // Predicated region
    $region10: #{tpu_custom_call.1} parent=1 // pred_check
      _
    $region11: #{tpu_custom_call.1} parent=1 // pred_check_branch
      %27 = sbr.rel (0) target = $region13
    $region12: #{tpu_custom_call.1} parent=1 // pred_region
      _
    $region13: #{tpu_custom_call.1} parent=1 // pred_fallthru
      _
    // Predicated region
    $region14: #{tpu_custom_call.1} parent=1 // pred_check
      _
    $region15: #{tpu_custom_call.1} parent=1 // pred_check_branch
      %29 = sbr.rel (0) target = $region17
    $region16: #{tpu_custom_call.1} parent=1 // pred_region
      _
    $region17: #{tpu_custom_call.1} parent=1 // pred_fallthru
      _
    // Predicated region
    $region18: #{tpu_custom_call.1} parent=1 // pred_check
      _
    $region19: #{tpu_custom_call.1} parent=1 // pred_check_branch
      %31 = sbr.rel (0) target = $region21
    $region20: #{tpu_custom_call.1} parent=1 // pred_region
      _
    $region21: #{tpu_custom_call.1} parent=1 // pred_fallthru
      _
    // Predicated region
    $region22: #{tpu_custom_call.1} parent=1 // pred_check
      _
    $region23: #{tpu_custom_call.1} parent=1 // pred_check_branch
      %33 = sbr.rel (0) target = $region25
    $region24: #{tpu_custom_call.1} parent=1 // pred_region
      _
    $region25: #{tpu_custom_call.1} parent=1 // pred_fallthru
      _
    // Predicated region
    $region26: #{tpu_custom_call.1} parent=1 // pred_check
      _
    $region27: #{tpu_custom_call.1} parent=1 // pred_check_branch
      %35 = sbr.rel (0) target = $region29
    $region28: #{tpu_custom_call.1} parent=1 // pred_region
      _
    $region29: #{tpu_custom_call.1} parent=1 // pred_fallthru
      _
    // Predicated region
    $region30: #{tpu_custom_call.1} parent=1 // pred_check
      _
    $region31: #{tpu_custom_call.1} parent=1 // pred_check_branch
      %37 = sbr.rel (0) target = $region33
    $region32: #{tpu_custom_call.1} parent=1 // pred_region
      _
    $region33: #{tpu_custom_call.1} parent=1 // pred_fallthru
      _
    // Predicated region
    $region34: #{tpu_custom_call.1} parent=1 // pred_check
      _
    $region35: #{tpu_custom_call.1} parent=1 // pred_check_branch
      %39 = sbr.rel (0) target = $region37
    $region36: #{tpu_custom_call.1} parent=1 // pred_region
      _
    $region37: #{tpu_custom_call.1} parent=1 // pred_fallthru
      _
    // Predicated region
    $region38: #{tpu_custom_call.1} parent=1 // pred_check
      _
    $region39: #{tpu_custom_call.1} parent=1 // pred_check_branch
      %41 = sbr.rel (0) target = $region41
    $region40: #{tpu_custom_call.1} parent=1 // pred_region
      _
    $region41: #{tpu_custom_call.1} parent=1 // pred_fallthru
      _
    // Predicated region
    $region42: #{tpu_custom_call.1} parent=1 // pred_check
      _
    $region43: #{tpu_custom_call.1} parent=1 // pred_check_branch
      %43 = sbr.rel (0) target = $region45
    $region44: #{tpu_custom_call.1} parent=1 // pred_region
      _
    $region45: #{tpu_custom_call.1} parent=1 // pred_fallthru
      _
    // Predicated region
    $region46: #{tpu_custom_call.1} parent=1 // pred_check
      _
    $region47: #{tpu_custom_call.1} parent=1 // pred_check_branch
      %45 = sbr.rel (0) target = $region49
    $region48: #{tpu_custom_call.1} parent=1 // pred_region
      _
    $region49: #{tpu_custom_call.1} parent=1 // pred_fallthru
      _
    // Predicated region
    $region50: #{tpu_custom_call.1} parent=1 // pred_check
      _
    $region51: #{tpu_custom_call.1} parent=1 // pred_check_branch
      %47 = sbr.rel (0) target = $region53
    $region52: #{tpu_custom_call.1} parent=1 // pred_region
      _
    $region53: #{tpu_custom_call.1} parent=1 // pred_fallthru
      _
    // Predicated region
    $region54: #{tpu_custom_call.1} parent=1 // pred_check
      _
    $region55: #{tpu_custom_call.1} parent=1 // pred_check_branch
      %49 = sbr.rel (0) target = $region57
    $region56: #{tpu_custom_call.1} parent=1 // pred_region
      _
    $region57: #{tpu_custom_call.1} parent=1 // pred_fallthru
      _
    %p50 = scmp.eq.s32.totalorder 0, 0
    // Predicated region
    $region58: #{tpu_custom_call.1} parent=1 // pred_check
      %p51 = pneg %p50
    $region59: #{tpu_custom_call.1} parent=1 // pred_check_branch
      %53 = sbr.rel (%p51) target = $region61
    $region60: #{tpu_custom_call.1} parent=1 // pred_region
      %54 = vst [vmem:[#allocation2] sm:$0xff] 0.0
      %55 = vst [vmem:[#allocation3] sm:$0xff] 0.0
      %vm56 = vcmask 0
      %57 = vst.msk [vmem:[#allocation4] sm:$0x1] %vm56, 0.0
    $region61: #{tpu_custom_call.1} parent=1 // pred_fallthru
      _
    %v58 = vld [vmem:[%s3] sm:$0xff]
    %v59 = vld [vmem:[%s4] sm:$0x3]
    %v60 = vld [vmem:[%s5] sm:$0xff]
    %v61 = vld [vmem:[%s5 + $0x8] sm:$0xff]
    %v62 = vld [vmem:[%s5 + $0x10] sm:$0xff]
    %v63 = vld [vmem:[%s5 + $0x18] sm:$0xff]
    %v64 = vld [vmem:[%s5 + $0x20] sm:$0xff]
    %v65 = vld [vmem:[%s5 + $0x28] sm:$0xff]
    %v66 = vld [vmem:[%s5 + $0x30] sm:$0xff]
    %v67 = vld [vmem:[%s5 + $0x38] sm:$0xff]
    %v68 = vld [vmem:[%s5 + $0x40] sm:$0xff]
    %v69 = vld [vmem:[%s5 + $0x48] sm:$0xff]
    %v70 = vld [vmem:[%s5 + $0x50] sm:$0xff]
    %v71 = vld [vmem:[%s5 + $0x58] sm:$0xff]
    %v72 = vld [vmem:[%s5 + $0x60] sm:$0xff]
    %v73 = vld [vmem:[%s5 + $0x68] sm:$0xff]
    %v74 = vld [vmem:[%s5 + $0x70] sm:$0xff]
    %v75 = vld [vmem:[%s5 + $0x78] sm:$0xff]
    %v76 = vld [vmem:[%s5 + $0x80] sm:$0xff]
    %v77 = vld [vmem:[%s5 + $0x88] sm:$0xff]
    %v78 = vld [vmem:[%s5 + $0x90] sm:$0xff]
    %v79 = vld [vmem:[%s5 + $0x98] sm:$0xff]
    %v80 = vld [vmem:[%s5 + $0xa0] sm:$0xff]
    %v81 = vld [vmem:[%s5 + $0xa8] sm:$0xff]
    %v82 = vld [vmem:[%s5 + $0xb0] sm:$0xff]
    %v83 = vld [vmem:[%s5 + $0xb8] sm:$0xff]
    %v84 = vld [vmem:[%s5 + $0xc0] sm:$0xff]
    %v85 = vld [vmem:[%s5 + $0xc8] sm:$0xff]
    %v86 = vld [vmem:[%s5 + $0xd0] sm:$0xff]
    %v87 = vld [vmem:[%s5 + $0xd8] sm:$0xff]
    %v88 = vld [vmem:[%s5 + $0xe0] sm:$0xff]
    %v89 = vld [vmem:[%s5 + $0xe8] sm:$0xff]
    %v90 = vld [vmem:[%s5 + $0xf0] sm:$0xff]
    %v91 = vld [vmem:[%s5 + $0xf8] sm:$0xff]
    %v92 = vld [vmem:[%s5 + $0x100] sm:$0xff]
    %v93 = vld [vmem:[%s5 + $0x108] sm:$0xff]
    %v94 = vld [vmem:[%s5 + $0x110] sm:$0xff]
    %v95 = vld [vmem:[%s5 + $0x118] sm:$0xff]
    %v96 = vld [vmem:[%s5 + $0x120] sm:$0xff]
    %v97 = vld [vmem:[%s5 + $0x128] sm:$0xff]
    %v98 = vld [vmem:[%s5 + $0x130] sm:$0xff]
    %v99 = vld [vmem:[%s5 + $0x138] sm:$0xff]
    %v100 = vld [vmem:[%s5 + $0x140] sm:$0xff]
    %v101 = vld [vmem:[%s5 + $0x148] sm:$0xff]
    %v102 = vld [vmem:[%s5 + $0x150] sm:$0xff]
    %v103 = vld [vmem:[%s5 + $0x158] sm:$0xff]
    %v104 = vld [vmem:[%s5 + $0x160] sm:$0xff]
    %v105 = vld [vmem:[%s5 + $0x168] sm:$0xff]
    %v106 = vld [vmem:[%s5 + $0x170] sm:$0xff]
    %v107 = vld [vmem:[%s5 + $0x178] sm:$0xff]
    %v108 = vld [vmem:[%s5 + $0x180] sm:$0xff]
    %v109 = vld [vmem:[%s5 + $0x188] sm:$0xff]
    %v110 = vld [vmem:[%s5 + $0x190] sm:$0xff]
    %v111 = vld [vmem:[%s5 + $0x198] sm:$0xff]
    %v112 = vld [vmem:[%s5 + $0x1a0] sm:$0xff]
    %v113 = vld [vmem:[%s5 + $0x1a8] sm:$0xff]
    %v114 = vld [vmem:[%s5 + $0x1b0] sm:$0xff]
    %v115 = vld [vmem:[%s5 + $0x1b8] sm:$0xff]
    %v116 = vld [vmem:[%s5 + $0x1c0] sm:$0xff]
    %v117 = vld [vmem:[%s5 + $0x1c8] sm:$0xff]
    %v118 = vld [vmem:[%s5 + $0x1d0] sm:$0xff]
    %v119 = vld [vmem:[%s5 + $0x1d8] sm:$0xff]
    %v120 = vld [vmem:[%s5 + $0x1e0] sm:$0xff]
    %v121 = vld [vmem:[%s5 + $0x1e8] sm:$0xff]
    %v122 = vld [vmem:[%s5 + $0x1f0] sm:$0xff]
    %v123 = vld [vmem:[%s5 + $0x1f8] sm:$0xff]
    %v124 = vld [vmem:[%s5 + $0x200] sm:$0xff]
    %v125 = vld [vmem:[%s5 + $0x208] sm:$0xff]
    %v126 = vld [vmem:[%s5 + $0x210] sm:$0xff]
    %v127 = vld [vmem:[%s5 + $0x218] sm:$0xff]
    %v128 = vld [vmem:[%s5 + $0x220] sm:$0xff]
    %v129 = vld [vmem:[%s5 + $0x228] sm:$0xff]
    %v130 = vld [vmem:[%s5 + $0x230] sm:$0xff]
    %v131 = vld [vmem:[%s5 + $0x238] sm:$0xff]
    %v132 = vld [vmem:[%s5 + $0x240] sm:$0xff]
    %v133 = vld [vmem:[%s5 + $0x248] sm:$0xff]
    %v134 = vld [vmem:[%s5 + $0x250] sm:$0xff]
    %v135 = vld [vmem:[%s5 + $0x258] sm:$0xff]
    %v136 = vld [vmem:[%s5 + $0x260] sm:$0xff]
    %v137 = vld [vmem:[%s5 + $0x268] sm:$0xff]
    %v138 = vld [vmem:[%s5 + $0x270] sm:$0xff]
    %v139 = vld [vmem:[%s5 + $0x278] sm:$0xff]
    %v140 = vld [vmem:[%s6] sm:$0x1]
    %v141 = vld [vmem:[%s7] sm:$0xf]
    %v142 = vld [vmem:[%s8] sm:$0x1]
    %v143 = vld [vmem:[%s9] sm:$0xf]
    %v144 = vld [vmem:[%s10] sm:$0x1]
    %v145 = vld [vmem:[%s11] sm:$0xff]
    %v146 = vld [vmem:[%s11 + $0x8] sm:$0xff]
    %v147 = vld [vmem:[%s11 + $0x10] sm:$0xf]
    %v148 = vld [vmem:[%s12] sm:$0xff]
    %v149 = vld [vmem:[%s12 + $0x8] sm:$0xff]
    %v150 = vld [vmem:[%s13] sm:$0xf]
    %v151 = vld [vmem:[#allocation2] sm:$0xff]
    %v152 = vld [vmem:[#allocation3] sm:$0xff]
    %v153 = vld [vmem:[%s0] sm:$0xff]
    %v154 = vld [vmem:[%s1] sm:$0xff]
    %v155 = vld [vmem:[%s2] sm:$0xff]
    %v157 = vlaneseq
    %v158 = vshrl.u32 %v157, 7
    %v159 = vsub.s32 0, %v158
    %v160 = vrot.slane %v59, %v159
    %v161 = vlaneseq
    %v162 = vshrl.u32 %v161, 7
    %v163 = vsub.s32 1, %v162
    %v164 = vrot.slane %v59, %v163
    %v168 = vcombine.high %v58, %v58
    %vm169 = vcmask 31744
    %v171 = vsel %vm169, %v155, 0
    %vm173 = vcmask 1043456
    %v174 = vsel %vm173, %v58, 0
    %v176 = vsel %vm173, %v168, 0
    %178 = vmatprep.subr.mxu0 0.0
    %179 = vmatpush1.msra.mxu0 0.0
    %180 = vmatprep.subr.mxu0 0.0
    %181 = vmatpush1.msra.mxu0 0.0
    %182 = vmatprep.subr.mxu0 0.0
    %183 = vmatpush1.msra.mxu0 0.0
    %184 = vmatprep.subr.mxu0 0.0
    %185 = vmatpush1.msra.mxu0 0.0
    %186 = vmatprep.subr.mxu0 0.0
    %187 = vmatpush1.msra.mxu0 0.0
    %188 = vmatprep.subr.mxu0 0.0
    %189 = vmatpush1.msra.mxu0 0.0
    %190 = vmatprep.subr.mxu0 0.0
    %191 = vmatpush1.msra.mxu0 0.0
    %192 = vmatprep.subr.mxu0 0.0
    %193 = vmatpush1.msra.mxu0 0.0
    %194 = vmatprep.subr.mxu0 0.0
    %195 = vmatpush1.msra.mxu0 0.0
    %196 = vmatprep.subr.mxu0 0.0
    %197 = vmatpush1.msra.mxu0 0.0
    %198 = vmatprep.subr.mxu0 0.0
    %199 = vmatpush1.msra.mxu0 0.0
    %200 = vmatprep.subr.mxu0 0.0
    %201 = vmatpush1.msra.mxu0 0.0
    %202 = vmatprep.subr.mxu0 0.0
    %203 = vmatpush1.msra.mxu0 0.0
    %204 = vmatprep.subr.mxu0 0.0
    %205 = vmatpush1.msra.mxu0 0.0
    %206 = vmatprep.subr.mxu0 0.0
    %207 = vmatpush1.msra.mxu0 0.0
    %208 = vmatprep.subr.mxu0 %v176
    %209 = vmatpush1.msra.mxu0 %v174
    %210 = vmatprep.subr.mxu0 0.0
    %211 = vmatpush2.msra.mxu0 0.0
    %212 = vmatprep.subr.mxu0 0.0
    %213 = vmatpush2.msra.mxu0 0.0
    %214 = vmatprep.subr.mxu0 0.0
    %215 = vmatpush2.msra.mxu0 0.0
    %216 = vmatprep.subr.mxu0 0.0
    %217 = vmatpush2.msra.mxu0 0.0
    %218 = vmatprep.subr.mxu0 0.0
    %219 = vmatpush2.msra.mxu0 0.0
    %220 = vmatprep.subr.mxu0 0.0
    %221 = vmatpush2.msra.mxu0 0.0
    %222 = vmatprep.subr.mxu0 0.0
    %223 = vmatpush2.msra.mxu0 0.0
    %224 = vmatprep.subr.mxu0 0.0
    %225 = vmatpush2.msra.mxu0 0.0
    %226 = vmatprep.subr.mxu0 0.0
    %227 = vmatpush2.msra.mxu0 0.0
    %228 = vmatprep.subr.mxu0 0.0
    %229 = vmatpush2.msra.mxu0 0.0
    %230 = vmatprep.subr.mxu0 0.0
    %231 = vmatpush2.msra.mxu0 0.0
    %232 = vmatprep.subr.mxu0 0.0
    %233 = vmatpush2.msra.mxu0 0.0
    %234 = vmatprep.subr.mxu0 0.0
    %235 = vmatpush2.msra.mxu0 0.0
    %236 = vmatprep.subr.mxu0 0.0
    %237 = vmatpush2.msra.mxu0 0.0
    %238 = vmatprep.subr.mxu0 0.0
    %239 = vmatpush2.msra.mxu0 0.0
    %240 = vmatprep.subr.mxu0 0.0
    %241 = vmatpush2.msra.mxu0 0.0
    %242 = vmatprep.mubr.f32.mxu0 0.0
    %243 = vmatmul.mubr.f32.gmra.mxu0 %v171
    %v244 = vpop.f32.mrf.mxu0
    %v245 = vadd.f32 %v160, %v244
    %v246 = vpop.f32.mrf.mxu0
    %v247 = vadd.f32 %v164, %v246
    %248 = vdwg.mxu0
    %v249 = vmax.f32 %v245, 0.0
    %v250 = vmax.f32 %v247, 0.0
    %v251 = vsub.f32 0.0, %v249
    %v252 = vsub.f32 0.0, %v250
    %v253 = vmul.f32 %v251, 1.442695
    %v254 = vpow.pop %v253
    %v255 = vmul.f32 %v252, 1.442695
    %v256 = vpow.pop %v255
    %v257 = vmul.f32 %v151, %v254
    %258 = vmatprep.subr.mxu0 %v136
    %259 = vmatpush1.msra.mxu0 %v135
    %260 = vmatprep.subr.mxu0 %v131
    %261 = vmatpush1.msra.mxu0 %v130
    %262 = vmatprep.subr.mxu0 %v126
    %263 = vmatpush1.msra.mxu0 %v125
    %264 = vmatprep.subr.mxu0 %v121
    %265 = vmatpush1.msra.mxu0 %v120
    %266 = vmatprep.subr.mxu0 %v116
    %267 = vmatpush1.msra.mxu0 %v115
    %268 = vmatprep.subr.mxu0 %v111
    %269 = vmatpush1.msra.mxu0 %v110
    %270 = vmatprep.subr.mxu0 %v106
    %271 = vmatpush1.msra.mxu0 %v105
    %272 = vmatprep.subr.mxu0 %v101
    %273 = vmatpush1.msra.mxu0 %v100
    %274 = vmatprep.subr.mxu0 %v96
    %275 = vmatpush1.msra.mxu0 %v95
    %276 = vmatprep.subr.mxu0 %v91
    %277 = vmatpush1.msra.mxu0 %v90
    %278 = vmatprep.subr.mxu0 %v86
    %279 = vmatpush1.msra.mxu0 %v85
    %280 = vmatprep.subr.mxu0 %v81
    %281 = vmatpush1.msra.mxu0 %v80
    %282 = vmatprep.subr.mxu0 %v76
    %283 = vmatpush1.msra.mxu0 %v75
    %284 = vmatprep.subr.mxu0 %v71
    %285 = vmatpush1.msra.mxu0 %v70
    %286 = vmatprep.subr.mxu0 %v66
    %287 = vmatpush1.msra.mxu0 %v65
    %288 = vmatprep.subr.mxu0 %v61
    %289 = vmatpush1.msra.mxu0 %v60
    %290 = vmatprep.subr.mxu0 0.0
    %291 = vmatpush2.msra.mxu0 0.0
    %292 = vmatprep.subr.mxu0 0.0
    %293 = vmatpush2.msra.mxu0 0.0
    %294 = vmatprep.subr.mxu0 0.0
    %295 = vmatpush2.msra.mxu0 0.0
    %296 = vmatprep.subr.mxu0 0.0
    %297 = vmatpush2.msra.mxu0 0.0
    %298 = vmatprep.subr.mxu0 0.0
    %299 = vmatpush2.msra.mxu0 0.0
    %300 = vmatprep.subr.mxu0 0.0
    %301 = vmatpush2.msra.mxu0 0.0
    %302 = vmatprep.subr.mxu0 0.0
    %303 = vmatpush2.msra.mxu0 0.0
    %304 = vmatprep.subr.mxu0 0.0
    %305 = vmatpush2.msra.mxu0 0.0
    %306 = vmatprep.subr.mxu0 0.0
    %307 = vmatpush2.msra.mxu0 0.0
    %308 = vmatprep.subr.mxu0 0.0
    %309 = vmatpush2.msra.mxu0 0.0
    %310 = vmatprep.subr.mxu0 0.0
    %311 = vmatpush2.msra.mxu0 0.0
    %312 = vmatprep.subr.mxu0 0.0
    %313 = vmatpush2.msra.mxu0 0.0
    %314 = vmatprep.subr.mxu0 0.0
    %315 = vmatpush2.msra.mxu0 0.0
    %316 = vmatprep.subr.mxu0 0.0
    %317 = vmatpush2.msra.mxu0 0.0
    %318 = vmatprep.subr.mxu0 0.0
    %319 = vmatpush2.msra.mxu0 0.0
    %320 = vmatprep.subr.mxu0 0.0
    %321 = vmatpush2.msra.mxu0 0.0
    %322 = vmatprep.mubr.f32.mxu0 0.0
    %323 = vmatmul.mubr.f32.gmra.mxu0 %v257
    %v324 = vpop.f32.mrf.mxu0
    %v325 = vadd.f32 0.0, %v324
    %v326 = vpop.f32.mrf.mxu0
    %v327 = vadd.f32 0.0, %v326
    %328 = vdwg.mxu0
    %329 = vmatprep.subr.mxu0 %v138
    %330 = vmatpush1.msra.mxu0 %v137
    %331 = vmatprep.subr.mxu0 %v133
    %332 = vmatpush1.msra.mxu0 %v132
    %333 = vmatprep.subr.mxu0 %v128
    %334 = vmatpush1.msra.mxu0 %v127
    %335 = vmatprep.subr.mxu0 %v123
    %336 = vmatpush1.msra.mxu0 %v122
    %337 = vmatprep.subr.mxu0 %v118
    %338 = vmatpush1.msra.mxu0 %v117
    %339 = vmatprep.subr.mxu0 %v113
    %340 = vmatpush1.msra.mxu0 %v112
    %341 = vmatprep.subr.mxu0 %v108
    %342 = vmatpush1.msra.mxu0 %v107
    %343 = vmatprep.subr.mxu0 %v103
    %344 = vmatpush1.msra.mxu0 %v102
    %345 = vmatprep.subr.mxu0 %v98
    %346 = vmatpush1.msra.mxu0 %v97
    %347 = vmatprep.subr.mxu0 %v93
    %348 = vmatpush1.msra.mxu0 %v92
    %349 = vmatprep.subr.mxu0 %v88
    %350 = vmatpush1.msra.mxu0 %v87
    %351 = vmatprep.subr.mxu0 %v83
    %352 = vmatpush1.msra.mxu0 %v82
    %353 = vmatprep.subr.mxu0 %v78
    %354 = vmatpush1.msra.mxu0 %v77
    %355 = vmatprep.subr.mxu0 %v73
    %356 = vmatpush1.msra.mxu0 %v72
    %357 = vmatprep.subr.mxu0 %v68
    %358 = vmatpush1.msra.mxu0 %v67
    %359 = vmatprep.subr.mxu0 %v63
    %360 = vmatpush1.msra.mxu0 %v62
    %361 = vmatprep.subr.mxu0 0.0
    %362 = vmatpush2.msra.mxu0 0.0
    %363 = vmatprep.subr.mxu0 0.0
    %364 = vmatpush2.msra.mxu0 0.0
    %365 = vmatprep.subr.mxu0 0.0
    %366 = vmatpush2.msra.mxu0 0.0
    %367 = vmatprep.subr.mxu0 0.0
    %368 = vmatpush2.msra.mxu0 0.0
    %369 = vmatprep.subr.mxu0 0.0
    %370 = vmatpush2.msra.mxu0 0.0
    %371 = vmatprep.subr.mxu0 0.0
    %372 = vmatpush2.msra.mxu0 0.0
    %373 = vmatprep.subr.mxu0 0.0
    %374 = vmatpush2.msra.mxu0 0.0
    %375 = vmatprep.subr.mxu0 0.0
    %376 = vmatpush2.msra.mxu0 0.0
    %377 = vmatprep.subr.mxu0 0.0
    %378 = vmatpush2.msra.mxu0 0.0
    %379 = vmatprep.subr.mxu0 0.0
    %380 = vmatpush2.msra.mxu0 0.0
    %381 = vmatprep.subr.mxu0 0.0
    %382 = vmatpush2.msra.mxu0 0.0
    %383 = vmatprep.subr.mxu0 0.0
    %384 = vmatpush2.msra.mxu0 0.0
    %385 = vmatprep.subr.mxu0 0.0
    %386 = vmatpush2.msra.mxu0 0.0
    %387 = vmatprep.subr.mxu0 0.0
    %388 = vmatpush2.msra.mxu0 0.0
    %389 = vmatprep.subr.mxu0 0.0
    %390 = vmatpush2.msra.mxu0 0.0
    %391 = vmatprep.subr.mxu0 0.0
    %392 = vmatpush2.msra.mxu0 0.0
    %393 = vmatprep.mubr.f32.mxu0 0.0
    %394 = vmatmul.mubr.f32.gmra.mxu0 %v257
    %v395 = vpop.f32.mrf.mxu0
    %v396 = vadd.f32 0.0, %v395
    %v397 = vpop.f32.mrf.mxu0
    %v398 = vadd.f32 0.0, %v397
    %399 = vdwg.mxu0
    %400 = vmatprep.subr.mxu0 0.0
    %401 = vmatpush1.msra.mxu0 %v139
    %402 = vmatprep.subr.mxu0 0.0
    %403 = vmatpush1.msra.mxu0 %v134
    %404 = vmatprep.subr.mxu0 0.0
    %405 = vmatpush1.msra.mxu0 %v129
    %406 = vmatprep.subr.mxu0 0.0
    %407 = vmatpush1.msra.mxu0 %v124
    %408 = vmatprep.subr.mxu0 0.0
    %409 = vmatpush1.msra.mxu0 %v119
    %410 = vmatprep.subr.mxu0 0.0
    %411 = vmatpush1.msra.mxu0 %v114
    %412 = vmatprep.subr.mxu0 0.0
    %413 = vmatpush1.msra.mxu0 %v109
    %414 = vmatprep.subr.mxu0 0.0
    %415 = vmatpush1.msra.mxu0 %v104
    %416 = vmatprep.subr.mxu0 0.0
    %417 = vmatpush1.msra.mxu0 %v99
    %418 = vmatprep.subr.mxu0 0.0
    %419 = vmatpush1.msra.mxu0 %v94
    %420 = vmatprep.subr.mxu0 0.0
    %421 = vmatpush1.msra.mxu0 %v89
    %422 = vmatprep.subr.mxu0 0.0
    %423 = vmatpush1.msra.mxu0 %v84
    %424 = vmatprep.subr.mxu0 0.0
    %425 = vmatpush1.msra.mxu0 %v79
    %426 = vmatprep.subr.mxu0 0.0
    %427 = vmatpush1.msra.mxu0 %v74
    %428 = vmatprep.subr.mxu0 0.0
    %429 = vmatpush1.msra.mxu0 %v69
    %430 = vmatprep.subr.mxu0 0.0
    %431 = vmatpush1.msra.mxu0 %v64
    %432 = vmatprep.subr.mxu0 0.0
    %433 = vmatpush2.msra.mxu0 0.0
    %434 = vmatprep.subr.mxu0 0.0
    %435 = vmatpush2.msra.mxu0 0.0
    %436 = vmatprep.subr.mxu0 0.0
    %437 = vmatpush2.msra.mxu0 0.0
    %438 = vmatprep.subr.mxu0 0.0
    %439 = vmatpush2.msra.mxu0 0.0
    %440 = vmatprep.subr.mxu0 0.0
    %441 = vmatpush2.msra.mxu0 0.0
    %442 = vmatprep.subr.mxu0 0.0
    %443 = vmatpush2.msra.mxu0 0.0
    %444 = vmatprep.subr.mxu0 0.0
    %445 = vmatpush2.msra.mxu0 0.0
    %446 = vmatprep.subr.mxu0 0.0
    %447 = vmatpush2.msra.mxu0 0.0
    %448 = vmatprep.subr.mxu0 0.0
    %449 = vmatpush2.msra.mxu0 0.0
    %450 = vmatprep.subr.mxu0 0.0
    %451 = vmatpush2.msra.mxu0 0.0
    %452 = vmatprep.subr.mxu0 0.0
    %453 = vmatpush2.msra.mxu0 0.0
    %454 = vmatprep.subr.mxu0 0.0
    %455 = vmatpush2.msra.mxu0 0.0
    %456 = vmatprep.subr.mxu0 0.0
    %457 = vmatpush2.msra.mxu0 0.0
    %458 = vmatprep.subr.mxu0 0.0
    %459 = vmatpush2.msra.mxu0 0.0
    %460 = vmatprep.subr.mxu0 0.0
    %461 = vmatpush2.msra.mxu0 0.0
    %462 = vmatprep.subr.mxu0 0.0
    %463 = vmatpush2.msra.mxu0 0.0
    %464 = vmatprep.mubr.f32.mxu0 0.0
    %465 = vmatmul.mubr.f32.gmra.mxu0 %v257
    %v466 = vpop.f32.mrf.mxu0
    %v467 = vadd.f32 0.0, %v466
    %v468 = vpop.f32.mrf.mxu0
    %469 = vdwg.mxu0
    %v471 = vlaneseq
    %v472 = vshrl.u32 %v471, 7
    %v473 = vsub.s32 0, %v472
    %v474 = vrot.slane %v140, %v473
    %v476 = vadd.f32 %v467, %v474
    %v477 = vmul.f32 %v154, %v153
    %v478 = vsub.f32 1.0, %v154
    %v479 = vmul.f32 %v478, %v476
    %v480 = vadd.f32 %v477, %v479
    %v482 = vlaneseq
    %v483 = vshrl.u32 %v482, 7
    %v484 = vsub.s32 0, %v483
    %v485 = vrot.slane %v142, %v484
    %v488 = vsel %vm169, %v480, 0
    %v491 = vsel %vm173, %v141, 0
    %493 = vmatprep.subr.mxu0 0.0
    %494 = vmatpush1.msra.mxu0 0.0
    %495 = vmatprep.subr.mxu0 0.0
    %496 = vmatpush1.msra.mxu0 0.0
    %497 = vmatprep.subr.mxu0 0.0
    %498 = vmatpush1.msra.mxu0 0.0
    %499 = vmatprep.subr.mxu0 0.0
    %500 = vmatpush1.msra.mxu0 0.0
    %501 = vmatprep.subr.mxu0 0.0
    %502 = vmatpush1.msra.mxu0 0.0
    %503 = vmatprep.subr.mxu0 0.0
    %504 = vmatpush1.msra.mxu0 0.0
    %505 = vmatprep.subr.mxu0 0.0
    %506 = vmatpush1.msra.mxu0 0.0
    %507 = vmatprep.subr.mxu0 0.0
    %508 = vmatpush1.msra.mxu0 0.0
    %509 = vmatprep.subr.mxu0 0.0
    %510 = vmatpush1.msra.mxu0 0.0
    %511 = vmatprep.subr.mxu0 0.0
    %512 = vmatpush1.msra.mxu0 0.0
    %513 = vmatprep.subr.mxu0 0.0
    %514 = vmatpush1.msra.mxu0 0.0
    %515 = vmatprep.subr.mxu0 0.0
    %516 = vmatpush1.msra.mxu0 0.0
    %517 = vmatprep.subr.mxu0 0.0
    %518 = vmatpush1.msra.mxu0 0.0
    %519 = vmatprep.subr.mxu0 0.0
    %520 = vmatpush1.msra.mxu0 0.0
    %521 = vmatprep.subr.mxu0 0.0
    %522 = vmatpush1.msra.mxu0 0.0
    %523 = vmatprep.subr.mxu0 0.0
    %524 = vmatpush1.msra.mxu0 %v491
    %525 = vmatprep.subr.mxu0 0.0
    %526 = vmatpush2.msra.mxu0 0.0
    %527 = vmatprep.subr.mxu0 0.0
    %528 = vmatpush2.msra.mxu0 0.0
    %529 = vmatprep.subr.mxu0 0.0
    %530 = vmatpush2.msra.mxu0 0.0
    %531 = vmatprep.subr.mxu0 0.0
    %532 = vmatpush2.msra.mxu0 0.0
    %533 = vmatprep.subr.mxu0 0.0
    %534 = vmatpush2.msra.mxu0 0.0
    %535 = vmatprep.subr.mxu0 0.0
    %536 = vmatpush2.msra.mxu0 0.0
    %537 = vmatprep.subr.mxu0 0.0
    %538 = vmatpush2.msra.mxu0 0.0
    %539 = vmatprep.subr.mxu0 0.0
    %540 = vmatpush2.msra.mxu0 0.0
    %541 = vmatprep.subr.mxu0 0.0
    %542 = vmatpush2.msra.mxu0 0.0
    %543 = vmatprep.subr.mxu0 0.0
    %544 = vmatpush2.msra.mxu0 0.0
    %545 = vmatprep.subr.mxu0 0.0
    %546 = vmatpush2.msra.mxu0 0.0
    %547 = vmatprep.subr.mxu0 0.0
    %548 = vmatpush2.msra.mxu0 0.0
    %549 = vmatprep.subr.mxu0 0.0
    %550 = vmatpush2.msra.mxu0 0.0
    %551 = vmatprep.subr.mxu0 0.0
    %552 = vmatpush2.msra.mxu0 0.0
    %553 = vmatprep.subr.mxu0 0.0
    %554 = vmatpush2.msra.mxu0 0.0
    %555 = vmatprep.subr.mxu0 0.0
    %556 = vmatpush2.msra.mxu0 0.0
    %557 = vmatprep.mubr.f32.mxu0 0.0
    %558 = vmatmul.mubr.f32.gmra.mxu0 %v488
    %v559 = vpop.f32.mrf.mxu0
    %v560 = vadd.f32 %v485, %v559
    %v561 = vpop.f32.mrf.mxu0
    %562 = vdwg.mxu0
    %v566 = vcombine.high %v145, %v145
    %v567 = vcombine.high %v146, %v146
    %v569 = vsel %vm169, %v154, 0
    %v571 = vsel %vm173, %v145, 0
    %v573 = vsel %vm173, %v566, 0
    %v575 = vsel %vm173, %v146, 0
    %v577 = vsel %vm173, %v567, 0
    %v579 = vsel %vm173, %v147, 0
    %581 = vmatprep.subr.mxu0 0.0
    %582 = vmatpush1.msra.mxu0 0.0
    %583 = vmatprep.subr.mxu0 0.0
    %584 = vmatpush1.msra.mxu0 0.0
    %585 = vmatprep.subr.mxu0 0.0
    %586 = vmatpush1.msra.mxu0 0.0
    %587 = vmatprep.subr.mxu0 0.0
    %588 = vmatpush1.msra.mxu0 0.0
    %589 = vmatprep.subr.mxu0 0.0
    %590 = vmatpush1.msra.mxu0 0.0
    %591 = vmatprep.subr.mxu0 0.0
    %592 = vmatpush1.msra.mxu0 0.0
    %593 = vmatprep.subr.mxu0 0.0
    %594 = vmatpush1.msra.mxu0 0.0
    %595 = vmatprep.subr.mxu0 0.0
    %596 = vmatpush1.msra.mxu0 0.0
    %597 = vmatprep.subr.mxu0 0.0
    %598 = vmatpush1.msra.mxu0 0.0
    %599 = vmatprep.subr.mxu0 0.0
    %600 = vmatpush1.msra.mxu0 0.0
    %601 = vmatprep.subr.mxu0 0.0
    %602 = vmatpush1.msra.mxu0 0.0
    %603 = vmatprep.subr.mxu0 0.0
    %604 = vmatpush1.msra.mxu0 0.0
    %605 = vmatprep.subr.mxu0 0.0
    %606 = vmatpush1.msra.mxu0 0.0
    %607 = vmatprep.subr.mxu0 0.0
    %608 = vmatpush1.msra.mxu0 0.0
    %609 = vmatprep.subr.mxu0 0.0
    %610 = vmatpush1.msra.mxu0 0.0
    %611 = vmatprep.subr.mxu0 %v573
    %612 = vmatpush1.msra.mxu0 %v571
    %613 = vmatprep.subr.mxu0 0.0
    %614 = vmatpush2.msra.mxu0 0.0
    %615 = vmatprep.subr.mxu0 0.0
    %616 = vmatpush2.msra.mxu0 0.0
    %617 = vmatprep.subr.mxu0 0.0
    %618 = vmatpush2.msra.mxu0 0.0
    %619 = vmatprep.subr.mxu0 0.0
    %620 = vmatpush2.msra.mxu0 0.0
    %621 = vmatprep.subr.mxu0 0.0
    %622 = vmatpush2.msra.mxu0 0.0
    %623 = vmatprep.subr.mxu0 0.0
    %624 = vmatpush2.msra.mxu0 0.0
    %625 = vmatprep.subr.mxu0 0.0
    %626 = vmatpush2.msra.mxu0 0.0
    %627 = vmatprep.subr.mxu0 0.0
    %628 = vmatpush2.msra.mxu0 0.0
    %629 = vmatprep.subr.mxu0 0.0
    %630 = vmatpush2.msra.mxu0 0.0
    %631 = vmatprep.subr.mxu0 0.0
    %632 = vmatpush2.msra.mxu0 0.0
    %633 = vmatprep.subr.mxu0 0.0
    %634 = vmatpush2.msra.mxu0 0.0
    %635 = vmatprep.subr.mxu0 0.0
    %636 = vmatpush2.msra.mxu0 0.0
    %637 = vmatprep.subr.mxu0 0.0
    %638 = vmatpush2.msra.mxu0 0.0
    %639 = vmatprep.subr.mxu0 0.0
    %640 = vmatpush2.msra.mxu0 0.0
    %641 = vmatprep.subr.mxu0 0.0
    %642 = vmatpush2.msra.mxu0 0.0
    %643 = vmatprep.subr.mxu0 0.0
    %644 = vmatpush2.msra.mxu0 0.0
    %645 = vmatprep.mubr.f32.mxu0 0.0
    %646 = vmatmul.mubr.f32.gmra.mxu0 %v569
    %v647 = vpop.f32.mrf.mxu0
    %v648 = vadd.f32 0.0, %v647
    %v649 = vpop.f32.mrf.mxu0
    %v650 = vadd.f32 0.0, %v649
    %651 = vdwg.mxu0
    %652 = vmatprep.subr.mxu0 0.0
    %653 = vmatpush1.msra.mxu0 0.0
    %654 = vmatprep.subr.mxu0 0.0
    %655 = vmatpush1.msra.mxu0 0.0
    %656 = vmatprep.subr.mxu0 0.0
    %657 = vmatpush1.msra.mxu0 0.0
    %658 = vmatprep.subr.mxu0 0.0
    %659 = vmatpush1.msra.mxu0 0.0
    %660 = vmatprep.subr.mxu0 0.0
    %661 = vmatpush1.msra.mxu0 0.0
    %662 = vmatprep.subr.mxu0 0.0
    %663 = vmatpush1.msra.mxu0 0.0
    %664 = vmatprep.subr.mxu0 0.0
    %665 = vmatpush1.msra.mxu0 0.0
    %666 = vmatprep.subr.mxu0 0.0
    %667 = vmatpush1.msra.mxu0 0.0
    %668 = vmatprep.subr.mxu0 0.0
    %669 = vmatpush1.msra.mxu0 0.0
    %670 = vmatprep.subr.mxu0 0.0
    %671 = vmatpush1.msra.mxu0 0.0
    %672 = vmatprep.subr.mxu0 0.0
    %673 = vmatpush1.msra.mxu0 0.0
    %674 = vmatprep.subr.mxu0 0.0
    %675 = vmatpush1.msra.mxu0 0.0
    %676 = vmatprep.subr.mxu0 0.0
    %677 = vmatpush1.msra.mxu0 0.0
    %678 = vmatprep.subr.mxu0 0.0
    %679 = vmatpush1.msra.mxu0 0.0
    %680 = vmatprep.subr.mxu0 0.0
    %681 = vmatpush1.msra.mxu0 0.0
    %682 = vmatprep.subr.mxu0 %v577
    %683 = vmatpush1.msra.mxu0 %v575
    %684 = vmatprep.subr.mxu0 0.0
    %685 = vmatpush2.msra.mxu0 0.0
    %686 = vmatprep.subr.mxu0 0.0
    %687 = vmatpush2.msra.mxu0 0.0
    %688 = vmatprep.subr.mxu0 0.0
    %689 = vmatpush2.msra.mxu0 0.0
    %690 = vmatprep.subr.mxu0 0.0
    %691 = vmatpush2.msra.mxu0 0.0
    %692 = vmatprep.subr.mxu0 0.0
    %693 = vmatpush2.msra.mxu0 0.0
    %694 = vmatprep.subr.mxu0 0.0
    %695 = vmatpush2.msra.mxu0 0.0
    %696 = vmatprep.subr.mxu0 0.0
    %697 = vmatpush2.msra.mxu0 0.0
    %698 = vmatprep.subr.mxu0 0.0
    %699 = vmatpush2.msra.mxu0 0.0
    %700 = vmatprep.subr.mxu0 0.0
    %701 = vmatpush2.msra.mxu0 0.0
    %702 = vmatprep.subr.mxu0 0.0
    %703 = vmatpush2.msra.mxu0 0.0
    %704 = vmatprep.subr.mxu0 0.0
    %705 = vmatpush2.msra.mxu0 0.0
    %706 = vmatprep.subr.mxu0 0.0
    %707 = vmatpush2.msra.mxu0 0.0
    %708 = vmatprep.subr.mxu0 0.0
    %709 = vmatpush2.msra.mxu0 0.0
    %710 = vmatprep.subr.mxu0 0.0
    %711 = vmatpush2.msra.mxu0 0.0
    %712 = vmatprep.subr.mxu0 0.0
    %713 = vmatpush2.msra.mxu0 0.0
    %714 = vmatprep.subr.mxu0 0.0
    %715 = vmatpush2.msra.mxu0 0.0
    %716 = vmatprep.mubr.f32.mxu0 0.0
    %717 = vmatmul.mubr.f32.gmra.mxu0 %v569
    %v718 = vpop.f32.mrf.mxu0
    %v719 = vadd.f32 0.0, %v718
    %v720 = vpop.f32.mrf.mxu0
    %v721 = vadd.f32 0.0, %v720
    %722 = vdwg.mxu0
    %723 = vmatprep.subr.mxu0 0.0
    %724 = vmatpush1.msra.mxu0 0.0
    %725 = vmatprep.subr.mxu0 0.0
    %726 = vmatpush1.msra.mxu0 0.0
    %727 = vmatprep.subr.mxu0 0.0
    %728 = vmatpush1.msra.mxu0 0.0
    %729 = vmatprep.subr.mxu0 0.0
    %730 = vmatpush1.msra.mxu0 0.0
    %731 = vmatprep.subr.mxu0 0.0
    %732 = vmatpush1.msra.mxu0 0.0
    %733 = vmatprep.subr.mxu0 0.0
    %734 = vmatpush1.msra.mxu0 0.0
    %735 = vmatprep.subr.mxu0 0.0
    %736 = vmatpush1.msra.mxu0 0.0
    %737 = vmatprep.subr.mxu0 0.0
    %738 = vmatpush1.msra.mxu0 0.0
    %739 = vmatprep.subr.mxu0 0.0
    %740 = vmatpush1.msra.mxu0 0.0
    %741 = vmatprep.subr.mxu0 0.0
    %742 = vmatpush1.msra.mxu0 0.0
    %743 = vmatprep.subr.mxu0 0.0
    %744 = vmatpush1.msra.mxu0 0.0
    %745 = vmatprep.subr.mxu0 0.0
    %746 = vmatpush1.msra.mxu0 0.0
    %747 = vmatprep.subr.mxu0 0.0
    %748 = vmatpush1.msra.mxu0 0.0
    %749 = vmatprep.subr.mxu0 0.0
    %750 = vmatpush1.msra.mxu0 0.0
    %751 = vmatprep.subr.mxu0 0.0
    %752 = vmatpush1.msra.mxu0 0.0
    %753 = vmatprep.subr.mxu0 0.0
    %754 = vmatpush1.msra.mxu0 %v579
    %755 = vmatprep.subr.mxu0 0.0
    %756 = vmatpush2.msra.mxu0 0.0
    %757 = vmatprep.subr.mxu0 0.0
    %758 = vmatpush2.msra.mxu0 0.0
    %759 = vmatprep.subr.mxu0 0.0
    %760 = vmatpush2.msra.mxu0 0.0
    %761 = vmatprep.subr.mxu0 0.0
    %762 = vmatpush2.msra.mxu0 0.0
    %763 = vmatprep.subr.mxu0 0.0
    %764 = vmatpush2.msra.mxu0 0.0
    %765 = vmatprep.subr.mxu0 0.0
    %766 = vmatpush2.msra.mxu0 0.0
    %767 = vmatprep.subr.mxu0 0.0
    %768 = vmatpush2.msra.mxu0 0.0
    %769 = vmatprep.subr.mxu0 0.0
    %770 = vmatpush2.msra.mxu0 0.0
    %771 = vmatprep.subr.mxu0 0.0
    %772 = vmatpush2.msra.mxu0 0.0
    %773 = vmatprep.subr.mxu0 0.0
    %774 = vmatpush2.msra.mxu0 0.0
    %775 = vmatprep.subr.mxu0 0.0
    %776 = vmatpush2.msra.mxu0 0.0
    %777 = vmatprep.subr.mxu0 0.0
    %778 = vmatpush2.msra.mxu0 0.0
    %779 = vmatprep.subr.mxu0 0.0
    %780 = vmatpush2.msra.mxu0 0.0
    %781 = vmatprep.subr.mxu0 0.0
    %782 = vmatpush2.msra.mxu0 0.0
    %783 = vmatprep.subr.mxu0 0.0
    %784 = vmatpush2.msra.mxu0 0.0
    %785 = vmatprep.subr.mxu0 0.0
    %786 = vmatpush2.msra.mxu0 0.0
    %787 = vmatprep.mubr.f32.mxu0 0.0
    %788 = vmatmul.mubr.f32.gmra.mxu0 %v569
    %v789 = vpop.f32.mrf.mxu0
    %v790 = vadd.f32 0.0, %v789
    %v791 = vpop.f32.mrf.mxu0
    %792 = vdwg.mxu0
    %v794 = vsel %vm169, %v256, 0
    %v797 = vsel %vm173, %v143, 0
    %799 = vmatprep.subr.mxu0 0.0
    %800 = vmatpush1.msra.mxu0 0.0
    %801 = vmatprep.subr.mxu0 0.0
    %802 = vmatpush1.msra.mxu0 0.0
    %803 = vmatprep.subr.mxu0 0.0
    %804 = vmatpush1.msra.mxu0 0.0
    %805 = vmatprep.subr.mxu0 0.0
    %806 = vmatpush1.msra.mxu0 0.0
    %807 = vmatprep.subr.mxu0 0.0
    %808 = vmatpush1.msra.mxu0 0.0
    %809 = vmatprep.subr.mxu0 0.0
    %810 = vmatpush1.msra.mxu0 0.0
    %811 = vmatprep.subr.mxu0 0.0
    %812 = vmatpush1.msra.mxu0 0.0
    %813 = vmatprep.subr.mxu0 0.0
    %814 = vmatpush1.msra.mxu0 0.0
    %815 = vmatprep.subr.mxu0 0.0
    %816 = vmatpush1.msra.mxu0 0.0
    %817 = vmatprep.subr.mxu0 0.0
    %818 = vmatpush1.msra.mxu0 0.0
    %819 = vmatprep.subr.mxu0 0.0
    %820 = vmatpush1.msra.mxu0 0.0
    %821 = vmatprep.subr.mxu0 0.0
    %822 = vmatpush1.msra.mxu0 0.0
    %823 = vmatprep.subr.mxu0 0.0
    %824 = vmatpush1.msra.mxu0 0.0
    %825 = vmatprep.subr.mxu0 0.0
    %826 = vmatpush1.msra.mxu0 0.0
    %827 = vmatprep.subr.mxu0 0.0
    %828 = vmatpush1.msra.mxu0 0.0
    %829 = vmatprep.subr.mxu0 0.0
    %830 = vmatpush1.msra.mxu0 %v797
    %831 = vmatprep.subr.mxu0 0.0
    %832 = vmatpush2.msra.mxu0 0.0
    %833 = vmatprep.subr.mxu0 0.0
    %834 = vmatpush2.msra.mxu0 0.0
    %835 = vmatprep.subr.mxu0 0.0
    %836 = vmatpush2.msra.mxu0 0.0
    %837 = vmatprep.subr.mxu0 0.0
    %838 = vmatpush2.msra.mxu0 0.0
    %839 = vmatprep.subr.mxu0 0.0
    %840 = vmatpush2.msra.mxu0 0.0
    %841 = vmatprep.subr.mxu0 0.0
    %842 = vmatpush2.msra.mxu0 0.0
    %843 = vmatprep.subr.mxu0 0.0
    %844 = vmatpush2.msra.mxu0 0.0
    %845 = vmatprep.subr.mxu0 0.0
    %846 = vmatpush2.msra.mxu0 0.0
    %847 = vmatprep.subr.mxu0 0.0
    %848 = vmatpush2.msra.mxu0 0.0
    %849 = vmatprep.subr.mxu0 0.0
    %850 = vmatpush2.msra.mxu0 0.0
    %851 = vmatprep.subr.mxu0 0.0
    %852 = vmatpush2.msra.mxu0 0.0
    %853 = vmatprep.subr.mxu0 0.0
    %854 = vmatpush2.msra.mxu0 0.0
    %855 = vmatprep.subr.mxu0 0.0
    %856 = vmatpush2.msra.mxu0 0.0
    %857 = vmatprep.subr.mxu0 0.0
    %858 = vmatpush2.msra.mxu0 0.0
    %859 = vmatprep.subr.mxu0 0.0
    %860 = vmatpush2.msra.mxu0 0.0
    %861 = vmatprep.subr.mxu0 0.0
    %862 = vmatpush2.msra.mxu0 0.0
    %863 = vmatprep.mubr.f32.mxu0 0.0
    %864 = vmatmul.mubr.f32.gmra.mxu0 %v794
    %v865 = vpop.f32.mrf.mxu0
    %v866 = vadd.f32 %v790, %v865
    %v867 = vpop.f32.mrf.mxu0
    %868 = vdwg.mxu0
    %v870 = vlaneseq
    %v871 = vshrl.u32 %v870, 7
    %v872 = vsub.s32 0, %v871
    %v873 = vrot.slane %v144, %v872
    %v875 = vadd.f32 %v866, %v873
    %v876 = vmul.f32 %v875, %v560
    %v877 = vsub.f32 1.0, %v875
    %v878 = vmul.f32 %v877, %v476
    %v879 = vadd.f32 %v876, %v878
    %v880 = vsub.f32 %v153, %v476
    %v881 = vand.u32 2147483647, %v880
    %v882 = vsub.f32 %v153, %v560
    %v883 = vand.u32 2147483647, %v882
    %v884 = vadd.f32 %v881, %v883
    %v885 = vsub.f32 %v153, %v879
    %v886 = vand.u32 2147483647, %v885
    %v887 = vadd.f32 %v884, %v886
    %v888 = vmul.f32 %v887, %v154
    %v889 = vsel %vm169, %v888, 0.0
    %890 = vadd.xlane.f32.xlu0 %v889
    %v891 = vpop.xlane.xlu0 %890
    %v892 = vrot.slane %v891, 4
    %v893 = vadd.f32 %v891, %v892
    %v894 = vrot.slane %v893, 2
    %v895 = vadd.f32 %v893, %v894
    %v896 = vrot.slane %v895, 1
    %v897 = vadd.f32 %v895, %v896
    %s898 = vtos %v897
    %v899 = vsel %vm169, %v154, 0.0
    %900 = vadd.xlane.f32.xlu0 %v899
    %v901 = vpop.xlane.xlu0 %900
    %v902 = vrot.slane %v901, 4
    %v903 = vadd.f32 %v901, %v902
    %v904 = vrot.slane %v903, 2
    %v905 = vadd.f32 %v903, %v904
    %v906 = vrot.slane %v905, 1
    %v907 = vadd.f32 %v905, %v906
    %s908 = vtos %v907
    %s909 = sadd.f32 %s908, 1e-05
    %v910 = vstv %s909
    %v911 = vrcp.pop %v910
    %s912 = vtos %v911
    %s913 = smul.f32 %s898, %s912
    %s914 = sadd.f32 %s913, 0.0
    %v915 = vmul.f32 %v478, %v879
    %v916 = vadd.f32 %v477, %v915
    %917 = vst.msk [vmem:[%s14] sm:$0xff] %vm169, %v916
    %v920 = vcombine.high %v148, %v148
    %v921 = vcombine.high %v149, %v149
    %v923 = vsel %vm169, %v916, 0
    %v925 = vsel %vm173, %v148, 0
    %v927 = vsel %vm173, %v920, 0
    %v929 = vsel %vm173, %v149, 0
    %v931 = vsel %vm173, %v921, 0
    %933 = vmatprep.subr.mxu0 0.0
    %934 = vmatpush1.msra.mxu0 0.0
    %935 = vmatprep.subr.mxu0 0.0
    %936 = vmatpush1.msra.mxu0 0.0
    %937 = vmatprep.subr.mxu0 0.0
    %938 = vmatpush1.msra.mxu0 0.0
    %939 = vmatprep.subr.mxu0 0.0
    %940 = vmatpush1.msra.mxu0 0.0
    %941 = vmatprep.subr.mxu0 0.0
    %942 = vmatpush1.msra.mxu0 0.0
    %943 = vmatprep.subr.mxu0 0.0
    %944 = vmatpush1.msra.mxu0 0.0
    %945 = vmatprep.subr.mxu0 0.0
    %946 = vmatpush1.msra.mxu0 0.0
    %947 = vmatprep.subr.mxu0 0.0
    %948 = vmatpush1.msra.mxu0 0.0
    %949 = vmatprep.subr.mxu0 0.0
    %950 = vmatpush1.msra.mxu0 0.0
    %951 = vmatprep.subr.mxu0 0.0
    %952 = vmatpush1.msra.mxu0 0.0
    %953 = vmatprep.subr.mxu0 0.0
    %954 = vmatpush1.msra.mxu0 0.0
    %955 = vmatprep.subr.mxu0 0.0
    %956 = vmatpush1.msra.mxu0 0.0
    %957 = vmatprep.subr.mxu0 0.0
    %958 = vmatpush1.msra.mxu0 0.0
    %959 = vmatprep.subr.mxu0 0.0
    %960 = vmatpush1.msra.mxu0 0.0
    %961 = vmatprep.subr.mxu0 0.0
    %962 = vmatpush1.msra.mxu0 0.0
    %963 = vmatprep.subr.mxu0 %v927
    %964 = vmatpush1.msra.mxu0 %v925
    %965 = vmatprep.subr.mxu0 0.0
    %966 = vmatpush2.msra.mxu0 0.0
    %967 = vmatprep.subr.mxu0 0.0
    %968 = vmatpush2.msra.mxu0 0.0
    %969 = vmatprep.subr.mxu0 0.0
    %970 = vmatpush2.msra.mxu0 0.0
    %971 = vmatprep.subr.mxu0 0.0
    %972 = vmatpush2.msra.mxu0 0.0
    %973 = vmatprep.subr.mxu0 0.0
    %974 = vmatpush2.msra.mxu0 0.0
    %975 = vmatprep.subr.mxu0 0.0
    %976 = vmatpush2.msra.mxu0 0.0
    %977 = vmatprep.subr.mxu0 0.0
    %978 = vmatpush2.msra.mxu0 0.0
    %979 = vmatprep.subr.mxu0 0.0
    %980 = vmatpush2.msra.mxu0 0.0
    %981 = vmatprep.subr.mxu0 0.0
    %982 = vmatpush2.msra.mxu0 0.0
    %983 = vmatprep.subr.mxu0 0.0
    %984 = vmatpush2.msra.mxu0 0.0
    %985 = vmatprep.subr.mxu0 0.0
    %986 = vmatpush2.msra.mxu0 0.0
    %987 = vmatprep.subr.mxu0 0.0
    %988 = vmatpush2.msra.mxu0 0.0
    %989 = vmatprep.subr.mxu0 0.0
    %990 = vmatpush2.msra.mxu0 0.0
    %991 = vmatprep.subr.mxu0 0.0
    %992 = vmatpush2.msra.mxu0 0.0
    %993 = vmatprep.subr.mxu0 0.0
    %994 = vmatpush2.msra.mxu0 0.0
    %995 = vmatprep.subr.mxu0 0.0
    %996 = vmatpush2.msra.mxu0 0.0
    %997 = vmatprep.mubr.f32.mxu0 0.0
    %998 = vmatmul.mubr.f32.gmra.mxu0 %v923
    %v999 = vpop.f32.mrf.mxu0
    %v1000 = vadd.f32 %v648, %v999
    %v1001 = vpop.f32.mrf.mxu0
    %v1002 = vadd.f32 %v650, %v1001
    %1003 = vdwg.mxu0
    %1004 = vmatprep.subr.mxu0 0.0
    %1005 = vmatpush1.msra.mxu0 0.0
    %1006 = vmatprep.subr.mxu0 0.0
    %1007 = vmatpush1.msra.mxu0 0.0
    %1008 = vmatprep.subr.mxu0 0.0
    %1009 = vmatpush1.msra.mxu0 0.0
    %1010 = vmatprep.subr.mxu0 0.0
    %1011 = vmatpush1.msra.mxu0 0.0
    %1012 = vmatprep.subr.mxu0 0.0
    %1013 = vmatpush1.msra.mxu0 0.0
    %1014 = vmatprep.subr.mxu0 0.0
    %1015 = vmatpush1.msra.mxu0 0.0
    %1016 = vmatprep.subr.mxu0 0.0
    %1017 = vmatpush1.msra.mxu0 0.0
    %1018 = vmatprep.subr.mxu0 0.0
    %1019 = vmatpush1.msra.mxu0 0.0
    %1020 = vmatprep.subr.mxu0 0.0
    %1021 = vmatpush1.msra.mxu0 0.0
    %1022 = vmatprep.subr.mxu0 0.0
    %1023 = vmatpush1.msra.mxu0 0.0
    %1024 = vmatprep.subr.mxu0 0.0
    %1025 = vmatpush1.msra.mxu0 0.0
    %1026 = vmatprep.subr.mxu0 0.0
    %1027 = vmatpush1.msra.mxu0 0.0
    %1028 = vmatprep.subr.mxu0 0.0
    %1029 = vmatpush1.msra.mxu0 0.0
    %1030 = vmatprep.subr.mxu0 0.0
    %1031 = vmatpush1.msra.mxu0 0.0
    %1032 = vmatprep.subr.mxu0 0.0
    %1033 = vmatpush1.msra.mxu0 0.0
    %1034 = vmatprep.subr.mxu0 %v931
    %1035 = vmatpush1.msra.mxu0 %v929
    %1036 = vmatprep.subr.mxu0 0.0
    %1037 = vmatpush2.msra.mxu0 0.0
    %1038 = vmatprep.subr.mxu0 0.0
    %1039 = vmatpush2.msra.mxu0 0.0
    %1040 = vmatprep.subr.mxu0 0.0
    %1041 = vmatpush2.msra.mxu0 0.0
    %1042 = vmatprep.subr.mxu0 0.0
    %1043 = vmatpush2.msra.mxu0 0.0
    %1044 = vmatprep.subr.mxu0 0.0
    %1045 = vmatpush2.msra.mxu0 0.0
    %1046 = vmatprep.subr.mxu0 0.0
    %1047 = vmatpush2.msra.mxu0 0.0
    %1048 = vmatprep.subr.mxu0 0.0
    %1049 = vmatpush2.msra.mxu0 0.0
    %1050 = vmatprep.subr.mxu0 0.0
    %1051 = vmatpush2.msra.mxu0 0.0
    %1052 = vmatprep.subr.mxu0 0.0
    %1053 = vmatpush2.msra.mxu0 0.0
    %1054 = vmatprep.subr.mxu0 0.0
    %1055 = vmatpush2.msra.mxu0 0.0
    %1056 = vmatprep.subr.mxu0 0.0
    %1057 = vmatpush2.msra.mxu0 0.0
    %1058 = vmatprep.subr.mxu0 0.0
    %1059 = vmatpush2.msra.mxu0 0.0
    %1060 = vmatprep.subr.mxu0 0.0
    %1061 = vmatpush2.msra.mxu0 0.0
    %1062 = vmatprep.subr.mxu0 0.0
    %1063 = vmatpush2.msra.mxu0 0.0
    %1064 = vmatprep.subr.mxu0 0.0
    %1065 = vmatpush2.msra.mxu0 0.0
    %1066 = vmatprep.subr.mxu0 0.0
    %1067 = vmatpush2.msra.mxu0 0.0
    %1068 = vmatprep.mubr.f32.mxu0 0.0
    %1069 = vmatmul.mubr.f32.gmra.mxu0 %v923
    %v1070 = vpop.f32.mrf.mxu0
    %v1071 = vadd.f32 %v719, %v1070
    %v1072 = vpop.f32.mrf.mxu0
    %v1073 = vadd.f32 %v721, %v1072
    %1074 = vdwg.mxu0
    %v1075 = vadd.f32 %v1000, %v325
    %v1076 = vadd.f32 %v1002, %v327
    %v1077 = vadd.f32 %v1071, %v396
    %v1078 = vadd.f32 %v1073, %v398
    %v1080 = vlaneseq
    %v1081 = vshrl.u32 %v1080, 7
    %v1082 = vsub.s32 0, %v1081
    %v1083 = vrot.slane %v150, %v1082
    %v1084 = vlaneseq
    %v1085 = vshrl.u32 %v1084, 7
    %v1086 = vsub.s32 1, %v1085
    %v1087 = vrot.slane %v150, %v1086
    %v1088 = vlaneseq
    %v1089 = vshrl.u32 %v1088, 7
    %v1090 = vsub.s32 2, %v1089
    %v1091 = vrot.slane %v150, %v1090
    %v1092 = vlaneseq
    %v1093 = vshrl.u32 %v1092, 7
    %v1094 = vsub.s32 3, %v1093
    %v1095 = vrot.slane %v150, %v1094
    %v1100 = vadd.f32 %v1075, %v1083
    %v1101 = vadd.f32 %v1076, %v1087
    %v1102 = vadd.f32 %v1077, %v1091
    %v1103 = vadd.f32 %v1078, %v1095
    %v1104 = vxor.u32 %v1100, 2147483648
    %v1105 = vmul.f32 %v1104, 1.442695
    %v1106 = vpow.pop %v1105
    %v1107 = vadd.f32 %v1106, 1.0
    %v1108 = vrcp.pop %v1107
    %v1109 = vmul.f32 1.0, %v1108
    %v1110 = vxor.u32 %v1101, 2147483648
    %v1111 = vmul.f32 %v1110, 1.442695
    %v1112 = vpow.pop %v1111
    %v1113 = vadd.f32 %v1112, 1.0
    %v1114 = vrcp.pop %v1113
    %v1115 = vmul.f32 1.0, %v1114
    %v1116 = vtanh.pop %v1102
    %v1117 = vxor.u32 %v1103, 2147483648
    %v1118 = vmul.f32 %v1117, 1.442695
    %v1119 = vpow.pop %v1118
    %v1120 = vadd.f32 %v1119, 1.0
    %v1121 = vrcp.pop %v1120
    %v1122 = vmul.f32 1.0, %v1121
    %v1123 = vmul.f32 %v1115, %v152
    %v1124 = vmul.f32 %v1109, %v1116
    %v1125 = vadd.f32 %v1123, %v1124
    %v1126 = vtanh.pop %v1125
    %v1127 = vmul.f32 %v1122, %v1126
    %s1128 = scalar_lea.vmem %s0, 8
    %v1129 = vld [vmem:[%s1128] sm:$0xff]
    %s1130 = scalar_lea.vmem %s1, 8
    %v1131 = vld [vmem:[%s1130] sm:$0xff]
    %s1132 = scalar_lea.vmem %s2, 8
    %v1133 = vld [vmem:[%s1132] sm:$0xff]
    %v1135 = vsel %vm169, %v1133, 0
    %1137 = vmatprep.subr.mxu0 0.0
    %1138 = vmatpush1.msra.mxu0 0.0
    %1139 = vmatprep.subr.mxu0 0.0
    %1140 = vmatpush1.msra.mxu0 0.0
    %1141 = vmatprep.subr.mxu0 0.0
    %1142 = vmatpush1.msra.mxu0 0.0
    %1143 = vmatprep.subr.mxu0 0.0
    %1144 = vmatpush1.msra.mxu0 0.0
    %1145 = vmatprep.subr.mxu0 0.0
    %1146 = vmatpush1.msra.mxu0 0.0
    %1147 = vmatprep.subr.mxu0 0.0
    %1148 = vmatpush1.msra.mxu0 0.0
    %1149 = vmatprep.subr.mxu0 0.0
    %1150 = vmatpush1.msra.mxu0 0.0
    %1151 = vmatprep.subr.mxu0 0.0
    %1152 = vmatpush1.msra.mxu0 0.0
    %1153 = vmatprep.subr.mxu0 0.0
    %1154 = vmatpush1.msra.mxu0 0.0
    %1155 = vmatprep.subr.mxu0 0.0
    %1156 = vmatpush1.msra.mxu0 0.0
    %1157 = vmatprep.subr.mxu0 0.0
    %1158 = vmatpush1.msra.mxu0 0.0
    %1159 = vmatprep.subr.mxu0 0.0
    %1160 = vmatpush1.msra.mxu0 0.0
    %1161 = vmatprep.subr.mxu0 0.0
    %1162 = vmatpush1.msra.mxu0 0.0
    %1163 = vmatprep.subr.mxu0 0.0
    %1164 = vmatpush1.msra.mxu0 0.0
    %1165 = vmatprep.subr.mxu0 0.0
    %1166 = vmatpush1.msra.mxu0 0.0
    %1167 = vmatprep.subr.mxu0 %v176
    %1168 = vmatpush1.msra.mxu0 %v174
    %1169 = vmatprep.subr.mxu0 0.0
    %1170 = vmatpush2.msra.mxu0 0.0
    %1171 = vmatprep.subr.mxu0 0.0
    %1172 = vmatpush2.msra.mxu0 0.0
    %1173 = vmatprep.subr.mxu0 0.0
    %1174 = vmatpush2.msra.mxu0 0.0
    %1175 = vmatprep.subr.mxu0 0.0
    %1176 = vmatpush2.msra.mxu0 0.0
    %1177 = vmatprep.subr.mxu0 0.0
    %1178 = vmatpush2.msra.mxu0 0.0
    %1179 = vmatprep.subr.mxu0 0.0
    %1180 = vmatpush2.msra.mxu0 0.0
    %1181 = vmatprep.subr.mxu0 0.0
    %1182 = vmatpush2.msra.mxu0 0.0
    %1183 = vmatprep.subr.mxu0 0.0
    %1184 = vmatpush2.msra.mxu0 0.0
    %1185 = vmatprep.subr.mxu0 0.0
    %1186 = vmatpush2.msra.mxu0 0.0
    %1187 = vmatprep.subr.mxu0 0.0
    %1188 = vmatpush2.msra.mxu0 0.0
    %1189 = vmatprep.subr.mxu0 0.0
    %1190 = vmatpush2.msra.mxu0 0.0
    %1191 = vmatprep.subr.mxu0 0.0
    %1192 = vmatpush2.msra.mxu0 0.0
    %1193 = vmatprep.subr.mxu0 0.0
    %1194 = vmatpush2.msra.mxu0 0.0
    %1195 = vmatprep.subr.mxu0 0.0
    %1196 = vmatpush2.msra.mxu0 0.0
    %1197 = vmatprep.subr.mxu0 0.0
    %1198 = vmatpush2.msra.mxu0 0.0
    %1199 = vmatprep.subr.mxu0 0.0
    %1200 = vmatpush2.msra.mxu0 0.0
    %1201 = vmatprep.mubr.f32.mxu0 0.0
    %1202 = vmatmul.mubr.f32.gmra.mxu0 %v1135
    %v1203 = vpop.f32.mrf.mxu0
    %v1204 = vadd.f32 %v160, %v1203
    %v1205 = vpop.f32.mrf.mxu0
    %v1206 = vadd.f32 %v164, %v1205
    %1207 = vdwg.mxu0
    %v1208 = vmax.f32 %v1204, 0.0
    %v1209 = vmax.f32 %v1206, 0.0
    %v1210 = vsub.f32 0.0, %v1208
    %v1211 = vsub.f32 0.0, %v1209
    %v1212 = vmul.f32 %v1210, 1.442695
    %v1213 = vpow.pop %v1212
    %v1214 = vmul.f32 %v1211, 1.442695
    %v1215 = vpow.pop %v1214
    %v1216 = vmul.f32 %v1127, %v1213
    %1217 = vmatprep.subr.mxu0 %v136
    %1218 = vmatpush1.msra.mxu0 %v135
    %1219 = vmatprep.subr.mxu0 %v131
    %1220 = vmatpush1.msra.mxu0 %v130
    %1221 = vmatprep.subr.mxu0 %v126
    %1222 = vmatpush1.msra.mxu0 %v125
    %1223 = vmatprep.subr.mxu0 %v121
    %1224 = vmatpush1.msra.mxu0 %v120
    %1225 = vmatprep.subr.mxu0 %v116
    %1226 = vmatpush1.msra.mxu0 %v115
    %1227 = vmatprep.subr.mxu0 %v111
    %1228 = vmatpush1.msra.mxu0 %v110
    %1229 = vmatprep.subr.mxu0 %v106
    %1230 = vmatpush1.msra.mxu0 %v105
    %1231 = vmatprep.subr.mxu0 %v101
    %1232 = vmatpush1.msra.mxu0 %v100
    %1233 = vmatprep.subr.mxu0 %v96
    %1234 = vmatpush1.msra.mxu0 %v95
    %1235 = vmatprep.subr.mxu0 %v91
    %1236 = vmatpush1.msra.mxu0 %v90
    %1237 = vmatprep.subr.mxu0 %v86
    %1238 = vmatpush1.msra.mxu0 %v85
    %1239 = vmatprep.subr.mxu0 %v81
    %1240 = vmatpush1.msra.mxu0 %v80
    %1241 = vmatprep.subr.mxu0 %v76
    %1242 = vmatpush1.msra.mxu0 %v75
    %1243 = vmatprep.subr.mxu0 %v71
    %1244 = vmatpush1.msra.mxu0 %v70
    %1245 = vmatprep.subr.mxu0 %v66
    %1246 = vmatpush1.msra.mxu0 %v65
    %1247 = vmatprep.subr.mxu0 %v61
    %1248 = vmatpush1.msra.mxu0 %v60
    %1249 = vmatprep.subr.mxu0 0.0
    %1250 = vmatpush2.msra.mxu0 0.0
    %1251 = vmatprep.subr.mxu0 0.0
    %1252 = vmatpush2.msra.mxu0 0.0
    %1253 = vmatprep.subr.mxu0 0.0
    %1254 = vmatpush2.msra.mxu0 0.0
    %1255 = vmatprep.subr.mxu0 0.0
    %1256 = vmatpush2.msra.mxu0 0.0
    %1257 = vmatprep.subr.mxu0 0.0
    %1258 = vmatpush2.msra.mxu0 0.0
    %1259 = vmatprep.subr.mxu0 0.0
    %1260 = vmatpush2.msra.mxu0 0.0
    %1261 = vmatprep.subr.mxu0 0.0
    %1262 = vmatpush2.msra.mxu0 0.0
    %1263 = vmatprep.subr.mxu0 0.0
    %1264 = vmatpush2.msra.mxu0 0.0
    %1265 = vmatprep.subr.mxu0 0.0
    %1266 = vmatpush2.msra.mxu0 0.0
    %1267 = vmatprep.subr.mxu0 0.0
    %1268 = vmatpush2.msra.mxu0 0.0
    %1269 = vmatprep.subr.mxu0 0.0
    %1270 = vmatpush2.msra.mxu0 0.0
    %1271 = vmatprep.subr.mxu0 0.0
    %1272 = vmatpush2.msra.mxu0 0.0
    %1273 = vmatprep.subr.mxu0 0.0
    %1274 = vmatpush2.msra.mxu0 0.0
    %1275 = vmatprep.subr.mxu0 0.0
    %1276 = vmatpush2.msra.mxu0 0.0
    %1277 = vmatprep.subr.mxu0 0.0
    %1278 = vmatpush2.msra.mxu0 0.0
    %1279 = vmatprep.subr.mxu0 0.0
    %1280 = vmatpush2.msra.mxu0 0.0
    %1281 = vmatprep.mubr.f32.mxu0 0.0
    %1282 = vmatmul.mubr.f32.gmra.mxu0 %v1216
    %v1283 = vpop.f32.mrf.mxu0
    %v1284 = vadd.f32 0.0, %v1283
    %v1285 = vpop.f32.mrf.mxu0
    %v1286 = vadd.f32 0.0, %v1285
    %1287 = vdwg.mxu0
    %1288 = vmatprep.subr.mxu0 %v138
    %1289 = vmatpush1.msra.mxu0 %v137
    %1290 = vmatprep.subr.mxu0 %v133
    %1291 = vmatpush1.msra.mxu0 %v132
    %1292 = vmatprep.subr.mxu0 %v128
    %1293 = vmatpush1.msra.mxu0 %v127
    %1294 = vmatprep.subr.mxu0 %v123
    %1295 = vmatpush1.msra.mxu0 %v122
    %1296 = vmatprep.subr.mxu0 %v118
    %1297 = vmatpush1.msra.mxu0 %v117
    %1298 = vmatprep.subr.mxu0 %v113
    %1299 = vmatpush1.msra.mxu0 %v112
    %1300 = vmatprep.subr.mxu0 %v108
    %1301 = vmatpush1.msra.mxu0 %v107
    %1302 = vmatprep.subr.mxu0 %v103
    %1303 = vmatpush1.msra.mxu0 %v102
    %1304 = vmatprep.subr.mxu0 %v98
    %1305 = vmatpush1.msra.mxu0 %v97
    %1306 = vmatprep.subr.mxu0 %v93
    %1307 = vmatpush1.msra.mxu0 %v92
    %1308 = vmatprep.subr.mxu0 %v88
    %1309 = vmatpush1.msra.mxu0 %v87
    %1310 = vmatprep.subr.mxu0 %v83
    %1311 = vmatpush1.msra.mxu0 %v82
    %1312 = vmatprep.subr.mxu0 %v78
    %1313 = vmatpush1.msra.mxu0 %v77
    %1314 = vmatprep.subr.mxu0 %v73
    %1315 = vmatpush1.msra.mxu0 %v72
    %1316 = vmatprep.subr.mxu0 %v68
    %1317 = vmatpush1.msra.mxu0 %v67
    %1318 = vmatprep.subr.mxu0 %v63
    %1319 = vmatpush1.msra.mxu0 %v62
    %1320 = vmatprep.subr.mxu0 0.0
    %1321 = vmatpush2.msra.mxu0 0.0
    %1322 = vmatprep.subr.mxu0 0.0
    %1323 = vmatpush2.msra.mxu0 0.0
    %1324 = vmatprep.subr.mxu0 0.0
    %1325 = vmatpush2.msra.mxu0 0.0
    %1326 = vmatprep.subr.mxu0 0.0
    %1327 = vmatpush2.msra.mxu0 0.0
    %1328 = vmatprep.subr.mxu0 0.0
    %1329 = vmatpush2.msra.mxu0 0.0
    %1330 = vmatprep.subr.mxu0 0.0
    %1331 = vmatpush2.msra.mxu0 0.0
    %1332 = vmatprep.subr.mxu0 0.0
    %1333 = vmatpush2.msra.mxu0 0.0
    %1334 = vmatprep.subr.mxu0 0.0
    %1335 = vmatpush2.msra.mxu0 0.0
    %1336 = vmatprep.subr.mxu0 0.0
    %1337 = vmatpush2.msra.mxu0 0.0
    %1338 = vmatprep.subr.mxu0 0.0
    %1339 = vmatpush2.msra.mxu0 0.0
    %1340 = vmatprep.subr.mxu0 0.0
    %1341 = vmatpush2.msra.mxu0 0.0
    %1342 = vmatprep.subr.mxu0 0.0
    %1343 = vmatpush2.msra.mxu0 0.0
    %1344 = vmatprep.subr.mxu0 0.0
    %1345 = vmatpush2.msra.mxu0 0.0
    %1346 = vmatprep.subr.mxu0 0.0
    %1347 = vmatpush2.msra.mxu0 0.0
    %1348 = vmatprep.subr.mxu0 0.0
    %1349 = vmatpush2.msra.mxu0 0.0
    %1350 = vmatprep.subr.mxu0 0.0
    %1351 = vmatpush2.msra.mxu0 0.0
    %1352 = vmatprep.mubr.f32.mxu0 0.0
    %1353 = vmatmul.mubr.f32.gmra.mxu0 %v1216
    %v1354 = vpop.f32.mrf.mxu0
    %v1355 = vadd.f32 0.0, %v1354
    %v1356 = vpop.f32.mrf.mxu0
    %v1357 = vadd.f32 0.0, %v1356
    %1358 = vdwg.mxu0
    %1359 = vmatprep.subr.mxu0 0.0
    %1360 = vmatpush1.msra.mxu0 %v139
    %1361 = vmatprep.subr.mxu0 0.0
    %1362 = vmatpush1.msra.mxu0 %v134
    %1363 = vmatprep.subr.mxu0 0.0
    %1364 = vmatpush1.msra.mxu0 %v129
    %1365 = vmatprep.subr.mxu0 0.0
    %1366 = vmatpush1.msra.mxu0 %v124
    %1367 = vmatprep.subr.mxu0 0.0
    %1368 = vmatpush1.msra.mxu0 %v119
    %1369 = vmatprep.subr.mxu0 0.0
    %1370 = vmatpush1.msra.mxu0 %v114
    %1371 = vmatprep.subr.mxu0 0.0
    %1372 = vmatpush1.msra.mxu0 %v109
    %1373 = vmatprep.subr.mxu0 0.0
    %1374 = vmatpush1.msra.mxu0 %v104
    %1375 = vmatprep.subr.mxu0 0.0
    %1376 = vmatpush1.msra.mxu0 %v99
    %1377 = vmatprep.subr.mxu0 0.0
    %1378 = vmatpush1.msra.mxu0 %v94
    %1379 = vmatprep.subr.mxu0 0.0
    %1380 = vmatpush1.msra.mxu0 %v89
    %1381 = vmatprep.subr.mxu0 0.0
    %1382 = vmatpush1.msra.mxu0 %v84
    %1383 = vmatprep.subr.mxu0 0.0
    %1384 = vmatpush1.msra.mxu0 %v79
    %1385 = vmatprep.subr.mxu0 0.0
    %1386 = vmatpush1.msra.mxu0 %v74
    %1387 = vmatprep.subr.mxu0 0.0
    %1388 = vmatpush1.msra.mxu0 %v69
    %1389 = vmatprep.subr.mxu0 0.0
    %1390 = vmatpush1.msra.mxu0 %v64
    %1391 = vmatprep.subr.mxu0 0.0
    %1392 = vmatpush2.msra.mxu0 0.0
    %1393 = vmatprep.subr.mxu0 0.0
    %1394 = vmatpush2.msra.mxu0 0.0
    %1395 = vmatprep.subr.mxu0 0.0
    %1396 = vmatpush2.msra.mxu0 0.0
    %1397 = vmatprep.subr.mxu0 0.0
    %1398 = vmatpush2.msra.mxu0 0.0
    %1399 = vmatprep.subr.mxu0 0.0
    %1400 = vmatpush2.msra.mxu0 0.0
    %1401 = vmatprep.subr.mxu0 0.0
    %1402 = vmatpush2.msra.mxu0 0.0
    %1403 = vmatprep.subr.mxu0 0.0
    %1404 = vmatpush2.msra.mxu0 0.0
    %1405 = vmatprep.subr.mxu0 0.0
    %1406 = vmatpush2.msra.mxu0 0.0
    %1407 = vmatprep.subr.mxu0 0.0
    %1408 = vmatpush2.msra.mxu0 0.0
    %1409 = vmatprep.subr.mxu0 0.0
    %1410 = vmatpush2.msra.mxu0 0.0
    %1411 = vmatprep.subr.mxu0 0.0
    %1412 = vmatpush2.msra.mxu0 0.0
    %1413 = vmatprep.subr.mxu0 0.0
    %1414 = vmatpush2.msra.mxu0 0.0
    %1415 = vmatprep.subr.mxu0 0.0
    %1416 = vmatpush2.msra.mxu0 0.0
    %1417 = vmatprep.subr.mxu0 0.0
    %1418 = vmatpush2.msra.mxu0 0.0
    %1419 = vmatprep.subr.mxu0 0.0
    %1420 = vmatpush2.msra.mxu0 0.0
    %1421 = vmatprep.subr.mxu0 0.0
    %1422 = vmatpush2.msra.mxu0 0.0
    %1423 = vmatprep.mubr.f32.mxu0 0.0
    %1424 = vmatmul.mubr.f32.gmra.mxu0 %v1216
    %v1425 = vpop.f32.mrf.mxu0
    %v1426 = vadd.f32 0.0, %v1425
    %v1427 = vpop.f32.mrf.mxu0
    %1428 = vdwg.mxu0
    %v1429 = vadd.f32 %v1426, %v474
    %v1430 = vmul.f32 %v1131, %v1129
    %v1431 = vsub.f32 1.0, %v1131
    %v1432 = vmul.f32 %v1431, %v1429
    %v1433 = vadd.f32 %v1430, %v1432
    %v1435 = vsel %vm169, %v1433, 0
    %1437 = vmatprep.subr.mxu0 0.0
    %1438 = vmatpush1.msra.mxu0 0.0
    %1439 = vmatprep.subr.mxu0 0.0
    %1440 = vmatpush1.msra.mxu0 0.0
    %1441 = vmatprep.subr.mxu0 0.0
    %1442 = vmatpush1.msra.mxu0 0.0
    %1443 = vmatprep.subr.mxu0 0.0
    %1444 = vmatpush1.msra.mxu0 0.0
    %1445 = vmatprep.subr.mxu0 0.0
    %1446 = vmatpush1.msra.mxu0 0.0
    %1447 = vmatprep.subr.mxu0 0.0
    %1448 = vmatpush1.msra.mxu0 0.0
    %1449 = vmatprep.subr.mxu0 0.0
    %1450 = vmatpush1.msra.mxu0 0.0
    %1451 = vmatprep.subr.mxu0 0.0
    %1452 = vmatpush1.msra.mxu0 0.0
    %1453 = vmatprep.subr.mxu0 0.0
    %1454 = vmatpush1.msra.mxu0 0.0
    %1455 = vmatprep.subr.mxu0 0.0
    %1456 = vmatpush1.msra.mxu0 0.0
    %1457 = vmatprep.subr.mxu0 0.0
    %1458 = vmatpush1.msra.mxu0 0.0
    %1459 = vmatprep.subr.mxu0 0.0
    %1460 = vmatpush1.msra.mxu0 0.0
    %1461 = vmatprep.subr.mxu0 0.0
    %1462 = vmatpush1.msra.mxu0 0.0
    %1463 = vmatprep.subr.mxu0 0.0
    %1464 = vmatpush1.msra.mxu0 0.0
    %1465 = vmatprep.subr.mxu0 0.0
    %1466 = vmatpush1.msra.mxu0 0.0
    %1467 = vmatprep.subr.mxu0 0.0
    %1468 = vmatpush1.msra.mxu0 %v491
    %1469 = vmatprep.subr.mxu0 0.0
    %1470 = vmatpush2.msra.mxu0 0.0
    %1471 = vmatprep.subr.mxu0 0.0
    %1472 = vmatpush2.msra.mxu0 0.0
    %1473 = vmatprep.subr.mxu0 0.0
    %1474 = vmatpush2.msra.mxu0 0.0
    %1475 = vmatprep.subr.mxu0 0.0
    %1476 = vmatpush2.msra.mxu0 0.0
    %1477 = vmatprep.subr.mxu0 0.0
    %1478 = vmatpush2.msra.mxu0 0.0
    %1479 = vmatprep.subr.mxu0 0.0
    %1480 = vmatpush2.msra.mxu0 0.0
    %1481 = vmatprep.subr.mxu0 0.0
    %1482 = vmatpush2.msra.mxu0 0.0
    %1483 = vmatprep.subr.mxu0 0.0
    %1484 = vmatpush2.msra.mxu0 0.0
    %1485 = vmatprep.subr.mxu0 0.0
    %1486 = vmatpush2.msra.mxu0 0.0
    %1487 = vmatprep.subr.mxu0 0.0
    %1488 = vmatpush2.msra.mxu0 0.0
    %1489 = vmatprep.subr.mxu0 0.0
    %1490 = vmatpush2.msra.mxu0 0.0
    %1491 = vmatprep.subr.mxu0 0.0
    %1492 = vmatpush2.msra.mxu0 0.0
    %1493 = vmatprep.subr.mxu0 0.0
    %1494 = vmatpush2.msra.mxu0 0.0
    %1495 = vmatprep.subr.mxu0 0.0
    %1496 = vmatpush2.msra.mxu0 0.0
    %1497 = vmatprep.subr.mxu0 0.0
    %1498 = vmatpush2.msra.mxu0 0.0
    %1499 = vmatprep.subr.mxu0 0.0
    %1500 = vmatpush2.msra.mxu0 0.0
    %1501 = vmatprep.mubr.f32.mxu0 0.0
    %1502 = vmatmul.mubr.f32.gmra.mxu0 %v1435
    %v1503 = vpop.f32.mrf.mxu0
    %v1504 = vadd.f32 %v485, %v1503
    %v1505 = vpop.f32.mrf.mxu0
    %1506 = vdwg.mxu0
    %v1508 = vsel %vm169, %v1131, 0
    %1510 = vmatprep.subr.mxu0 0.0
    %1511 = vmatpush1.msra.mxu0 0.0
    %1512 = vmatprep.subr.mxu0 0.0
    %1513 = vmatpush1.msra.mxu0 0.0
    %1514 = vmatprep.subr.mxu0 0.0
    %1515 = vmatpush1.msra.mxu0 0.0
    %1516 = vmatprep.subr.mxu0 0.0
    %1517 = vmatpush1.msra.mxu0 0.0
    %1518 = vmatprep.subr.mxu0 0.0
    %1519 = vmatpush1.msra.mxu0 0.0
    %1520 = vmatprep.subr.mxu0 0.0
    %1521 = vmatpush1.msra.mxu0 0.0
    %1522 = vmatprep.subr.mxu0 0.0
    %1523 = vmatpush1.msra.mxu0 0.0
    %1524 = vmatprep.subr.mxu0 0.0
    %1525 = vmatpush1.msra.mxu0 0.0
    %1526 = vmatprep.subr.mxu0 0.0
    %1527 = vmatpush1.msra.mxu0 0.0
    %1528 = vmatprep.subr.mxu0 0.0
    %1529 = vmatpush1.msra.mxu0 0.0
    %1530 = vmatprep.subr.mxu0 0.0
    %1531 = vmatpush1.msra.mxu0 0.0
    %1532 = vmatprep.subr.mxu0 0.0
    %1533 = vmatpush1.msra.mxu0 0.0
    %1534 = vmatprep.subr.mxu0 0.0
    %1535 = vmatpush1.msra.mxu0 0.0
    %1536 = vmatprep.subr.mxu0 0.0
    %1537 = vmatpush1.msra.mxu0 0.0
    %1538 = vmatprep.subr.mxu0 0.0
    %1539 = vmatpush1.msra.mxu0 0.0
    %1540 = vmatprep.subr.mxu0 %v573
    %1541 = vmatpush1.msra.mxu0 %v571
    %1542 = vmatprep.subr.mxu0 0.0
    %1543 = vmatpush2.msra.mxu0 0.0
    %1544 = vmatprep.subr.mxu0 0.0
    %1545 = vmatpush2.msra.mxu0 0.0
    %1546 = vmatprep.subr.mxu0 0.0
    %1547 = vmatpush2.msra.mxu0 0.0
    %1548 = vmatprep.subr.mxu0 0.0
    %1549 = vmatpush2.msra.mxu0 0.0
    %1550 = vmatprep.subr.mxu0 0.0
    %1551 = vmatpush2.msra.mxu0 0.0
    %1552 = vmatprep.subr.mxu0 0.0
    %1553 = vmatpush2.msra.mxu0 0.0
    %1554 = vmatprep.subr.mxu0 0.0
    %1555 = vmatpush2.msra.mxu0 0.0
    %1556 = vmatprep.subr.mxu0 0.0
    %1557 = vmatpush2.msra.mxu0 0.0
    %1558 = vmatprep.subr.mxu0 0.0
    %1559 = vmatpush2.msra.mxu0 0.0
    %1560 = vmatprep.subr.mxu0 0.0
    %1561 = vmatpush2.msra.mxu0 0.0
    %1562 = vmatprep.subr.mxu0 0.0
    %1563 = vmatpush2.msra.mxu0 0.0
    %1564 = vmatprep.subr.mxu0 0.0
    %1565 = vmatpush2.msra.mxu0 0.0
    %1566 = vmatprep.subr.mxu0 0.0
    %1567 = vmatpush2.msra.mxu0 0.0
    %1568 = vmatprep.subr.mxu0 0.0
    %1569 = vmatpush2.msra.mxu0 0.0
    %1570 = vmatprep.subr.mxu0 0.0
    %1571 = vmatpush2.msra.mxu0 0.0
    %1572 = vmatprep.subr.mxu0 0.0
    %1573 = vmatpush2.msra.mxu0 0.0
    %1574 = vmatprep.mubr.f32.mxu0 0.0
    %1575 = vmatmul.mubr.f32.gmra.mxu0 %v1508
    %v1576 = vpop.f32.mrf.mxu0
    %v1577 = vadd.f32 0.0, %v1576
    %v1578 = vpop.f32.mrf.mxu0
    %v1579 = vadd.f32 0.0, %v1578
    %1580 = vdwg.mxu0
    %1581 = vmatprep.subr.mxu0 0.0
    %1582 = vmatpush1.msra.mxu0 0.0
    %1583 = vmatprep.subr.mxu0 0.0
    %1584 = vmatpush1.msra.mxu0 0.0
    %1585 = vmatprep.subr.mxu0 0.0
    %1586 = vmatpush1.msra.mxu0 0.0
    %1587 = vmatprep.subr.mxu0 0.0
    %1588 = vmatpush1.msra.mxu0 0.0
    %1589 = vmatprep.subr.mxu0 0.0
    %1590 = vmatpush1.msra.mxu0 0.0
    %1591 = vmatprep.subr.mxu0 0.0
    %1592 = vmatpush1.msra.mxu0 0.0
    %1593 = vmatprep.subr.mxu0 0.0
    %1594 = vmatpush1.msra.mxu0 0.0
    %1595 = vmatprep.subr.mxu0 0.0
    %1596 = vmatpush1.msra.mxu0 0.0
    %1597 = vmatprep.subr.mxu0 0.0
    %1598 = vmatpush1.msra.mxu0 0.0
    %1599 = vmatprep.subr.mxu0 0.0
    %1600 = vmatpush1.msra.mxu0 0.0
    %1601 = vmatprep.subr.mxu0 0.0
    %1602 = vmatpush1.msra.mxu0 0.0
    %1603 = vmatprep.subr.mxu0 0.0
    %1604 = vmatpush1.msra.mxu0 0.0
    %1605 = vmatprep.subr.mxu0 0.0
    %1606 = vmatpush1.msra.mxu0 0.0
    %1607 = vmatprep.subr.mxu0 0.0
    %1608 = vmatpush1.msra.mxu0 0.0
    %1609 = vmatprep.subr.mxu0 0.0
    %1610 = vmatpush1.msra.mxu0 0.0
    %1611 = vmatprep.subr.mxu0 %v577
    %1612 = vmatpush1.msra.mxu0 %v575
    %1613 = vmatprep.subr.mxu0 0.0
    %1614 = vmatpush2.msra.mxu0 0.0
    %1615 = vmatprep.subr.mxu0 0.0
    %1616 = vmatpush2.msra.mxu0 0.0
    %1617 = vmatprep.subr.mxu0 0.0
    %1618 = vmatpush2.msra.mxu0 0.0
    %1619 = vmatprep.subr.mxu0 0.0
    %1620 = vmatpush2.msra.mxu0 0.0
    %1621 = vmatprep.subr.mxu0 0.0
    %1622 = vmatpush2.msra.mxu0 0.0
    %1623 = vmatprep.subr.mxu0 0.0
    %1624 = vmatpush2.msra.mxu0 0.0
    %1625 = vmatprep.subr.mxu0 0.0
    %1626 = vmatpush2.msra.mxu0 0.0
    %1627 = vmatprep.subr.mxu0 0.0
    %1628 = vmatpush2.msra.mxu0 0.0
    %1629 = vmatprep.subr.mxu0 0.0
    %1630 = vmatpush2.msra.mxu0 0.0
    %1631 = vmatprep.subr.mxu0 0.0
    %1632 = vmatpush2.msra.mxu0 0.0
    %1633 = vmatprep.subr.mxu0 0.0
    %1634 = vmatpush2.msra.mxu0 0.0
    %1635 = vmatprep.subr.mxu0 0.0
    %1636 = vmatpush2.msra.mxu0 0.0
    %1637 = vmatprep.subr.mxu0 0.0
    %1638 = vmatpush2.msra.mxu0 0.0
    %1639 = vmatprep.subr.mxu0 0.0
    %1640 = vmatpush2.msra.mxu0 0.0
    %1641 = vmatprep.subr.mxu0 0.0
    %1642 = vmatpush2.msra.mxu0 0.0
    %1643 = vmatprep.subr.mxu0 0.0
    %1644 = vmatpush2.msra.mxu0 0.0
    %1645 = vmatprep.mubr.f32.mxu0 0.0
    %1646 = vmatmul.mubr.f32.gmra.mxu0 %v1508
    %v1647 = vpop.f32.mrf.mxu0
    %v1648 = vadd.f32 0.0, %v1647
    %v1649 = vpop.f32.mrf.mxu0
    %v1650 = vadd.f32 0.0, %v1649
    %1651 = vdwg.mxu0
    %1652 = vmatprep.subr.mxu0 0.0
    %1653 = vmatpush1.msra.mxu0 0.0
    %1654 = vmatprep.subr.mxu0 0.0
    %1655 = vmatpush1.msra.mxu0 0.0
    %1656 = vmatprep.subr.mxu0 0.0
    %1657 = vmatpush1.msra.mxu0 0.0
    %1658 = vmatprep.subr.mxu0 0.0
    %1659 = vmatpush1.msra.mxu0 0.0
    %1660 = vmatprep.subr.mxu0 0.0
    %1661 = vmatpush1.msra.mxu0 0.0
    %1662 = vmatprep.subr.mxu0 0.0
    %1663 = vmatpush1.msra.mxu0 0.0
    %1664 = vmatprep.subr.mxu0 0.0
    %1665 = vmatpush1.msra.mxu0 0.0
    %1666 = vmatprep.subr.mxu0 0.0
    %1667 = vmatpush1.msra.mxu0 0.0
    %1668 = vmatprep.subr.mxu0 0.0
    %1669 = vmatpush1.msra.mxu0 0.0
    %1670 = vmatprep.subr.mxu0 0.0
    %1671 = vmatpush1.msra.mxu0 0.0
    %1672 = vmatprep.subr.mxu0 0.0
    %1673 = vmatpush1.msra.mxu0 0.0
    %1674 = vmatprep.subr.mxu0 0.0
    %1675 = vmatpush1.msra.mxu0 0.0
    %1676 = vmatprep.subr.mxu0 0.0
    %1677 = vmatpush1.msra.mxu0 0.0
    %1678 = vmatprep.subr.mxu0 0.0
    %1679 = vmatpush1.msra.mxu0 0.0
    %1680 = vmatprep.subr.mxu0 0.0
    %1681 = vmatpush1.msra.mxu0 0.0
    %1682 = vmatprep.subr.mxu0 0.0
    %1683 = vmatpush1.msra.mxu0 %v579
    %1684 = vmatprep.subr.mxu0 0.0
    %1685 = vmatpush2.msra.mxu0 0.0
    %1686 = vmatprep.subr.mxu0 0.0
    %1687 = vmatpush2.msra.mxu0 0.0
    %1688 = vmatprep.subr.mxu0 0.0
    %1689 = vmatpush2.msra.mxu0 0.0
    %1690 = vmatprep.subr.mxu0 0.0
    %1691 = vmatpush2.msra.mxu0 0.0
    %1692 = vmatprep.subr.mxu0 0.0
    %1693 = vmatpush2.msra.mxu0 0.0
    %1694 = vmatprep.subr.mxu0 0.0
    %1695 = vmatpush2.msra.mxu0 0.0
    %1696 = vmatprep.subr.mxu0 0.0
    %1697 = vmatpush2.msra.mxu0 0.0
    %1698 = vmatprep.subr.mxu0 0.0
    %1699 = vmatpush2.msra.mxu0 0.0
    %1700 = vmatprep.subr.mxu0 0.0
    %1701 = vmatpush2.msra.mxu0 0.0
    %1702 = vmatprep.subr.mxu0 0.0
    %1703 = vmatpush2.msra.mxu0 0.0
    %1704 = vmatprep.subr.mxu0 0.0
    %1705 = vmatpush2.msra.mxu0 0.0
    %1706 = vmatprep.subr.mxu0 0.0
    %1707 = vmatpush2.msra.mxu0 0.0
    %1708 = vmatprep.subr.mxu0 0.0
    %1709 = vmatpush2.msra.mxu0 0.0
    %1710 = vmatprep.subr.mxu0 0.0
    %1711 = vmatpush2.msra.mxu0 0.0
    %1712 = vmatprep.subr.mxu0 0.0
    %1713 = vmatpush2.msra.mxu0 0.0
    %1714 = vmatprep.subr.mxu0 0.0
    %1715 = vmatpush2.msra.mxu0 0.0
    %1716 = vmatprep.mubr.f32.mxu0 0.0
    %1717 = vmatmul.mubr.f32.gmra.mxu0 %v1508
    %v1718 = vpop.f32.mrf.mxu0
    %v1719 = vadd.f32 0.0, %v1718
    %v1720 = vpop.f32.mrf.mxu0
    %1721 = vdwg.mxu0
    %v1723 = vsel %vm169, %v1215, 0
    %1725 = vmatprep.subr.mxu0 0.0
    %1726 = vmatpush1.msra.mxu0 0.0
    %1727 = vmatprep.subr.mxu0 0.0
    %1728 = vmatpush1.msra.mxu0 0.0
    %1729 = vmatprep.subr.mxu0 0.0
    %1730 = vmatpush1.msra.mxu0 0.0
    %1731 = vmatprep.subr.mxu0 0.0
    %1732 = vmatpush1.msra.mxu0 0.0
    %1733 = vmatprep.subr.mxu0 0.0
    %1734 = vmatpush1.msra.mxu0 0.0
    %1735 = vmatprep.subr.mxu0 0.0
    %1736 = vmatpush1.msra.mxu0 0.0
    %1737 = vmatprep.subr.mxu0 0.0
    %1738 = vmatpush1.msra.mxu0 0.0
    %1739 = vmatprep.subr.mxu0 0.0
    %1740 = vmatpush1.msra.mxu0 0.0
    %1741 = vmatprep.subr.mxu0 0.0
    %1742 = vmatpush1.msra.mxu0 0.0
    %1743 = vmatprep.subr.mxu0 0.0
    %1744 = vmatpush1.msra.mxu0 0.0
    %1745 = vmatprep.subr.mxu0 0.0
    %1746 = vmatpush1.msra.mxu0 0.0
    %1747 = vmatprep.subr.mxu0 0.0
    %1748 = vmatpush1.msra.mxu0 0.0
    %1749 = vmatprep.subr.mxu0 0.0
    %1750 = vmatpush1.msra.mxu0 0.0
    %1751 = vmatprep.subr.mxu0 0.0
    %1752 = vmatpush1.msra.mxu0 0.0
    %1753 = vmatprep.subr.mxu0 0.0
    %1754 = vmatpush1.msra.mxu0 0.0
    %1755 = vmatprep.subr.mxu0 0.0
    %1756 = vmatpush1.msra.mxu0 %v797
    %1757 = vmatprep.subr.mxu0 0.0
    %1758 = vmatpush2.msra.mxu0 0.0
    %1759 = vmatprep.subr.mxu0 0.0
    %1760 = vmatpush2.msra.mxu0 0.0
    %1761 = vmatprep.subr.mxu0 0.0
    %1762 = vmatpush2.msra.mxu0 0.0
    %1763 = vmatprep.subr.mxu0 0.0
    %1764 = vmatpush2.msra.mxu0 0.0
    %1765 = vmatprep.subr.mxu0 0.0
    %1766 = vmatpush2.msra.mxu0 0.0
    %1767 = vmatprep.subr.mxu0 0.0
    %1768 = vmatpush2.msra.mxu0 0.0
    %1769 = vmatprep.subr.mxu0 0.0
    %1770 = vmatpush2.msra.mxu0 0.0
    %1771 = vmatprep.subr.mxu0 0.0
    %1772 = vmatpush2.msra.mxu0 0.0
    %1773 = vmatprep.subr.mxu0 0.0
    %1774 = vmatpush2.msra.mxu0 0.0
    %1775 = vmatprep.subr.mxu0 0.0
    %1776 = vmatpush2.msra.mxu0 0.0
    %1777 = vmatprep.subr.mxu0 0.0
    %1778 = vmatpush2.msra.mxu0 0.0
    %1779 = vmatprep.subr.mxu0 0.0
    %1780 = vmatpush2.msra.mxu0 0.0
    %1781 = vmatprep.subr.mxu0 0.0
    %1782 = vmatpush2.msra.mxu0 0.0
    %1783 = vmatprep.subr.mxu0 0.0
    %1784 = vmatpush2.msra.mxu0 0.0
    %1785 = vmatprep.subr.mxu0 0.0
    %1786 = vmatpush2.msra.mxu0 0.0
    %1787 = vmatprep.subr.mxu0 0.0
    %1788 = vmatpush2.msra.mxu0 0.0
    %1789 = vmatprep.mubr.f32.mxu0 0.0
    %1790 = vmatmul.mubr.f32.gmra.mxu0 %v1723
    %v1791 = vpop.f32.mrf.mxu0
    %v1792 = vadd.f32 %v1719, %v1791
    %v1793 = vpop.f32.mrf.mxu0
    %1794 = vdwg.mxu0
    %v1795 = vadd.f32 %v1792, %v873
    %v1796 = vmul.f32 %v1795, %v1504
    %v1797 = vsub.f32 1.0, %v1795
    %v1798 = vmul.f32 %v1797, %v1429
    %v1799 = vadd.f32 %v1796, %v1798
    %v1800 = vsub.f32 %v1129, %v1429
    %v1801 = vand.u32 2147483647, %v1800
    %v1802 = vsub.f32 %v1129, %v1504
    %v1803 = vand.u32 2147483647, %v1802
    %v1804 = vadd.f32 %v1801, %v1803
    %v1805 = vsub.f32 %v1129, %v1799
    %v1806 = vand.u32 2147483647, %v1805
    %v1807 = vadd.f32 %v1804, %v1806
    %v1808 = vmul.f32 %v1807, %v1131
    %v1809 = vsel %vm169, %v1808, 0.0
    %1810 = vadd.xlane.f32.xlu0 %v1809
    %v1811 = vpop.xlane.xlu0 %1810
    %v1812 = vrot.slane %v1811, 4
    %v1813 = vadd.f32 %v1811, %v1812
    %v1814 = vrot.slane %v1813, 2
    %v1815 = vadd.f32 %v1813, %v1814
    %v1816 = vrot.slane %v1815, 1
    %v1817 = vadd.f32 %v1815, %v1816
    %s1818 = vtos %v1817
    %v1819 = vsel %vm169, %v1131, 0.0
    %1820 = vadd.xlane.f32.xlu0 %v1819
    %v1821 = vpop.xlane.xlu0 %1820
    %v1822 = vrot.slane %v1821, 4
    %v1823 = vadd.f32 %v1821, %v1822
    %v1824 = vrot.slane %v1823, 2
    %v1825 = vadd.f32 %v1823, %v1824
    %v1826 = vrot.slane %v1825, 1
    %v1827 = vadd.f32 %v1825, %v1826
    %s1828 = vtos %v1827
    %s1829 = sadd.f32 %s1828, 1e-05
    %v1830 = vstv %s1829
    %v1831 = vrcp.pop %v1830
    %s1832 = vtos %v1831
    %s1833 = smul.f32 %s1818, %s1832
    %s1834 = sadd.f32 %s914, %s1833
    %v1835 = vmul.f32 %v1431, %v1799
    %v1836 = vadd.f32 %v1430, %v1835
    %s1837 = scalar_lea.vmem %s14, 8
    %1838 = vst.msk [vmem:[%s1837] sm:$0xff] %vm169, %v1836
    %v1840 = vsel %vm169, %v1836, 0
    %1842 = vmatprep.subr.mxu0 0.0
    %1843 = vmatpush1.msra.mxu0 0.0
    %1844 = vmatprep.subr.mxu0 0.0
    %1845 = vmatpush1.msra.mxu0 0.0
    %1846 = vmatprep.subr.mxu0 0.0
    %1847 = vmatpush1.msra.mxu0 0.0
    %1848 = vmatprep.subr.mxu0 0.0
    %1849 = vmatpush1.msra.mxu0 0.0
    %1850 = vmatprep.subr.mxu0 0.0
    %1851 = vmatpush1.msra.mxu0 0.0
    %1852 = vmatprep.subr.mxu0 0.0
    %1853 = vmatpush1.msra.mxu0 0.0
    %1854 = vmatprep.subr.mxu0 0.0
    %1855 = vmatpush1.msra.mxu0 0.0
    %1856 = vmatprep.subr.mxu0 0.0
    %1857 = vmatpush1.msra.mxu0 0.0
    %1858 = vmatprep.subr.mxu0 0.0
    %1859 = vmatpush1.msra.mxu0 0.0
    %1860 = vmatprep.subr.mxu0 0.0
    %1861 = vmatpush1.msra.mxu0 0.0
    %1862 = vmatprep.subr.mxu0 0.0
    %1863 = vmatpush1.msra.mxu0 0.0
    %1864 = vmatprep.subr.mxu0 0.0
    %1865 = vmatpush1.msra.mxu0 0.0
    %1866 = vmatprep.subr.mxu0 0.0
    %1867 = vmatpush1.msra.mxu0 0.0
    %1868 = vmatprep.subr.mxu0 0.0
    %1869 = vmatpush1.msra.mxu0 0.0
    %1870 = vmatprep.subr.mxu0 0.0
    %1871 = vmatpush1.msra.mxu0 0.0
    %1872 = vmatprep.subr.mxu0 %v927
    %1873 = vmatpush1.msra.mxu0 %v925
    %1874 = vmatprep.subr.mxu0 0.0
    %1875 = vmatpush2.msra.mxu0 0.0
    %1876 = vmatprep.subr.mxu0 0.0
    %1877 = vmatpush2.msra.mxu0 0.0
    %1878 = vmatprep.subr.mxu0 0.0
    %1879 = vmatpush2.msra.mxu0 0.0
    %1880 = vmatprep.subr.mxu0 0.0
    %1881 = vmatpush2.msra.mxu0 0.0
    %1882 = vmatprep.subr.mxu0 0.0
    %1883 = vmatpush2.msra.mxu0 0.0
    %1884 = vmatprep.subr.mxu0 0.0
    %1885 = vmatpush2.msra.mxu0 0.0
    %1886 = vmatprep.subr.mxu0 0.0
    %1887 = vmatpush2.msra.mxu0 0.0
    %1888 = vmatprep.subr.mxu0 0.0
    %1889 = vmatpush2.msra.mxu0 0.0
    %1890 = vmatprep.subr.mxu0 0.0
    %1891 = vmatpush2.msra.mxu0 0.0
    %1892 = vmatprep.subr.mxu0 0.0
    %1893 = vmatpush2.msra.mxu0 0.0
    %1894 = vmatprep.subr.mxu0 0.0
    %1895 = vmatpush2.msra.mxu0 0.0
    %1896 = vmatprep.subr.mxu0 0.0
    %1897 = vmatpush2.msra.mxu0 0.0
    %1898 = vmatprep.subr.mxu0 0.0
    %1899 = vmatpush2.msra.mxu0 0.0
    %1900 = vmatprep.subr.mxu0 0.0
    %1901 = vmatpush2.msra.mxu0 0.0
    %1902 = vmatprep.subr.mxu0 0.0
    %1903 = vmatpush2.msra.mxu0 0.0
    %1904 = vmatprep.subr.mxu0 0.0
    %1905 = vmatpush2.msra.mxu0 0.0
    %1906 = vmatprep.mubr.f32.mxu0 0.0
    %1907 = vmatmul.mubr.f32.gmra.mxu0 %v1840
    %v1908 = vpop.f32.mrf.mxu0
    %v1909 = vadd.f32 %v1577, %v1908
    %v1910 = vpop.f32.mrf.mxu0
    %v1911 = vadd.f32 %v1579, %v1910
    %1912 = vdwg.mxu0
    %1913 = vmatprep.subr.mxu0 0.0
    %1914 = vmatpush1.msra.mxu0 0.0
    %1915 = vmatprep.subr.mxu0 0.0
    %1916 = vmatpush1.msra.mxu0 0.0
    %1917 = vmatprep.subr.mxu0 0.0
    %1918 = vmatpush1.msra.mxu0 0.0
    %1919 = vmatprep.subr.mxu0 0.0
    %1920 = vmatpush1.msra.mxu0 0.0
    %1921 = vmatprep.subr.mxu0 0.0
    %1922 = vmatpush1.msra.mxu0 0.0
    %1923 = vmatprep.subr.mxu0 0.0
    %1924 = vmatpush1.msra.mxu0 0.0
    %1925 = vmatprep.subr.mxu0 0.0
    %1926 = vmatpush1.msra.mxu0 0.0
    %1927 = vmatprep.subr.mxu0 0.0
    %1928 = vmatpush1.msra.mxu0 0.0
    %1929 = vmatprep.subr.mxu0 0.0
    %1930 = vmatpush1.msra.mxu0 0.0
    %1931 = vmatprep.subr.mxu0 0.0
    %1932 = vmatpush1.msra.mxu0 0.0
    %1933 = vmatprep.subr.mxu0 0.0
    %1934 = vmatpush1.msra.mxu0 0.0
    %1935 = vmatprep.subr.mxu0 0.0
    %1936 = vmatpush1.msra.mxu0 0.0
    %1937 = vmatprep.subr.mxu0 0.0
    %1938 = vmatpush1.msra.mxu0 0.0
    %1939 = vmatprep.subr.mxu0 0.0
    %1940 = vmatpush1.msra.mxu0 0.0
    %1941 = vmatprep.subr.mxu0 0.0
    %1942 = vmatpush1.msra.mxu0 0.0
    %1943 = vmatprep.subr.mxu0 %v931
    %1944 = vmatpush1.msra.mxu0 %v929
    %1945 = vmatprep.subr.mxu0 0.0
    %1946 = vmatpush2.msra.mxu0 0.0
    %1947 = vmatprep.subr.mxu0 0.0
    %1948 = vmatpush2.msra.mxu0 0.0
    %1949 = vmatprep.subr.mxu0 0.0
    %1950 = vmatpush2.msra.mxu0 0.0
    %1951 = vmatprep.subr.mxu0 0.0
    %1952 = vmatpush2.msra.mxu0 0.0
    %1953 = vmatprep.subr.mxu0 0.0
    %1954 = vmatpush2.msra.mxu0 0.0
    %1955 = vmatprep.subr.mxu0 0.0
    %1956 = vmatpush2.msra.mxu0 0.0
    %1957 = vmatprep.subr.mxu0 0.0
    %1958 = vmatpush2.msra.mxu0 0.0
    %1959 = vmatprep.subr.mxu0 0.0
    %1960 = vmatpush2.msra.mxu0 0.0
    %1961 = vmatprep.subr.mxu0 0.0
    %1962 = vmatpush2.msra.mxu0 0.0
    %1963 = vmatprep.subr.mxu0 0.0
    %1964 = vmatpush2.msra.mxu0 0.0
    %1965 = vmatprep.subr.mxu0 0.0
    %1966 = vmatpush2.msra.mxu0 0.0
    %1967 = vmatprep.subr.mxu0 0.0
    %1968 = vmatpush2.msra.mxu0 0.0
    %1969 = vmatprep.subr.mxu0 0.0
    %1970 = vmatpush2.msra.mxu0 0.0
    %1971 = vmatprep.subr.mxu0 0.0
    %1972 = vmatpush2.msra.mxu0 0.0
    %1973 = vmatprep.subr.mxu0 0.0
    %1974 = vmatpush2.msra.mxu0 0.0
    %1975 = vmatprep.subr.mxu0 0.0
    %1976 = vmatpush2.msra.mxu0 0.0
    %1977 = vmatprep.mubr.f32.mxu0 0.0
    %1978 = vmatmul.mubr.f32.gmra.mxu0 %v1840
    %v1979 = vpop.f32.mrf.mxu0
    %v1980 = vadd.f32 %v1648, %v1979
    %v1981 = vpop.f32.mrf.mxu0
    %v1982 = vadd.f32 %v1650, %v1981
    %1983 = vdwg.mxu0
    %v1984 = vadd.f32 %v1909, %v1284
    %v1985 = vadd.f32 %v1911, %v1286
    %v1986 = vadd.f32 %v1980, %v1355
    %v1987 = vadd.f32 %v1982, %v1357
    %v1988 = vadd.f32 %v1984, %v1083
    %v1989 = vadd.f32 %v1985, %v1087
    %v1990 = vadd.f32 %v1986, %v1091
    %v1991 = vadd.f32 %v1987, %v1095
    %v1992 = vxor.u32 %v1988, 2147483648
    %v1993 = vmul.f32 %v1992, 1.442695
    %v1994 = vpow.pop %v1993
    %v1995 = vadd.f32 %v1994, 1.0
    %v1996 = vrcp.pop %v1995
    %v1997 = vmul.f32 1.0, %v1996
    %v1998 = vxor.u32 %v1989, 2147483648
    %v1999 = vmul.f32 %v1998, 1.442695
    %v2000 = vpow.pop %v1999
    %v2001 = vadd.f32 %v2000, 1.0
    %v2002 = vrcp.pop %v2001
    %v2003 = vmul.f32 1.0, %v2002
    %v2004 = vtanh.pop %v1990
    %v2005 = vxor.u32 %v1991, 2147483648
    %v2006 = vmul.f32 %v2005, 1.442695
    %v2007 = vpow.pop %v2006
    %v2008 = vadd.f32 %v2007, 1.0
    %v2009 = vrcp.pop %v2008
    %v2010 = vmul.f32 1.0, %v2009
    %v2011 = vmul.f32 %v2003, %v1125
    %v2012 = vmul.f32 %v1997, %v2004
    %v2013 = vadd.f32 %v2011, %v2012
    %v2014 = vtanh.pop %v2013
    %v2015 = vmul.f32 %v2010, %v2014
    %s2016 = scalar_lea.vmem %s0, 16
    %v2017 = vld [vmem:[%s2016] sm:$0xff]
    %s2018 = scalar_lea.vmem %s1, 16
    %v2019 = vld [vmem:[%s2018] sm:$0xff]
    %s2020 = scalar_lea.vmem %s2, 16
    %v2021 = vld [vmem:[%s2020] sm:$0xff]
    %v2023 = vsel %vm169, %v2021, 0
    %2025 = vmatprep.subr.mxu0 0.0
    %2026 = vmatpush1.msra.mxu0 0.0
    %2027 = vmatprep.subr.mxu0 0.0
    %2028 = vmatpush1.msra.mxu0 0.0
    %2029 = vmatprep.subr.mxu0 0.0
    %2030 = vmatpush1.msra.mxu0 0.0
    %2031 = vmatprep.subr.mxu0 0.0
    %2032 = vmatpush1.msra.mxu0 0.0
    %2033 = vmatprep.subr.mxu0 0.0
    %2034 = vmatpush1.msra.mxu0 0.0
    %2035 = vmatprep.subr.mxu0 0.0
    %2036 = vmatpush1.msra.mxu0 0.0
    %2037 = vmatprep.subr.mxu0 0.0
    %2038 = vmatpush1.msra.mxu0 0.0
    %2039 = vmatprep.subr.mxu0 0.0
    %2040 = vmatpush1.msra.mxu0 0.0
    %2041 = vmatprep.subr.mxu0 0.0
    %2042 = vmatpush1.msra.mxu0 0.0
    %2043 = vmatprep.subr.mxu0 0.0
    %2044 = vmatpush1.msra.mxu0 0.0
    %2045 = vmatprep.subr.mxu0 0.0
    %2046 = vmatpush1.msra.mxu0 0.0
    %2047 = vmatprep.subr.mxu0 0.0
    %2048 = vmatpush1.msra.mxu0 0.0
    %2049 = vmatprep.subr.mxu0 0.0
    %2050 = vmatpush1.msra.mxu0 0.0
    %2051 = vmatprep.subr.mxu0 0.0
    %2052 = vmatpush1.msra.mxu0 0.0
    %2053 = vmatprep.subr.mxu0 0.0
    %2054 = vmatpush1.msra.mxu0 0.0
    %2055 = vmatprep.subr.mxu0 %v176
    %2056 = vmatpush1.msra.mxu0 %v174
    %2057 = vmatprep.subr.mxu0 0.0
    %2058 = vmatpush2.msra.mxu0 0.0
    %2059 = vmatprep.subr.mxu0 0.0
    %2060 = vmatpush2.msra.mxu0 0.0
    %2061 = vmatprep.subr.mxu0 0.0
    %2062 = vmatpush2.msra.mxu0 0.0
    %2063 = vmatprep.subr.mxu0 0.0
    %2064 = vmatpush2.msra.mxu0 0.0
    %2065 = vmatprep.subr.mxu0 0.0
    %2066 = vmatpush2.msra.mxu0 0.0
    %2067 = vmatprep.subr.mxu0 0.0
    %2068 = vmatpush2.msra.mxu0 0.0
    %2069 = vmatprep.subr.mxu0 0.0
    %2070 = vmatpush2.msra.mxu0 0.0
    %2071 = vmatprep.subr.mxu0 0.0
    %2072 = vmatpush2.msra.mxu0 0.0
    %2073 = vmatprep.subr.mxu0 0.0
    %2074 = vmatpush2.msra.mxu0 0.0
    %2075 = vmatprep.subr.mxu0 0.0
    %2076 = vmatpush2.msra.mxu0 0.0
    %2077 = vmatprep.subr.mxu0 0.0
    %2078 = vmatpush2.msra.mxu0 0.0
    %2079 = vmatprep.subr.mxu0 0.0
    %2080 = vmatpush2.msra.mxu0 0.0
    %2081 = vmatprep.subr.mxu0 0.0
    %2082 = vmatpush2.msra.mxu0 0.0
    %2083 = vmatprep.subr.mxu0 0.0
    %2084 = vmatpush2.msra.mxu0 0.0
    %2085 = vmatprep.subr.mxu0 0.0
    %2086 = vmatpush2.msra.mxu0 0.0
    %2087 = vmatprep.subr.mxu0 0.0
    %2088 = vmatpush2.msra.mxu0 0.0
    %2089 = vmatprep.mubr.f32.mxu0 0.0
    %2090 = vmatmul.mubr.f32.gmra.mxu0 %v2023
    %v2091 = vpop.f32.mrf.mxu0
    %v2092 = vadd.f32 %v160, %v2091
    %v2093 = vpop.f32.mrf.mxu0
    %v2094 = vadd.f32 %v164, %v2093
    %2095 = vdwg.mxu0
    %v2096 = vmax.f32 %v2092, 0.0
    %v2097 = vmax.f32 %v2094, 0.0
    %v2098 = vsub.f32 0.0, %v2096
    %v2099 = vsub.f32 0.0, %v2097
    %v2100 = vmul.f32 %v2098, 1.442695
    %v2101 = vpow.pop %v2100
    %v2102 = vmul.f32 %v2099, 1.442695
    %v2103 = vpow.pop %v2102
    %v2104 = vmul.f32 %v2015, %v2101
    %2105 = vmatprep.subr.mxu0 %v136
    %2106 = vmatpush1.msra.mxu0 %v135
    %2107 = vmatprep.subr.mxu0 %v131
    %2108 = vmatpush1.msra.mxu0 %v130
    %2109 = vmatprep.subr.mxu0 %v126
    %2110 = vmatpush1.msra.mxu0 %v125
    %2111 = vmatprep.subr.mxu0 %v121
    %2112 = vmatpush1.msra.mxu0 %v120
    %2113 = vmatprep.subr.mxu0 %v116
    %2114 = vmatpush1.msra.mxu0 %v115
    %2115 = vmatprep.subr.mxu0 %v111
    %2116 = vmatpush1.msra.mxu0 %v110
    %2117 = vmatprep.subr.mxu0 %v106
    %2118 = vmatpush1.msra.mxu0 %v105
    %2119 = vmatprep.subr.mxu0 %v101
    %2120 = vmatpush1.msra.mxu0 %v100
    %2121 = vmatprep.subr.mxu0 %v96
    %2122 = vmatpush1.msra.mxu0 %v95
    %2123 = vmatprep.subr.mxu0 %v91
    %2124 = vmatpush1.msra.mxu0 %v90
    %2125 = vmatprep.subr.mxu0 %v86
    %2126 = vmatpush1.msra.mxu0 %v85
    %2127 = vmatprep.subr.mxu0 %v81
    %2128 = vmatpush1.msra.mxu0 %v80
    %2129 = vmatprep.subr.mxu0 %v76
    %2130 = vmatpush1.msra.mxu0 %v75
    %2131 = vmatprep.subr.mxu0 %v71
    %2132 = vmatpush1.msra.mxu0 %v70
    %2133 = vmatprep.subr.mxu0 %v66
    %2134 = vmatpush1.msra.mxu0 %v65
    %2135 = vmatprep.subr.mxu0 %v61
    %2136 = vmatpush1.msra.mxu0 %v60
    %2137 = vmatprep.subr.mxu0 0.0
    %2138 = vmatpush2.msra.mxu0 0.0
    %2139 = vmatprep.subr.mxu0 0.0
    %2140 = vmatpush2.msra.mxu0 0.0
    %2141 = vmatprep.subr.mxu0 0.0
    %2142 = vmatpush2.msra.mxu0 0.0
    %2143 = vmatprep.subr.mxu0 0.0
    %2144 = vmatpush2.msra.mxu0 0.0
    %2145 = vmatprep.subr.mxu0 0.0
    %2146 = vmatpush2.msra.mxu0 0.0
    %2147 = vmatprep.subr.mxu0 0.0
    %2148 = vmatpush2.msra.mxu0 0.0
    %2149 = vmatprep.subr.mxu0 0.0
    %2150 = vmatpush2.msra.mxu0 0.0
    %2151 = vmatprep.subr.mxu0 0.0
    %2152 = vmatpush2.msra.mxu0 0.0
    %2153 = vmatprep.subr.mxu0 0.0
    %2154 = vmatpush2.msra.mxu0 0.0
    %2155 = vmatprep.subr.mxu0 0.0
    %2156 = vmatpush2.msra.mxu0 0.0
    %2157 = vmatprep.subr.mxu0 0.0
    %2158 = vmatpush2.msra.mxu0 0.0
    %2159 = vmatprep.subr.mxu0 0.0
    %2160 = vmatpush2.msra.mxu0 0.0
    %2161 = vmatprep.subr.mxu0 0.0
    %2162 = vmatpush2.msra.mxu0 0.0
    %2163 = vmatprep.subr.mxu0 0.0
    %2164 = vmatpush2.msra.mxu0 0.0
    %2165 = vmatprep.subr.mxu0 0.0
    %2166 = vmatpush2.msra.mxu0 0.0
    %2167 = vmatprep.subr.mxu0 0.0
    %2168 = vmatpush2.msra.mxu0 0.0
    %2169 = vmatprep.mubr.f32.mxu0 0.0
    %2170 = vmatmul.mubr.f32.gmra.mxu0 %v2104
    %v2171 = vpop.f32.mrf.mxu0
    %v2172 = vadd.f32 0.0, %v2171
    %v2173 = vpop.f32.mrf.mxu0
    %v2174 = vadd.f32 0.0, %v2173
    %2175 = vdwg.mxu0
    %2176 = vmatprep.subr.mxu0 %v138
    %2177 = vmatpush1.msra.mxu0 %v137
    %2178 = vmatprep.subr.mxu0 %v133
    %2179 = vmatpush1.msra.mxu0 %v132
    %2180 = vmatprep.subr.mxu0 %v128
    %2181 = vmatpush1.msra.mxu0 %v127
    %2182 = vmatprep.subr.mxu0 %v123
    %2183 = vmatpush1.msra.mxu0 %v122
    %2184 = vmatprep.subr.mxu0 %v118
    %2185 = vmatpush1.msra.mxu0 %v117
    %2186 = vmatprep.subr.mxu0 %v113
    %2187 = vmatpush1.msra.mxu0 %v112
    %2188 = vmatprep.subr.mxu0 %v108
    %2189 = vmatpush1.msra.mxu0 %v107
    %2190 = vmatprep.subr.mxu0 %v103
    %2191 = vmatpush1.msra.mxu0 %v102
    %2192 = vmatprep.subr.mxu0 %v98
    %2193 = vmatpush1.msra.mxu0 %v97
    %2194 = vmatprep.subr.mxu0 %v93
    %2195 = vmatpush1.msra.mxu0 %v92
    %2196 = vmatprep.subr.mxu0 %v88
    %2197 = vmatpush1.msra.mxu0 %v87
    %2198 = vmatprep.subr.mxu0 %v83
    %2199 = vmatpush1.msra.mxu0 %v82
    %2200 = vmatprep.subr.mxu0 %v78
    %2201 = vmatpush1.msra.mxu0 %v77
    %2202 = vmatprep.subr.mxu0 %v73
    %2203 = vmatpush1.msra.mxu0 %v72
    %2204 = vmatprep.subr.mxu0 %v68
    %2205 = vmatpush1.msra.mxu0 %v67
    %2206 = vmatprep.subr.mxu0 %v63
    %2207 = vmatpush1.msra.mxu0 %v62
    %2208 = vmatprep.subr.mxu0 0.0
    %2209 = vmatpush2.msra.mxu0 0.0
    %2210 = vmatprep.subr.mxu0 0.0
    %2211 = vmatpush2.msra.mxu0 0.0
    %2212 = vmatprep.subr.mxu0 0.0
    %2213 = vmatpush2.msra.mxu0 0.0
    %2214 = vmatprep.subr.mxu0 0.0
    %2215 = vmatpush2.msra.mxu0 0.0
    %2216 = vmatprep.subr.mxu0 0.0
    %2217 = vmatpush2.msra.mxu0 0.0
    %2218 = vmatprep.subr.mxu0 0.0
    %2219 = vmatpush2.msra.mxu0 0.0
    %2220 = vmatprep.subr.mxu0 0.0
    %2221 = vmatpush2.msra.mxu0 0.0
    %2222 = vmatprep.subr.mxu0 0.0
    %2223 = vmatpush2.msra.mxu0 0.0
    %2224 = vmatprep.subr.mxu0 0.0
    %2225 = vmatpush2.msra.mxu0 0.0
    %2226 = vmatprep.subr.mxu0 0.0
    %2227 = vmatpush2.msra.mxu0 0.0
    %2228 = vmatprep.subr.mxu0 0.0
    %2229 = vmatpush2.msra.mxu0 0.0
    %2230 = vmatprep.subr.mxu0 0.0
    %2231 = vmatpush2.msra.mxu0 0.0
    %2232 = vmatprep.subr.mxu0 0.0
    %2233 = vmatpush2.msra.mxu0 0.0
    %2234 = vmatprep.subr.mxu0 0.0
    %2235 = vmatpush2.msra.mxu0 0.0
    %2236 = vmatprep.subr.mxu0 0.0
    %2237 = vmatpush2.msra.mxu0 0.0
    %2238 = vmatprep.subr.mxu0 0.0
    %2239 = vmatpush2.msra.mxu0 0.0
    %2240 = vmatprep.mubr.f32.mxu0 0.0
    %2241 = vmatmul.mubr.f32.gmra.mxu0 %v2104
    %v2242 = vpop.f32.mrf.mxu0
    %v2243 = vadd.f32 0.0, %v2242
    %v2244 = vpop.f32.mrf.mxu0
    %v2245 = vadd.f32 0.0, %v2244
    %2246 = vdwg.mxu0
    %2247 = vmatprep.subr.mxu0 0.0
    %2248 = vmatpush1.msra.mxu0 %v139
    %2249 = vmatprep.subr.mxu0 0.0
    %2250 = vmatpush1.msra.mxu0 %v134
    %2251 = vmatprep.subr.mxu0 0.0
    %2252 = vmatpush1.msra.mxu0 %v129
    %2253 = vmatprep.subr.mxu0 0.0
    %2254 = vmatpush1.msra.mxu0 %v124
    %2255 = vmatprep.subr.mxu0 0.0
    %2256 = vmatpush1.msra.mxu0 %v119
    %2257 = vmatprep.subr.mxu0 0.0
    %2258 = vmatpush1.msra.mxu0 %v114
    %2259 = vmatprep.subr.mxu0 0.0
    %2260 = vmatpush1.msra.mxu0 %v109
    %2261 = vmatprep.subr.mxu0 0.0
    %2262 = vmatpush1.msra.mxu0 %v104
    %2263 = vmatprep.subr.mxu0 0.0
    %2264 = vmatpush1.msra.mxu0 %v99
    %2265 = vmatprep.subr.mxu0 0.0
    %2266 = vmatpush1.msra.mxu0 %v94
    %2267 = vmatprep.subr.mxu0 0.0
    %2268 = vmatpush1.msra.mxu0 %v89
    %2269 = vmatprep.subr.mxu0 0.0
    %2270 = vmatpush1.msra.mxu0 %v84
    %2271 = vmatprep.subr.mxu0 0.0
    %2272 = vmatpush1.msra.mxu0 %v79
    %2273 = vmatprep.subr.mxu0 0.0
    %2274 = vmatpush1.msra.mxu0 %v74
    %2275 = vmatprep.subr.mxu0 0.0
    %2276 = vmatpush1.msra.mxu0 %v69
    %2277 = vmatprep.subr.mxu0 0.0
    %2278 = vmatpush1.msra.mxu0 %v64
    %2279 = vmatprep.subr.mxu0 0.0
    %2280 = vmatpush2.msra.mxu0 0.0
    %2281 = vmatprep.subr.mxu0 0.0
    %2282 = vmatpush2.msra.mxu0 0.0
    %2283 = vmatprep.subr.mxu0 0.0
    %2284 = vmatpush2.msra.mxu0 0.0
    %2285 = vmatprep.subr.mxu0 0.0
    %2286 = vmatpush2.msra.mxu0 0.0
    %2287 = vmatprep.subr.mxu0 0.0
    %2288 = vmatpush2.msra.mxu0 0.0
    %2289 = vmatprep.subr.mxu0 0.0
    %2290 = vmatpush2.msra.mxu0 0.0
    %2291 = vmatprep.subr.mxu0 0.0
    %2292 = vmatpush2.msra.mxu0 0.0
    %2293 = vmatprep.subr.mxu0 0.0
    %2294 = vmatpush2.msra.mxu0 0.0
    %2295 = vmatprep.subr.mxu0 0.0
    %2296 = vmatpush2.msra.mxu0 0.0
    %2297 = vmatprep.subr.mxu0 0.0
    %2298 = vmatpush2.msra.mxu0 0.0
    %2299 = vmatprep.subr.mxu0 0.0
    %2300 = vmatpush2.msra.mxu0 0.0
    %2301 = vmatprep.subr.mxu0 0.0
    %2302 = vmatpush2.msra.mxu0 0.0
    %2303 = vmatprep.subr.mxu0 0.0
    %2304 = vmatpush2.msra.mxu0 0.0
    %2305 = vmatprep.subr.mxu0 0.0
    %2306 = vmatpush2.msra.mxu0 0.0
    %2307 = vmatprep.subr.mxu0 0.0
    %2308 = vmatpush2.msra.mxu0 0.0
    %2309 = vmatprep.subr.mxu0 0.0
    %2310 = vmatpush2.msra.mxu0 0.0
    %2311 = vmatprep.mubr.f32.mxu0 0.0
    %2312 = vmatmul.mubr.f32.gmra.mxu0 %v2104
    %v2313 = vpop.f32.mrf.mxu0
    %v2314 = vadd.f32 0.0, %v2313
    %v2315 = vpop.f32.mrf.mxu0
    %2316 = vdwg.mxu0
    %v2317 = vadd.f32 %v2314, %v474
    %v2318 = vmul.f32 %v2019, %v2017
    %v2319 = vsub.f32 1.0, %v2019
    %v2320 = vmul.f32 %v2319, %v2317
    %v2321 = vadd.f32 %v2318, %v2320
    %v2323 = vsel %vm169, %v2321, 0
    %2325 = vmatprep.subr.mxu0 0.0
    %2326 = vmatpush1.msra.mxu0 0.0
    %2327 = vmatprep.subr.mxu0 0.0
    %2328 = vmatpush1.msra.mxu0 0.0
    %2329 = vmatprep.subr.mxu0 0.0
    %2330 = vmatpush1.msra.mxu0 0.0
    %2331 = vmatprep.subr.mxu0 0.0
    %2332 = vmatpush1.msra.mxu0 0.0
    %2333 = vmatprep.subr.mxu0 0.0
    %2334 = vmatpush1.msra.mxu0 0.0
    %2335 = vmatprep.subr.mxu0 0.0
    %2336 = vmatpush1.msra.mxu0 0.0
    %2337 = vmatprep.subr.mxu0 0.0
    %2338 = vmatpush1.msra.mxu0 0.0
    %2339 = vmatprep.subr.mxu0 0.0
    %2340 = vmatpush1.msra.mxu0 0.0
    %2341 = vmatprep.subr.mxu0 0.0
    %2342 = vmatpush1.msra.mxu0 0.0
    %2343 = vmatprep.subr.mxu0 0.0
    %2344 = vmatpush1.msra.mxu0 0.0
    %2345 = vmatprep.subr.mxu0 0.0
    %2346 = vmatpush1.msra.mxu0 0.0
    %2347 = vmatprep.subr.mxu0 0.0
    %2348 = vmatpush1.msra.mxu0 0.0
    %2349 = vmatprep.subr.mxu0 0.0
    %2350 = vmatpush1.msra.mxu0 0.0
    %2351 = vmatprep.subr.mxu0 0.0
    %2352 = vmatpush1.msra.mxu0 0.0
    %2353 = vmatprep.subr.mxu0 0.0
    %2354 = vmatpush1.msra.mxu0 0.0
    %2355 = vmatprep.subr.mxu0 0.0
    %2356 = vmatpush1.msra.mxu0 %v491
    %2357 = vmatprep.subr.mxu0 0.0
    %2358 = vmatpush2.msra.mxu0 0.0
    %2359 = vmatprep.subr.mxu0 0.0
    %2360 = vmatpush2.msra.mxu0 0.0
    %2361 = vmatprep.subr.mxu0 0.0
    %2362 = vmatpush2.msra.mxu0 0.0
    %2363 = vmatprep.subr.mxu0 0.0
    %2364 = vmatpush2.msra.mxu0 0.0
    %2365 = vmatprep.subr.mxu0 0.0
    %2366 = vmatpush2.msra.mxu0 0.0
    %2367 = vmatprep.subr.mxu0 0.0
    %2368 = vmatpush2.msra.mxu0 0.0
    %2369 = vmatprep.subr.mxu0 0.0
    %2370 = vmatpush2.msra.mxu0 0.0
    %2371 = vmatprep.subr.mxu0 0.0
    %2372 = vmatpush2.msra.mxu0 0.0
    %2373 = vmatprep.subr.mxu0 0.0
    %2374 = vmatpush2.msra.mxu0 0.0
    %2375 = vmatprep.subr.mxu0 0.0
    %2376 = vmatpush2.msra.mxu0 0.0
    %2377 = vmatprep.subr.mxu0 0.0
    %2378 = vmatpush2.msra.mxu0 0.0
    %2379 = vmatprep.subr.mxu0 0.0
    %2380 = vmatpush2.msra.mxu0 0.0
    %2381 = vmatprep.subr.mxu0 0.0
    %2382 = vmatpush2.msra.mxu0 0.0
    %2383 = vmatprep.subr.mxu0 0.0
    %2384 = vmatpush2.msra.mxu0 0.0
    %2385 = vmatprep.subr.mxu0 0.0
    %2386 = vmatpush2.msra.mxu0 0.0
    %2387 = vmatprep.subr.mxu0 0.0
    %2388 = vmatpush2.msra.mxu0 0.0
    %2389 = vmatprep.mubr.f32.mxu0 0.0
    %2390 = vmatmul.mubr.f32.gmra.mxu0 %v2323
    %v2391 = vpop.f32.mrf.mxu0
    %v2392 = vadd.f32 %v485, %v2391
    %v2393 = vpop.f32.mrf.mxu0
    %2394 = vdwg.mxu0
    %v2396 = vsel %vm169, %v2019, 0
    %2398 = vmatprep.subr.mxu0 0.0
    %2399 = vmatpush1.msra.mxu0 0.0
    %2400 = vmatprep.subr.mxu0 0.0
    %2401 = vmatpush1.msra.mxu0 0.0
    %2402 = vmatprep.subr.mxu0 0.0
    %2403 = vmatpush1.msra.mxu0 0.0
    %2404 = vmatprep.subr.mxu0 0.0
    %2405 = vmatpush1.msra.mxu0 0.0
    %2406 = vmatprep.subr.mxu0 0.0
    %2407 = vmatpush1.msra.mxu0 0.0
    %2408 = vmatprep.subr.mxu0 0.0
    %2409 = vmatpush1.msra.mxu0 0.0
    %2410 = vmatprep.subr.mxu0 0.0
    %2411 = vmatpush1.msra.mxu0 0.0
    %2412 = vmatprep.subr.mxu0 0.0
    %2413 = vmatpush1.msra.mxu0 0.0
    %2414 = vmatprep.subr.mxu0 0.0
    %2415 = vmatpush1.msra.mxu0 0.0
    %2416 = vmatprep.subr.mxu0 0.0
    %2417 = vmatpush1.msra.mxu0 0.0
    %2418 = vmatprep.subr.mxu0 0.0
    %2419 = vmatpush1.msra.mxu0 0.0
    %2420 = vmatprep.subr.mxu0 0.0
    %2421 = vmatpush1.msra.mxu0 0.0
    %2422 = vmatprep.subr.mxu0 0.0
    %2423 = vmatpush1.msra.mxu0 0.0
    %2424 = vmatprep.subr.mxu0 0.0
    %2425 = vmatpush1.msra.mxu0 0.0
    %2426 = vmatprep.subr.mxu0 0.0
    %2427 = vmatpush1.msra.mxu0 0.0
    %2428 = vmatprep.subr.mxu0 %v573
    %2429 = vmatpush1.msra.mxu0 %v571
    %2430 = vmatprep.subr.mxu0 0.0
    %2431 = vmatpush2.msra.mxu0 0.0
    %2432 = vmatprep.subr.mxu0 0.0
    %2433 = vmatpush2.msra.mxu0 0.0
    %2434 = vmatprep.subr.mxu0 0.0
    %2435 = vmatpush2.msra.mxu0 0.0
    %2436 = vmatprep.subr.mxu0 0.0
    %2437 = vmatpush2.msra.mxu0 0.0
    %2438 = vmatprep.subr.mxu0 0.0
    %2439 = vmatpush2.msra.mxu0 0.0
    %2440 = vmatprep.subr.mxu0 0.0
    %2441 = vmatpush2.msra.mxu0 0.0
    %2442 = vmatprep.subr.mxu0 0.0
    %2443 = vmatpush2.msra.mxu0 0.0
    %2444 = vmatprep.subr.mxu0 0.0
    %2445 = vmatpush2.msra.mxu0 0.0
    %2446 = vmatprep.subr.mxu0 0.0
    %2447 = vmatpush2.msra.mxu0 0.0
    %2448 = vmatprep.subr.mxu0 0.0
    %2449 = vmatpush2.msra.mxu0 0.0
    %2450 = vmatprep.subr.mxu0 0.0
    %2451 = vmatpush2.msra.mxu0 0.0
    %2452 = vmatprep.subr.mxu0 0.0
    %2453 = vmatpush2.msra.mxu0 0.0
    %2454 = vmatprep.subr.mxu0 0.0
    %2455 = vmatpush2.msra.mxu0 0.0
    %2456 = vmatprep.subr.mxu0 0.0
    %2457 = vmatpush2.msra.mxu0 0.0
    %2458 = vmatprep.subr.mxu0 0.0
    %2459 = vmatpush2.msra.mxu0 0.0
    %2460 = vmatprep.subr.mxu0 0.0
    %2461 = vmatpush2.msra.mxu0 0.0
    %2462 = vmatprep.mubr.f32.mxu0 0.0
    %2463 = vmatmul.mubr.f32.gmra.mxu0 %v2396
    %v2464 = vpop.f32.mrf.mxu0
    %v2465 = vadd.f32 0.0, %v2464
    %v2466 = vpop.f32.mrf.mxu0
    %v2467 = vadd.f32 0.0, %v2466
    %2468 = vdwg.mxu0
    %2469 = vmatprep.subr.mxu0 0.0
    %2470 = vmatpush1.msra.mxu0 0.0
    %2471 = vmatprep.subr.mxu0 0.0
    %2472 = vmatpush1.msra.mxu0 0.0
    %2473 = vmatprep.subr.mxu0 0.0
    %2474 = vmatpush1.msra.mxu0 0.0
    %2475 = vmatprep.subr.mxu0 0.0
    %2476 = vmatpush1.msra.mxu0 0.0
    %2477 = vmatprep.subr.mxu0 0.0
    %2478 = vmatpush1.msra.mxu0 0.0
    %2479 = vmatprep.subr.mxu0 0.0
    %2480 = vmatpush1.msra.mxu0 0.0
    %2481 = vmatprep.subr.mxu0 0.0
    %2482 = vmatpush1.msra.mxu0 0.0
    %2483 = vmatprep.subr.mxu0 0.0
    %2484 = vmatpush1.msra.mxu0 0.0
    %2485 = vmatprep.subr.mxu0 0.0
    %2486 = vmatpush1.msra.mxu0 0.0
    %2487 = vmatprep.subr.mxu0 0.0
    %2488 = vmatpush1.msra.mxu0 0.0
    %2489 = vmatprep.subr.mxu0 0.0
    %2490 = vmatpush1.msra.mxu0 0.0
    %2491 = vmatprep.subr.mxu0 0.0
    %2492 = vmatpush1.msra.mxu0 0.0
    %2493 = vmatprep.subr.mxu0 0.0
    %2494 = vmatpush1.msra.mxu0 0.0
    %2495 = vmatprep.subr.mxu0 0.0
    %2496 = vmatpush1.msra.mxu0 0.0
    %2497 = vmatprep.subr.mxu0 0.0
    %2498 = vmatpush1.msra.mxu0 0.0
    %2499 = vmatprep.subr.mxu0 %v577
    %2500 = vmatpush1.msra.mxu0 %v575
    %2501 = vmatprep.subr.mxu0 0.0
    %2502 = vmatpush2.msra.mxu0 0.0
    %2503 = vmatprep.subr.mxu0 0.0
    %2504 = vmatpush2.msra.mxu0 0.0
    %2505 = vmatprep.subr.mxu0 0.0
    %2506 = vmatpush2.msra.mxu0 0.0
    %2507 = vmatprep.subr.mxu0 0.0
    %2508 = vmatpush2.msra.mxu0 0.0
    %2509 = vmatprep.subr.mxu0 0.0
    %2510 = vmatpush2.msra.mxu0 0.0
    %2511 = vmatprep.subr.mxu0 0.0
    %2512 = vmatpush2.msra.mxu0 0.0
    %2513 = vmatprep.subr.mxu0 0.0
    %2514 = vmatpush2.msra.mxu0 0.0
    %2515 = vmatprep.subr.mxu0 0.0
    %2516 = vmatpush2.msra.mxu0 0.0
    %2517 = vmatprep.subr.mxu0 0.0
    %2518 = vmatpush2.msra.mxu0 0.0
    %2519 = vmatprep.subr.mxu0 0.0
    %2520 = vmatpush2.msra.mxu0 0.0
    %2521 = vmatprep.subr.mxu0 0.0
    %2522 = vmatpush2.msra.mxu0 0.0
    %2523 = vmatprep.subr.mxu0 0.0
    %2524 = vmatpush2.msra.mxu0 0.0
    %2525 = vmatprep.subr.mxu0 0.0
    %2526 = vmatpush2.msra.mxu0 0.0
    %2527 = vmatprep.subr.mxu0 0.0
    %2528 = vmatpush2.msra.mxu0 0.0
    %2529 = vmatprep.subr.mxu0 0.0
    %2530 = vmatpush2.msra.mxu0 0.0
    %2531 = vmatprep.subr.mxu0 0.0
    %2532 = vmatpush2.msra.mxu0 0.0
    %2533 = vmatprep.mubr.f32.mxu0 0.0
    %2534 = vmatmul.mubr.f32.gmra.mxu0 %v2396
    %v2535 = vpop.f32.mrf.mxu0
    %v2536 = vadd.f32 0.0, %v2535
    %v2537 = vpop.f32.mrf.mxu0
    %v2538 = vadd.f32 0.0, %v2537
    %2539 = vdwg.mxu0
    %2540 = vmatprep.subr.mxu0 0.0
    %2541 = vmatpush1.msra.mxu0 0.0
    %2542 = vmatprep.subr.mxu0 0.0
    %2543 = vmatpush1.msra.mxu0 0.0
    %2544 = vmatprep.subr.mxu0 0.0
    %2545 = vmatpush1.msra.mxu0 0.0
    %2546 = vmatprep.subr.mxu0 0.0
    %2547 = vmatpush1.msra.mxu0 0.0
    %2548 = vmatprep.subr.mxu0 0.0
    %2549 = vmatpush1.msra.mxu0 0.0
    %2550 = vmatprep.subr.mxu0 0.0
    %2551 = vmatpush1.msra.mxu0 0.0
    %2552 = vmatprep.subr.mxu0 0.0
    %2553 = vmatpush1.msra.mxu0 0.0
    %2554 = vmatprep.subr.mxu0 0.0
    %2555 = vmatpush1.msra.mxu0 0.0
    %2556 = vmatprep.subr.mxu0 0.0
    %2557 = vmatpush1.msra.mxu0 0.0
    %2558 = vmatprep.subr.mxu0 0.0
    %2559 = vmatpush1.msra.mxu0 0.0
    %2560 = vmatprep.subr.mxu0 0.0
    %2561 = vmatpush1.msra.mxu0 0.0
    %2562 = vmatprep.subr.mxu0 0.0
    %2563 = vmatpush1.msra.mxu0 0.0
    %2564 = vmatprep.subr.mxu0 0.0
    %2565 = vmatpush1.msra.mxu0 0.0
    %2566 = vmatprep.subr.mxu0 0.0
    %2567 = vmatpush1.msra.mxu0 0.0
    %2568 = vmatprep.subr.mxu0 0.0
    %2569 = vmatpush1.msra.mxu0 0.0
    %2570 = vmatprep.subr.mxu0 0.0
    %2571 = vmatpush1.msra.mxu0 %v579
    %2572 = vmatprep.subr.mxu0 0.0
    %2573 = vmatpush2.msra.mxu0 0.0
    %2574 = vmatprep.subr.mxu0 0.0
    %2575 = vmatpush2.msra.mxu0 0.0
    %2576 = vmatprep.subr.mxu0 0.0
    %2577 = vmatpush2.msra.mxu0 0.0
    %2578 = vmatprep.subr.mxu0 0.0
    %2579 = vmatpush2.msra.mxu0 0.0
    %2580 = vmatprep.subr.mxu0 0.0
    %2581 = vmatpush2.msra.mxu0 0.0
    %2582 = vmatprep.subr.mxu0 0.0
    %2583 = vmatpush2.msra.mxu0 0.0
    %2584 = vmatprep.subr.mxu0 0.0
    %2585 = vmatpush2.msra.mxu0 0.0
    %2586 = vmatprep.subr.mxu0 0.0
    %2587 = vmatpush2.msra.mxu0 0.0
    %2588 = vmatprep.subr.mxu0 0.0
    %2589 = vmatpush2.msra.mxu0 0.0
    %2590 = vmatprep.subr.mxu0 0.0
    %2591 = vmatpush2.msra.mxu0 0.0
    %2592 = vmatprep.subr.mxu0 0.0
    %2593 = vmatpush2.msra.mxu0 0.0
    %2594 = vmatprep.subr.mxu0 0.0
    %2595 = vmatpush2.msra.mxu0 0.0
    %2596 = vmatprep.subr.mxu0 0.0
    %2597 = vmatpush2.msra.mxu0 0.0
    %2598 = vmatprep.subr.mxu0 0.0
    %2599 = vmatpush2.msra.mxu0 0.0
    %2600 = vmatprep.subr.mxu0 0.0
    %2601 = vmatpush2.msra.mxu0 0.0
    %2602 = vmatprep.subr.mxu0 0.0
    %2603 = vmatpush2.msra.mxu0 0.0
    %2604 = vmatprep.mubr.f32.mxu0 0.0
    %2605 = vmatmul.mubr.f32.gmra.mxu0 %v2396
    %v2606 = vpop.f32.mrf.mxu0
    %v2607 = vadd.f32 0.0, %v2606
    %v2608 = vpop.f32.mrf.mxu0
    %2609 = vdwg.mxu0
    %v2611 = vsel %vm169, %v2103, 0
    %2613 = vmatprep.subr.mxu0 0.0
    %2614 = vmatpush1.msra.mxu0 0.0
    %2615 = vmatprep.subr.mxu0 0.0
    %2616 = vmatpush1.msra.mxu0 0.0
    %2617 = vmatprep.subr.mxu0 0.0
    %2618 = vmatpush1.msra.mxu0 0.0
    %2619 = vmatprep.subr.mxu0 0.0
    %2620 = vmatpush1.msra.mxu0 0.0
    %2621 = vmatprep.subr.mxu0 0.0
    %2622 = vmatpush1.msra.mxu0 0.0
    %2623 = vmatprep.subr.mxu0 0.0
    %2624 = vmatpush1.msra.mxu0 0.0
    %2625 = vmatprep.subr.mxu0 0.0
    %2626 = vmatpush1.msra.mxu0 0.0
    %2627 = vmatprep.subr.mxu0 0.0
    %2628 = vmatpush1.msra.mxu0 0.0
    %2629 = vmatprep.subr.mxu0 0.0
    %2630 = vmatpush1.msra.mxu0 0.0
    %2631 = vmatprep.subr.mxu0 0.0
    %2632 = vmatpush1.msra.mxu0 0.0
    %2633 = vmatprep.subr.mxu0 0.0
    %2634 = vmatpush1.msra.mxu0 0.0
    %2635 = vmatprep.subr.mxu0 0.0
    %2636 = vmatpush1.msra.mxu0 0.0
    %2637 = vmatprep.subr.mxu0 0.0
    %2638 = vmatpush1.msra.mxu0 0.0
    %2639 = vmatprep.subr.mxu0 0.0
    %2640 = vmatpush1.msra.mxu0 0.0
    %2641 = vmatprep.subr.mxu0 0.0
    %2642 = vmatpush1.msra.mxu0 0.0
    %2643 = vmatprep.subr.mxu0 0.0
    %2644 = vmatpush1.msra.mxu0 %v797
    %2645 = vmatprep.subr.mxu0 0.0
    %2646 = vmatpush2.msra.mxu0 0.0
    %2647 = vmatprep.subr.mxu0 0.0
    %2648 = vmatpush2.msra.mxu0 0.0
    %2649 = vmatprep.subr.mxu0 0.0
    %2650 = vmatpush2.msra.mxu0 0.0
    %2651 = vmatprep.subr.mxu0 0.0
    %2652 = vmatpush2.msra.mxu0 0.0
    %2653 = vmatprep.subr.mxu0 0.0
    %2654 = vmatpush2.msra.mxu0 0.0
    %2655 = vmatprep.subr.mxu0 0.0
    %2656 = vmatpush2.msra.mxu0 0.0
    %2657 = vmatprep.subr.mxu0 0.0
    %2658 = vmatpush2.msra.mxu0 0.0
    %2659 = vmatprep.subr.mxu0 0.0
    %2660 = vmatpush2.msra.mxu0 0.0
    %2661 = vmatprep.subr.mxu0 0.0
    %2662 = vmatpush2.msra.mxu0 0.0
    %2663 = vmatprep.subr.mxu0 0.0
    %2664 = vmatpush2.msra.mxu0 0.0
    %2665 = vmatprep.subr.mxu0 0.0
    %2666 = vmatpush2.msra.mxu0 0.0
    %2667 = vmatprep.subr.mxu0 0.0
    %2668 = vmatpush2.msra.mxu0 0.0
    %2669 = vmatprep.subr.mxu0 0.0
    %2670 = vmatpush2.msra.mxu0 0.0
    %2671 = vmatprep.subr.mxu0 0.0
    %2672 = vmatpush2.msra.mxu0 0.0
    %2673 = vmatprep.subr.mxu0 0.0
    %2674 = vmatpush2.msra.mxu0 0.0
    %2675 = vmatprep.subr.mxu0 0.0
    %2676 = vmatpush2.msra.mxu0 0.0
    %2677 = vmatprep.mubr.f32.mxu0 0.0
    %2678 = vmatmul.mubr.f32.gmra.mxu0 %v2611
    %v2679 = vpop.f32.mrf.mxu0
    %v2680 = vadd.f32 %v2607, %v2679
    %v2681 = vpop.f32.mrf.mxu0
    %2682 = vdwg.mxu0
    %v2683 = vadd.f32 %v2680, %v873
    %v2684 = vmul.f32 %v2683, %v2392
    %v2685 = vsub.f32 1.0, %v2683
    %v2686 = vmul.f32 %v2685, %v2317
    %v2687 = vadd.f32 %v2684, %v2686
    %v2688 = vsub.f32 %v2017, %v2317
    %v2689 = vand.u32 2147483647, %v2688
    %v2690 = vsub.f32 %v2017, %v2392
    %v2691 = vand.u32 2147483647, %v2690
    %v2692 = vadd.f32 %v2689, %v2691
    %v2693 = vsub.f32 %v2017, %v2687
    %v2694 = vand.u32 2147483647, %v2693
    %v2695 = vadd.f32 %v2692, %v2694
    %v2696 = vmul.f32 %v2695, %v2019
    %v2697 = vsel %vm169, %v2696, 0.0
    %2698 = vadd.xlane.f32.xlu0 %v2697
    %v2699 = vpop.xlane.xlu0 %2698
    %v2700 = vrot.slane %v2699, 4
    %v2701 = vadd.f32 %v2699, %v2700
    %v2702 = vrot.slane %v2701, 2
    %v2703 = vadd.f32 %v2701, %v2702
    %v2704 = vrot.slane %v2703, 1
    %v2705 = vadd.f32 %v2703, %v2704
    %s2706 = vtos %v2705
    %v2707 = vsel %vm169, %v2019, 0.0
    %2708 = vadd.xlane.f32.xlu0 %v2707
    %v2709 = vpop.xlane.xlu0 %2708
    %v2710 = vrot.slane %v2709, 4
    %v2711 = vadd.f32 %v2709, %v2710
    %v2712 = vrot.slane %v2711, 2
    %v2713 = vadd.f32 %v2711, %v2712
    %v2714 = vrot.slane %v2713, 1
    %v2715 = vadd.f32 %v2713, %v2714
    %s2716 = vtos %v2715
    %s2717 = sadd.f32 %s2716, 1e-05
    %v2718 = vstv %s2717
    %v2719 = vrcp.pop %v2718
    %s2720 = vtos %v2719
    %s2721 = smul.f32 %s2706, %s2720
    %s2722 = sadd.f32 %s1834, %s2721
    %v2723 = vmul.f32 %v2319, %v2687
    %v2724 = vadd.f32 %v2318, %v2723
    %s2725 = scalar_lea.vmem %s14, 16
    %2726 = vst.msk [vmem:[%s2725] sm:$0xff] %vm169, %v2724
    %v2728 = vsel %vm169, %v2724, 0
    %2730 = vmatprep.subr.mxu0 0.0
    %2731 = vmatpush1.msra.mxu0 0.0
    %2732 = vmatprep.subr.mxu0 0.0
    %2733 = vmatpush1.msra.mxu0 0.0
    %2734 = vmatprep.subr.mxu0 0.0
    %2735 = vmatpush1.msra.mxu0 0.0
    %2736 = vmatprep.subr.mxu0 0.0
    %2737 = vmatpush1.msra.mxu0 0.0
    %2738 = vmatprep.subr.mxu0 0.0
    %2739 = vmatpush1.msra.mxu0 0.0
    %2740 = vmatprep.subr.mxu0 0.0
    %2741 = vmatpush1.msra.mxu0 0.0
    %2742 = vmatprep.subr.mxu0 0.0
    %2743 = vmatpush1.msra.mxu0 0.0
    %2744 = vmatprep.subr.mxu0 0.0
    %2745 = vmatpush1.msra.mxu0 0.0
    %2746 = vmatprep.subr.mxu0 0.0
    %2747 = vmatpush1.msra.mxu0 0.0
    %2748 = vmatprep.subr.mxu0 0.0
    %2749 = vmatpush1.msra.mxu0 0.0
    %2750 = vmatprep.subr.mxu0 0.0
    %2751 = vmatpush1.msra.mxu0 0.0
    %2752 = vmatprep.subr.mxu0 0.0
    %2753 = vmatpush1.msra.mxu0 0.0
    %2754 = vmatprep.subr.mxu0 0.0
    %2755 = vmatpush1.msra.mxu0 0.0
    %2756 = vmatprep.subr.mxu0 0.0
    %2757 = vmatpush1.msra.mxu0 0.0
    %2758 = vmatprep.subr.mxu0 0.0
    %2759 = vmatpush1.msra.mxu0 0.0
    %2760 = vmatprep.subr.mxu0 %v927
    %2761 = vmatpush1.msra.mxu0 %v925
    %2762 = vmatprep.subr.mxu0 0.0
    %2763 = vmatpush2.msra.mxu0 0.0
    %2764 = vmatprep.subr.mxu0 0.0
    %2765 = vmatpush2.msra.mxu0 0.0
    %2766 = vmatprep.subr.mxu0 0.0
    %2767 = vmatpush2.msra.mxu0 0.0
    %2768 = vmatprep.subr.mxu0 0.0
    %2769 = vmatpush2.msra.mxu0 0.0
    %2770 = vmatprep.subr.mxu0 0.0
    %2771 = vmatpush2.msra.mxu0 0.0
    %2772 = vmatprep.subr.mxu0 0.0
    %2773 = vmatpush2.msra.mxu0 0.0
    %2774 = vmatprep.subr.mxu0 0.0
    %2775 = vmatpush2.msra.mxu0 0.0
    %2776 = vmatprep.subr.mxu0 0.0
    %2777 = vmatpush2.msra.mxu0 0.0
    %2778 = vmatprep.subr.mxu0 0.0
    %2779 = vmatpush2.msra.mxu0 0.0
    %2780 = vmatprep.subr.mxu0 0.0
    %2781 = vmatpush2.msra.mxu0 0.0
    %2782 = vmatprep.subr.mxu0 0.0
    %2783 = vmatpush2.msra.mxu0 0.0
    %2784 = vmatprep.subr.mxu0 0.0
    %2785 = vmatpush2.msra.mxu0 0.0
    %2786 = vmatprep.subr.mxu0 0.0
    %2787 = vmatpush2.msra.mxu0 0.0
    %2788 = vmatprep.subr.mxu0 0.0
    %2789 = vmatpush2.msra.mxu0 0.0
    %2790 = vmatprep.subr.mxu0 0.0
    %2791 = vmatpush2.msra.mxu0 0.0
    %2792 = vmatprep.subr.mxu0 0.0
    %2793 = vmatpush2.msra.mxu0 0.0
    %2794 = vmatprep.mubr.f32.mxu0 0.0
    %2795 = vmatmul.mubr.f32.gmra.mxu0 %v2728
    %v2796 = vpop.f32.mrf.mxu0
    %v2797 = vadd.f32 %v2465, %v2796
    %v2798 = vpop.f32.mrf.mxu0
    %v2799 = vadd.f32 %v2467, %v2798
    %2800 = vdwg.mxu0
    %2801 = vmatprep.subr.mxu0 0.0
    %2802 = vmatpush1.msra.mxu0 0.0
    %2803 = vmatprep.subr.mxu0 0.0
    %2804 = vmatpush1.msra.mxu0 0.0
    %2805 = vmatprep.subr.mxu0 0.0
    %2806 = vmatpush1.msra.mxu0 0.0
    %2807 = vmatprep.subr.mxu0 0.0
    %2808 = vmatpush1.msra.mxu0 0.0
    %2809 = vmatprep.subr.mxu0 0.0
    %2810 = vmatpush1.msra.mxu0 0.0
    %2811 = vmatprep.subr.mxu0 0.0
    %2812 = vmatpush1.msra.mxu0 0.0
    %2813 = vmatprep.subr.mxu0 0.0
    %2814 = vmatpush1.msra.mxu0 0.0
    %2815 = vmatprep.subr.mxu0 0.0
    %2816 = vmatpush1.msra.mxu0 0.0
    %2817 = vmatprep.subr.mxu0 0.0
    %2818 = vmatpush1.msra.mxu0 0.0
    %2819 = vmatprep.subr.mxu0 0.0
    %2820 = vmatpush1.msra.mxu0 0.0
    %2821 = vmatprep.subr.mxu0 0.0
    %2822 = vmatpush1.msra.mxu0 0.0
    %2823 = vmatprep.subr.mxu0 0.0
    %2824 = vmatpush1.msra.mxu0 0.0
    %2825 = vmatprep.subr.mxu0 0.0
    %2826 = vmatpush1.msra.mxu0 0.0
    %2827 = vmatprep.subr.mxu0 0.0
    %2828 = vmatpush1.msra.mxu0 0.0
    %2829 = vmatprep.subr.mxu0 0.0
    %2830 = vmatpush1.msra.mxu0 0.0
    %2831 = vmatprep.subr.mxu0 %v931
    %2832 = vmatpush1.msra.mxu0 %v929
    %2833 = vmatprep.subr.mxu0 0.0
    %2834 = vmatpush2.msra.mxu0 0.0
    %2835 = vmatprep.subr.mxu0 0.0
    %2836 = vmatpush2.msra.mxu0 0.0
    %2837 = vmatprep.subr.mxu0 0.0
    %2838 = vmatpush2.msra.mxu0 0.0
    %2839 = vmatprep.subr.mxu0 0.0
    %2840 = vmatpush2.msra.mxu0 0.0
    %2841 = vmatprep.subr.mxu0 0.0
    %2842 = vmatpush2.msra.mxu0 0.0
    %2843 = vmatprep.subr.mxu0 0.0
    %2844 = vmatpush2.msra.mxu0 0.0
    %2845 = vmatprep.subr.mxu0 0.0
    %2846 = vmatpush2.msra.mxu0 0.0
    %2847 = vmatprep.subr.mxu0 0.0
    %2848 = vmatpush2.msra.mxu0 0.0
    %2849 = vmatprep.subr.mxu0 0.0
    %2850 = vmatpush2.msra.mxu0 0.0
    %2851 = vmatprep.subr.mxu0 0.0
    %2852 = vmatpush2.msra.mxu0 0.0
    %2853 = vmatprep.subr.mxu0 0.0
    %2854 = vmatpush2.msra.mxu0 0.0
    %2855 = vmatprep.subr.mxu0 0.0
    %2856 = vmatpush2.msra.mxu0 0.0
    %2857 = vmatprep.subr.mxu0 0.0
    %2858 = vmatpush2.msra.mxu0 0.0
    %2859 = vmatprep.subr.mxu0 0.0
    %2860 = vmatpush2.msra.mxu0 0.0
    %2861 = vmatprep.subr.mxu0 0.0
    %2862 = vmatpush2.msra.mxu0 0.0
    %2863 = vmatprep.subr.mxu0 0.0
    %2864 = vmatpush2.msra.mxu0 0.0
    %2865 = vmatprep.mubr.f32.mxu0 0.0
    %2866 = vmatmul.mubr.f32.gmra.mxu0 %v2728
    %v2867 = vpop.f32.mrf.mxu0
    %v2868 = vadd.f32 %v2536, %v2867
    %v2869 = vpop.f32.mrf.mxu0
    %v2870 = vadd.f32 %v2538, %v2869
    %2871 = vdwg.mxu0
    %v2872 = vadd.f32 %v2797, %v2172
    %v2873 = vadd.f32 %v2799, %v2174
    %v2874 = vadd.f32 %v2868, %v2243
    %v2875 = vadd.f32 %v2870, %v2245
    %v2876 = vadd.f32 %v2872, %v1083
    %v2877 = vadd.f32 %v2873, %v1087
    %v2878 = vadd.f32 %v2874, %v1091
    %v2879 = vadd.f32 %v2875, %v1095
    %v2880 = vxor.u32 %v2876, 2147483648
    %v2881 = vmul.f32 %v2880, 1.442695
    %v2882 = vpow.pop %v2881
    %v2883 = vadd.f32 %v2882, 1.0
    %v2884 = vrcp.pop %v2883
    %v2885 = vmul.f32 1.0, %v2884
    %v2886 = vxor.u32 %v2877, 2147483648
    %v2887 = vmul.f32 %v2886, 1.442695
    %v2888 = vpow.pop %v2887
    %v2889 = vadd.f32 %v2888, 1.0
    %v2890 = vrcp.pop %v2889
    %v2891 = vmul.f32 1.0, %v2890
    %v2892 = vtanh.pop %v2878
    %v2893 = vxor.u32 %v2879, 2147483648
    %v2894 = vmul.f32 %v2893, 1.442695
    %v2895 = vpow.pop %v2894
    %v2896 = vadd.f32 %v2895, 1.0
    %v2897 = vrcp.pop %v2896
    %v2898 = vmul.f32 1.0, %v2897
    %v2899 = vmul.f32 %v2891, %v2013
    %v2900 = vmul.f32 %v2885, %v2892
    %v2901 = vadd.f32 %v2899, %v2900
    %v2902 = vtanh.pop %v2901
    %v2903 = vmul.f32 %v2898, %v2902
    %s2904 = scalar_lea.vmem %s0, 24
    %v2905 = vld [vmem:[%s2904] sm:$0xff]
    %s2906 = scalar_lea.vmem %s1, 24
    %v2907 = vld [vmem:[%s2906] sm:$0xff]
    %s2908 = scalar_lea.vmem %s2, 24
    %v2909 = vld [vmem:[%s2908] sm:$0xff]
    %v2911 = vsel %vm169, %v2909, 0
    %2913 = vmatprep.subr.mxu0 0.0
    %2914 = vmatpush1.msra.mxu0 0.0
    %2915 = vmatprep.subr.mxu0 0.0
    %2916 = vmatpush1.msra.mxu0 0.0
    %2917 = vmatprep.subr.mxu0 0.0
    %2918 = vmatpush1.msra.mxu0 0.0
    %2919 = vmatprep.subr.mxu0 0.0
    %2920 = vmatpush1.msra.mxu0 0.0
    %2921 = vmatprep.subr.mxu0 0.0
    %2922 = vmatpush1.msra.mxu0 0.0
    %2923 = vmatprep.subr.mxu0 0.0
    %2924 = vmatpush1.msra.mxu0 0.0
    %2925 = vmatprep.subr.mxu0 0.0
    %2926 = vmatpush1.msra.mxu0 0.0
    %2927 = vmatprep.subr.mxu0 0.0
    %2928 = vmatpush1.msra.mxu0 0.0
    %2929 = vmatprep.subr.mxu0 0.0
    %2930 = vmatpush1.msra.mxu0 0.0
    %2931 = vmatprep.subr.mxu0 0.0
    %2932 = vmatpush1.msra.mxu0 0.0
    %2933 = vmatprep.subr.mxu0 0.0
    %2934 = vmatpush1.msra.mxu0 0.0
    %2935 = vmatprep.subr.mxu0 0.0
    %2936 = vmatpush1.msra.mxu0 0.0
    %2937 = vmatprep.subr.mxu0 0.0
    %2938 = vmatpush1.msra.mxu0 0.0
    %2939 = vmatprep.subr.mxu0 0.0
    %2940 = vmatpush1.msra.mxu0 0.0
    %2941 = vmatprep.subr.mxu0 0.0
    %2942 = vmatpush1.msra.mxu0 0.0
    %2943 = vmatprep.subr.mxu0 %v176
    %2944 = vmatpush1.msra.mxu0 %v174
    %2945 = vmatprep.subr.mxu0 0.0
    %2946 = vmatpush2.msra.mxu0 0.0
    %2947 = vmatprep.subr.mxu0 0.0
    %2948 = vmatpush2.msra.mxu0 0.0
    %2949 = vmatprep.subr.mxu0 0.0
    %2950 = vmatpush2.msra.mxu0 0.0
    %2951 = vmatprep.subr.mxu0 0.0
    %2952 = vmatpush2.msra.mxu0 0.0
    %2953 = vmatprep.subr.mxu0 0.0
    %2954 = vmatpush2.msra.mxu0 0.0
    %2955 = vmatprep.subr.mxu0 0.0
    %2956 = vmatpush2.msra.mxu0 0.0
    %2957 = vmatprep.subr.mxu0 0.0
    %2958 = vmatpush2.msra.mxu0 0.0
    %2959 = vmatprep.subr.mxu0 0.0
    %2960 = vmatpush2.msra.mxu0 0.0
    %2961 = vmatprep.subr.mxu0 0.0
    %2962 = vmatpush2.msra.mxu0 0.0
    %2963 = vmatprep.subr.mxu0 0.0
    %2964 = vmatpush2.msra.mxu0 0.0
    %2965 = vmatprep.subr.mxu0 0.0
    %2966 = vmatpush2.msra.mxu0 0.0
    %2967 = vmatprep.subr.mxu0 0.0
    %2968 = vmatpush2.msra.mxu0 0.0
    %2969 = vmatprep.subr.mxu0 0.0
    %2970 = vmatpush2.msra.mxu0 0.0
    %2971 = vmatprep.subr.mxu0 0.0
    %2972 = vmatpush2.msra.mxu0 0.0
    %2973 = vmatprep.subr.mxu0 0.0
    %2974 = vmatpush2.msra.mxu0 0.0
    %2975 = vmatprep.subr.mxu0 0.0
    %2976 = vmatpush2.msra.mxu0 0.0
    %2977 = vmatprep.mubr.f32.mxu0 0.0
    %2978 = vmatmul.mubr.f32.gmra.mxu0 %v2911
    %v2979 = vpop.f32.mrf.mxu0
    %v2980 = vadd.f32 %v160, %v2979
    %v2981 = vpop.f32.mrf.mxu0
    %v2982 = vadd.f32 %v164, %v2981
    %2983 = vdwg.mxu0
    %v2984 = vmax.f32 %v2980, 0.0
    %v2985 = vmax.f32 %v2982, 0.0
    %v2986 = vsub.f32 0.0, %v2984
    %v2987 = vsub.f32 0.0, %v2985
    %v2988 = vmul.f32 %v2986, 1.442695
    %v2989 = vpow.pop %v2988
    %v2990 = vmul.f32 %v2987, 1.442695
    %v2991 = vpow.pop %v2990
    %v2992 = vmul.f32 %v2903, %v2989
    %2993 = vmatprep.subr.mxu0 %v136
    %2994 = vmatpush1.msra.mxu0 %v135
    %2995 = vmatprep.subr.mxu0 %v131
    %2996 = vmatpush1.msra.mxu0 %v130
    %2997 = vmatprep.subr.mxu0 %v126
    %2998 = vmatpush1.msra.mxu0 %v125
    %2999 = vmatprep.subr.mxu0 %v121
    %3000 = vmatpush1.msra.mxu0 %v120
    %3001 = vmatprep.subr.mxu0 %v116
    %3002 = vmatpush1.msra.mxu0 %v115
    %3003 = vmatprep.subr.mxu0 %v111
    %3004 = vmatpush1.msra.mxu0 %v110
    %3005 = vmatprep.subr.mxu0 %v106
    %3006 = vmatpush1.msra.mxu0 %v105
    %3007 = vmatprep.subr.mxu0 %v101
    %3008 = vmatpush1.msra.mxu0 %v100
    %3009 = vmatprep.subr.mxu0 %v96
    %3010 = vmatpush1.msra.mxu0 %v95
    %3011 = vmatprep.subr.mxu0 %v91
    %3012 = vmatpush1.msra.mxu0 %v90
    %3013 = vmatprep.subr.mxu0 %v86
    %3014 = vmatpush1.msra.mxu0 %v85
    %3015 = vmatprep.subr.mxu0 %v81
    %3016 = vmatpush1.msra.mxu0 %v80
    %3017 = vmatprep.subr.mxu0 %v76
    %3018 = vmatpush1.msra.mxu0 %v75
    %3019 = vmatprep.subr.mxu0 %v71
    %3020 = vmatpush1.msra.mxu0 %v70
    %3021 = vmatprep.subr.mxu0 %v66
    %3022 = vmatpush1.msra.mxu0 %v65
    %3023 = vmatprep.subr.mxu0 %v61
    %3024 = vmatpush1.msra.mxu0 %v60
    %3025 = vmatprep.subr.mxu0 0.0
    %3026 = vmatpush2.msra.mxu0 0.0
    %3027 = vmatprep.subr.mxu0 0.0
    %3028 = vmatpush2.msra.mxu0 0.0
    %3029 = vmatprep.subr.mxu0 0.0
    %3030 = vmatpush2.msra.mxu0 0.0
    %3031 = vmatprep.subr.mxu0 0.0
    %3032 = vmatpush2.msra.mxu0 0.0
    %3033 = vmatprep.subr.mxu0 0.0
    %3034 = vmatpush2.msra.mxu0 0.0
    %3035 = vmatprep.subr.mxu0 0.0
    %3036 = vmatpush2.msra.mxu0 0.0
    %3037 = vmatprep.subr.mxu0 0.0
    %3038 = vmatpush2.msra.mxu0 0.0
    %3039 = vmatprep.subr.mxu0 0.0
    %3040 = vmatpush2.msra.mxu0 0.0
    %3041 = vmatprep.subr.mxu0 0.0
    %3042 = vmatpush2.msra.mxu0 0.0
    %3043 = vmatprep.subr.mxu0 0.0
    %3044 = vmatpush2.msra.mxu0 0.0
    %3045 = vmatprep.subr.mxu0 0.0
    %3046 = vmatpush2.msra.mxu0 0.0
    %3047 = vmatprep.subr.mxu0 0.0
    %3048 = vmatpush2.msra.mxu0 0.0
    %3049 = vmatprep.subr.mxu0 0.0
    %3050 = vmatpush2.msra.mxu0 0.0
    %3051 = vmatprep.subr.mxu0 0.0
    %3052 = vmatpush2.msra.mxu0 0.0
    %3053 = vmatprep.subr.mxu0 0.0
    %3054 = vmatpush2.msra.mxu0 0.0
    %3055 = vmatprep.subr.mxu0 0.0
    %3056 = vmatpush2.msra.mxu0 0.0
    %3057 = vmatprep.mubr.f32.mxu0 0.0
    %3058 = vmatmul.mubr.f32.gmra.mxu0 %v2992
    %v3059 = vpop.f32.mrf.mxu0
    %v3060 = vadd.f32 0.0, %v3059
    %v3061 = vpop.f32.mrf.mxu0
    %v3062 = vadd.f32 0.0, %v3061
    %3063 = vdwg.mxu0
    %3064 = vmatprep.subr.mxu0 %v138
    %3065 = vmatpush1.msra.mxu0 %v137
    %3066 = vmatprep.subr.mxu0 %v133
    %3067 = vmatpush1.msra.mxu0 %v132
    %3068 = vmatprep.subr.mxu0 %v128
    %3069 = vmatpush1.msra.mxu0 %v127
    %3070 = vmatprep.subr.mxu0 %v123
    %3071 = vmatpush1.msra.mxu0 %v122
    %3072 = vmatprep.subr.mxu0 %v118
    %3073 = vmatpush1.msra.mxu0 %v117
    %3074 = vmatprep.subr.mxu0 %v113
    %3075 = vmatpush1.msra.mxu0 %v112
    %3076 = vmatprep.subr.mxu0 %v108
    %3077 = vmatpush1.msra.mxu0 %v107
    %3078 = vmatprep.subr.mxu0 %v103
    %3079 = vmatpush1.msra.mxu0 %v102
    %3080 = vmatprep.subr.mxu0 %v98
    %3081 = vmatpush1.msra.mxu0 %v97
    %3082 = vmatprep.subr.mxu0 %v93
    %3083 = vmatpush1.msra.mxu0 %v92
    %3084 = vmatprep.subr.mxu0 %v88
    %3085 = vmatpush1.msra.mxu0 %v87
    %3086 = vmatprep.subr.mxu0 %v83
    %3087 = vmatpush1.msra.mxu0 %v82
    %3088 = vmatprep.subr.mxu0 %v78
    %3089 = vmatpush1.msra.mxu0 %v77
    %3090 = vmatprep.subr.mxu0 %v73
    %3091 = vmatpush1.msra.mxu0 %v72
    %3092 = vmatprep.subr.mxu0 %v68
    %3093 = vmatpush1.msra.mxu0 %v67
    %3094 = vmatprep.subr.mxu0 %v63
    %3095 = vmatpush1.msra.mxu0 %v62
    %3096 = vmatprep.subr.mxu0 0.0
    %3097 = vmatpush2.msra.mxu0 0.0
    %3098 = vmatprep.subr.mxu0 0.0
    %3099 = vmatpush2.msra.mxu0 0.0
    %3100 = vmatprep.subr.mxu0 0.0
    %3101 = vmatpush2.msra.mxu0 0.0
    %3102 = vmatprep.subr.mxu0 0.0
    %3103 = vmatpush2.msra.mxu0 0.0
    %3104 = vmatprep.subr.mxu0 0.0
    %3105 = vmatpush2.msra.mxu0 0.0
    %3106 = vmatprep.subr.mxu0 0.0
    %3107 = vmatpush2.msra.mxu0 0.0
    %3108 = vmatprep.subr.mxu0 0.0
    %3109 = vmatpush2.msra.mxu0 0.0
    %3110 = vmatprep.subr.mxu0 0.0
    %3111 = vmatpush2.msra.mxu0 0.0
    %3112 = vmatprep.subr.mxu0 0.0
    %3113 = vmatpush2.msra.mxu0 0.0
    %3114 = vmatprep.subr.mxu0 0.0
    %3115 = vmatpush2.msra.mxu0 0.0
    %3116 = vmatprep.subr.mxu0 0.0
    %3117 = vmatpush2.msra.mxu0 0.0
    %3118 = vmatprep.subr.mxu0 0.0
    %3119 = vmatpush2.msra.mxu0 0.0
    %3120 = vmatprep.subr.mxu0 0.0
    %3121 = vmatpush2.msra.mxu0 0.0
    %3122 = vmatprep.subr.mxu0 0.0
    %3123 = vmatpush2.msra.mxu0 0.0
    %3124 = vmatprep.subr.mxu0 0.0
    %3125 = vmatpush2.msra.mxu0 0.0
    %3126 = vmatprep.subr.mxu0 0.0
    %3127 = vmatpush2.msra.mxu0 0.0
    %3128 = vmatprep.mubr.f32.mxu0 0.0
    %3129 = vmatmul.mubr.f32.gmra.mxu0 %v2992
    %v3130 = vpop.f32.mrf.mxu0
    %v3131 = vadd.f32 0.0, %v3130
    %v3132 = vpop.f32.mrf.mxu0
    %v3133 = vadd.f32 0.0, %v3132
    %3134 = vdwg.mxu0
    %3135 = vmatprep.subr.mxu0 0.0
    %3136 = vmatpush1.msra.mxu0 %v139
    %3137 = vmatprep.subr.mxu0 0.0
    %3138 = vmatpush1.msra.mxu0 %v134
    %3139 = vmatprep.subr.mxu0 0.0
    %3140 = vmatpush1.msra.mxu0 %v129
    %3141 = vmatprep.subr.mxu0 0.0
    %3142 = vmatpush1.msra.mxu0 %v124
    %3143 = vmatprep.subr.mxu0 0.0
    %3144 = vmatpush1.msra.mxu0 %v119
    %3145 = vmatprep.subr.mxu0 0.0
    %3146 = vmatpush1.msra.mxu0 %v114
    %3147 = vmatprep.subr.mxu0 0.0
    %3148 = vmatpush1.msra.mxu0 %v109
    %3149 = vmatprep.subr.mxu0 0.0
    %3150 = vmatpush1.msra.mxu0 %v104
    %3151 = vmatprep.subr.mxu0 0.0
    %3152 = vmatpush1.msra.mxu0 %v99
    %3153 = vmatprep.subr.mxu0 0.0
    %3154 = vmatpush1.msra.mxu0 %v94
    %3155 = vmatprep.subr.mxu0 0.0
    %3156 = vmatpush1.msra.mxu0 %v89
    %3157 = vmatprep.subr.mxu0 0.0
    %3158 = vmatpush1.msra.mxu0 %v84
    %3159 = vmatprep.subr.mxu0 0.0
    %3160 = vmatpush1.msra.mxu0 %v79
    %3161 = vmatprep.subr.mxu0 0.0
    %3162 = vmatpush1.msra.mxu0 %v74
    %3163 = vmatprep.subr.mxu0 0.0
    %3164 = vmatpush1.msra.mxu0 %v69
    %3165 = vmatprep.subr.mxu0 0.0
    %3166 = vmatpush1.msra.mxu0 %v64
    %3167 = vmatprep.subr.mxu0 0.0
    %3168 = vmatpush2.msra.mxu0 0.0
    %3169 = vmatprep.subr.mxu0 0.0
    %3170 = vmatpush2.msra.mxu0 0.0
    %3171 = vmatprep.subr.mxu0 0.0
    %3172 = vmatpush2.msra.mxu0 0.0
    %3173 = vmatprep.subr.mxu0 0.0
    %3174 = vmatpush2.msra.mxu0 0.0
    %3175 = vmatprep.subr.mxu0 0.0
    %3176 = vmatpush2.msra.mxu0 0.0
    %3177 = vmatprep.subr.mxu0 0.0
    %3178 = vmatpush2.msra.mxu0 0.0
    %3179 = vmatprep.subr.mxu0 0.0
    %3180 = vmatpush2.msra.mxu0 0.0
    %3181 = vmatprep.subr.mxu0 0.0
    %3182 = vmatpush2.msra.mxu0 0.0
    %3183 = vmatprep.subr.mxu0 0.0
    %3184 = vmatpush2.msra.mxu0 0.0
    %3185 = vmatprep.subr.mxu0 0.0
    %3186 = vmatpush2.msra.mxu0 0.0
    %3187 = vmatprep.subr.mxu0 0.0
    %3188 = vmatpush2.msra.mxu0 0.0
    %3189 = vmatprep.subr.mxu0 0.0
    %3190 = vmatpush2.msra.mxu0 0.0
    %3191 = vmatprep.subr.mxu0 0.0
    %3192 = vmatpush2.msra.mxu0 0.0
    %3193 = vmatprep.subr.mxu0 0.0
    %3194 = vmatpush2.msra.mxu0 0.0
    %3195 = vmatprep.subr.mxu0 0.0
    %3196 = vmatpush2.msra.mxu0 0.0
    %3197 = vmatprep.subr.mxu0 0.0
    %3198 = vmatpush2.msra.mxu0 0.0
    %3199 = vmatprep.mubr.f32.mxu0 0.0
    %3200 = vmatmul.mubr.f32.gmra.mxu0 %v2992
    %v3201 = vpop.f32.mrf.mxu0
    %v3202 = vadd.f32 0.0, %v3201
    %v3203 = vpop.f32.mrf.mxu0
    %3204 = vdwg.mxu0
    %v3205 = vadd.f32 %v3202, %v474
    %v3206 = vmul.f32 %v2907, %v2905
    %v3207 = vsub.f32 1.0, %v2907
    %v3208 = vmul.f32 %v3207, %v3205
    %v3209 = vadd.f32 %v3206, %v3208
    %v3211 = vsel %vm169, %v3209, 0
    %3213 = vmatprep.subr.mxu0 0.0
    %3214 = vmatpush1.msra.mxu0 0.0
    %3215 = vmatprep.subr.mxu0 0.0
    %3216 = vmatpush1.msra.mxu0 0.0
    %3217 = vmatprep.subr.mxu0 0.0
    %3218 = vmatpush1.msra.mxu0 0.0
    %3219 = vmatprep.subr.mxu0 0.0
    %3220 = vmatpush1.msra.mxu0 0.0
    %3221 = vmatprep.subr.mxu0 0.0
    %3222 = vmatpush1.msra.mxu0 0.0
    %3223 = vmatprep.subr.mxu0 0.0
    %3224 = vmatpush1.msra.mxu0 0.0
    %3225 = vmatprep.subr.mxu0 0.0
    %3226 = vmatpush1.msra.mxu0 0.0
    %3227 = vmatprep.subr.mxu0 0.0
    %3228 = vmatpush1.msra.mxu0 0.0
    %3229 = vmatprep.subr.mxu0 0.0
    %3230 = vmatpush1.msra.mxu0 0.0
    %3231 = vmatprep.subr.mxu0 0.0
    %3232 = vmatpush1.msra.mxu0 0.0
    %3233 = vmatprep.subr.mxu0 0.0
    %3234 = vmatpush1.msra.mxu0 0.0
    %3235 = vmatprep.subr.mxu0 0.0
    %3236 = vmatpush1.msra.mxu0 0.0
    %3237 = vmatprep.subr.mxu0 0.0
    %3238 = vmatpush1.msra.mxu0 0.0
    %3239 = vmatprep.subr.mxu0 0.0
    %3240 = vmatpush1.msra.mxu0 0.0
    %3241 = vmatprep.subr.mxu0 0.0
    %3242 = vmatpush1.msra.mxu0 0.0
    %3243 = vmatprep.subr.mxu0 0.0
    %3244 = vmatpush1.msra.mxu0 %v491
    %3245 = vmatprep.subr.mxu0 0.0
    %3246 = vmatpush2.msra.mxu0 0.0
    %3247 = vmatprep.subr.mxu0 0.0
    %3248 = vmatpush2.msra.mxu0 0.0
    %3249 = vmatprep.subr.mxu0 0.0
    %3250 = vmatpush2.msra.mxu0 0.0
    %3251 = vmatprep.subr.mxu0 0.0
    %3252 = vmatpush2.msra.mxu0 0.0
    %3253 = vmatprep.subr.mxu0 0.0
    %3254 = vmatpush2.msra.mxu0 0.0
    %3255 = vmatprep.subr.mxu0 0.0
    %3256 = vmatpush2.msra.mxu0 0.0
    %3257 = vmatprep.subr.mxu0 0.0
    %3258 = vmatpush2.msra.mxu0 0.0
    %3259 = vmatprep.subr.mxu0 0.0
    %3260 = vmatpush2.msra.mxu0 0.0
    %3261 = vmatprep.subr.mxu0 0.0
    %3262 = vmatpush2.msra.mxu0 0.0
    %3263 = vmatprep.subr.mxu0 0.0
    %3264 = vmatpush2.msra.mxu0 0.0
    %3265 = vmatprep.subr.mxu0 0.0
    %3266 = vmatpush2.msra.mxu0 0.0
    %3267 = vmatprep.subr.mxu0 0.0
    %3268 = vmatpush2.msra.mxu0 0.0
    %3269 = vmatprep.subr.mxu0 0.0
    %3270 = vmatpush2.msra.mxu0 0.0
    %3271 = vmatprep.subr.mxu0 0.0
    %3272 = vmatpush2.msra.mxu0 0.0
    %3273 = vmatprep.subr.mxu0 0.0
    %3274 = vmatpush2.msra.mxu0 0.0
    %3275 = vmatprep.subr.mxu0 0.0
    %3276 = vmatpush2.msra.mxu0 0.0
    %3277 = vmatprep.mubr.f32.mxu0 0.0
    %3278 = vmatmul.mubr.f32.gmra.mxu0 %v3211
    %v3279 = vpop.f32.mrf.mxu0
    %v3280 = vadd.f32 %v485, %v3279
    %v3281 = vpop.f32.mrf.mxu0
    %3282 = vdwg.mxu0
    %v3284 = vsel %vm169, %v2907, 0
    %3286 = vmatprep.subr.mxu0 0.0
    %3287 = vmatpush1.msra.mxu0 0.0
    %3288 = vmatprep.subr.mxu0 0.0
    %3289 = vmatpush1.msra.mxu0 0.0
    %3290 = vmatprep.subr.mxu0 0.0
    %3291 = vmatpush1.msra.mxu0 0.0
    %3292 = vmatprep.subr.mxu0 0.0
    %3293 = vmatpush1.msra.mxu0 0.0
    %3294 = vmatprep.subr.mxu0 0.0
    %3295 = vmatpush1.msra.mxu0 0.0
    %3296 = vmatprep.subr.mxu0 0.0
    %3297 = vmatpush1.msra.mxu0 0.0
    %3298 = vmatprep.subr.mxu0 0.0
    %3299 = vmatpush1.msra.mxu0 0.0
    %3300 = vmatprep.subr.mxu0 0.0
    %3301 = vmatpush1.msra.mxu0 0.0
    %3302 = vmatprep.subr.mxu0 0.0
    %3303 = vmatpush1.msra.mxu0 0.0
    %3304 = vmatprep.subr.mxu0 0.0
    %3305 = vmatpush1.msra.mxu0 0.0
    %3306 = vmatprep.subr.mxu0 0.0
    %3307 = vmatpush1.msra.mxu0 0.0
    %3308 = vmatprep.subr.mxu0 0.0
    %3309 = vmatpush1.msra.mxu0 0.0
    %3310 = vmatprep.subr.mxu0 0.0
    %3311 = vmatpush1.msra.mxu0 0.0
    %3312 = vmatprep.subr.mxu0 0.0
    %3313 = vmatpush1.msra.mxu0 0.0
    %3314 = vmatprep.subr.mxu0 0.0
    %3315 = vmatpush1.msra.mxu0 0.0
    %3316 = vmatprep.subr.mxu0 %v573
    %3317 = vmatpush1.msra.mxu0 %v571
    %3318 = vmatprep.subr.mxu0 0.0
    %3319 = vmatpush2.msra.mxu0 0.0
    %3320 = vmatprep.subr.mxu0 0.0
    %3321 = vmatpush2.msra.mxu0 0.0
    %3322 = vmatprep.subr.mxu0 0.0
    %3323 = vmatpush2.msra.mxu0 0.0
    %3324 = vmatprep.subr.mxu0 0.0
    %3325 = vmatpush2.msra.mxu0 0.0
    %3326 = vmatprep.subr.mxu0 0.0
    %3327 = vmatpush2.msra.mxu0 0.0
    %3328 = vmatprep.subr.mxu0 0.0
    %3329 = vmatpush2.msra.mxu0 0.0
    %3330 = vmatprep.subr.mxu0 0.0
    %3331 = vmatpush2.msra.mxu0 0.0
    %3332 = vmatprep.subr.mxu0 0.0
    %3333 = vmatpush2.msra.mxu0 0.0
    %3334 = vmatprep.subr.mxu0 0.0
    %3335 = vmatpush2.msra.mxu0 0.0
    %3336 = vmatprep.subr.mxu0 0.0
    %3337 = vmatpush2.msra.mxu0 0.0
    %3338 = vmatprep.subr.mxu0 0.0
    %3339 = vmatpush2.msra.mxu0 0.0
    %3340 = vmatprep.subr.mxu0 0.0
    %3341 = vmatpush2.msra.mxu0 0.0
    %3342 = vmatprep.subr.mxu0 0.0
    %3343 = vmatpush2.msra.mxu0 0.0
    %3344 = vmatprep.subr.mxu0 0.0
    %3345 = vmatpush2.msra.mxu0 0.0
    %3346 = vmatprep.subr.mxu0 0.0
    %3347 = vmatpush2.msra.mxu0 0.0
    %3348 = vmatprep.subr.mxu0 0.0
    %3349 = vmatpush2.msra.mxu0 0.0
    %3350 = vmatprep.mubr.f32.mxu0 0.0
    %3351 = vmatmul.mubr.f32.gmra.mxu0 %v3284
    %v3352 = vpop.f32.mrf.mxu0
    %v3353 = vadd.f32 0.0, %v3352
    %v3354 = vpop.f32.mrf.mxu0
    %v3355 = vadd.f32 0.0, %v3354
    %3356 = vdwg.mxu0
    %3357 = vmatprep.subr.mxu0 0.0
    %3358 = vmatpush1.msra.mxu0 0.0
    %3359 = vmatprep.subr.mxu0 0.0
    %3360 = vmatpush1.msra.mxu0 0.0
    %3361 = vmatprep.subr.mxu0 0.0
    %3362 = vmatpush1.msra.mxu0 0.0
    %3363 = vmatprep.subr.mxu0 0.0
    %3364 = vmatpush1.msra.mxu0 0.0
    %3365 = vmatprep.subr.mxu0 0.0
    %3366 = vmatpush1.msra.mxu0 0.0
    %3367 = vmatprep.subr.mxu0 0.0
    %3368 = vmatpush1.msra.mxu0 0.0
    %3369 = vmatprep.subr.mxu0 0.0
    %3370 = vmatpush1.msra.mxu0 0.0
    %3371 = vmatprep.subr.mxu0 0.0
    %3372 = vmatpush1.msra.mxu0 0.0
    %3373 = vmatprep.subr.mxu0 0.0
    %3374 = vmatpush1.msra.mxu0 0.0
    %3375 = vmatprep.subr.mxu0 0.0
    %3376 = vmatpush1.msra.mxu0 0.0
    %3377 = vmatprep.subr.mxu0 0.0
    %3378 = vmatpush1.msra.mxu0 0.0
    %3379 = vmatprep.subr.mxu0 0.0
    %3380 = vmatpush1.msra.mxu0 0.0
    %3381 = vmatprep.subr.mxu0 0.0
    %3382 = vmatpush1.msra.mxu0 0.0
    %3383 = vmatprep.subr.mxu0 0.0
    %3384 = vmatpush1.msra.mxu0 0.0
    %3385 = vmatprep.subr.mxu0 0.0
    %3386 = vmatpush1.msra.mxu0 0.0
    %3387 = vmatprep.subr.mxu0 %v577
    %3388 = vmatpush1.msra.mxu0 %v575
    %3389 = vmatprep.subr.mxu0 0.0
    %3390 = vmatpush2.msra.mxu0 0.0
    %3391 = vmatprep.subr.mxu0 0.0
    %3392 = vmatpush2.msra.mxu0 0.0
    %3393 = vmatprep.subr.mxu0 0.0
    %3394 = vmatpush2.msra.mxu0 0.0
    %3395 = vmatprep.subr.mxu0 0.0
    %3396 = vmatpush2.msra.mxu0 0.0
    %3397 = vmatprep.subr.mxu0 0.0
    %3398 = vmatpush2.msra.mxu0 0.0
    %3399 = vmatprep.subr.mxu0 0.0
    %3400 = vmatpush2.msra.mxu0 0.0
    %3401 = vmatprep.subr.mxu0 0.0
    %3402 = vmatpush2.msra.mxu0 0.0
    %3403 = vmatprep.subr.mxu0 0.0
    %3404 = vmatpush2.msra.mxu0 0.0
    %3405 = vmatprep.subr.mxu0 0.0
    %3406 = vmatpush2.msra.mxu0 0.0
    %3407 = vmatprep.subr.mxu0 0.0
    %3408 = vmatpush2.msra.mxu0 0.0
    %3409 = vmatprep.subr.mxu0 0.0
    %3410 = vmatpush2.msra.mxu0 0.0
    %3411 = vmatprep.subr.mxu0 0.0
    %3412 = vmatpush2.msra.mxu0 0.0
    %3413 = vmatprep.subr.mxu0 0.0
    %3414 = vmatpush2.msra.mxu0 0.0
    %3415 = vmatprep.subr.mxu0 0.0
    %3416 = vmatpush2.msra.mxu0 0.0
    %3417 = vmatprep.subr.mxu0 0.0
    %3418 = vmatpush2.msra.mxu0 0.0
    %3419 = vmatprep.subr.mxu0 0.0
    %3420 = vmatpush2.msra.mxu0 0.0
    %3421 = vmatprep.mubr.f32.mxu0 0.0
    %3422 = vmatmul.mubr.f32.gmra.mxu0 %v3284
    %v3423 = vpop.f32.mrf.mxu0
    %v3424 = vadd.f32 0.0, %v3423
    %v3425 = vpop.f32.mrf.mxu0
    %v3426 = vadd.f32 0.0, %v3425
    %3427 = vdwg.mxu0
    %3428 = vmatprep.subr.mxu0 0.0
    %3429 = vmatpush1.msra.mxu0 0.0
    %3430 = vmatprep.subr.mxu0 0.0
    %3431 = vmatpush1.msra.mxu0 0.0
    %3432 = vmatprep.subr.mxu0 0.0
    %3433 = vmatpush1.msra.mxu0 0.0
    %3434 = vmatprep.subr.mxu0 0.0
    %3435 = vmatpush1.msra.mxu0 0.0
    %3436 = vmatprep.subr.mxu0 0.0
    %3437 = vmatpush1.msra.mxu0 0.0
    %3438 = vmatprep.subr.mxu0 0.0
    %3439 = vmatpush1.msra.mxu0 0.0
    %3440 = vmatprep.subr.mxu0 0.0
    %3441 = vmatpush1.msra.mxu0 0.0
    %3442 = vmatprep.subr.mxu0 0.0
    %3443 = vmatpush1.msra.mxu0 0.0
    %3444 = vmatprep.subr.mxu0 0.0
    %3445 = vmatpush1.msra.mxu0 0.0
    %3446 = vmatprep.subr.mxu0 0.0
    %3447 = vmatpush1.msra.mxu0 0.0
    %3448 = vmatprep.subr.mxu0 0.0
    %3449 = vmatpush1.msra.mxu0 0.0
    %3450 = vmatprep.subr.mxu0 0.0
    %3451 = vmatpush1.msra.mxu0 0.0
    %3452 = vmatprep.subr.mxu0 0.0
    %3453 = vmatpush1.msra.mxu0 0.0
    %3454 = vmatprep.subr.mxu0 0.0
    %3455 = vmatpush1.msra.mxu0 0.0
    %3456 = vmatprep.subr.mxu0 0.0
    %3457 = vmatpush1.msra.mxu0 0.0
    %3458 = vmatprep.subr.mxu0 0.0
    %3459 = vmatpush1.msra.mxu0 %v579
    %3460 = vmatprep.subr.mxu0 0.0
    %3461 = vmatpush2.msra.mxu0 0.0
    %3462 = vmatprep.subr.mxu0 0.0
    %3463 = vmatpush2.msra.mxu0 0.0
    %3464 = vmatprep.subr.mxu0 0.0
    %3465 = vmatpush2.msra.mxu0 0.0
    %3466 = vmatprep.subr.mxu0 0.0
    %3467 = vmatpush2.msra.mxu0 0.0
    %3468 = vmatprep.subr.mxu0 0.0
    %3469 = vmatpush2.msra.mxu0 0.0
    %3470 = vmatprep.subr.mxu0 0.0
    %3471 = vmatpush2.msra.mxu0 0.0
    %3472 = vmatprep.subr.mxu0 0.0
    %3473 = vmatpush2.msra.mxu0 0.0
    %3474 = vmatprep.subr.mxu0 0.0
    %3475 = vmatpush2.msra.mxu0 0.0
    %3476 = vmatprep.subr.mxu0 0.0
    %3477 = vmatpush2.msra.mxu0 0.0
    %3478 = vmatprep.subr.mxu0 0.0
    %3479 = vmatpush2.msra.mxu0 0.0
    %3480 = vmatprep.subr.mxu0 0.0
    %3481 = vmatpush2.msra.mxu0 0.0
    %3482 = vmatprep.subr.mxu0 0.0
    %3483 = vmatpush2.msra.mxu0 0.0
    %3484 = vmatprep.subr.mxu0 0.0
    %3485 = vmatpush2.msra.mxu0 0.0
    %3486 = vmatprep.subr.mxu0 0.0
    %3487 = vmatpush2.msra.mxu0 0.0
    %3488 = vmatprep.subr.mxu0 0.0
    %3489 = vmatpush2.msra.mxu0 0.0
    %3490 = vmatprep.subr.mxu0 0.0
    %3491 = vmatpush2.msra.mxu0 0.0
    %3492 = vmatprep.mubr.f32.mxu0 0.0
    %3493 = vmatmul.mubr.f32.gmra.mxu0 %v3284
    %v3494 = vpop.f32.mrf.mxu0
    %v3495 = vadd.f32 0.0, %v3494
    %v3496 = vpop.f32.mrf.mxu0
    %3497 = vdwg.mxu0
    %v3499 = vsel %vm169, %v2991, 0
    %3501 = vmatprep.subr.mxu0 0.0
    %3502 = vmatpush1.msra.mxu0 0.0
    %3503 = vmatprep.subr.mxu0 0.0
    %3504 = vmatpush1.msra.mxu0 0.0
    %3505 = vmatprep.subr.mxu0 0.0
    %3506 = vmatpush1.msra.mxu0 0.0
    %3507 = vmatprep.subr.mxu0 0.0
    %3508 = vmatpush1.msra.mxu0 0.0
    %3509 = vmatprep.subr.mxu0 0.0
    %3510 = vmatpush1.msra.mxu0 0.0
    %3511 = vmatprep.subr.mxu0 0.0
    %3512 = vmatpush1.msra.mxu0 0.0
    %3513 = vmatprep.subr.mxu0 0.0
    %3514 = vmatpush1.msra.mxu0 0.0
    %3515 = vmatprep.subr.mxu0 0.0
    %3516 = vmatpush1.msra.mxu0 0.0
    %3517 = vmatprep.subr.mxu0 0.0
    %3518 = vmatpush1.msra.mxu0 0.0
    %3519 = vmatprep.subr.mxu0 0.0
    %3520 = vmatpush1.msra.mxu0 0.0
    %3521 = vmatprep.subr.mxu0 0.0
    %3522 = vmatpush1.msra.mxu0 0.0
    %3523 = vmatprep.subr.mxu0 0.0
    %3524 = vmatpush1.msra.mxu0 0.0
    %3525 = vmatprep.subr.mxu0 0.0
    %3526 = vmatpush1.msra.mxu0 0.0
    %3527 = vmatprep.subr.mxu0 0.0
    %3528 = vmatpush1.msra.mxu0 0.0
    %3529 = vmatprep.subr.mxu0 0.0
    %3530 = vmatpush1.msra.mxu0 0.0
    %3531 = vmatprep.subr.mxu0 0.0
    %3532 = vmatpush1.msra.mxu0 %v797
    %3533 = vmatprep.subr.mxu0 0.0
    %3534 = vmatpush2.msra.mxu0 0.0
    %3535 = vmatprep.subr.mxu0 0.0
    %3536 = vmatpush2.msra.mxu0 0.0
    %3537 = vmatprep.subr.mxu0 0.0
    %3538 = vmatpush2.msra.mxu0 0.0
    %3539 = vmatprep.subr.mxu0 0.0
    %3540 = vmatpush2.msra.mxu0 0.0
    %3541 = vmatprep.subr.mxu0 0.0
    %3542 = vmatpush2.msra.mxu0 0.0
    %3543 = vmatprep.subr.mxu0 0.0
    %3544 = vmatpush2.msra.mxu0 0.0
    %3545 = vmatprep.subr.mxu0 0.0
    %3546 = vmatpush2.msra.mxu0 0.0
    %3547 = vmatprep.subr.mxu0 0.0
    %3548 = vmatpush2.msra.mxu0 0.0
    %3549 = vmatprep.subr.mxu0 0.0
    %3550 = vmatpush2.msra.mxu0 0.0
    %3551 = vmatprep.subr.mxu0 0.0
    %3552 = vmatpush2.msra.mxu0 0.0
    %3553 = vmatprep.subr.mxu0 0.0
    %3554 = vmatpush2.msra.mxu0 0.0
    %3555 = vmatprep.subr.mxu0 0.0
    %3556 = vmatpush2.msra.mxu0 0.0
    %3557 = vmatprep.subr.mxu0 0.0
    %3558 = vmatpush2.msra.mxu0 0.0
    %3559 = vmatprep.subr.mxu0 0.0
    %3560 = vmatpush2.msra.mxu0 0.0
    %3561 = vmatprep.subr.mxu0 0.0
    %3562 = vmatpush2.msra.mxu0 0.0
    %3563 = vmatprep.subr.mxu0 0.0
    %3564 = vmatpush2.msra.mxu0 0.0
    %3565 = vmatprep.mubr.f32.mxu0 0.0
    %3566 = vmatmul.mubr.f32.gmra.mxu0 %v3499
    %v3567 = vpop.f32.mrf.mxu0
    %v3568 = vadd.f32 %v3495, %v3567
    %v3569 = vpop.f32.mrf.mxu0
    %3570 = vdwg.mxu0
    %v3571 = vadd.f32 %v3568, %v873
    %v3572 = vmul.f32 %v3571, %v3280
    %v3573 = vsub.f32 1.0, %v3571
    %v3574 = vmul.f32 %v3573, %v3205
    %v3575 = vadd.f32 %v3572, %v3574
    %v3576 = vsub.f32 %v2905, %v3205
    %v3577 = vand.u32 2147483647, %v3576
    %v3578 = vsub.f32 %v2905, %v3280
    %v3579 = vand.u32 2147483647, %v3578
    %v3580 = vadd.f32 %v3577, %v3579
    %v3581 = vsub.f32 %v2905, %v3575
    %v3582 = vand.u32 2147483647, %v3581
    %v3583 = vadd.f32 %v3580, %v3582
    %v3584 = vmul.f32 %v3583, %v2907
    %v3585 = vsel %vm169, %v3584, 0.0
    %3586 = vadd.xlane.f32.xlu0 %v3585
    %v3587 = vpop.xlane.xlu0 %3586
    %v3588 = vrot.slane %v3587, 4
    %v3589 = vadd.f32 %v3587, %v3588
    %v3590 = vrot.slane %v3589, 2
    %v3591 = vadd.f32 %v3589, %v3590
    %v3592 = vrot.slane %v3591, 1
    %v3593 = vadd.f32 %v3591, %v3592
    %s3594 = vtos %v3593
    %v3595 = vsel %vm169, %v2907, 0.0
    %3596 = vadd.xlane.f32.xlu0 %v3595
    %v3597 = vpop.xlane.xlu0 %3596
    %v3598 = vrot.slane %v3597, 4
    %v3599 = vadd.f32 %v3597, %v3598
    %v3600 = vrot.slane %v3599, 2
    %v3601 = vadd.f32 %v3599, %v3600
    %v3602 = vrot.slane %v3601, 1
    %v3603 = vadd.f32 %v3601, %v3602
    %s3604 = vtos %v3603
    %s3605 = sadd.f32 %s3604, 1e-05
    %v3606 = vstv %s3605
    %v3607 = vrcp.pop %v3606
    %s3608 = vtos %v3607
    %s3609 = smul.f32 %s3594, %s3608
    %s3610 = sadd.f32 %s2722, %s3609
    %v3611 = vmul.f32 %v3207, %v3575
    %v3612 = vadd.f32 %v3206, %v3611
    %s3613 = scalar_lea.vmem %s14, 24
    %3614 = vst.msk [vmem:[%s3613] sm:$0xff] %vm169, %v3612
    %v3616 = vsel %vm169, %v3612, 0
    %3618 = vmatprep.subr.mxu0 0.0
    %3619 = vmatpush1.msra.mxu0 0.0
    %3620 = vmatprep.subr.mxu0 0.0
    %3621 = vmatpush1.msra.mxu0 0.0
    %3622 = vmatprep.subr.mxu0 0.0
    %3623 = vmatpush1.msra.mxu0 0.0
    %3624 = vmatprep.subr.mxu0 0.0
    %3625 = vmatpush1.msra.mxu0 0.0
    %3626 = vmatprep.subr.mxu0 0.0
    %3627 = vmatpush1.msra.mxu0 0.0
    %3628 = vmatprep.subr.mxu0 0.0
    %3629 = vmatpush1.msra.mxu0 0.0
    %3630 = vmatprep.subr.mxu0 0.0
    %3631 = vmatpush1.msra.mxu0 0.0
    %3632 = vmatprep.subr.mxu0 0.0
    %3633 = vmatpush1.msra.mxu0 0.0
    %3634 = vmatprep.subr.mxu0 0.0
    %3635 = vmatpush1.msra.mxu0 0.0
    %3636 = vmatprep.subr.mxu0 0.0
    %3637 = vmatpush1.msra.mxu0 0.0
    %3638 = vmatprep.subr.mxu0 0.0
    %3639 = vmatpush1.msra.mxu0 0.0
    %3640 = vmatprep.subr.mxu0 0.0
    %3641 = vmatpush1.msra.mxu0 0.0
    %3642 = vmatprep.subr.mxu0 0.0
    %3643 = vmatpush1.msra.mxu0 0.0
    %3644 = vmatprep.subr.mxu0 0.0
    %3645 = vmatpush1.msra.mxu0 0.0
    %3646 = vmatprep.subr.mxu0 0.0
    %3647 = vmatpush1.msra.mxu0 0.0
    %3648 = vmatprep.subr.mxu0 %v927
    %3649 = vmatpush1.msra.mxu0 %v925
    %3650 = vmatprep.subr.mxu0 0.0
    %3651 = vmatpush2.msra.mxu0 0.0
    %3652 = vmatprep.subr.mxu0 0.0
    %3653 = vmatpush2.msra.mxu0 0.0
    %3654 = vmatprep.subr.mxu0 0.0
    %3655 = vmatpush2.msra.mxu0 0.0
    %3656 = vmatprep.subr.mxu0 0.0
    %3657 = vmatpush2.msra.mxu0 0.0
    %3658 = vmatprep.subr.mxu0 0.0
    %3659 = vmatpush2.msra.mxu0 0.0
    %3660 = vmatprep.subr.mxu0 0.0
    %3661 = vmatpush2.msra.mxu0 0.0
    %3662 = vmatprep.subr.mxu0 0.0
    %3663 = vmatpush2.msra.mxu0 0.0
    %3664 = vmatprep.subr.mxu0 0.0
    %3665 = vmatpush2.msra.mxu0 0.0
    %3666 = vmatprep.subr.mxu0 0.0
    %3667 = vmatpush2.msra.mxu0 0.0
    %3668 = vmatprep.subr.mxu0 0.0
    %3669 = vmatpush2.msra.mxu0 0.0
    %3670 = vmatprep.subr.mxu0 0.0
    %3671 = vmatpush2.msra.mxu0 0.0
    %3672 = vmatprep.subr.mxu0 0.0
    %3673 = vmatpush2.msra.mxu0 0.0
    %3674 = vmatprep.subr.mxu0 0.0
    %3675 = vmatpush2.msra.mxu0 0.0
    %3676 = vmatprep.subr.mxu0 0.0
    %3677 = vmatpush2.msra.mxu0 0.0
    %3678 = vmatprep.subr.mxu0 0.0
    %3679 = vmatpush2.msra.mxu0 0.0
    %3680 = vmatprep.subr.mxu0 0.0
    %3681 = vmatpush2.msra.mxu0 0.0
    %3682 = vmatprep.mubr.f32.mxu0 0.0
    %3683 = vmatmul.mubr.f32.gmra.mxu0 %v3616
    %v3684 = vpop.f32.mrf.mxu0
    %v3685 = vadd.f32 %v3353, %v3684
    %v3686 = vpop.f32.mrf.mxu0
    %v3687 = vadd.f32 %v3355, %v3686
    %3688 = vdwg.mxu0
    %3689 = vmatprep.subr.mxu0 0.0
    %3690 = vmatpush1.msra.mxu0 0.0
    %3691 = vmatprep.subr.mxu0 0.0
    %3692 = vmatpush1.msra.mxu0 0.0
    %3693 = vmatprep.subr.mxu0 0.0
    %3694 = vmatpush1.msra.mxu0 0.0
    %3695 = vmatprep.subr.mxu0 0.0
    %3696 = vmatpush1.msra.mxu0 0.0
    %3697 = vmatprep.subr.mxu0 0.0
    %3698 = vmatpush1.msra.mxu0 0.0
    %3699 = vmatprep.subr.mxu0 0.0
    %3700 = vmatpush1.msra.mxu0 0.0
    %3701 = vmatprep.subr.mxu0 0.0
    %3702 = vmatpush1.msra.mxu0 0.0
    %3703 = vmatprep.subr.mxu0 0.0
    %3704 = vmatpush1.msra.mxu0 0.0
    %3705 = vmatprep.subr.mxu0 0.0
    %3706 = vmatpush1.msra.mxu0 0.0
    %3707 = vmatprep.subr.mxu0 0.0
    %3708 = vmatpush1.msra.mxu0 0.0
    %3709 = vmatprep.subr.mxu0 0.0
    %3710 = vmatpush1.msra.mxu0 0.0
    %3711 = vmatprep.subr.mxu0 0.0
    %3712 = vmatpush1.msra.mxu0 0.0
    %3713 = vmatprep.subr.mxu0 0.0
    %3714 = vmatpush1.msra.mxu0 0.0
    %3715 = vmatprep.subr.mxu0 0.0
    %3716 = vmatpush1.msra.mxu0 0.0
    %3717 = vmatprep.subr.mxu0 0.0
    %3718 = vmatpush1.msra.mxu0 0.0
    %3719 = vmatprep.subr.mxu0 %v931
    %3720 = vmatpush1.msra.mxu0 %v929
    %3721 = vmatprep.subr.mxu0 0.0
    %3722 = vmatpush2.msra.mxu0 0.0
    %3723 = vmatprep.subr.mxu0 0.0
    %3724 = vmatpush2.msra.mxu0 0.0
    %3725 = vmatprep.subr.mxu0 0.0
    %3726 = vmatpush2.msra.mxu0 0.0
    %3727 = vmatprep.subr.mxu0 0.0
    %3728 = vmatpush2.msra.mxu0 0.0
    %3729 = vmatprep.subr.mxu0 0.0
    %3730 = vmatpush2.msra.mxu0 0.0
    %3731 = vmatprep.subr.mxu0 0.0
    %3732 = vmatpush2.msra.mxu0 0.0
    %3733 = vmatprep.subr.mxu0 0.0
    %3734 = vmatpush2.msra.mxu0 0.0
    %3735 = vmatprep.subr.mxu0 0.0
    %3736 = vmatpush2.msra.mxu0 0.0
    %3737 = vmatprep.subr.mxu0 0.0
    %3738 = vmatpush2.msra.mxu0 0.0
    %3739 = vmatprep.subr.mxu0 0.0
    %3740 = vmatpush2.msra.mxu0 0.0
    %3741 = vmatprep.subr.mxu0 0.0
    %3742 = vmatpush2.msra.mxu0 0.0
    %3743 = vmatprep.subr.mxu0 0.0
    %3744 = vmatpush2.msra.mxu0 0.0
    %3745 = vmatprep.subr.mxu0 0.0
    %3746 = vmatpush2.msra.mxu0 0.0
    %3747 = vmatprep.subr.mxu0 0.0
    %3748 = vmatpush2.msra.mxu0 0.0
    %3749 = vmatprep.subr.mxu0 0.0
    %3750 = vmatpush2.msra.mxu0 0.0
    %3751 = vmatprep.subr.mxu0 0.0
    %3752 = vmatpush2.msra.mxu0 0.0
    %3753 = vmatprep.mubr.f32.mxu0 0.0
    %3754 = vmatmul.mubr.f32.gmra.mxu0 %v3616
    %v3755 = vpop.f32.mrf.mxu0
    %v3756 = vadd.f32 %v3424, %v3755
    %v3757 = vpop.f32.mrf.mxu0
    %v3758 = vadd.f32 %v3426, %v3757
    %3759 = vdwg.mxu0
    %v3760 = vadd.f32 %v3685, %v3060
    %v3761 = vadd.f32 %v3687, %v3062
    %v3762 = vadd.f32 %v3756, %v3131
    %v3763 = vadd.f32 %v3758, %v3133
    %v3764 = vadd.f32 %v3760, %v1083
    %v3765 = vadd.f32 %v3761, %v1087
    %v3766 = vadd.f32 %v3762, %v1091
    %v3767 = vadd.f32 %v3763, %v1095
    %v3768 = vxor.u32 %v3764, 2147483648
    %v3769 = vmul.f32 %v3768, 1.442695
    %v3770 = vpow.pop %v3769
    %v3771 = vadd.f32 %v3770, 1.0
    %v3772 = vrcp.pop %v3771
    %v3773 = vmul.f32 1.0, %v3772
    %v3774 = vxor.u32 %v3765, 2147483648
    %v3775 = vmul.f32 %v3774, 1.442695
    %v3776 = vpow.pop %v3775
    %v3777 = vadd.f32 %v3776, 1.0
    %v3778 = vrcp.pop %v3777
    %v3779 = vmul.f32 1.0, %v3778
    %v3780 = vtanh.pop %v3766
    %v3781 = vxor.u32 %v3767, 2147483648
    %v3782 = vmul.f32 %v3781, 1.442695
    %v3783 = vpow.pop %v3782
    %v3784 = vadd.f32 %v3783, 1.0
    %v3785 = vrcp.pop %v3784
    %v3786 = vmul.f32 1.0, %v3785
    %v3787 = vmul.f32 %v3779, %v2901
    %v3788 = vmul.f32 %v3773, %v3780
    %v3789 = vadd.f32 %v3787, %v3788
    %v3790 = vtanh.pop %v3789
    %v3791 = vmul.f32 %v3786, %v3790
    %s3792 = scalar_lea.vmem %s0, 32
    %v3793 = vld [vmem:[%s3792] sm:$0xff]
    %s3794 = scalar_lea.vmem %s1, 32
    %v3795 = vld [vmem:[%s3794] sm:$0xff]
    %s3796 = scalar_lea.vmem %s2, 32
    %v3797 = vld [vmem:[%s3796] sm:$0xff]
    %v3799 = vsel %vm169, %v3797, 0
    %3801 = vmatprep.subr.mxu0 0.0
    %3802 = vmatpush1.msra.mxu0 0.0
    %3803 = vmatprep.subr.mxu0 0.0
    %3804 = vmatpush1.msra.mxu0 0.0
    %3805 = vmatprep.subr.mxu0 0.0
    %3806 = vmatpush1.msra.mxu0 0.0
    %3807 = vmatprep.subr.mxu0 0.0
    %3808 = vmatpush1.msra.mxu0 0.0
    %3809 = vmatprep.subr.mxu0 0.0
    %3810 = vmatpush1.msra.mxu0 0.0
    %3811 = vmatprep.subr.mxu0 0.0
    %3812 = vmatpush1.msra.mxu0 0.0
    %3813 = vmatprep.subr.mxu0 0.0
    %3814 = vmatpush1.msra.mxu0 0.0
    %3815 = vmatprep.subr.mxu0 0.0
    %3816 = vmatpush1.msra.mxu0 0.0
    %3817 = vmatprep.subr.mxu0 0.0
    %3818 = vmatpush1.msra.mxu0 0.0
    %3819 = vmatprep.subr.mxu0 0.0
    %3820 = vmatpush1.msra.mxu0 0.0
    %3821 = vmatprep.subr.mxu0 0.0
    %3822 = vmatpush1.msra.mxu0 0.0
    %3823 = vmatprep.subr.mxu0 0.0
    %3824 = vmatpush1.msra.mxu0 0.0
    %3825 = vmatprep.subr.mxu0 0.0
    %3826 = vmatpush1.msra.mxu0 0.0
    %3827 = vmatprep.subr.mxu0 0.0
    %3828 = vmatpush1.msra.mxu0 0.0
    %3829 = vmatprep.subr.mxu0 0.0
    %3830 = vmatpush1.msra.mxu0 0.0
    %3831 = vmatprep.subr.mxu0 %v176
    %3832 = vmatpush1.msra.mxu0 %v174
    %3833 = vmatprep.subr.mxu0 0.0
    %3834 = vmatpush2.msra.mxu0 0.0
    %3835 = vmatprep.subr.mxu0 0.0
    %3836 = vmatpush2.msra.mxu0 0.0
    %3837 = vmatprep.subr.mxu0 0.0
    %3838 = vmatpush2.msra.mxu0 0.0
    %3839 = vmatprep.subr.mxu0 0.0
    %3840 = vmatpush2.msra.mxu0 0.0
    %3841 = vmatprep.subr.mxu0 0.0
    %3842 = vmatpush2.msra.mxu0 0.0
    %3843 = vmatprep.subr.mxu0 0.0
    %3844 = vmatpush2.msra.mxu0 0.0
    %3845 = vmatprep.subr.mxu0 0.0
    %3846 = vmatpush2.msra.mxu0 0.0
    %3847 = vmatprep.subr.mxu0 0.0
    %3848 = vmatpush2.msra.mxu0 0.0
    %3849 = vmatprep.subr.mxu0 0.0
    %3850 = vmatpush2.msra.mxu0 0.0
    %3851 = vmatprep.subr.mxu0 0.0
    %3852 = vmatpush2.msra.mxu0 0.0
    %3853 = vmatprep.subr.mxu0 0.0
    %3854 = vmatpush2.msra.mxu0 0.0
    %3855 = vmatprep.subr.mxu0 0.0
    %3856 = vmatpush2.msra.mxu0 0.0
    %3857 = vmatprep.subr.mxu0 0.0
    %3858 = vmatpush2.msra.mxu0 0.0
    %3859 = vmatprep.subr.mxu0 0.0
    %3860 = vmatpush2.msra.mxu0 0.0
    %3861 = vmatprep.subr.mxu0 0.0
    %3862 = vmatpush2.msra.mxu0 0.0
    %3863 = vmatprep.subr.mxu0 0.0
    %3864 = vmatpush2.msra.mxu0 0.0
    %3865 = vmatprep.mubr.f32.mxu0 0.0
    %3866 = vmatmul.mubr.f32.gmra.mxu0 %v3799
    %v3867 = vpop.f32.mrf.mxu0
    %v3868 = vadd.f32 %v160, %v3867
    %v3869 = vpop.f32.mrf.mxu0
    %v3870 = vadd.f32 %v164, %v3869
    %3871 = vdwg.mxu0
    %v3872 = vmax.f32 %v3868, 0.0
    %v3873 = vmax.f32 %v3870, 0.0
    %v3874 = vsub.f32 0.0, %v3872
    %v3875 = vsub.f32 0.0, %v3873
    %v3876 = vmul.f32 %v3874, 1.442695
    %v3877 = vpow.pop %v3876
    %v3878 = vmul.f32 %v3875, 1.442695
    %v3879 = vpow.pop %v3878
    %v3880 = vmul.f32 %v3791, %v3877
    %3881 = vmatprep.subr.mxu0 %v136
    %3882 = vmatpush1.msra.mxu0 %v135
    %3883 = vmatprep.subr.mxu0 %v131
    %3884 = vmatpush1.msra.mxu0 %v130
    %3885 = vmatprep.subr.mxu0 %v126
    %3886 = vmatpush1.msra.mxu0 %v125
    %3887 = vmatprep.subr.mxu0 %v121
    %3888 = vmatpush1.msra.mxu0 %v120
    %3889 = vmatprep.subr.mxu0 %v116
    %3890 = vmatpush1.msra.mxu0 %v115
    %3891 = vmatprep.subr.mxu0 %v111
    %3892 = vmatpush1.msra.mxu0 %v110
    %3893 = vmatprep.subr.mxu0 %v106
    %3894 = vmatpush1.msra.mxu0 %v105
    %3895 = vmatprep.subr.mxu0 %v101
    %3896 = vmatpush1.msra.mxu0 %v100
    %3897 = vmatprep.subr.mxu0 %v96
    %3898 = vmatpush1.msra.mxu0 %v95
    %3899 = vmatprep.subr.mxu0 %v91
    %3900 = vmatpush1.msra.mxu0 %v90
    %3901 = vmatprep.subr.mxu0 %v86
    %3902 = vmatpush1.msra.mxu0 %v85
    %3903 = vmatprep.subr.mxu0 %v81
    %3904 = vmatpush1.msra.mxu0 %v80
    %3905 = vmatprep.subr.mxu0 %v76
    %3906 = vmatpush1.msra.mxu0 %v75
    %3907 = vmatprep.subr.mxu0 %v71
    %3908 = vmatpush1.msra.mxu0 %v70
    %3909 = vmatprep.subr.mxu0 %v66
    %3910 = vmatpush1.msra.mxu0 %v65
    %3911 = vmatprep.subr.mxu0 %v61
    %3912 = vmatpush1.msra.mxu0 %v60
    %3913 = vmatprep.subr.mxu0 0.0
    %3914 = vmatpush2.msra.mxu0 0.0
    %3915 = vmatprep.subr.mxu0 0.0
    %3916 = vmatpush2.msra.mxu0 0.0
    %3917 = vmatprep.subr.mxu0 0.0
    %3918 = vmatpush2.msra.mxu0 0.0
    %3919 = vmatprep.subr.mxu0 0.0
    %3920 = vmatpush2.msra.mxu0 0.0
    %3921 = vmatprep.subr.mxu0 0.0
    %3922 = vmatpush2.msra.mxu0 0.0
    %3923 = vmatprep.subr.mxu0 0.0
    %3924 = vmatpush2.msra.mxu0 0.0
    %3925 = vmatprep.subr.mxu0 0.0
    %3926 = vmatpush2.msra.mxu0 0.0
    %3927 = vmatprep.subr.mxu0 0.0
    %3928 = vmatpush2.msra.mxu0 0.0
    %3929 = vmatprep.subr.mxu0 0.0
    %3930 = vmatpush2.msra.mxu0 0.0
    %3931 = vmatprep.subr.mxu0 0.0
    %3932 = vmatpush2.msra.mxu0 0.0
    %3933 = vmatprep.subr.mxu0 0.0
    %3934 = vmatpush2.msra.mxu0 0.0
    %3935 = vmatprep.subr.mxu0 0.0
    %3936 = vmatpush2.msra.mxu0 0.0
    %3937 = vmatprep.subr.mxu0 0.0
    %3938 = vmatpush2.msra.mxu0 0.0
    %3939 = vmatprep.subr.mxu0 0.0
    %3940 = vmatpush2.msra.mxu0 0.0
    %3941 = vmatprep.subr.mxu0 0.0
    %3942 = vmatpush2.msra.mxu0 0.0
    %3943 = vmatprep.subr.mxu0 0.0
    %3944 = vmatpush2.msra.mxu0 0.0
    %3945 = vmatprep.mubr.f32.mxu0 0.0
    %3946 = vmatmul.mubr.f32.gmra.mxu0 %v3880
    %v3947 = vpop.f32.mrf.mxu0
    %v3948 = vadd.f32 0.0, %v3947
    %v3949 = vpop.f32.mrf.mxu0
    %v3950 = vadd.f32 0.0, %v3949
    %3951 = vdwg.mxu0
    %3952 = vmatprep.subr.mxu0 %v138
    %3953 = vmatpush1.msra.mxu0 %v137
    %3954 = vmatprep.subr.mxu0 %v133
    %3955 = vmatpush1.msra.mxu0 %v132
    %3956 = vmatprep.subr.mxu0 %v128
    %3957 = vmatpush1.msra.mxu0 %v127
    %3958 = vmatprep.subr.mxu0 %v123
    %3959 = vmatpush1.msra.mxu0 %v122
    %3960 = vmatprep.subr.mxu0 %v118
    %3961 = vmatpush1.msra.mxu0 %v117
    %3962 = vmatprep.subr.mxu0 %v113
    %3963 = vmatpush1.msra.mxu0 %v112
    %3964 = vmatprep.subr.mxu0 %v108
    %3965 = vmatpush1.msra.mxu0 %v107
    %3966 = vmatprep.subr.mxu0 %v103
    %3967 = vmatpush1.msra.mxu0 %v102
    %3968 = vmatprep.subr.mxu0 %v98
    %3969 = vmatpush1.msra.mxu0 %v97
    %3970 = vmatprep.subr.mxu0 %v93
    %3971 = vmatpush1.msra.mxu0 %v92
    %3972 = vmatprep.subr.mxu0 %v88
    %3973 = vmatpush1.msra.mxu0 %v87
    %3974 = vmatprep.subr.mxu0 %v83
    %3975 = vmatpush1.msra.mxu0 %v82
    %3976 = vmatprep.subr.mxu0 %v78
    %3977 = vmatpush1.msra.mxu0 %v77
    %3978 = vmatprep.subr.mxu0 %v73
    %3979 = vmatpush1.msra.mxu0 %v72
    %3980 = vmatprep.subr.mxu0 %v68
    %3981 = vmatpush1.msra.mxu0 %v67
    %3982 = vmatprep.subr.mxu0 %v63
    %3983 = vmatpush1.msra.mxu0 %v62
    %3984 = vmatprep.subr.mxu0 0.0
    %3985 = vmatpush2.msra.mxu0 0.0
    %3986 = vmatprep.subr.mxu0 0.0
    %3987 = vmatpush2.msra.mxu0 0.0
    %3988 = vmatprep.subr.mxu0 0.0
    %3989 = vmatpush2.msra.mxu0 0.0
    %3990 = vmatprep.subr.mxu0 0.0
    %3991 = vmatpush2.msra.mxu0 0.0
    %3992 = vmatprep.subr.mxu0 0.0
    %3993 = vmatpush2.msra.mxu0 0.0
    %3994 = vmatprep.subr.mxu0 0.0
    %3995 = vmatpush2.msra.mxu0 0.0
    %3996 = vmatprep.subr.mxu0 0.0
    %3997 = vmatpush2.msra.mxu0 0.0
    %3998 = vmatprep.subr.mxu0 0.0
    %3999 = vmatpush2.msra.mxu0 0.0
    %4000 = vmatprep.subr.mxu0 0.0
    %4001 = vmatpush2.msra.mxu0 0.0
    %4002 = vmatprep.subr.mxu0 0.0
    %4003 = vmatpush2.msra.mxu0 0.0
    %4004 = vmatprep.subr.mxu0 0.0
    %4005 = vmatpush2.msra.mxu0 0.0
    %4006 = vmatprep.subr.mxu0 0.0
    %4007 = vmatpush2.msra.mxu0 0.0
    %4008 = vmatprep.subr.mxu0 0.0
    %4009 = vmatpush2.msra.mxu0 0.0
    %4010 = vmatprep.subr.mxu0 0.0
    %4011 = vmatpush2.msra.mxu0 0.0
    %4012 = vmatprep.subr.mxu0 0.0
    %4013 = vmatpush2.msra.mxu0 0.0
    %4014 = vmatprep.subr.mxu0 0.0
    %4015 = vmatpush2.msra.mxu0 0.0
    %4016 = vmatprep.mubr.f32.mxu0 0.0
    %4017 = vmatmul.mubr.f32.gmra.mxu0 %v3880
    %v4018 = vpop.f32.mrf.mxu0
    %v4019 = vadd.f32 0.0, %v4018
    %v4020 = vpop.f32.mrf.mxu0
    %v4021 = vadd.f32 0.0, %v4020
    %4022 = vdwg.mxu0
    %4023 = vmatprep.subr.mxu0 0.0
    %4024 = vmatpush1.msra.mxu0 %v139
    %4025 = vmatprep.subr.mxu0 0.0
    %4026 = vmatpush1.msra.mxu0 %v134
    %4027 = vmatprep.subr.mxu0 0.0
    %4028 = vmatpush1.msra.mxu0 %v129
    %4029 = vmatprep.subr.mxu0 0.0
    %4030 = vmatpush1.msra.mxu0 %v124
    %4031 = vmatprep.subr.mxu0 0.0
    %4032 = vmatpush1.msra.mxu0 %v119
    %4033 = vmatprep.subr.mxu0 0.0
    %4034 = vmatpush1.msra.mxu0 %v114
    %4035 = vmatprep.subr.mxu0 0.0
    %4036 = vmatpush1.msra.mxu0 %v109
    %4037 = vmatprep.subr.mxu0 0.0
    %4038 = vmatpush1.msra.mxu0 %v104
    %4039 = vmatprep.subr.mxu0 0.0
    %4040 = vmatpush1.msra.mxu0 %v99
    %4041 = vmatprep.subr.mxu0 0.0
    %4042 = vmatpush1.msra.mxu0 %v94
    %4043 = vmatprep.subr.mxu0 0.0
    %4044 = vmatpush1.msra.mxu0 %v89
    %4045 = vmatprep.subr.mxu0 0.0
    %4046 = vmatpush1.msra.mxu0 %v84
    %4047 = vmatprep.subr.mxu0 0.0
    %4048 = vmatpush1.msra.mxu0 %v79
    %4049 = vmatprep.subr.mxu0 0.0
    %4050 = vmatpush1.msra.mxu0 %v74
    %4051 = vmatprep.subr.mxu0 0.0
    %4052 = vmatpush1.msra.mxu0 %v69
    %4053 = vmatprep.subr.mxu0 0.0
    %4054 = vmatpush1.msra.mxu0 %v64
    %4055 = vmatprep.subr.mxu0 0.0
    %4056 = vmatpush2.msra.mxu0 0.0
    %4057 = vmatprep.subr.mxu0 0.0
    %4058 = vmatpush2.msra.mxu0 0.0
    %4059 = vmatprep.subr.mxu0 0.0
    %4060 = vmatpush2.msra.mxu0 0.0
    %4061 = vmatprep.subr.mxu0 0.0
    %4062 = vmatpush2.msra.mxu0 0.0
    %4063 = vmatprep.subr.mxu0 0.0
    %4064 = vmatpush2.msra.mxu0 0.0
    %4065 = vmatprep.subr.mxu0 0.0
    %4066 = vmatpush2.msra.mxu0 0.0
    %4067 = vmatprep.subr.mxu0 0.0
    %4068 = vmatpush2.msra.mxu0 0.0
    %4069 = vmatprep.subr.mxu0 0.0
    %4070 = vmatpush2.msra.mxu0 0.0
    %4071 = vmatprep.subr.mxu0 0.0
    %4072 = vmatpush2.msra.mxu0 0.0
    %4073 = vmatprep.subr.mxu0 0.0
    %4074 = vmatpush2.msra.mxu0 0.0
    %4075 = vmatprep.subr.mxu0 0.0
    %4076 = vmatpush2.msra.mxu0 0.0
    %4077 = vmatprep.subr.mxu0 0.0
    %4078 = vmatpush2.msra.mxu0 0.0
    %4079 = vmatprep.subr.mxu0 0.0
    %4080 = vmatpush2.msra.mxu0 0.0
    %4081 = vmatprep.subr.mxu0 0.0
    %4082 = vmatpush2.msra.mxu0 0.0
    %4083 = vmatprep.subr.mxu0 0.0
    %4084 = vmatpush2.msra.mxu0 0.0
    %4085 = vmatprep.subr.mxu0 0.0
    %4086 = vmatpush2.msra.mxu0 0.0
    %4087 = vmatprep.mubr.f32.mxu0 0.0
    %4088 = vmatmul.mubr.f32.gmra.mxu0 %v3880
    %v4089 = vpop.f32.mrf.mxu0
    %v4090 = vadd.f32 0.0, %v4089
    %v4091 = vpop.f32.mrf.mxu0
    %4092 = vdwg.mxu0
    %v4093 = vadd.f32 %v4090, %v474
    %v4094 = vmul.f32 %v3795, %v3793
    %v4095 = vsub.f32 1.0, %v3795
    %v4096 = vmul.f32 %v4095, %v4093
    %v4097 = vadd.f32 %v4094, %v4096
    %v4099 = vsel %vm169, %v4097, 0
    %4101 = vmatprep.subr.mxu0 0.0
    %4102 = vmatpush1.msra.mxu0 0.0
    %4103 = vmatprep.subr.mxu0 0.0
    %4104 = vmatpush1.msra.mxu0 0.0
    %4105 = vmatprep.subr.mxu0 0.0
    %4106 = vmatpush1.msra.mxu0 0.0
    %4107 = vmatprep.subr.mxu0 0.0
    %4108 = vmatpush1.msra.mxu0 0.0
    %4109 = vmatprep.subr.mxu0 0.0
    %4110 = vmatpush1.msra.mxu0 0.0
    %4111 = vmatprep.subr.mxu0 0.0
    %4112 = vmatpush1.msra.mxu0 0.0
    %4113 = vmatprep.subr.mxu0 0.0
    %4114 = vmatpush1.msra.mxu0 0.0
    %4115 = vmatprep.subr.mxu0 0.0
    %4116 = vmatpush1.msra.mxu0 0.0
    %4117 = vmatprep.subr.mxu0 0.0
    %4118 = vmatpush1.msra.mxu0 0.0
    %4119 = vmatprep.subr.mxu0 0.0
    %4120 = vmatpush1.msra.mxu0 0.0
    %4121 = vmatprep.subr.mxu0 0.0
    %4122 = vmatpush1.msra.mxu0 0.0
    %4123 = vmatprep.subr.mxu0 0.0
    %4124 = vmatpush1.msra.mxu0 0.0
    %4125 = vmatprep.subr.mxu0 0.0
    %4126 = vmatpush1.msra.mxu0 0.0
    %4127 = vmatprep.subr.mxu0 0.0
    %4128 = vmatpush1.msra.mxu0 0.0
    %4129 = vmatprep.subr.mxu0 0.0
    %4130 = vmatpush1.msra.mxu0 0.0
    %4131 = vmatprep.subr.mxu0 0.0
    %4132 = vmatpush1.msra.mxu0 %v491
    %4133 = vmatprep.subr.mxu0 0.0
    %4134 = vmatpush2.msra.mxu0 0.0
    %4135 = vmatprep.subr.mxu0 0.0
    %4136 = vmatpush2.msra.mxu0 0.0
    %4137 = vmatprep.subr.mxu0 0.0
    %4138 = vmatpush2.msra.mxu0 0.0
    %4139 = vmatprep.subr.mxu0 0.0
    %4140 = vmatpush2.msra.mxu0 0.0
    %4141 = vmatprep.subr.mxu0 0.0
    %4142 = vmatpush2.msra.mxu0 0.0
    %4143 = vmatprep.subr.mxu0 0.0
    %4144 = vmatpush2.msra.mxu0 0.0
    %4145 = vmatprep.subr.mxu0 0.0
    %4146 = vmatpush2.msra.mxu0 0.0
    %4147 = vmatprep.subr.mxu0 0.0
    %4148 = vmatpush2.msra.mxu0 0.0
    %4149 = vmatprep.subr.mxu0 0.0
    %4150 = vmatpush2.msra.mxu0 0.0
    %4151 = vmatprep.subr.mxu0 0.0
    %4152 = vmatpush2.msra.mxu0 0.0
    %4153 = vmatprep.subr.mxu0 0.0
    %4154 = vmatpush2.msra.mxu0 0.0
    %4155 = vmatprep.subr.mxu0 0.0
    %4156 = vmatpush2.msra.mxu0 0.0
    %4157 = vmatprep.subr.mxu0 0.0
    %4158 = vmatpush2.msra.mxu0 0.0
    %4159 = vmatprep.subr.mxu0 0.0
    %4160 = vmatpush2.msra.mxu0 0.0
    %4161 = vmatprep.subr.mxu0 0.0
    %4162 = vmatpush2.msra.mxu0 0.0
    %4163 = vmatprep.subr.mxu0 0.0
    %4164 = vmatpush2.msra.mxu0 0.0
    %4165 = vmatprep.mubr.f32.mxu0 0.0
    %4166 = vmatmul.mubr.f32.gmra.mxu0 %v4099
    %v4167 = vpop.f32.mrf.mxu0
    %v4168 = vadd.f32 %v485, %v4167
    %v4169 = vpop.f32.mrf.mxu0
    %4170 = vdwg.mxu0
    %v4172 = vsel %vm169, %v3795, 0
    %4174 = vmatprep.subr.mxu0 0.0
    %4175 = vmatpush1.msra.mxu0 0.0
    %4176 = vmatprep.subr.mxu0 0.0
    %4177 = vmatpush1.msra.mxu0 0.0
    %4178 = vmatprep.subr.mxu0 0.0
    %4179 = vmatpush1.msra.mxu0 0.0
    %4180 = vmatprep.subr.mxu0 0.0
    %4181 = vmatpush1.msra.mxu0 0.0
    %4182 = vmatprep.subr.mxu0 0.0
    %4183 = vmatpush1.msra.mxu0 0.0
    %4184 = vmatprep.subr.mxu0 0.0
    %4185 = vmatpush1.msra.mxu0 0.0
    %4186 = vmatprep.subr.mxu0 0.0
    %4187 = vmatpush1.msra.mxu0 0.0
    %4188 = vmatprep.subr.mxu0 0.0
    %4189 = vmatpush1.msra.mxu0 0.0
    %4190 = vmatprep.subr.mxu0 0.0
    %4191 = vmatpush1.msra.mxu0 0.0
    %4192 = vmatprep.subr.mxu0 0.0
    %4193 = vmatpush1.msra.mxu0 0.0
    %4194 = vmatprep.subr.mxu0 0.0
    %4195 = vmatpush1.msra.mxu0 0.0
    %4196 = vmatprep.subr.mxu0 0.0
    %4197 = vmatpush1.msra.mxu0 0.0
    %4198 = vmatprep.subr.mxu0 0.0
    %4199 = vmatpush1.msra.mxu0 0.0
    %4200 = vmatprep.subr.mxu0 0.0
    %4201 = vmatpush1.msra.mxu0 0.0
    %4202 = vmatprep.subr.mxu0 0.0
    %4203 = vmatpush1.msra.mxu0 0.0
    %4204 = vmatprep.subr.mxu0 %v573
    %4205 = vmatpush1.msra.mxu0 %v571
    %4206 = vmatprep.subr.mxu0 0.0
    %4207 = vmatpush2.msra.mxu0 0.0
    %4208 = vmatprep.subr.mxu0 0.0
    %4209 = vmatpush2.msra.mxu0 0.0
    %4210 = vmatprep.subr.mxu0 0.0
    %4211 = vmatpush2.msra.mxu0 0.0
    %4212 = vmatprep.subr.mxu0 0.0
    %4213 = vmatpush2.msra.mxu0 0.0
    %4214 = vmatprep.subr.mxu0 0.0
    %4215 = vmatpush2.msra.mxu0 0.0
    %4216 = vmatprep.subr.mxu0 0.0
    %4217 = vmatpush2.msra.mxu0 0.0
    %4218 = vmatprep.subr.mxu0 0.0
    %4219 = vmatpush2.msra.mxu0 0.0
    %4220 = vmatprep.subr.mxu0 0.0
    %4221 = vmatpush2.msra.mxu0 0.0
    %4222 = vmatprep.subr.mxu0 0.0
    %4223 = vmatpush2.msra.mxu0 0.0
    %4224 = vmatprep.subr.mxu0 0.0
    %4225 = vmatpush2.msra.mxu0 0.0
    %4226 = vmatprep.subr.mxu0 0.0
    %4227 = vmatpush2.msra.mxu0 0.0
    %4228 = vmatprep.subr.mxu0 0.0
    %4229 = vmatpush2.msra.mxu0 0.0
    %4230 = vmatprep.subr.mxu0 0.0
    %4231 = vmatpush2.msra.mxu0 0.0
    %4232 = vmatprep.subr.mxu0 0.0
    %4233 = vmatpush2.msra.mxu0 0.0
    %4234 = vmatprep.subr.mxu0 0.0
    %4235 = vmatpush2.msra.mxu0 0.0
    %4236 = vmatprep.subr.mxu0 0.0
    %4237 = vmatpush2.msra.mxu0 0.0
    %4238 = vmatprep.mubr.f32.mxu0 0.0
    %4239 = vmatmul.mubr.f32.gmra.mxu0 %v4172
    %v4240 = vpop.f32.mrf.mxu0
    %v4241 = vadd.f32 0.0, %v4240
    %v4242 = vpop.f32.mrf.mxu0
    %v4243 = vadd.f32 0.0, %v4242
    %4244 = vdwg.mxu0
    %4245 = vmatprep.subr.mxu0 0.0
    %4246 = vmatpush1.msra.mxu0 0.0
    %4247 = vmatprep.subr.mxu0 0.0
    %4248 = vmatpush1.msra.mxu0 0.0
    %4249 = vmatprep.subr.mxu0 0.0
    %4250 = vmatpush1.msra.mxu0 0.0
    %4251 = vmatprep.subr.mxu0 0.0
    %4252 = vmatpush1.msra.mxu0 0.0
    %4253 = vmatprep.subr.mxu0 0.0
    %4254 = vmatpush1.msra.mxu0 0.0
    %4255 = vmatprep.subr.mxu0 0.0
    %4256 = vmatpush1.msra.mxu0 0.0
    %4257 = vmatprep.subr.mxu0 0.0
    %4258 = vmatpush1.msra.mxu0 0.0
    %4259 = vmatprep.subr.mxu0 0.0
    %4260 = vmatpush1.msra.mxu0 0.0
    %4261 = vmatprep.subr.mxu0 0.0
    %4262 = vmatpush1.msra.mxu0 0.0
    %4263 = vmatprep.subr.mxu0 0.0
    %4264 = vmatpush1.msra.mxu0 0.0
    %4265 = vmatprep.subr.mxu0 0.0
    %4266 = vmatpush1.msra.mxu0 0.0
    %4267 = vmatprep.subr.mxu0 0.0
    %4268 = vmatpush1.msra.mxu0 0.0
    %4269 = vmatprep.subr.mxu0 0.0
    %4270 = vmatpush1.msra.mxu0 0.0
    %4271 = vmatprep.subr.mxu0 0.0
    %4272 = vmatpush1.msra.mxu0 0.0
    %4273 = vmatprep.subr.mxu0 0.0
    %4274 = vmatpush1.msra.mxu0 0.0
    %4275 = vmatprep.subr.mxu0 %v577
    %4276 = vmatpush1.msra.mxu0 %v575
    %4277 = vmatprep.subr.mxu0 0.0
    %4278 = vmatpush2.msra.mxu0 0.0
    %4279 = vmatprep.subr.mxu0 0.0
    %4280 = vmatpush2.msra.mxu0 0.0
    %4281 = vmatprep.subr.mxu0 0.0
    %4282 = vmatpush2.msra.mxu0 0.0
    %4283 = vmatprep.subr.mxu0 0.0
    %4284 = vmatpush2.msra.mxu0 0.0
    %4285 = vmatprep.subr.mxu0 0.0
    %4286 = vmatpush2.msra.mxu0 0.0
    %4287 = vmatprep.subr.mxu0 0.0
    %4288 = vmatpush2.msra.mxu0 0.0
    %4289 = vmatprep.subr.mxu0 0.0
    %4290 = vmatpush2.msra.mxu0 0.0
    %4291 = vmatprep.subr.mxu0 0.0
    %4292 = vmatpush2.msra.mxu0 0.0
    %4293 = vmatprep.subr.mxu0 0.0
    %4294 = vmatpush2.msra.mxu0 0.0
    %4295 = vmatprep.subr.mxu0 0.0
    %4296 = vmatpush2.msra.mxu0 0.0
    %4297 = vmatprep.subr.mxu0 0.0
    %4298 = vmatpush2.msra.mxu0 0.0
    %4299 = vmatprep.subr.mxu0 0.0
    %4300 = vmatpush2.msra.mxu0 0.0
    %4301 = vmatprep.subr.mxu0 0.0
    %4302 = vmatpush2.msra.mxu0 0.0
    %4303 = vmatprep.subr.mxu0 0.0
    %4304 = vmatpush2.msra.mxu0 0.0
    %4305 = vmatprep.subr.mxu0 0.0
    %4306 = vmatpush2.msra.mxu0 0.0
    %4307 = vmatprep.subr.mxu0 0.0
    %4308 = vmatpush2.msra.mxu0 0.0
    %4309 = vmatprep.mubr.f32.mxu0 0.0
    %4310 = vmatmul.mubr.f32.gmra.mxu0 %v4172
    %v4311 = vpop.f32.mrf.mxu0
    %v4312 = vadd.f32 0.0, %v4311
    %v4313 = vpop.f32.mrf.mxu0
    %v4314 = vadd.f32 0.0, %v4313
    %4315 = vdwg.mxu0
    %4316 = vmatprep.subr.mxu0 0.0
    %4317 = vmatpush1.msra.mxu0 0.0
    %4318 = vmatprep.subr.mxu0 0.0
    %4319 = vmatpush1.msra.mxu0 0.0
    %4320 = vmatprep.subr.mxu0 0.0
    %4321 = vmatpush1.msra.mxu0 0.0
    %4322 = vmatprep.subr.mxu0 0.0
    %4323 = vmatpush1.msra.mxu0 0.0
    %4324 = vmatprep.subr.mxu0 0.0
    %4325 = vmatpush1.msra.mxu0 0.0
    %4326 = vmatprep.subr.mxu0 0.0
    %4327 = vmatpush1.msra.mxu0 0.0
    %4328 = vmatprep.subr.mxu0 0.0
    %4329 = vmatpush1.msra.mxu0 0.0
    %4330 = vmatprep.subr.mxu0 0.0
    %4331 = vmatpush1.msra.mxu0 0.0
    %4332 = vmatprep.subr.mxu0 0.0
    %4333 = vmatpush1.msra.mxu0 0.0
    %4334 = vmatprep.subr.mxu0 0.0
    %4335 = vmatpush1.msra.mxu0 0.0
    %4336 = vmatprep.subr.mxu0 0.0
    %4337 = vmatpush1.msra.mxu0 0.0
    %4338 = vmatprep.subr.mxu0 0.0
    %4339 = vmatpush1.msra.mxu0 0.0
    %4340 = vmatprep.subr.mxu0 0.0
    %4341 = vmatpush1.msra.mxu0 0.0
    %4342 = vmatprep.subr.mxu0 0.0
    %4343 = vmatpush1.msra.mxu0 0.0
    %4344 = vmatprep.subr.mxu0 0.0
    %4345 = vmatpush1.msra.mxu0 0.0
    %4346 = vmatprep.subr.mxu0 0.0
    %4347 = vmatpush1.msra.mxu0 %v579
    %4348 = vmatprep.subr.mxu0 0.0
    %4349 = vmatpush2.msra.mxu0 0.0
    %4350 = vmatprep.subr.mxu0 0.0
    %4351 = vmatpush2.msra.mxu0 0.0
    %4352 = vmatprep.subr.mxu0 0.0
    %4353 = vmatpush2.msra.mxu0 0.0
    %4354 = vmatprep.subr.mxu0 0.0
    %4355 = vmatpush2.msra.mxu0 0.0
    %4356 = vmatprep.subr.mxu0 0.0
    %4357 = vmatpush2.msra.mxu0 0.0
    %4358 = vmatprep.subr.mxu0 0.0
    %4359 = vmatpush2.msra.mxu0 0.0
    %4360 = vmatprep.subr.mxu0 0.0
    %4361 = vmatpush2.msra.mxu0 0.0
    %4362 = vmatprep.subr.mxu0 0.0
    %4363 = vmatpush2.msra.mxu0 0.0
    %4364 = vmatprep.subr.mxu0 0.0
    %4365 = vmatpush2.msra.mxu0 0.0
    %4366 = vmatprep.subr.mxu0 0.0
    %4367 = vmatpush2.msra.mxu0 0.0
    %4368 = vmatprep.subr.mxu0 0.0
    %4369 = vmatpush2.msra.mxu0 0.0
    %4370 = vmatprep.subr.mxu0 0.0
    %4371 = vmatpush2.msra.mxu0 0.0
    %4372 = vmatprep.subr.mxu0 0.0
    %4373 = vmatpush2.msra.mxu0 0.0
    %4374 = vmatprep.subr.mxu0 0.0
    %4375 = vmatpush2.msra.mxu0 0.0
    %4376 = vmatprep.subr.mxu0 0.0
    %4377 = vmatpush2.msra.mxu0 0.0
    %4378 = vmatprep.subr.mxu0 0.0
    %4379 = vmatpush2.msra.mxu0 0.0
    %4380 = vmatprep.mubr.f32.mxu0 0.0
    %4381 = vmatmul.mubr.f32.gmra.mxu0 %v4172
    %v4382 = vpop.f32.mrf.mxu0
    %v4383 = vadd.f32 0.0, %v4382
    %v4384 = vpop.f32.mrf.mxu0
    %4385 = vdwg.mxu0
    %v4387 = vsel %vm169, %v3879, 0
    %4389 = vmatprep.subr.mxu0 0.0
    %4390 = vmatpush1.msra.mxu0 0.0
    %4391 = vmatprep.subr.mxu0 0.0
    %4392 = vmatpush1.msra.mxu0 0.0
    %4393 = vmatprep.subr.mxu0 0.0
    %4394 = vmatpush1.msra.mxu0 0.0
    %4395 = vmatprep.subr.mxu0 0.0
    %4396 = vmatpush1.msra.mxu0 0.0
    %4397 = vmatprep.subr.mxu0 0.0
    %4398 = vmatpush1.msra.mxu0 0.0
    %4399 = vmatprep.subr.mxu0 0.0
    %4400 = vmatpush1.msra.mxu0 0.0
    %4401 = vmatprep.subr.mxu0 0.0
    %4402 = vmatpush1.msra.mxu0 0.0
    %4403 = vmatprep.subr.mxu0 0.0
    %4404 = vmatpush1.msra.mxu0 0.0
    %4405 = vmatprep.subr.mxu0 0.0
    %4406 = vmatpush1.msra.mxu0 0.0
    %4407 = vmatprep.subr.mxu0 0.0
    %4408 = vmatpush1.msra.mxu0 0.0
    %4409 = vmatprep.subr.mxu0 0.0
    %4410 = vmatpush1.msra.mxu0 0.0
    %4411 = vmatprep.subr.mxu0 0.0
    %4412 = vmatpush1.msra.mxu0 0.0
    %4413 = vmatprep.subr.mxu0 0.0
    %4414 = vmatpush1.msra.mxu0 0.0
    %4415 = vmatprep.subr.mxu0 0.0
    %4416 = vmatpush1.msra.mxu0 0.0
    %4417 = vmatprep.subr.mxu0 0.0
    %4418 = vmatpush1.msra.mxu0 0.0
    %4419 = vmatprep.subr.mxu0 0.0
    %4420 = vmatpush1.msra.mxu0 %v797
    %4421 = vmatprep.subr.mxu0 0.0
    %4422 = vmatpush2.msra.mxu0 0.0
    %4423 = vmatprep.subr.mxu0 0.0
    %4424 = vmatpush2.msra.mxu0 0.0
    %4425 = vmatprep.subr.mxu0 0.0
    %4426 = vmatpush2.msra.mxu0 0.0
    %4427 = vmatprep.subr.mxu0 0.0
    %4428 = vmatpush2.msra.mxu0 0.0
    %4429 = vmatprep.subr.mxu0 0.0
    %4430 = vmatpush2.msra.mxu0 0.0
    %4431 = vmatprep.subr.mxu0 0.0
    %4432 = vmatpush2.msra.mxu0 0.0
    %4433 = vmatprep.subr.mxu0 0.0
    %4434 = vmatpush2.msra.mxu0 0.0
    %4435 = vmatprep.subr.mxu0 0.0
    %4436 = vmatpush2.msra.mxu0 0.0
    %4437 = vmatprep.subr.mxu0 0.0
    %4438 = vmatpush2.msra.mxu0 0.0
    %4439 = vmatprep.subr.mxu0 0.0
    %4440 = vmatpush2.msra.mxu0 0.0
    %4441 = vmatprep.subr.mxu0 0.0
    %4442 = vmatpush2.msra.mxu0 0.0
    %4443 = vmatprep.subr.mxu0 0.0
    %4444 = vmatpush2.msra.mxu0 0.0
    %4445 = vmatprep.subr.mxu0 0.0
    %4446 = vmatpush2.msra.mxu0 0.0
    %4447 = vmatprep.subr.mxu0 0.0
    %4448 = vmatpush2.msra.mxu0 0.0
    %4449 = vmatprep.subr.mxu0 0.0
    %4450 = vmatpush2.msra.mxu0 0.0
    %4451 = vmatprep.subr.mxu0 0.0
    %4452 = vmatpush2.msra.mxu0 0.0
    %4453 = vmatprep.mubr.f32.mxu0 0.0
    %4454 = vmatmul.mubr.f32.gmra.mxu0 %v4387
    %v4455 = vpop.f32.mrf.mxu0
    %v4456 = vadd.f32 %v4383, %v4455
    %v4457 = vpop.f32.mrf.mxu0
    %4458 = vdwg.mxu0
    %v4459 = vadd.f32 %v4456, %v873
    %v4460 = vmul.f32 %v4459, %v4168
    %v4461 = vsub.f32 1.0, %v4459
    %v4462 = vmul.f32 %v4461, %v4093
    %v4463 = vadd.f32 %v4460, %v4462
    %v4464 = vsub.f32 %v3793, %v4093
    %v4465 = vand.u32 2147483647, %v4464
    %v4466 = vsub.f32 %v3793, %v4168
    %v4467 = vand.u32 2147483647, %v4466
    %v4468 = vadd.f32 %v4465, %v4467
    %v4469 = vsub.f32 %v3793, %v4463
    %v4470 = vand.u32 2147483647, %v4469
    %v4471 = vadd.f32 %v4468, %v4470
    %v4472 = vmul.f32 %v4471, %v3795
    %v4473 = vsel %vm169, %v4472, 0.0
    %4474 = vadd.xlane.f32.xlu0 %v4473
    %v4475 = vpop.xlane.xlu0 %4474
    %v4476 = vrot.slane %v4475, 4
    %v4477 = vadd.f32 %v4475, %v4476
    %v4478 = vrot.slane %v4477, 2
    %v4479 = vadd.f32 %v4477, %v4478
    %v4480 = vrot.slane %v4479, 1
    %v4481 = vadd.f32 %v4479, %v4480
    %s4482 = vtos %v4481
    %v4483 = vsel %vm169, %v3795, 0.0
    %4484 = vadd.xlane.f32.xlu0 %v4483
    %v4485 = vpop.xlane.xlu0 %4484
    %v4486 = vrot.slane %v4485, 4
    %v4487 = vadd.f32 %v4485, %v4486
    %v4488 = vrot.slane %v4487, 2
    %v4489 = vadd.f32 %v4487, %v4488
    %v4490 = vrot.slane %v4489, 1
    %v4491 = vadd.f32 %v4489, %v4490
    %s4492 = vtos %v4491
    %s4493 = sadd.f32 %s4492, 1e-05
    %v4494 = vstv %s4493
    %v4495 = vrcp.pop %v4494
    %s4496 = vtos %v4495
    %s4497 = smul.f32 %s4482, %s4496
    %s4498 = sadd.f32 %s3610, %s4497
    %v4499 = vmul.f32 %v4095, %v4463
    %v4500 = vadd.f32 %v4094, %v4499
    %s4501 = scalar_lea.vmem %s14, 32
    %4502 = vst.msk [vmem:[%s4501] sm:$0xff] %vm169, %v4500
    %v4504 = vsel %vm169, %v4500, 0
    %4506 = vmatprep.subr.mxu0 0.0
    %4507 = vmatpush1.msra.mxu0 0.0
    %4508 = vmatprep.subr.mxu0 0.0
    %4509 = vmatpush1.msra.mxu0 0.0
    %4510 = vmatprep.subr.mxu0 0.0
    %4511 = vmatpush1.msra.mxu0 0.0
    %4512 = vmatprep.subr.mxu0 0.0
    %4513 = vmatpush1.msra.mxu0 0.0
    %4514 = vmatprep.subr.mxu0 0.0
    %4515 = vmatpush1.msra.mxu0 0.0
    %4516 = vmatprep.subr.mxu0 0.0
    %4517 = vmatpush1.msra.mxu0 0.0
    %4518 = vmatprep.subr.mxu0 0.0
    %4519 = vmatpush1.msra.mxu0 0.0
    %4520 = vmatprep.subr.mxu0 0.0
    %4521 = vmatpush1.msra.mxu0 0.0
    %4522 = vmatprep.subr.mxu0 0.0
    %4523 = vmatpush1.msra.mxu0 0.0
    %4524 = vmatprep.subr.mxu0 0.0
    %4525 = vmatpush1.msra.mxu0 0.0
    %4526 = vmatprep.subr.mxu0 0.0
    %4527 = vmatpush1.msra.mxu0 0.0
    %4528 = vmatprep.subr.mxu0 0.0
    %4529 = vmatpush1.msra.mxu0 0.0
    %4530 = vmatprep.subr.mxu0 0.0
    %4531 = vmatpush1.msra.mxu0 0.0
    %4532 = vmatprep.subr.mxu0 0.0
    %4533 = vmatpush1.msra.mxu0 0.0
    %4534 = vmatprep.subr.mxu0 0.0
    %4535 = vmatpush1.msra.mxu0 0.0
    %4536 = vmatprep.subr.mxu0 %v927
    %4537 = vmatpush1.msra.mxu0 %v925
    %4538 = vmatprep.subr.mxu0 0.0
    %4539 = vmatpush2.msra.mxu0 0.0
    %4540 = vmatprep.subr.mxu0 0.0
    %4541 = vmatpush2.msra.mxu0 0.0
    %4542 = vmatprep.subr.mxu0 0.0
    %4543 = vmatpush2.msra.mxu0 0.0
    %4544 = vmatprep.subr.mxu0 0.0
    %4545 = vmatpush2.msra.mxu0 0.0
    %4546 = vmatprep.subr.mxu0 0.0
    %4547 = vmatpush2.msra.mxu0 0.0
    %4548 = vmatprep.subr.mxu0 0.0
    %4549 = vmatpush2.msra.mxu0 0.0
    %4550 = vmatprep.subr.mxu0 0.0
    %4551 = vmatpush2.msra.mxu0 0.0
    %4552 = vmatprep.subr.mxu0 0.0
    %4553 = vmatpush2.msra.mxu0 0.0
    %4554 = vmatprep.subr.mxu0 0.0
    %4555 = vmatpush2.msra.mxu0 0.0
    %4556 = vmatprep.subr.mxu0 0.0
    %4557 = vmatpush2.msra.mxu0 0.0
    %4558 = vmatprep.subr.mxu0 0.0
    %4559 = vmatpush2.msra.mxu0 0.0
    %4560 = vmatprep.subr.mxu0 0.0
    %4561 = vmatpush2.msra.mxu0 0.0
    %4562 = vmatprep.subr.mxu0 0.0
    %4563 = vmatpush2.msra.mxu0 0.0
    %4564 = vmatprep.subr.mxu0 0.0
    %4565 = vmatpush2.msra.mxu0 0.0
    %4566 = vmatprep.subr.mxu0 0.0
    %4567 = vmatpush2.msra.mxu0 0.0
    %4568 = vmatprep.subr.mxu0 0.0
    %4569 = vmatpush2.msra.mxu0 0.0
    %4570 = vmatprep.mubr.f32.mxu0 0.0
    %4571 = vmatmul.mubr.f32.gmra.mxu0 %v4504
    %v4572 = vpop.f32.mrf.mxu0
    %v4573 = vadd.f32 %v4241, %v4572
    %v4574 = vpop.f32.mrf.mxu0
    %v4575 = vadd.f32 %v4243, %v4574
    %4576 = vdwg.mxu0
    %4577 = vmatprep.subr.mxu0 0.0
    %4578 = vmatpush1.msra.mxu0 0.0
    %4579 = vmatprep.subr.mxu0 0.0
    %4580 = vmatpush1.msra.mxu0 0.0
    %4581 = vmatprep.subr.mxu0 0.0
    %4582 = vmatpush1.msra.mxu0 0.0
    %4583 = vmatprep.subr.mxu0 0.0
    %4584 = vmatpush1.msra.mxu0 0.0
    %4585 = vmatprep.subr.mxu0 0.0
    %4586 = vmatpush1.msra.mxu0 0.0
    %4587 = vmatprep.subr.mxu0 0.0
    %4588 = vmatpush1.msra.mxu0 0.0
    %4589 = vmatprep.subr.mxu0 0.0
    %4590 = vmatpush1.msra.mxu0 0.0
    %4591 = vmatprep.subr.mxu0 0.0
    %4592 = vmatpush1.msra.mxu0 0.0
    %4593 = vmatprep.subr.mxu0 0.0
    %4594 = vmatpush1.msra.mxu0 0.0
    %4595 = vmatprep.subr.mxu0 0.0
    %4596 = vmatpush1.msra.mxu0 0.0
    %4597 = vmatprep.subr.mxu0 0.0
    %4598 = vmatpush1.msra.mxu0 0.0
    %4599 = vmatprep.subr.mxu0 0.0
    %4600 = vmatpush1.msra.mxu0 0.0
    %4601 = vmatprep.subr.mxu0 0.0
    %4602 = vmatpush1.msra.mxu0 0.0
    %4603 = vmatprep.subr.mxu0 0.0
    %4604 = vmatpush1.msra.mxu0 0.0
    %4605 = vmatprep.subr.mxu0 0.0
    %4606 = vmatpush1.msra.mxu0 0.0
    %4607 = vmatprep.subr.mxu0 %v931
    %4608 = vmatpush1.msra.mxu0 %v929
    %4609 = vmatprep.subr.mxu0 0.0
    %4610 = vmatpush2.msra.mxu0 0.0
    %4611 = vmatprep.subr.mxu0 0.0
    %4612 = vmatpush2.msra.mxu0 0.0
    %4613 = vmatprep.subr.mxu0 0.0
    %4614 = vmatpush2.msra.mxu0 0.0
    %4615 = vmatprep.subr.mxu0 0.0
    %4616 = vmatpush2.msra.mxu0 0.0
    %4617 = vmatprep.subr.mxu0 0.0
    %4618 = vmatpush2.msra.mxu0 0.0
    %4619 = vmatprep.subr.mxu0 0.0
    %4620 = vmatpush2.msra.mxu0 0.0
    %4621 = vmatprep.subr.mxu0 0.0
    %4622 = vmatpush2.msra.mxu0 0.0
    %4623 = vmatprep.subr.mxu0 0.0
    %4624 = vmatpush2.msra.mxu0 0.0
    %4625 = vmatprep.subr.mxu0 0.0
    %4626 = vmatpush2.msra.mxu0 0.0
    %4627 = vmatprep.subr.mxu0 0.0
    %4628 = vmatpush2.msra.mxu0 0.0
    %4629 = vmatprep.subr.mxu0 0.0
    %4630 = vmatpush2.msra.mxu0 0.0
    %4631 = vmatprep.subr.mxu0 0.0
    %4632 = vmatpush2.msra.mxu0 0.0
    %4633 = vmatprep.subr.mxu0 0.0
    %4634 = vmatpush2.msra.mxu0 0.0
    %4635 = vmatprep.subr.mxu0 0.0
    %4636 = vmatpush2.msra.mxu0 0.0
    %4637 = vmatprep.subr.mxu0 0.0
    %4638 = vmatpush2.msra.mxu0 0.0
    %4639 = vmatprep.subr.mxu0 0.0
    %4640 = vmatpush2.msra.mxu0 0.0
    %4641 = vmatprep.mubr.f32.mxu0 0.0
    %4642 = vmatmul.mubr.f32.gmra.mxu0 %v4504
    %v4643 = vpop.f32.mrf.mxu0
    %v4644 = vadd.f32 %v4312, %v4643
    %v4645 = vpop.f32.mrf.mxu0
    %v4646 = vadd.f32 %v4314, %v4645
    %4647 = vdwg.mxu0
    %v4648 = vadd.f32 %v4573, %v3948
    %v4649 = vadd.f32 %v4575, %v3950
    %v4650 = vadd.f32 %v4644, %v4019
    %v4651 = vadd.f32 %v4646, %v4021
    %v4652 = vadd.f32 %v4648, %v1083
    %v4653 = vadd.f32 %v4649, %v1087
    %v4654 = vadd.f32 %v4650, %v1091
    %v4655 = vadd.f32 %v4651, %v1095
    %v4656 = vxor.u32 %v4652, 2147483648
    %v4657 = vmul.f32 %v4656, 1.442695
    %v4658 = vpow.pop %v4657
    %v4659 = vadd.f32 %v4658, 1.0
    %v4660 = vrcp.pop %v4659
    %v4661 = vmul.f32 1.0, %v4660
    %v4662 = vxor.u32 %v4653, 2147483648
    %v4663 = vmul.f32 %v4662, 1.442695
    %v4664 = vpow.pop %v4663
    %v4665 = vadd.f32 %v4664, 1.0
    %v4666 = vrcp.pop %v4665
    %v4667 = vmul.f32 1.0, %v4666
    %v4668 = vtanh.pop %v4654
    %v4669 = vxor.u32 %v4655, 2147483648
    %v4670 = vmul.f32 %v4669, 1.442695
    %v4671 = vpow.pop %v4670
    %v4672 = vadd.f32 %v4671, 1.0
    %v4673 = vrcp.pop %v4672
    %v4674 = vmul.f32 1.0, %v4673
    %v4675 = vmul.f32 %v4667, %v3789
    %v4676 = vmul.f32 %v4661, %v4668
    %v4677 = vadd.f32 %v4675, %v4676
    %v4678 = vtanh.pop %v4677
    %v4679 = vmul.f32 %v4674, %v4678
    %s4680 = scalar_lea.vmem %s0, 40
    %v4681 = vld [vmem:[%s4680] sm:$0xff]
    %s4682 = scalar_lea.vmem %s1, 40
    %v4683 = vld [vmem:[%s4682] sm:$0xff]
    %s4684 = scalar_lea.vmem %s2, 40
    %v4685 = vld [vmem:[%s4684] sm:$0xff]
    %v4687 = vsel %vm169, %v4685, 0
    %4689 = vmatprep.subr.mxu0 0.0
    %4690 = vmatpush1.msra.mxu0 0.0
    %4691 = vmatprep.subr.mxu0 0.0
    %4692 = vmatpush1.msra.mxu0 0.0
    %4693 = vmatprep.subr.mxu0 0.0
    %4694 = vmatpush1.msra.mxu0 0.0
    %4695 = vmatprep.subr.mxu0 0.0
    %4696 = vmatpush1.msra.mxu0 0.0
    %4697 = vmatprep.subr.mxu0 0.0
    %4698 = vmatpush1.msra.mxu0 0.0
    %4699 = vmatprep.subr.mxu0 0.0
    %4700 = vmatpush1.msra.mxu0 0.0
    %4701 = vmatprep.subr.mxu0 0.0
    %4702 = vmatpush1.msra.mxu0 0.0
    %4703 = vmatprep.subr.mxu0 0.0
    %4704 = vmatpush1.msra.mxu0 0.0
    %4705 = vmatprep.subr.mxu0 0.0
    %4706 = vmatpush1.msra.mxu0 0.0
    %4707 = vmatprep.subr.mxu0 0.0
    %4708 = vmatpush1.msra.mxu0 0.0
    %4709 = vmatprep.subr.mxu0 0.0
    %4710 = vmatpush1.msra.mxu0 0.0
    %4711 = vmatprep.subr.mxu0 0.0
    %4712 = vmatpush1.msra.mxu0 0.0
    %4713 = vmatprep.subr.mxu0 0.0
    %4714 = vmatpush1.msra.mxu0 0.0
    %4715 = vmatprep.subr.mxu0 0.0
    %4716 = vmatpush1.msra.mxu0 0.0
    %4717 = vmatprep.subr.mxu0 0.0
    %4718 = vmatpush1.msra.mxu0 0.0
    %4719 = vmatprep.subr.mxu0 %v176
    %4720 = vmatpush1.msra.mxu0 %v174
    %4721 = vmatprep.subr.mxu0 0.0
    %4722 = vmatpush2.msra.mxu0 0.0
    %4723 = vmatprep.subr.mxu0 0.0
    %4724 = vmatpush2.msra.mxu0 0.0
    %4725 = vmatprep.subr.mxu0 0.0
    %4726 = vmatpush2.msra.mxu0 0.0
    %4727 = vmatprep.subr.mxu0 0.0
    %4728 = vmatpush2.msra.mxu0 0.0
    %4729 = vmatprep.subr.mxu0 0.0
    %4730 = vmatpush2.msra.mxu0 0.0
    %4731 = vmatprep.subr.mxu0 0.0
    %4732 = vmatpush2.msra.mxu0 0.0
    %4733 = vmatprep.subr.mxu0 0.0
    %4734 = vmatpush2.msra.mxu0 0.0
    %4735 = vmatprep.subr.mxu0 0.0
    %4736 = vmatpush2.msra.mxu0 0.0
    %4737 = vmatprep.subr.mxu0 0.0
    %4738 = vmatpush2.msra.mxu0 0.0
    %4739 = vmatprep.subr.mxu0 0.0
    %4740 = vmatpush2.msra.mxu0 0.0
    %4741 = vmatprep.subr.mxu0 0.0
    %4742 = vmatpush2.msra.mxu0 0.0
    %4743 = vmatprep.subr.mxu0 0.0
    %4744 = vmatpush2.msra.mxu0 0.0
    %4745 = vmatprep.subr.mxu0 0.0
    %4746 = vmatpush2.msra.mxu0 0.0
    %4747 = vmatprep.subr.mxu0 0.0
    %4748 = vmatpush2.msra.mxu0 0.0
    %4749 = vmatprep.subr.mxu0 0.0
    %4750 = vmatpush2.msra.mxu0 0.0
    %4751 = vmatprep.subr.mxu0 0.0
    %4752 = vmatpush2.msra.mxu0 0.0
    %4753 = vmatprep.mubr.f32.mxu0 0.0
    %4754 = vmatmul.mubr.f32.gmra.mxu0 %v4687
    %v4755 = vpop.f32.mrf.mxu0
    %v4756 = vadd.f32 %v160, %v4755
    %v4757 = vpop.f32.mrf.mxu0
    %v4758 = vadd.f32 %v164, %v4757
    %4759 = vdwg.mxu0
    %v4760 = vmax.f32 %v4756, 0.0
    %v4761 = vmax.f32 %v4758, 0.0
    %v4762 = vsub.f32 0.0, %v4760
    %v4763 = vsub.f32 0.0, %v4761
    %v4764 = vmul.f32 %v4762, 1.442695
    %v4765 = vpow.pop %v4764
    %v4766 = vmul.f32 %v4763, 1.442695
    %v4767 = vpow.pop %v4766
    %v4768 = vmul.f32 %v4679, %v4765
    %4769 = vmatprep.subr.mxu0 %v136
    %4770 = vmatpush1.msra.mxu0 %v135
    %4771 = vmatprep.subr.mxu0 %v131
    %4772 = vmatpush1.msra.mxu0 %v130
    %4773 = vmatprep.subr.mxu0 %v126
    %4774 = vmatpush1.msra.mxu0 %v125
    %4775 = vmatprep.subr.mxu0 %v121
    %4776 = vmatpush1.msra.mxu0 %v120
    %4777 = vmatprep.subr.mxu0 %v116
    %4778 = vmatpush1.msra.mxu0 %v115
    %4779 = vmatprep.subr.mxu0 %v111
    %4780 = vmatpush1.msra.mxu0 %v110
    %4781 = vmatprep.subr.mxu0 %v106
    %4782 = vmatpush1.msra.mxu0 %v105
    %4783 = vmatprep.subr.mxu0 %v101
    %4784 = vmatpush1.msra.mxu0 %v100
    %4785 = vmatprep.subr.mxu0 %v96
    %4786 = vmatpush1.msra.mxu0 %v95
    %4787 = vmatprep.subr.mxu0 %v91
    %4788 = vmatpush1.msra.mxu0 %v90
    %4789 = vmatprep.subr.mxu0 %v86
    %4790 = vmatpush1.msra.mxu0 %v85
    %4791 = vmatprep.subr.mxu0 %v81
    %4792 = vmatpush1.msra.mxu0 %v80
    %4793 = vmatprep.subr.mxu0 %v76
    %4794 = vmatpush1.msra.mxu0 %v75
    %4795 = vmatprep.subr.mxu0 %v71
    %4796 = vmatpush1.msra.mxu0 %v70
    %4797 = vmatprep.subr.mxu0 %v66
    %4798 = vmatpush1.msra.mxu0 %v65
    %4799 = vmatprep.subr.mxu0 %v61
    %4800 = vmatpush1.msra.mxu0 %v60
    %4801 = vmatprep.subr.mxu0 0.0
    %4802 = vmatpush2.msra.mxu0 0.0
    %4803 = vmatprep.subr.mxu0 0.0
    %4804 = vmatpush2.msra.mxu0 0.0
    %4805 = vmatprep.subr.mxu0 0.0
    %4806 = vmatpush2.msra.mxu0 0.0
    %4807 = vmatprep.subr.mxu0 0.0
    %4808 = vmatpush2.msra.mxu0 0.0
    %4809 = vmatprep.subr.mxu0 0.0
    %4810 = vmatpush2.msra.mxu0 0.0
    %4811 = vmatprep.subr.mxu0 0.0
    %4812 = vmatpush2.msra.mxu0 0.0
    %4813 = vmatprep.subr.mxu0 0.0
    %4814 = vmatpush2.msra.mxu0 0.0
    %4815 = vmatprep.subr.mxu0 0.0
    %4816 = vmatpush2.msra.mxu0 0.0
    %4817 = vmatprep.subr.mxu0 0.0
    %4818 = vmatpush2.msra.mxu0 0.0
    %4819 = vmatprep.subr.mxu0 0.0
    %4820 = vmatpush2.msra.mxu0 0.0
    %4821 = vmatprep.subr.mxu0 0.0
    %4822 = vmatpush2.msra.mxu0 0.0
    %4823 = vmatprep.subr.mxu0 0.0
    %4824 = vmatpush2.msra.mxu0 0.0
    %4825 = vmatprep.subr.mxu0 0.0
    %4826 = vmatpush2.msra.mxu0 0.0
    %4827 = vmatprep.subr.mxu0 0.0
    %4828 = vmatpush2.msra.mxu0 0.0
    %4829 = vmatprep.subr.mxu0 0.0
    %4830 = vmatpush2.msra.mxu0 0.0
    %4831 = vmatprep.subr.mxu0 0.0
    %4832 = vmatpush2.msra.mxu0 0.0
    %4833 = vmatprep.mubr.f32.mxu0 0.0
    %4834 = vmatmul.mubr.f32.gmra.mxu0 %v4768
    %v4835 = vpop.f32.mrf.mxu0
    %v4836 = vadd.f32 0.0, %v4835
    %v4837 = vpop.f32.mrf.mxu0
    %v4838 = vadd.f32 0.0, %v4837
    %4839 = vdwg.mxu0
    %4840 = vmatprep.subr.mxu0 %v138
    %4841 = vmatpush1.msra.mxu0 %v137
    %4842 = vmatprep.subr.mxu0 %v133
    %4843 = vmatpush1.msra.mxu0 %v132
    %4844 = vmatprep.subr.mxu0 %v128
    %4845 = vmatpush1.msra.mxu0 %v127
    %4846 = vmatprep.subr.mxu0 %v123
    %4847 = vmatpush1.msra.mxu0 %v122
    %4848 = vmatprep.subr.mxu0 %v118
    %4849 = vmatpush1.msra.mxu0 %v117
    %4850 = vmatprep.subr.mxu0 %v113
    %4851 = vmatpush1.msra.mxu0 %v112
    %4852 = vmatprep.subr.mxu0 %v108
    %4853 = vmatpush1.msra.mxu0 %v107
    %4854 = vmatprep.subr.mxu0 %v103
    %4855 = vmatpush1.msra.mxu0 %v102
    %4856 = vmatprep.subr.mxu0 %v98
    %4857 = vmatpush1.msra.mxu0 %v97
    %4858 = vmatprep.subr.mxu0 %v93
    %4859 = vmatpush1.msra.mxu0 %v92
    %4860 = vmatprep.subr.mxu0 %v88
    %4861 = vmatpush1.msra.mxu0 %v87
    %4862 = vmatprep.subr.mxu0 %v83
    %4863 = vmatpush1.msra.mxu0 %v82
    %4864 = vmatprep.subr.mxu0 %v78
    %4865 = vmatpush1.msra.mxu0 %v77
    %4866 = vmatprep.subr.mxu0 %v73
    %4867 = vmatpush1.msra.mxu0 %v72
    %4868 = vmatprep.subr.mxu0 %v68
    %4869 = vmatpush1.msra.mxu0 %v67
    %4870 = vmatprep.subr.mxu0 %v63
    %4871 = vmatpush1.msra.mxu0 %v62
    %4872 = vmatprep.subr.mxu0 0.0
    %4873 = vmatpush2.msra.mxu0 0.0
    %4874 = vmatprep.subr.mxu0 0.0
    %4875 = vmatpush2.msra.mxu0 0.0
    %4876 = vmatprep.subr.mxu0 0.0
    %4877 = vmatpush2.msra.mxu0 0.0
    %4878 = vmatprep.subr.mxu0 0.0
    %4879 = vmatpush2.msra.mxu0 0.0
    %4880 = vmatprep.subr.mxu0 0.0
    %4881 = vmatpush2.msra.mxu0 0.0
    %4882 = vmatprep.subr.mxu0 0.0
    %4883 = vmatpush2.msra.mxu0 0.0
    %4884 = vmatprep.subr.mxu0 0.0
    %4885 = vmatpush2.msra.mxu0 0.0
    %4886 = vmatprep.subr.mxu0 0.0
    %4887 = vmatpush2.msra.mxu0 0.0
    %4888 = vmatprep.subr.mxu0 0.0
    %4889 = vmatpush2.msra.mxu0 0.0
    %4890 = vmatprep.subr.mxu0 0.0
    %4891 = vmatpush2.msra.mxu0 0.0
    %4892 = vmatprep.subr.mxu0 0.0
    %4893 = vmatpush2.msra.mxu0 0.0
    %4894 = vmatprep.subr.mxu0 0.0
    %4895 = vmatpush2.msra.mxu0 0.0
    %4896 = vmatprep.subr.mxu0 0.0
    %4897 = vmatpush2.msra.mxu0 0.0
    %4898 = vmatprep.subr.mxu0 0.0
    %4899 = vmatpush2.msra.mxu0 0.0
    %4900 = vmatprep.subr.mxu0 0.0
    %4901 = vmatpush2.msra.mxu0 0.0
    %4902 = vmatprep.subr.mxu0 0.0
    %4903 = vmatpush2.msra.mxu0 0.0
    %4904 = vmatprep.mubr.f32.mxu0 0.0
    %4905 = vmatmul.mubr.f32.gmra.mxu0 %v4768
    %v4906 = vpop.f32.mrf.mxu0
    %v4907 = vadd.f32 0.0, %v4906
    %v4908 = vpop.f32.mrf.mxu0
    %v4909 = vadd.f32 0.0, %v4908
    %4910 = vdwg.mxu0
    %4911 = vmatprep.subr.mxu0 0.0
    %4912 = vmatpush1.msra.mxu0 %v139
    %4913 = vmatprep.subr.mxu0 0.0
    %4914 = vmatpush1.msra.mxu0 %v134
    %4915 = vmatprep.subr.mxu0 0.0
    %4916 = vmatpush1.msra.mxu0 %v129
    %4917 = vmatprep.subr.mxu0 0.0
    %4918 = vmatpush1.msra.mxu0 %v124
    %4919 = vmatprep.subr.mxu0 0.0
    %4920 = vmatpush1.msra.mxu0 %v119
    %4921 = vmatprep.subr.mxu0 0.0
    %4922 = vmatpush1.msra.mxu0 %v114
    %4923 = vmatprep.subr.mxu0 0.0
    %4924 = vmatpush1.msra.mxu0 %v109
    %4925 = vmatprep.subr.mxu0 0.0
    %4926 = vmatpush1.msra.mxu0 %v104
    %4927 = vmatprep.subr.mxu0 0.0
    %4928 = vmatpush1.msra.mxu0 %v99
    %4929 = vmatprep.subr.mxu0 0.0
    %4930 = vmatpush1.msra.mxu0 %v94
    %4931 = vmatprep.subr.mxu0 0.0
    %4932 = vmatpush1.msra.mxu0 %v89
    %4933 = vmatprep.subr.mxu0 0.0
    %4934 = vmatpush1.msra.mxu0 %v84
    %4935 = vmatprep.subr.mxu0 0.0
    %4936 = vmatpush1.msra.mxu0 %v79
    %4937 = vmatprep.subr.mxu0 0.0
    %4938 = vmatpush1.msra.mxu0 %v74
    %4939 = vmatprep.subr.mxu0 0.0
    %4940 = vmatpush1.msra.mxu0 %v69
    %4941 = vmatprep.subr.mxu0 0.0
    %4942 = vmatpush1.msra.mxu0 %v64
    %4943 = vmatprep.subr.mxu0 0.0
    %4944 = vmatpush2.msra.mxu0 0.0
    %4945 = vmatprep.subr.mxu0 0.0
    %4946 = vmatpush2.msra.mxu0 0.0
    %4947 = vmatprep.subr.mxu0 0.0
    %4948 = vmatpush2.msra.mxu0 0.0
    %4949 = vmatprep.subr.mxu0 0.0
    %4950 = vmatpush2.msra.mxu0 0.0
    %4951 = vmatprep.subr.mxu0 0.0
    %4952 = vmatpush2.msra.mxu0 0.0
    %4953 = vmatprep.subr.mxu0 0.0
    %4954 = vmatpush2.msra.mxu0 0.0
    %4955 = vmatprep.subr.mxu0 0.0
    %4956 = vmatpush2.msra.mxu0 0.0
    %4957 = vmatprep.subr.mxu0 0.0
    %4958 = vmatpush2.msra.mxu0 0.0
    %4959 = vmatprep.subr.mxu0 0.0
    %4960 = vmatpush2.msra.mxu0 0.0
    %4961 = vmatprep.subr.mxu0 0.0
    %4962 = vmatpush2.msra.mxu0 0.0
    %4963 = vmatprep.subr.mxu0 0.0
    %4964 = vmatpush2.msra.mxu0 0.0
    %4965 = vmatprep.subr.mxu0 0.0
    %4966 = vmatpush2.msra.mxu0 0.0
    %4967 = vmatprep.subr.mxu0 0.0
    %4968 = vmatpush2.msra.mxu0 0.0
    %4969 = vmatprep.subr.mxu0 0.0
    %4970 = vmatpush2.msra.mxu0 0.0
    %4971 = vmatprep.subr.mxu0 0.0
    %4972 = vmatpush2.msra.mxu0 0.0
    %4973 = vmatprep.subr.mxu0 0.0
    %4974 = vmatpush2.msra.mxu0 0.0
    %4975 = vmatprep.mubr.f32.mxu0 0.0
    %4976 = vmatmul.mubr.f32.gmra.mxu0 %v4768
    %v4977 = vpop.f32.mrf.mxu0
    %v4978 = vadd.f32 0.0, %v4977
    %v4979 = vpop.f32.mrf.mxu0
    %4980 = vdwg.mxu0
    %v4981 = vadd.f32 %v4978, %v474
    %v4982 = vmul.f32 %v4683, %v4681
    %v4983 = vsub.f32 1.0, %v4683
    %v4984 = vmul.f32 %v4983, %v4981
    %v4985 = vadd.f32 %v4982, %v4984
    %v4987 = vsel %vm169, %v4985, 0
    %4989 = vmatprep.subr.mxu0 0.0
    %4990 = vmatpush1.msra.mxu0 0.0
    %4991 = vmatprep.subr.mxu0 0.0
    %4992 = vmatpush1.msra.mxu0 0.0
    %4993 = vmatprep.subr.mxu0 0.0
    %4994 = vmatpush1.msra.mxu0 0.0
    %4995 = vmatprep.subr.mxu0 0.0
    %4996 = vmatpush1.msra.mxu0 0.0
    %4997 = vmatprep.subr.mxu0 0.0
    %4998 = vmatpush1.msra.mxu0 0.0
    %4999 = vmatprep.subr.mxu0 0.0
    %5000 = vmatpush1.msra.mxu0 0.0
    %5001 = vmatprep.subr.mxu0 0.0
    %5002 = vmatpush1.msra.mxu0 0.0
    %5003 = vmatprep.subr.mxu0 0.0
    %5004 = vmatpush1.msra.mxu0 0.0
    %5005 = vmatprep.subr.mxu0 0.0
    %5006 = vmatpush1.msra.mxu0 0.0
    %5007 = vmatprep.subr.mxu0 0.0
    %5008 = vmatpush1.msra.mxu0 0.0
    %5009 = vmatprep.subr.mxu0 0.0
    %5010 = vmatpush1.msra.mxu0 0.0
    %5011 = vmatprep.subr.mxu0 0.0
    %5012 = vmatpush1.msra.mxu0 0.0
    %5013 = vmatprep.subr.mxu0 0.0
    %5014 = vmatpush1.msra.mxu0 0.0
    %5015 = vmatprep.subr.mxu0 0.0
    %5016 = vmatpush1.msra.mxu0 0.0
    %5017 = vmatprep.subr.mxu0 0.0
    %5018 = vmatpush1.msra.mxu0 0.0
    %5019 = vmatprep.subr.mxu0 0.0
    %5020 = vmatpush1.msra.mxu0 %v491
    %5021 = vmatprep.subr.mxu0 0.0
    %5022 = vmatpush2.msra.mxu0 0.0
    %5023 = vmatprep.subr.mxu0 0.0
    %5024 = vmatpush2.msra.mxu0 0.0
    %5025 = vmatprep.subr.mxu0 0.0
    %5026 = vmatpush2.msra.mxu0 0.0
    %5027 = vmatprep.subr.mxu0 0.0
    %5028 = vmatpush2.msra.mxu0 0.0
    %5029 = vmatprep.subr.mxu0 0.0
    %5030 = vmatpush2.msra.mxu0 0.0
    %5031 = vmatprep.subr.mxu0 0.0
    %5032 = vmatpush2.msra.mxu0 0.0
    %5033 = vmatprep.subr.mxu0 0.0
    %5034 = vmatpush2.msra.mxu0 0.0
    %5035 = vmatprep.subr.mxu0 0.0
    %5036 = vmatpush2.msra.mxu0 0.0
    %5037 = vmatprep.subr.mxu0 0.0
    %5038 = vmatpush2.msra.mxu0 0.0
    %5039 = vmatprep.subr.mxu0 0.0
    %5040 = vmatpush2.msra.mxu0 0.0
    %5041 = vmatprep.subr.mxu0 0.0
    %5042 = vmatpush2.msra.mxu0 0.0
    %5043 = vmatprep.subr.mxu0 0.0
    %5044 = vmatpush2.msra.mxu0 0.0
    %5045 = vmatprep.subr.mxu0 0.0
    %5046 = vmatpush2.msra.mxu0 0.0
    %5047 = vmatprep.subr.mxu0 0.0
    %5048 = vmatpush2.msra.mxu0 0.0
    %5049 = vmatprep.subr.mxu0 0.0
    %5050 = vmatpush2.msra.mxu0 0.0
    %5051 = vmatprep.subr.mxu0 0.0
    %5052 = vmatpush2.msra.mxu0 0.0
    %5053 = vmatprep.mubr.f32.mxu0 0.0
    %5054 = vmatmul.mubr.f32.gmra.mxu0 %v4987
    %v5055 = vpop.f32.mrf.mxu0
    %v5056 = vadd.f32 %v485, %v5055
    %v5057 = vpop.f32.mrf.mxu0
    %5058 = vdwg.mxu0
    %v5060 = vsel %vm169, %v4683, 0
    %5062 = vmatprep.subr.mxu0 0.0
    %5063 = vmatpush1.msra.mxu0 0.0
    %5064 = vmatprep.subr.mxu0 0.0
    %5065 = vmatpush1.msra.mxu0 0.0
    %5066 = vmatprep.subr.mxu0 0.0
    %5067 = vmatpush1.msra.mxu0 0.0
    %5068 = vmatprep.subr.mxu0 0.0
    %5069 = vmatpush1.msra.mxu0 0.0
    %5070 = vmatprep.subr.mxu0 0.0
    %5071 = vmatpush1.msra.mxu0 0.0
    %5072 = vmatprep.subr.mxu0 0.0
    %5073 = vmatpush1.msra.mxu0 0.0
    %5074 = vmatprep.subr.mxu0 0.0
    %5075 = vmatpush1.msra.mxu0 0.0
    %5076 = vmatprep.subr.mxu0 0.0
    %5077 = vmatpush1.msra.mxu0 0.0
    %5078 = vmatprep.subr.mxu0 0.0
    %5079 = vmatpush1.msra.mxu0 0.0
    %5080 = vmatprep.subr.mxu0 0.0
    %5081 = vmatpush1.msra.mxu0 0.0
    %5082 = vmatprep.subr.mxu0 0.0
    %5083 = vmatpush1.msra.mxu0 0.0
    %5084 = vmatprep.subr.mxu0 0.0
    %5085 = vmatpush1.msra.mxu0 0.0
    %5086 = vmatprep.subr.mxu0 0.0
    %5087 = vmatpush1.msra.mxu0 0.0
    %5088 = vmatprep.subr.mxu0 0.0
    %5089 = vmatpush1.msra.mxu0 0.0
    %5090 = vmatprep.subr.mxu0 0.0
    %5091 = vmatpush1.msra.mxu0 0.0
    %5092 = vmatprep.subr.mxu0 %v573
    %5093 = vmatpush1.msra.mxu0 %v571
    %5094 = vmatprep.subr.mxu0 0.0
    %5095 = vmatpush2.msra.mxu0 0.0
    %5096 = vmatprep.subr.mxu0 0.0
    %5097 = vmatpush2.msra.mxu0 0.0
    %5098 = vmatprep.subr.mxu0 0.0
    %5099 = vmatpush2.msra.mxu0 0.0
    %5100 = vmatprep.subr.mxu0 0.0
    %5101 = vmatpush2.msra.mxu0 0.0
    %5102 = vmatprep.subr.mxu0 0.0
    %5103 = vmatpush2.msra.mxu0 0.0
    %5104 = vmatprep.subr.mxu0 0.0
    %5105 = vmatpush2.msra.mxu0 0.0
    %5106 = vmatprep.subr.mxu0 0.0
    %5107 = vmatpush2.msra.mxu0 0.0
    %5108 = vmatprep.subr.mxu0 0.0
    %5109 = vmatpush2.msra.mxu0 0.0
    %5110 = vmatprep.subr.mxu0 0.0
    %5111 = vmatpush2.msra.mxu0 0.0
    %5112 = vmatprep.subr.mxu0 0.0
    %5113 = vmatpush2.msra.mxu0 0.0
    %5114 = vmatprep.subr.mxu0 0.0
    %5115 = vmatpush2.msra.mxu0 0.0
    %5116 = vmatprep.subr.mxu0 0.0
    %5117 = vmatpush2.msra.mxu0 0.0
    %5118 = vmatprep.subr.mxu0 0.0
    %5119 = vmatpush2.msra.mxu0 0.0
    %5120 = vmatprep.subr.mxu0 0.0
    %5121 = vmatpush2.msra.mxu0 0.0
    %5122 = vmatprep.subr.mxu0 0.0
    %5123 = vmatpush2.msra.mxu0 0.0
    %5124 = vmatprep.subr.mxu0 0.0
    %5125 = vmatpush2.msra.mxu0 0.0
    %5126 = vmatprep.mubr.f32.mxu0 0.0
    %5127 = vmatmul.mubr.f32.gmra.mxu0 %v5060
    %v5128 = vpop.f32.mrf.mxu0
    %v5129 = vadd.f32 0.0, %v5128
    %v5130 = vpop.f32.mrf.mxu0
    %v5131 = vadd.f32 0.0, %v5130
    %5132 = vdwg.mxu0
    %5133 = vmatprep.subr.mxu0 0.0
    %5134 = vmatpush1.msra.mxu0 0.0
    %5135 = vmatprep.subr.mxu0 0.0
    %5136 = vmatpush1.msra.mxu0 0.0
    %5137 = vmatprep.subr.mxu0 0.0
    %5138 = vmatpush1.msra.mxu0 0.0
    %5139 = vmatprep.subr.mxu0 0.0
    %5140 = vmatpush1.msra.mxu0 0.0
    %5141 = vmatprep.subr.mxu0 0.0
    %5142 = vmatpush1.msra.mxu0 0.0
    %5143 = vmatprep.subr.mxu0 0.0
    %5144 = vmatpush1.msra.mxu0 0.0
    %5145 = vmatprep.subr.mxu0 0.0
    %5146 = vmatpush1.msra.mxu0 0.0
    %5147 = vmatprep.subr.mxu0 0.0
    %5148 = vmatpush1.msra.mxu0 0.0
    %5149 = vmatprep.subr.mxu0 0.0
    %5150 = vmatpush1.msra.mxu0 0.0
    %5151 = vmatprep.subr.mxu0 0.0
    %5152 = vmatpush1.msra.mxu0 0.0
    %5153 = vmatprep.subr.mxu0 0.0
    %5154 = vmatpush1.msra.mxu0 0.0
    %5155 = vmatprep.subr.mxu0 0.0
    %5156 = vmatpush1.msra.mxu0 0.0
    %5157 = vmatprep.subr.mxu0 0.0
    %5158 = vmatpush1.msra.mxu0 0.0
    %5159 = vmatprep.subr.mxu0 0.0
    %5160 = vmatpush1.msra.mxu0 0.0
    %5161 = vmatprep.subr.mxu0 0.0
    %5162 = vmatpush1.msra.mxu0 0.0
    %5163 = vmatprep.subr.mxu0 %v577
    %5164 = vmatpush1.msra.mxu0 %v575
    %5165 = vmatprep.subr.mxu0 0.0
    %5166 = vmatpush2.msra.mxu0 0.0
    %5167 = vmatprep.subr.mxu0 0.0
    %5168 = vmatpush2.msra.mxu0 0.0
    %5169 = vmatprep.subr.mxu0 0.0
    %5170 = vmatpush2.msra.mxu0 0.0
    %5171 = vmatprep.subr.mxu0 0.0
    %5172 = vmatpush2.msra.mxu0 0.0
    %5173 = vmatprep.subr.mxu0 0.0
    %5174 = vmatpush2.msra.mxu0 0.0
    %5175 = vmatprep.subr.mxu0 0.0
    %5176 = vmatpush2.msra.mxu0 0.0
    %5177 = vmatprep.subr.mxu0 0.0
    %5178 = vmatpush2.msra.mxu0 0.0
    %5179 = vmatprep.subr.mxu0 0.0
    %5180 = vmatpush2.msra.mxu0 0.0
    %5181 = vmatprep.subr.mxu0 0.0
    %5182 = vmatpush2.msra.mxu0 0.0
    %5183 = vmatprep.subr.mxu0 0.0
    %5184 = vmatpush2.msra.mxu0 0.0
    %5185 = vmatprep.subr.mxu0 0.0
    %5186 = vmatpush2.msra.mxu0 0.0
    %5187 = vmatprep.subr.mxu0 0.0
    %5188 = vmatpush2.msra.mxu0 0.0
    %5189 = vmatprep.subr.mxu0 0.0
    %5190 = vmatpush2.msra.mxu0 0.0
    %5191 = vmatprep.subr.mxu0 0.0
    %5192 = vmatpush2.msra.mxu0 0.0
    %5193 = vmatprep.subr.mxu0 0.0
    %5194 = vmatpush2.msra.mxu0 0.0
    %5195 = vmatprep.subr.mxu0 0.0
    %5196 = vmatpush2.msra.mxu0 0.0
    %5197 = vmatprep.mubr.f32.mxu0 0.0
    %5198 = vmatmul.mubr.f32.gmra.mxu0 %v5060
    %v5199 = vpop.f32.mrf.mxu0
    %v5200 = vadd.f32 0.0, %v5199
    %v5201 = vpop.f32.mrf.mxu0
    %v5202 = vadd.f32 0.0, %v5201
    %5203 = vdwg.mxu0
    %5204 = vmatprep.subr.mxu0 0.0
    %5205 = vmatpush1.msra.mxu0 0.0
    %5206 = vmatprep.subr.mxu0 0.0
    %5207 = vmatpush1.msra.mxu0 0.0
    %5208 = vmatprep.subr.mxu0 0.0
    %5209 = vmatpush1.msra.mxu0 0.0
    %5210 = vmatprep.subr.mxu0 0.0
    %5211 = vmatpush1.msra.mxu0 0.0
    %5212 = vmatprep.subr.mxu0 0.0
    %5213 = vmatpush1.msra.mxu0 0.0
    %5214 = vmatprep.subr.mxu0 0.0
    %5215 = vmatpush1.msra.mxu0 0.0
    %5216 = vmatprep.subr.mxu0 0.0
    %5217 = vmatpush1.msra.mxu0 0.0
    %5218 = vmatprep.subr.mxu0 0.0
    %5219 = vmatpush1.msra.mxu0 0.0
    %5220 = vmatprep.subr.mxu0 0.0
    %5221 = vmatpush1.msra.mxu0 0.0
    %5222 = vmatprep.subr.mxu0 0.0
    %5223 = vmatpush1.msra.mxu0 0.0
    %5224 = vmatprep.subr.mxu0 0.0
    %5225 = vmatpush1.msra.mxu0 0.0
    %5226 = vmatprep.subr.mxu0 0.0
    %5227 = vmatpush1.msra.mxu0 0.0
    %5228 = vmatprep.subr.mxu0 0.0
    %5229 = vmatpush1.msra.mxu0 0.0
    %5230 = vmatprep.subr.mxu0 0.0
    %5231 = vmatpush1.msra.mxu0 0.0
    %5232 = vmatprep.subr.mxu0 0.0
    %5233 = vmatpush1.msra.mxu0 0.0
    %5234 = vmatprep.subr.mxu0 0.0
    %5235 = vmatpush1.msra.mxu0 %v579
    %5236 = vmatprep.subr.mxu0 0.0
    %5237 = vmatpush2.msra.mxu0 0.0
    %5238 = vmatprep.subr.mxu0 0.0
    %5239 = vmatpush2.msra.mxu0 0.0
    %5240 = vmatprep.subr.mxu0 0.0
    %5241 = vmatpush2.msra.mxu0 0.0
    %5242 = vmatprep.subr.mxu0 0.0
    %5243 = vmatpush2.msra.mxu0 0.0
    %5244 = vmatprep.subr.mxu0 0.0
    %5245 = vmatpush2.msra.mxu0 0.0
    %5246 = vmatprep.subr.mxu0 0.0
    %5247 = vmatpush2.msra.mxu0 0.0
    %5248 = vmatprep.subr.mxu0 0.0
    %5249 = vmatpush2.msra.mxu0 0.0
    %5250 = vmatprep.subr.mxu0 0.0
    %5251 = vmatpush2.msra.mxu0 0.0
    %5252 = vmatprep.subr.mxu0 0.0
    %5253 = vmatpush2.msra.mxu0 0.0
    %5254 = vmatprep.subr.mxu0 0.0
    %5255 = vmatpush2.msra.mxu0 0.0
    %5256 = vmatprep.subr.mxu0 0.0
    %5257 = vmatpush2.msra.mxu0 0.0
    %5258 = vmatprep.subr.mxu0 0.0
    %5259 = vmatpush2.msra.mxu0 0.0
    %5260 = vmatprep.subr.mxu0 0.0
    %5261 = vmatpush2.msra.mxu0 0.0
    %5262 = vmatprep.subr.mxu0 0.0
    %5263 = vmatpush2.msra.mxu0 0.0
    %5264 = vmatprep.subr.mxu0 0.0
    %5265 = vmatpush2.msra.mxu0 0.0
    %5266 = vmatprep.subr.mxu0 0.0
    %5267 = vmatpush2.msra.mxu0 0.0
    %5268 = vmatprep.mubr.f32.mxu0 0.0
    %5269 = vmatmul.mubr.f32.gmra.mxu0 %v5060
    %v5270 = vpop.f32.mrf.mxu0
    %v5271 = vadd.f32 0.0, %v5270
    %v5272 = vpop.f32.mrf.mxu0
    %5273 = vdwg.mxu0
    %v5275 = vsel %vm169, %v4767, 0
    %5277 = vmatprep.subr.mxu0 0.0
    %5278 = vmatpush1.msra.mxu0 0.0
    %5279 = vmatprep.subr.mxu0 0.0
    %5280 = vmatpush1.msra.mxu0 0.0
    %5281 = vmatprep.subr.mxu0 0.0
    %5282 = vmatpush1.msra.mxu0 0.0
    %5283 = vmatprep.subr.mxu0 0.0
    %5284 = vmatpush1.msra.mxu0 0.0
    %5285 = vmatprep.subr.mxu0 0.0
    %5286 = vmatpush1.msra.mxu0 0.0
    %5287 = vmatprep.subr.mxu0 0.0
    %5288 = vmatpush1.msra.mxu0 0.0
    %5289 = vmatprep.subr.mxu0 0.0
    %5290 = vmatpush1.msra.mxu0 0.0
    %5291 = vmatprep.subr.mxu0 0.0
    %5292 = vmatpush1.msra.mxu0 0.0
    %5293 = vmatprep.subr.mxu0 0.0
    %5294 = vmatpush1.msra.mxu0 0.0
    %5295 = vmatprep.subr.mxu0 0.0
    %5296 = vmatpush1.msra.mxu0 0.0
    %5297 = vmatprep.subr.mxu0 0.0
    %5298 = vmatpush1.msra.mxu0 0.0
    %5299 = vmatprep.subr.mxu0 0.0
    %5300 = vmatpush1.msra.mxu0 0.0
    %5301 = vmatprep.subr.mxu0 0.0
    %5302 = vmatpush1.msra.mxu0 0.0
    %5303 = vmatprep.subr.mxu0 0.0
    %5304 = vmatpush1.msra.mxu0 0.0
    %5305 = vmatprep.subr.mxu0 0.0
    %5306 = vmatpush1.msra.mxu0 0.0
    %5307 = vmatprep.subr.mxu0 0.0
    %5308 = vmatpush1.msra.mxu0 %v797
    %5309 = vmatprep.subr.mxu0 0.0
    %5310 = vmatpush2.msra.mxu0 0.0
    %5311 = vmatprep.subr.mxu0 0.0
    %5312 = vmatpush2.msra.mxu0 0.0
    %5313 = vmatprep.subr.mxu0 0.0
    %5314 = vmatpush2.msra.mxu0 0.0
    %5315 = vmatprep.subr.mxu0 0.0
    %5316 = vmatpush2.msra.mxu0 0.0
    %5317 = vmatprep.subr.mxu0 0.0
    %5318 = vmatpush2.msra.mxu0 0.0
    %5319 = vmatprep.subr.mxu0 0.0
    %5320 = vmatpush2.msra.mxu0 0.0
    %5321 = vmatprep.subr.mxu0 0.0
    %5322 = vmatpush2.msra.mxu0 0.0
    %5323 = vmatprep.subr.mxu0 0.0
    %5324 = vmatpush2.msra.mxu0 0.0
    %5325 = vmatprep.subr.mxu0 0.0
    %5326 = vmatpush2.msra.mxu0 0.0
    %5327 = vmatprep.subr.mxu0 0.0
    %5328 = vmatpush2.msra.mxu0 0.0
    %5329 = vmatprep.subr.mxu0 0.0
    %5330 = vmatpush2.msra.mxu0 0.0
    %5331 = vmatprep.subr.mxu0 0.0
    %5332 = vmatpush2.msra.mxu0 0.0
    %5333 = vmatprep.subr.mxu0 0.0
    %5334 = vmatpush2.msra.mxu0 0.0
    %5335 = vmatprep.subr.mxu0 0.0
    %5336 = vmatpush2.msra.mxu0 0.0
    %5337 = vmatprep.subr.mxu0 0.0
    %5338 = vmatpush2.msra.mxu0 0.0
    %5339 = vmatprep.subr.mxu0 0.0
    %5340 = vmatpush2.msra.mxu0 0.0
    %5341 = vmatprep.mubr.f32.mxu0 0.0
    %5342 = vmatmul.mubr.f32.gmra.mxu0 %v5275
    %v5343 = vpop.f32.mrf.mxu0
    %v5344 = vadd.f32 %v5271, %v5343
    %v5345 = vpop.f32.mrf.mxu0
    %5346 = vdwg.mxu0
    %v5347 = vadd.f32 %v5344, %v873
    %v5348 = vmul.f32 %v5347, %v5056
    %v5349 = vsub.f32 1.0, %v5347
    %v5350 = vmul.f32 %v5349, %v4981
    %v5351 = vadd.f32 %v5348, %v5350
    %v5352 = vsub.f32 %v4681, %v4981
    %v5353 = vand.u32 2147483647, %v5352
    %v5354 = vsub.f32 %v4681, %v5056
    %v5355 = vand.u32 2147483647, %v5354
    %v5356 = vadd.f32 %v5353, %v5355
    %v5357 = vsub.f32 %v4681, %v5351
    %v5358 = vand.u32 2147483647, %v5357
    %v5359 = vadd.f32 %v5356, %v5358
    %v5360 = vmul.f32 %v5359, %v4683
    %v5361 = vsel %vm169, %v5360, 0.0
    %5362 = vadd.xlane.f32.xlu0 %v5361
    %v5363 = vpop.xlane.xlu0 %5362
    %v5364 = vrot.slane %v5363, 4
    %v5365 = vadd.f32 %v5363, %v5364
    %v5366 = vrot.slane %v5365, 2
    %v5367 = vadd.f32 %v5365, %v5366
    %v5368 = vrot.slane %v5367, 1
    %v5369 = vadd.f32 %v5367, %v5368
    %s5370 = vtos %v5369
    %v5371 = vsel %vm169, %v4683, 0.0
    %5372 = vadd.xlane.f32.xlu0 %v5371
    %v5373 = vpop.xlane.xlu0 %5372
    %v5374 = vrot.slane %v5373, 4
    %v5375 = vadd.f32 %v5373, %v5374
    %v5376 = vrot.slane %v5375, 2
    %v5377 = vadd.f32 %v5375, %v5376
    %v5378 = vrot.slane %v5377, 1
    %v5379 = vadd.f32 %v5377, %v5378
    %s5380 = vtos %v5379
    %s5381 = sadd.f32 %s5380, 1e-05
    %v5382 = vstv %s5381
    %v5383 = vrcp.pop %v5382
    %s5384 = vtos %v5383
    %s5385 = smul.f32 %s5370, %s5384
    %s5386 = sadd.f32 %s4498, %s5385
    %v5387 = vmul.f32 %v4983, %v5351
    %v5388 = vadd.f32 %v4982, %v5387
    %s5389 = scalar_lea.vmem %s14, 40
    %5390 = vst.msk [vmem:[%s5389] sm:$0xff] %vm169, %v5388
    %v5392 = vsel %vm169, %v5388, 0
    %5394 = vmatprep.subr.mxu0 0.0
    %5395 = vmatpush1.msra.mxu0 0.0
    %5396 = vmatprep.subr.mxu0 0.0
    %5397 = vmatpush1.msra.mxu0 0.0
    %5398 = vmatprep.subr.mxu0 0.0
    %5399 = vmatpush1.msra.mxu0 0.0
    %5400 = vmatprep.subr.mxu0 0.0
    %5401 = vmatpush1.msra.mxu0 0.0
    %5402 = vmatprep.subr.mxu0 0.0
    %5403 = vmatpush1.msra.mxu0 0.0
    %5404 = vmatprep.subr.mxu0 0.0
    %5405 = vmatpush1.msra.mxu0 0.0
    %5406 = vmatprep.subr.mxu0 0.0
    %5407 = vmatpush1.msra.mxu0 0.0
    %5408 = vmatprep.subr.mxu0 0.0
    %5409 = vmatpush1.msra.mxu0 0.0
    %5410 = vmatprep.subr.mxu0 0.0
    %5411 = vmatpush1.msra.mxu0 0.0
    %5412 = vmatprep.subr.mxu0 0.0
    %5413 = vmatpush1.msra.mxu0 0.0
    %5414 = vmatprep.subr.mxu0 0.0
    %5415 = vmatpush1.msra.mxu0 0.0
    %5416 = vmatprep.subr.mxu0 0.0
    %5417 = vmatpush1.msra.mxu0 0.0
    %5418 = vmatprep.subr.mxu0 0.0
    %5419 = vmatpush1.msra.mxu0 0.0
    %5420 = vmatprep.subr.mxu0 0.0
    %5421 = vmatpush1.msra.mxu0 0.0
    %5422 = vmatprep.subr.mxu0 0.0
    %5423 = vmatpush1.msra.mxu0 0.0
    %5424 = vmatprep.subr.mxu0 %v927
    %5425 = vmatpush1.msra.mxu0 %v925
    %5426 = vmatprep.subr.mxu0 0.0
    %5427 = vmatpush2.msra.mxu0 0.0
    %5428 = vmatprep.subr.mxu0 0.0
    %5429 = vmatpush2.msra.mxu0 0.0
    %5430 = vmatprep.subr.mxu0 0.0
    %5431 = vmatpush2.msra.mxu0 0.0
    %5432 = vmatprep.subr.mxu0 0.0
    %5433 = vmatpush2.msra.mxu0 0.0
    %5434 = vmatprep.subr.mxu0 0.0
    %5435 = vmatpush2.msra.mxu0 0.0
    %5436 = vmatprep.subr.mxu0 0.0
    %5437 = vmatpush2.msra.mxu0 0.0
    %5438 = vmatprep.subr.mxu0 0.0
    %5439 = vmatpush2.msra.mxu0 0.0
    %5440 = vmatprep.subr.mxu0 0.0
    %5441 = vmatpush2.msra.mxu0 0.0
    %5442 = vmatprep.subr.mxu0 0.0
    %5443 = vmatpush2.msra.mxu0 0.0
    %5444 = vmatprep.subr.mxu0 0.0
    %5445 = vmatpush2.msra.mxu0 0.0
    %5446 = vmatprep.subr.mxu0 0.0
    %5447 = vmatpush2.msra.mxu0 0.0
    %5448 = vmatprep.subr.mxu0 0.0
    %5449 = vmatpush2.msra.mxu0 0.0
    %5450 = vmatprep.subr.mxu0 0.0
    %5451 = vmatpush2.msra.mxu0 0.0
    %5452 = vmatprep.subr.mxu0 0.0
    %5453 = vmatpush2.msra.mxu0 0.0
    %5454 = vmatprep.subr.mxu0 0.0
    %5455 = vmatpush2.msra.mxu0 0.0
    %5456 = vmatprep.subr.mxu0 0.0
    %5457 = vmatpush2.msra.mxu0 0.0
    %5458 = vmatprep.mubr.f32.mxu0 0.0
    %5459 = vmatmul.mubr.f32.gmra.mxu0 %v5392
    %v5460 = vpop.f32.mrf.mxu0
    %v5461 = vadd.f32 %v5129, %v5460
    %v5462 = vpop.f32.mrf.mxu0
    %v5463 = vadd.f32 %v5131, %v5462
    %5464 = vdwg.mxu0
    %5465 = vmatprep.subr.mxu0 0.0
    %5466 = vmatpush1.msra.mxu0 0.0
    %5467 = vmatprep.subr.mxu0 0.0
    %5468 = vmatpush1.msra.mxu0 0.0
    %5469 = vmatprep.subr.mxu0 0.0
    %5470 = vmatpush1.msra.mxu0 0.0
    %5471 = vmatprep.subr.mxu0 0.0
    %5472 = vmatpush1.msra.mxu0 0.0
    %5473 = vmatprep.subr.mxu0 0.0
    %5474 = vmatpush1.msra.mxu0 0.0
    %5475 = vmatprep.subr.mxu0 0.0
    %5476 = vmatpush1.msra.mxu0 0.0
    %5477 = vmatprep.subr.mxu0 0.0
    %5478 = vmatpush1.msra.mxu0 0.0
    %5479 = vmatprep.subr.mxu0 0.0
    %5480 = vmatpush1.msra.mxu0 0.0
    %5481 = vmatprep.subr.mxu0 0.0
    %5482 = vmatpush1.msra.mxu0 0.0
    %5483 = vmatprep.subr.mxu0 0.0
    %5484 = vmatpush1.msra.mxu0 0.0
    %5485 = vmatprep.subr.mxu0 0.0
    %5486 = vmatpush1.msra.mxu0 0.0
    %5487 = vmatprep.subr.mxu0 0.0
    %5488 = vmatpush1.msra.mxu0 0.0
    %5489 = vmatprep.subr.mxu0 0.0
    %5490 = vmatpush1.msra.mxu0 0.0
    %5491 = vmatprep.subr.mxu0 0.0
    %5492 = vmatpush1.msra.mxu0 0.0
    %5493 = vmatprep.subr.mxu0 0.0
    %5494 = vmatpush1.msra.mxu0 0.0
    %5495 = vmatprep.subr.mxu0 %v931
    %5496 = vmatpush1.msra.mxu0 %v929
    %5497 = vmatprep.subr.mxu0 0.0
    %5498 = vmatpush2.msra.mxu0 0.0
    %5499 = vmatprep.subr.mxu0 0.0
    %5500 = vmatpush2.msra.mxu0 0.0
    %5501 = vmatprep.subr.mxu0 0.0
    %5502 = vmatpush2.msra.mxu0 0.0
    %5503 = vmatprep.subr.mxu0 0.0
    %5504 = vmatpush2.msra.mxu0 0.0
    %5505 = vmatprep.subr.mxu0 0.0
    %5506 = vmatpush2.msra.mxu0 0.0
    %5507 = vmatprep.subr.mxu0 0.0
    %5508 = vmatpush2.msra.mxu0 0.0
    %5509 = vmatprep.subr.mxu0 0.0
    %5510 = vmatpush2.msra.mxu0 0.0
    %5511 = vmatprep.subr.mxu0 0.0
    %5512 = vmatpush2.msra.mxu0 0.0
    %5513 = vmatprep.subr.mxu0 0.0
    %5514 = vmatpush2.msra.mxu0 0.0
    %5515 = vmatprep.subr.mxu0 0.0
    %5516 = vmatpush2.msra.mxu0 0.0
    %5517 = vmatprep.subr.mxu0 0.0
    %5518 = vmatpush2.msra.mxu0 0.0
    %5519 = vmatprep.subr.mxu0 0.0
    %5520 = vmatpush2.msra.mxu0 0.0
    %5521 = vmatprep.subr.mxu0 0.0
    %5522 = vmatpush2.msra.mxu0 0.0
    %5523 = vmatprep.subr.mxu0 0.0
    %5524 = vmatpush2.msra.mxu0 0.0
    %5525 = vmatprep.subr.mxu0 0.0
    %5526 = vmatpush2.msra.mxu0 0.0
    %5527 = vmatprep.subr.mxu0 0.0
    %5528 = vmatpush2.msra.mxu0 0.0
    %5529 = vmatprep.mubr.f32.mxu0 0.0
    %5530 = vmatmul.mubr.f32.gmra.mxu0 %v5392
    %v5531 = vpop.f32.mrf.mxu0
    %v5532 = vadd.f32 %v5200, %v5531
    %v5533 = vpop.f32.mrf.mxu0
    %v5534 = vadd.f32 %v5202, %v5533
    %5535 = vdwg.mxu0
    %v5536 = vadd.f32 %v5461, %v4836
    %v5537 = vadd.f32 %v5463, %v4838
    %v5538 = vadd.f32 %v5532, %v4907
    %v5539 = vadd.f32 %v5534, %v4909
    %v5540 = vadd.f32 %v5536, %v1083
    %v5541 = vadd.f32 %v5537, %v1087
    %v5542 = vadd.f32 %v5538, %v1091
    %v5543 = vadd.f32 %v5539, %v1095
    %v5544 = vxor.u32 %v5540, 2147483648
    %v5545 = vmul.f32 %v5544, 1.442695
    %v5546 = vpow.pop %v5545
    %v5547 = vadd.f32 %v5546, 1.0
    %v5548 = vrcp.pop %v5547
    %v5549 = vmul.f32 1.0, %v5548
    %v5550 = vxor.u32 %v5541, 2147483648
    %v5551 = vmul.f32 %v5550, 1.442695
    %v5552 = vpow.pop %v5551
    %v5553 = vadd.f32 %v5552, 1.0
    %v5554 = vrcp.pop %v5553
    %v5555 = vmul.f32 1.0, %v5554
    %v5556 = vtanh.pop %v5542
    %v5557 = vxor.u32 %v5543, 2147483648
    %v5558 = vmul.f32 %v5557, 1.442695
    %v5559 = vpow.pop %v5558
    %v5560 = vadd.f32 %v5559, 1.0
    %v5561 = vrcp.pop %v5560
    %v5562 = vmul.f32 1.0, %v5561
    %v5563 = vmul.f32 %v5555, %v4677
    %v5564 = vmul.f32 %v5549, %v5556
    %v5565 = vadd.f32 %v5563, %v5564
    %v5566 = vtanh.pop %v5565
    %v5567 = vmul.f32 %v5562, %v5566
    %s5568 = scalar_lea.vmem %s0, 48
    %v5569 = vld [vmem:[%s5568] sm:$0xff]
    %s5570 = scalar_lea.vmem %s1, 48
    %v5571 = vld [vmem:[%s5570] sm:$0xff]
    %s5572 = scalar_lea.vmem %s2, 48
    %v5573 = vld [vmem:[%s5572] sm:$0xff]
    %v5575 = vsel %vm169, %v5573, 0
    %5577 = vmatprep.subr.mxu0 0.0
    %5578 = vmatpush1.msra.mxu0 0.0
    %5579 = vmatprep.subr.mxu0 0.0
    %5580 = vmatpush1.msra.mxu0 0.0
    %5581 = vmatprep.subr.mxu0 0.0
    %5582 = vmatpush1.msra.mxu0 0.0
    %5583 = vmatprep.subr.mxu0 0.0
    %5584 = vmatpush1.msra.mxu0 0.0
    %5585 = vmatprep.subr.mxu0 0.0
    %5586 = vmatpush1.msra.mxu0 0.0
    %5587 = vmatprep.subr.mxu0 0.0
    %5588 = vmatpush1.msra.mxu0 0.0
    %5589 = vmatprep.subr.mxu0 0.0
    %5590 = vmatpush1.msra.mxu0 0.0
    %5591 = vmatprep.subr.mxu0 0.0
    %5592 = vmatpush1.msra.mxu0 0.0
    %5593 = vmatprep.subr.mxu0 0.0
    %5594 = vmatpush1.msra.mxu0 0.0
    %5595 = vmatprep.subr.mxu0 0.0
    %5596 = vmatpush1.msra.mxu0 0.0
    %5597 = vmatprep.subr.mxu0 0.0
    %5598 = vmatpush1.msra.mxu0 0.0
    %5599 = vmatprep.subr.mxu0 0.0
    %5600 = vmatpush1.msra.mxu0 0.0
    %5601 = vmatprep.subr.mxu0 0.0
    %5602 = vmatpush1.msra.mxu0 0.0
    %5603 = vmatprep.subr.mxu0 0.0
    %5604 = vmatpush1.msra.mxu0 0.0
    %5605 = vmatprep.subr.mxu0 0.0
    %5606 = vmatpush1.msra.mxu0 0.0
    %5607 = vmatprep.subr.mxu0 %v176
    %5608 = vmatpush1.msra.mxu0 %v174
    %5609 = vmatprep.subr.mxu0 0.0
    %5610 = vmatpush2.msra.mxu0 0.0
    %5611 = vmatprep.subr.mxu0 0.0
    %5612 = vmatpush2.msra.mxu0 0.0
    %5613 = vmatprep.subr.mxu0 0.0
    %5614 = vmatpush2.msra.mxu0 0.0
    %5615 = vmatprep.subr.mxu0 0.0
    %5616 = vmatpush2.msra.mxu0 0.0
    %5617 = vmatprep.subr.mxu0 0.0
    %5618 = vmatpush2.msra.mxu0 0.0
    %5619 = vmatprep.subr.mxu0 0.0
    %5620 = vmatpush2.msra.mxu0 0.0
    %5621 = vmatprep.subr.mxu0 0.0
    %5622 = vmatpush2.msra.mxu0 0.0
    %5623 = vmatprep.subr.mxu0 0.0
    %5624 = vmatpush2.msra.mxu0 0.0
    %5625 = vmatprep.subr.mxu0 0.0
    %5626 = vmatpush2.msra.mxu0 0.0
    %5627 = vmatprep.subr.mxu0 0.0
    %5628 = vmatpush2.msra.mxu0 0.0
    %5629 = vmatprep.subr.mxu0 0.0
    %5630 = vmatpush2.msra.mxu0 0.0
    %5631 = vmatprep.subr.mxu0 0.0
    %5632 = vmatpush2.msra.mxu0 0.0
    %5633 = vmatprep.subr.mxu0 0.0
    %5634 = vmatpush2.msra.mxu0 0.0
    %5635 = vmatprep.subr.mxu0 0.0
    %5636 = vmatpush2.msra.mxu0 0.0
    %5637 = vmatprep.subr.mxu0 0.0
    %5638 = vmatpush2.msra.mxu0 0.0
    %5639 = vmatprep.subr.mxu0 0.0
    %5640 = vmatpush2.msra.mxu0 0.0
    %5641 = vmatprep.mubr.f32.mxu0 0.0
    %5642 = vmatmul.mubr.f32.gmra.mxu0 %v5575
    %v5643 = vpop.f32.mrf.mxu0
    %v5644 = vadd.f32 %v160, %v5643
    %v5645 = vpop.f32.mrf.mxu0
    %v5646 = vadd.f32 %v164, %v5645
    %5647 = vdwg.mxu0
    %v5648 = vmax.f32 %v5644, 0.0
    %v5649 = vmax.f32 %v5646, 0.0
    %v5650 = vsub.f32 0.0, %v5648
    %v5651 = vsub.f32 0.0, %v5649
    %v5652 = vmul.f32 %v5650, 1.442695
    %v5653 = vpow.pop %v5652
    %v5654 = vmul.f32 %v5651, 1.442695
    %v5655 = vpow.pop %v5654
    %v5656 = vmul.f32 %v5567, %v5653
    %5657 = vmatprep.subr.mxu0 %v136
    %5658 = vmatpush1.msra.mxu0 %v135
    %5659 = vmatprep.subr.mxu0 %v131
    %5660 = vmatpush1.msra.mxu0 %v130
    %5661 = vmatprep.subr.mxu0 %v126
    %5662 = vmatpush1.msra.mxu0 %v125
    %5663 = vmatprep.subr.mxu0 %v121
    %5664 = vmatpush1.msra.mxu0 %v120
    %5665 = vmatprep.subr.mxu0 %v116
    %5666 = vmatpush1.msra.mxu0 %v115
    %5667 = vmatprep.subr.mxu0 %v111
    %5668 = vmatpush1.msra.mxu0 %v110
    %5669 = vmatprep.subr.mxu0 %v106
    %5670 = vmatpush1.msra.mxu0 %v105
    %5671 = vmatprep.subr.mxu0 %v101
    %5672 = vmatpush1.msra.mxu0 %v100
    %5673 = vmatprep.subr.mxu0 %v96
    %5674 = vmatpush1.msra.mxu0 %v95
    %5675 = vmatprep.subr.mxu0 %v91
    %5676 = vmatpush1.msra.mxu0 %v90
    %5677 = vmatprep.subr.mxu0 %v86
    %5678 = vmatpush1.msra.mxu0 %v85
    %5679 = vmatprep.subr.mxu0 %v81
    %5680 = vmatpush1.msra.mxu0 %v80
    %5681 = vmatprep.subr.mxu0 %v76
    %5682 = vmatpush1.msra.mxu0 %v75
    %5683 = vmatprep.subr.mxu0 %v71
    %5684 = vmatpush1.msra.mxu0 %v70
    %5685 = vmatprep.subr.mxu0 %v66
    %5686 = vmatpush1.msra.mxu0 %v65
    %5687 = vmatprep.subr.mxu0 %v61
    %5688 = vmatpush1.msra.mxu0 %v60
    %5689 = vmatprep.subr.mxu0 0.0
    %5690 = vmatpush2.msra.mxu0 0.0
    %5691 = vmatprep.subr.mxu0 0.0
    %5692 = vmatpush2.msra.mxu0 0.0
    %5693 = vmatprep.subr.mxu0 0.0
    %5694 = vmatpush2.msra.mxu0 0.0
    %5695 = vmatprep.subr.mxu0 0.0
    %5696 = vmatpush2.msra.mxu0 0.0
    %5697 = vmatprep.subr.mxu0 0.0
    %5698 = vmatpush2.msra.mxu0 0.0
    %5699 = vmatprep.subr.mxu0 0.0
    %5700 = vmatpush2.msra.mxu0 0.0
    %5701 = vmatprep.subr.mxu0 0.0
    %5702 = vmatpush2.msra.mxu0 0.0
    %5703 = vmatprep.subr.mxu0 0.0
    %5704 = vmatpush2.msra.mxu0 0.0
    %5705 = vmatprep.subr.mxu0 0.0
    %5706 = vmatpush2.msra.mxu0 0.0
    %5707 = vmatprep.subr.mxu0 0.0
    %5708 = vmatpush2.msra.mxu0 0.0
    %5709 = vmatprep.subr.mxu0 0.0
    %5710 = vmatpush2.msra.mxu0 0.0
    %5711 = vmatprep.subr.mxu0 0.0
    %5712 = vmatpush2.msra.mxu0 0.0
    %5713 = vmatprep.subr.mxu0 0.0
    %5714 = vmatpush2.msra.mxu0 0.0
    %5715 = vmatprep.subr.mxu0 0.0
    %5716 = vmatpush2.msra.mxu0 0.0
    %5717 = vmatprep.subr.mxu0 0.0
    %5718 = vmatpush2.msra.mxu0 0.0
    %5719 = vmatprep.subr.mxu0 0.0
    %5720 = vmatpush2.msra.mxu0 0.0
    %5721 = vmatprep.mubr.f32.mxu0 0.0
    %5722 = vmatmul.mubr.f32.gmra.mxu0 %v5656
    %v5723 = vpop.f32.mrf.mxu0
    %v5724 = vadd.f32 0.0, %v5723
    %v5725 = vpop.f32.mrf.mxu0
    %v5726 = vadd.f32 0.0, %v5725
    %5727 = vdwg.mxu0
    %5728 = vmatprep.subr.mxu0 %v138
    %5729 = vmatpush1.msra.mxu0 %v137
    %5730 = vmatprep.subr.mxu0 %v133
    %5731 = vmatpush1.msra.mxu0 %v132
    %5732 = vmatprep.subr.mxu0 %v128
    %5733 = vmatpush1.msra.mxu0 %v127
    %5734 = vmatprep.subr.mxu0 %v123
    %5735 = vmatpush1.msra.mxu0 %v122
    %5736 = vmatprep.subr.mxu0 %v118
    %5737 = vmatpush1.msra.mxu0 %v117
    %5738 = vmatprep.subr.mxu0 %v113
    %5739 = vmatpush1.msra.mxu0 %v112
    %5740 = vmatprep.subr.mxu0 %v108
    %5741 = vmatpush1.msra.mxu0 %v107
    %5742 = vmatprep.subr.mxu0 %v103
    %5743 = vmatpush1.msra.mxu0 %v102
    %5744 = vmatprep.subr.mxu0 %v98
    %5745 = vmatpush1.msra.mxu0 %v97
    %5746 = vmatprep.subr.mxu0 %v93
    %5747 = vmatpush1.msra.mxu0 %v92
    %5748 = vmatprep.subr.mxu0 %v88
    %5749 = vmatpush1.msra.mxu0 %v87
    %5750 = vmatprep.subr.mxu0 %v83
    %5751 = vmatpush1.msra.mxu0 %v82
    %5752 = vmatprep.subr.mxu0 %v78
    %5753 = vmatpush1.msra.mxu0 %v77
    %5754 = vmatprep.subr.mxu0 %v73
    %5755 = vmatpush1.msra.mxu0 %v72
    %5756 = vmatprep.subr.mxu0 %v68
    %5757 = vmatpush1.msra.mxu0 %v67
    %5758 = vmatprep.subr.mxu0 %v63
    %5759 = vmatpush1.msra.mxu0 %v62
    %5760 = vmatprep.subr.mxu0 0.0
    %5761 = vmatpush2.msra.mxu0 0.0
    %5762 = vmatprep.subr.mxu0 0.0
    %5763 = vmatpush2.msra.mxu0 0.0
    %5764 = vmatprep.subr.mxu0 0.0
    %5765 = vmatpush2.msra.mxu0 0.0
    %5766 = vmatprep.subr.mxu0 0.0
    %5767 = vmatpush2.msra.mxu0 0.0
    %5768 = vmatprep.subr.mxu0 0.0
    %5769 = vmatpush2.msra.mxu0 0.0
    %5770 = vmatprep.subr.mxu0 0.0
    %5771 = vmatpush2.msra.mxu0 0.0
    %5772 = vmatprep.subr.mxu0 0.0
    %5773 = vmatpush2.msra.mxu0 0.0
    %5774 = vmatprep.subr.mxu0 0.0
    %5775 = vmatpush2.msra.mxu0 0.0
    %5776 = vmatprep.subr.mxu0 0.0
    %5777 = vmatpush2.msra.mxu0 0.0
    %5778 = vmatprep.subr.mxu0 0.0
    %5779 = vmatpush2.msra.mxu0 0.0
    %5780 = vmatprep.subr.mxu0 0.0
    %5781 = vmatpush2.msra.mxu0 0.0
    %5782 = vmatprep.subr.mxu0 0.0
    %5783 = vmatpush2.msra.mxu0 0.0
    %5784 = vmatprep.subr.mxu0 0.0
    %5785 = vmatpush2.msra.mxu0 0.0
    %5786 = vmatprep.subr.mxu0 0.0
    %5787 = vmatpush2.msra.mxu0 0.0
    %5788 = vmatprep.subr.mxu0 0.0
    %5789 = vmatpush2.msra.mxu0 0.0
    %5790 = vmatprep.subr.mxu0 0.0
    %5791 = vmatpush2.msra.mxu0 0.0
    %5792 = vmatprep.mubr.f32.mxu0 0.0
    %5793 = vmatmul.mubr.f32.gmra.mxu0 %v5656
    %v5794 = vpop.f32.mrf.mxu0
    %v5795 = vadd.f32 0.0, %v5794
    %v5796 = vpop.f32.mrf.mxu0
    %v5797 = vadd.f32 0.0, %v5796
    %5798 = vdwg.mxu0
    %5799 = vmatprep.subr.mxu0 0.0
    %5800 = vmatpush1.msra.mxu0 %v139
    %5801 = vmatprep.subr.mxu0 0.0
    %5802 = vmatpush1.msra.mxu0 %v134
    %5803 = vmatprep.subr.mxu0 0.0
    %5804 = vmatpush1.msra.mxu0 %v129
    %5805 = vmatprep.subr.mxu0 0.0
    %5806 = vmatpush1.msra.mxu0 %v124
    %5807 = vmatprep.subr.mxu0 0.0
    %5808 = vmatpush1.msra.mxu0 %v119
    %5809 = vmatprep.subr.mxu0 0.0
    %5810 = vmatpush1.msra.mxu0 %v114
    %5811 = vmatprep.subr.mxu0 0.0
    %5812 = vmatpush1.msra.mxu0 %v109
    %5813 = vmatprep.subr.mxu0 0.0
    %5814 = vmatpush1.msra.mxu0 %v104
    %5815 = vmatprep.subr.mxu0 0.0
    %5816 = vmatpush1.msra.mxu0 %v99
    %5817 = vmatprep.subr.mxu0 0.0
    %5818 = vmatpush1.msra.mxu0 %v94
    %5819 = vmatprep.subr.mxu0 0.0
    %5820 = vmatpush1.msra.mxu0 %v89
    %5821 = vmatprep.subr.mxu0 0.0
    %5822 = vmatpush1.msra.mxu0 %v84
    %5823 = vmatprep.subr.mxu0 0.0
    %5824 = vmatpush1.msra.mxu0 %v79
    %5825 = vmatprep.subr.mxu0 0.0
    %5826 = vmatpush1.msra.mxu0 %v74
    %5827 = vmatprep.subr.mxu0 0.0
    %5828 = vmatpush1.msra.mxu0 %v69
    %5829 = vmatprep.subr.mxu0 0.0
    %5830 = vmatpush1.msra.mxu0 %v64
    %5831 = vmatprep.subr.mxu0 0.0
    %5832 = vmatpush2.msra.mxu0 0.0
    %5833 = vmatprep.subr.mxu0 0.0
    %5834 = vmatpush2.msra.mxu0 0.0
    %5835 = vmatprep.subr.mxu0 0.0
    %5836 = vmatpush2.msra.mxu0 0.0
    %5837 = vmatprep.subr.mxu0 0.0
    %5838 = vmatpush2.msra.mxu0 0.0
    %5839 = vmatprep.subr.mxu0 0.0
    %5840 = vmatpush2.msra.mxu0 0.0
    %5841 = vmatprep.subr.mxu0 0.0
    %5842 = vmatpush2.msra.mxu0 0.0
    %5843 = vmatprep.subr.mxu0 0.0
    %5844 = vmatpush2.msra.mxu0 0.0
    %5845 = vmatprep.subr.mxu0 0.0
    %5846 = vmatpush2.msra.mxu0 0.0
    %5847 = vmatprep.subr.mxu0 0.0
    %5848 = vmatpush2.msra.mxu0 0.0
    %5849 = vmatprep.subr.mxu0 0.0
    %5850 = vmatpush2.msra.mxu0 0.0
    %5851 = vmatprep.subr.mxu0 0.0
    %5852 = vmatpush2.msra.mxu0 0.0
    %5853 = vmatprep.subr.mxu0 0.0
    %5854 = vmatpush2.msra.mxu0 0.0
    %5855 = vmatprep.subr.mxu0 0.0
    %5856 = vmatpush2.msra.mxu0 0.0
    %5857 = vmatprep.subr.mxu0 0.0
    %5858 = vmatpush2.msra.mxu0 0.0
    %5859 = vmatprep.subr.mxu0 0.0
    %5860 = vmatpush2.msra.mxu0 0.0
    %5861 = vmatprep.subr.mxu0 0.0
    %5862 = vmatpush2.msra.mxu0 0.0
    %5863 = vmatprep.mubr.f32.mxu0 0.0
    %5864 = vmatmul.mubr.f32.gmra.mxu0 %v5656
    %v5865 = vpop.f32.mrf.mxu0
    %v5866 = vadd.f32 0.0, %v5865
    %v5867 = vpop.f32.mrf.mxu0
    %5868 = vdwg.mxu0
    %v5869 = vadd.f32 %v5866, %v474
    %v5870 = vmul.f32 %v5571, %v5569
    %v5871 = vsub.f32 1.0, %v5571
    %v5872 = vmul.f32 %v5871, %v5869
    %v5873 = vadd.f32 %v5870, %v5872
    %v5875 = vsel %vm169, %v5873, 0
    %5877 = vmatprep.subr.mxu0 0.0
    %5878 = vmatpush1.msra.mxu0 0.0
    %5879 = vmatprep.subr.mxu0 0.0
    %5880 = vmatpush1.msra.mxu0 0.0
    %5881 = vmatprep.subr.mxu0 0.0
    %5882 = vmatpush1.msra.mxu0 0.0
    %5883 = vmatprep.subr.mxu0 0.0
    %5884 = vmatpush1.msra.mxu0 0.0
    %5885 = vmatprep.subr.mxu0 0.0
    %5886 = vmatpush1.msra.mxu0 0.0
    %5887 = vmatprep.subr.mxu0 0.0
    %5888 = vmatpush1.msra.mxu0 0.0
    %5889 = vmatprep.subr.mxu0 0.0
    %5890 = vmatpush1.msra.mxu0 0.0
    %5891 = vmatprep.subr.mxu0 0.0
    %5892 = vmatpush1.msra.mxu0 0.0
    %5893 = vmatprep.subr.mxu0 0.0
    %5894 = vmatpush1.msra.mxu0 0.0
    %5895 = vmatprep.subr.mxu0 0.0
    %5896 = vmatpush1.msra.mxu0 0.0
    %5897 = vmatprep.subr.mxu0 0.0
    %5898 = vmatpush1.msra.mxu0 0.0
    %5899 = vmatprep.subr.mxu0 0.0
    %5900 = vmatpush1.msra.mxu0 0.0
    %5901 = vmatprep.subr.mxu0 0.0
    %5902 = vmatpush1.msra.mxu0 0.0
    %5903 = vmatprep.subr.mxu0 0.0
    %5904 = vmatpush1.msra.mxu0 0.0
    %5905 = vmatprep.subr.mxu0 0.0
    %5906 = vmatpush1.msra.mxu0 0.0
    %5907 = vmatprep.subr.mxu0 0.0
    %5908 = vmatpush1.msra.mxu0 %v491
    %5909 = vmatprep.subr.mxu0 0.0
    %5910 = vmatpush2.msra.mxu0 0.0
    %5911 = vmatprep.subr.mxu0 0.0
    %5912 = vmatpush2.msra.mxu0 0.0
    %5913 = vmatprep.subr.mxu0 0.0
    %5914 = vmatpush2.msra.mxu0 0.0
    %5915 = vmatprep.subr.mxu0 0.0
    %5916 = vmatpush2.msra.mxu0 0.0
    %5917 = vmatprep.subr.mxu0 0.0
    %5918 = vmatpush2.msra.mxu0 0.0
    %5919 = vmatprep.subr.mxu0 0.0
    %5920 = vmatpush2.msra.mxu0 0.0
    %5921 = vmatprep.subr.mxu0 0.0
    %5922 = vmatpush2.msra.mxu0 0.0
    %5923 = vmatprep.subr.mxu0 0.0
    %5924 = vmatpush2.msra.mxu0 0.0
    %5925 = vmatprep.subr.mxu0 0.0
    %5926 = vmatpush2.msra.mxu0 0.0
    %5927 = vmatprep.subr.mxu0 0.0
    %5928 = vmatpush2.msra.mxu0 0.0
    %5929 = vmatprep.subr.mxu0 0.0
    %5930 = vmatpush2.msra.mxu0 0.0
    %5931 = vmatprep.subr.mxu0 0.0
    %5932 = vmatpush2.msra.mxu0 0.0
    %5933 = vmatprep.subr.mxu0 0.0
    %5934 = vmatpush2.msra.mxu0 0.0
    %5935 = vmatprep.subr.mxu0 0.0
    %5936 = vmatpush2.msra.mxu0 0.0
    %5937 = vmatprep.subr.mxu0 0.0
    %5938 = vmatpush2.msra.mxu0 0.0
    %5939 = vmatprep.subr.mxu0 0.0
    %5940 = vmatpush2.msra.mxu0 0.0
    %5941 = vmatprep.mubr.f32.mxu0 0.0
    %5942 = vmatmul.mubr.f32.gmra.mxu0 %v5875
    %v5943 = vpop.f32.mrf.mxu0
    %v5944 = vadd.f32 %v485, %v5943
    %v5945 = vpop.f32.mrf.mxu0
    %5946 = vdwg.mxu0
    %v5948 = vsel %vm169, %v5571, 0
    %5950 = vmatprep.subr.mxu0 0.0
    %5951 = vmatpush1.msra.mxu0 0.0
    %5952 = vmatprep.subr.mxu0 0.0
    %5953 = vmatpush1.msra.mxu0 0.0
    %5954 = vmatprep.subr.mxu0 0.0
    %5955 = vmatpush1.msra.mxu0 0.0
    %5956 = vmatprep.subr.mxu0 0.0
    %5957 = vmatpush1.msra.mxu0 0.0
    %5958 = vmatprep.subr.mxu0 0.0
    %5959 = vmatpush1.msra.mxu0 0.0
    %5960 = vmatprep.subr.mxu0 0.0
    %5961 = vmatpush1.msra.mxu0 0.0
    %5962 = vmatprep.subr.mxu0 0.0
    %5963 = vmatpush1.msra.mxu0 0.0
    %5964 = vmatprep.subr.mxu0 0.0
    %5965 = vmatpush1.msra.mxu0 0.0
    %5966 = vmatprep.subr.mxu0 0.0
    %5967 = vmatpush1.msra.mxu0 0.0
    %5968 = vmatprep.subr.mxu0 0.0
    %5969 = vmatpush1.msra.mxu0 0.0
    %5970 = vmatprep.subr.mxu0 0.0
    %5971 = vmatpush1.msra.mxu0 0.0
    %5972 = vmatprep.subr.mxu0 0.0
    %5973 = vmatpush1.msra.mxu0 0.0
    %5974 = vmatprep.subr.mxu0 0.0
    %5975 = vmatpush1.msra.mxu0 0.0
    %5976 = vmatprep.subr.mxu0 0.0
    %5977 = vmatpush1.msra.mxu0 0.0
    %5978 = vmatprep.subr.mxu0 0.0
    %5979 = vmatpush1.msra.mxu0 0.0
    %5980 = vmatprep.subr.mxu0 %v573
    %5981 = vmatpush1.msra.mxu0 %v571
    %5982 = vmatprep.subr.mxu0 0.0
    %5983 = vmatpush2.msra.mxu0 0.0
    %5984 = vmatprep.subr.mxu0 0.0
    %5985 = vmatpush2.msra.mxu0 0.0
    %5986 = vmatprep.subr.mxu0 0.0
    %5987 = vmatpush2.msra.mxu0 0.0
    %5988 = vmatprep.subr.mxu0 0.0
    %5989 = vmatpush2.msra.mxu0 0.0
    %5990 = vmatprep.subr.mxu0 0.0
    %5991 = vmatpush2.msra.mxu0 0.0
    %5992 = vmatprep.subr.mxu0 0.0
    %5993 = vmatpush2.msra.mxu0 0.0
    %5994 = vmatprep.subr.mxu0 0.0
    %5995 = vmatpush2.msra.mxu0 0.0
    %5996 = vmatprep.subr.mxu0 0.0
    %5997 = vmatpush2.msra.mxu0 0.0
    %5998 = vmatprep.subr.mxu0 0.0
    %5999 = vmatpush2.msra.mxu0 0.0
    %6000 = vmatprep.subr.mxu0 0.0
    %6001 = vmatpush2.msra.mxu0 0.0
    %6002 = vmatprep.subr.mxu0 0.0
    %6003 = vmatpush2.msra.mxu0 0.0
    %6004 = vmatprep.subr.mxu0 0.0
    %6005 = vmatpush2.msra.mxu0 0.0
    %6006 = vmatprep.subr.mxu0 0.0
    %6007 = vmatpush2.msra.mxu0 0.0
    %6008 = vmatprep.subr.mxu0 0.0
    %6009 = vmatpush2.msra.mxu0 0.0
    %6010 = vmatprep.subr.mxu0 0.0
    %6011 = vmatpush2.msra.mxu0 0.0
    %6012 = vmatprep.subr.mxu0 0.0
    %6013 = vmatpush2.msra.mxu0 0.0
    %6014 = vmatprep.mubr.f32.mxu0 0.0
    %6015 = vmatmul.mubr.f32.gmra.mxu0 %v5948
    %v6016 = vpop.f32.mrf.mxu0
    %v6017 = vadd.f32 0.0, %v6016
    %v6018 = vpop.f32.mrf.mxu0
    %v6019 = vadd.f32 0.0, %v6018
    %6020 = vdwg.mxu0
    %6021 = vmatprep.subr.mxu0 0.0
    %6022 = vmatpush1.msra.mxu0 0.0
    %6023 = vmatprep.subr.mxu0 0.0
    %6024 = vmatpush1.msra.mxu0 0.0
    %6025 = vmatprep.subr.mxu0 0.0
    %6026 = vmatpush1.msra.mxu0 0.0
    %6027 = vmatprep.subr.mxu0 0.0
    %6028 = vmatpush1.msra.mxu0 0.0
    %6029 = vmatprep.subr.mxu0 0.0
    %6030 = vmatpush1.msra.mxu0 0.0
    %6031 = vmatprep.subr.mxu0 0.0
    %6032 = vmatpush1.msra.mxu0 0.0
    %6033 = vmatprep.subr.mxu0 0.0
    %6034 = vmatpush1.msra.mxu0 0.0
    %6035 = vmatprep.subr.mxu0 0.0
    %6036 = vmatpush1.msra.mxu0 0.0
    %6037 = vmatprep.subr.mxu0 0.0
    %6038 = vmatpush1.msra.mxu0 0.0
    %6039 = vmatprep.subr.mxu0 0.0
    %6040 = vmatpush1.msra.mxu0 0.0
    %6041 = vmatprep.subr.mxu0 0.0
    %6042 = vmatpush1.msra.mxu0 0.0
    %6043 = vmatprep.subr.mxu0 0.0
    %6044 = vmatpush1.msra.mxu0 0.0
    %6045 = vmatprep.subr.mxu0 0.0
    %6046 = vmatpush1.msra.mxu0 0.0
    %6047 = vmatprep.subr.mxu0 0.0
    %6048 = vmatpush1.msra.mxu0 0.0
    %6049 = vmatprep.subr.mxu0 0.0
    %6050 = vmatpush1.msra.mxu0 0.0
    %6051 = vmatprep.subr.mxu0 %v577
    %6052 = vmatpush1.msra.mxu0 %v575
    %6053 = vmatprep.subr.mxu0 0.0
    %6054 = vmatpush2.msra.mxu0 0.0
    %6055 = vmatprep.subr.mxu0 0.0
    %6056 = vmatpush2.msra.mxu0 0.0
    %6057 = vmatprep.subr.mxu0 0.0
    %6058 = vmatpush2.msra.mxu0 0.0
    %6059 = vmatprep.subr.mxu0 0.0
    %6060 = vmatpush2.msra.mxu0 0.0
    %6061 = vmatprep.subr.mxu0 0.0
    %6062 = vmatpush2.msra.mxu0 0.0
    %6063 = vmatprep.subr.mxu0 0.0
    %6064 = vmatpush2.msra.mxu0 0.0
    %6065 = vmatprep.subr.mxu0 0.0
    %6066 = vmatpush2.msra.mxu0 0.0
    %6067 = vmatprep.subr.mxu0 0.0
    %6068 = vmatpush2.msra.mxu0 0.0
    %6069 = vmatprep.subr.mxu0 0.0
    %6070 = vmatpush2.msra.mxu0 0.0
    %6071 = vmatprep.subr.mxu0 0.0
    %6072 = vmatpush2.msra.mxu0 0.0
    %6073 = vmatprep.subr.mxu0 0.0
    %6074 = vmatpush2.msra.mxu0 0.0
    %6075 = vmatprep.subr.mxu0 0.0
    %6076 = vmatpush2.msra.mxu0 0.0
    %6077 = vmatprep.subr.mxu0 0.0
    %6078 = vmatpush2.msra.mxu0 0.0
    %6079 = vmatprep.subr.mxu0 0.0
    %6080 = vmatpush2.msra.mxu0 0.0
    %6081 = vmatprep.subr.mxu0 0.0
    %6082 = vmatpush2.msra.mxu0 0.0
    %6083 = vmatprep.subr.mxu0 0.0
    %6084 = vmatpush2.msra.mxu0 0.0
    %6085 = vmatprep.mubr.f32.mxu0 0.0
    %6086 = vmatmul.mubr.f32.gmra.mxu0 %v5948
    %v6087 = vpop.f32.mrf.mxu0
    %v6088 = vadd.f32 0.0, %v6087
    %v6089 = vpop.f32.mrf.mxu0
    %v6090 = vadd.f32 0.0, %v6089
    %6091 = vdwg.mxu0
    %6092 = vmatprep.subr.mxu0 0.0
    %6093 = vmatpush1.msra.mxu0 0.0
    %6094 = vmatprep.subr.mxu0 0.0
    %6095 = vmatpush1.msra.mxu0 0.0
    %6096 = vmatprep.subr.mxu0 0.0
    %6097 = vmatpush1.msra.mxu0 0.0
    %6098 = vmatprep.subr.mxu0 0.0
    %6099 = vmatpush1.msra.mxu0 0.0
    %6100 = vmatprep.subr.mxu0 0.0
    %6101 = vmatpush1.msra.mxu0 0.0
    %6102 = vmatprep.subr.mxu0 0.0
    %6103 = vmatpush1.msra.mxu0 0.0
    %6104 = vmatprep.subr.mxu0 0.0
    %6105 = vmatpush1.msra.mxu0 0.0
    %6106 = vmatprep.subr.mxu0 0.0
    %6107 = vmatpush1.msra.mxu0 0.0
    %6108 = vmatprep.subr.mxu0 0.0
    %6109 = vmatpush1.msra.mxu0 0.0
    %6110 = vmatprep.subr.mxu0 0.0
    %6111 = vmatpush1.msra.mxu0 0.0
    %6112 = vmatprep.subr.mxu0 0.0
    %6113 = vmatpush1.msra.mxu0 0.0
    %6114 = vmatprep.subr.mxu0 0.0
    %6115 = vmatpush1.msra.mxu0 0.0
    %6116 = vmatprep.subr.mxu0 0.0
    %6117 = vmatpush1.msra.mxu0 0.0
    %6118 = vmatprep.subr.mxu0 0.0
    %6119 = vmatpush1.msra.mxu0 0.0
    %6120 = vmatprep.subr.mxu0 0.0
    %6121 = vmatpush1.msra.mxu0 0.0
    %6122 = vmatprep.subr.mxu0 0.0
    %6123 = vmatpush1.msra.mxu0 %v579
    %6124 = vmatprep.subr.mxu0 0.0
    %6125 = vmatpush2.msra.mxu0 0.0
    %6126 = vmatprep.subr.mxu0 0.0
    %6127 = vmatpush2.msra.mxu0 0.0
    %6128 = vmatprep.subr.mxu0 0.0
    %6129 = vmatpush2.msra.mxu0 0.0
    %6130 = vmatprep.subr.mxu0 0.0
    %6131 = vmatpush2.msra.mxu0 0.0
    %6132 = vmatprep.subr.mxu0 0.0
    %6133 = vmatpush2.msra.mxu0 0.0
    %6134 = vmatprep.subr.mxu0 0.0
    %6135 = vmatpush2.msra.mxu0 0.0
    %6136 = vmatprep.subr.mxu0 0.0
    %6137 = vmatpush2.msra.mxu0 0.0
    %6138 = vmatprep.subr.mxu0 0.0
    %6139 = vmatpush2.msra.mxu0 0.0
    %6140 = vmatprep.subr.mxu0 0.0
    %6141 = vmatpush2.msra.mxu0 0.0
    %6142 = vmatprep.subr.mxu0 0.0
    %6143 = vmatpush2.msra.mxu0 0.0
    %6144 = vmatprep.subr.mxu0 0.0
    %6145 = vmatpush2.msra.mxu0 0.0
    %6146 = vmatprep.subr.mxu0 0.0
    %6147 = vmatpush2.msra.mxu0 0.0
    %6148 = vmatprep.subr.mxu0 0.0
    %6149 = vmatpush2.msra.mxu0 0.0
    %6150 = vmatprep.subr.mxu0 0.0
    %6151 = vmatpush2.msra.mxu0 0.0
    %6152 = vmatprep.subr.mxu0 0.0
    %6153 = vmatpush2.msra.mxu0 0.0
    %6154 = vmatprep.subr.mxu0 0.0
    %6155 = vmatpush2.msra.mxu0 0.0
    %6156 = vmatprep.mubr.f32.mxu0 0.0
    %6157 = vmatmul.mubr.f32.gmra.mxu0 %v5948
    %v6158 = vpop.f32.mrf.mxu0
    %v6159 = vadd.f32 0.0, %v6158
    %v6160 = vpop.f32.mrf.mxu0
    %6161 = vdwg.mxu0
    %v6163 = vsel %vm169, %v5655, 0
    %6165 = vmatprep.subr.mxu0 0.0
    %6166 = vmatpush1.msra.mxu0 0.0
    %6167 = vmatprep.subr.mxu0 0.0
    %6168 = vmatpush1.msra.mxu0 0.0
    %6169 = vmatprep.subr.mxu0 0.0
    %6170 = vmatpush1.msra.mxu0 0.0
    %6171 = vmatprep.subr.mxu0 0.0
    %6172 = vmatpush1.msra.mxu0 0.0
    %6173 = vmatprep.subr.mxu0 0.0
    %6174 = vmatpush1.msra.mxu0 0.0
    %6175 = vmatprep.subr.mxu0 0.0
    %6176 = vmatpush1.msra.mxu0 0.0
    %6177 = vmatprep.subr.mxu0 0.0
    %6178 = vmatpush1.msra.mxu0 0.0
    %6179 = vmatprep.subr.mxu0 0.0
    %6180 = vmatpush1.msra.mxu0 0.0
    %6181 = vmatprep.subr.mxu0 0.0
    %6182 = vmatpush1.msra.mxu0 0.0
    %6183 = vmatprep.subr.mxu0 0.0
    %6184 = vmatpush1.msra.mxu0 0.0
    %6185 = vmatprep.subr.mxu0 0.0
    %6186 = vmatpush1.msra.mxu0 0.0
    %6187 = vmatprep.subr.mxu0 0.0
    %6188 = vmatpush1.msra.mxu0 0.0
    %6189 = vmatprep.subr.mxu0 0.0
    %6190 = vmatpush1.msra.mxu0 0.0
    %6191 = vmatprep.subr.mxu0 0.0
    %6192 = vmatpush1.msra.mxu0 0.0
    %6193 = vmatprep.subr.mxu0 0.0
    %6194 = vmatpush1.msra.mxu0 0.0
    %6195 = vmatprep.subr.mxu0 0.0
    %6196 = vmatpush1.msra.mxu0 %v797
    %6197 = vmatprep.subr.mxu0 0.0
    %6198 = vmatpush2.msra.mxu0 0.0
    %6199 = vmatprep.subr.mxu0 0.0
    %6200 = vmatpush2.msra.mxu0 0.0
    %6201 = vmatprep.subr.mxu0 0.0
    %6202 = vmatpush2.msra.mxu0 0.0
    %6203 = vmatprep.subr.mxu0 0.0
    %6204 = vmatpush2.msra.mxu0 0.0
    %6205 = vmatprep.subr.mxu0 0.0
    %6206 = vmatpush2.msra.mxu0 0.0
    %6207 = vmatprep.subr.mxu0 0.0
    %6208 = vmatpush2.msra.mxu0 0.0
    %6209 = vmatprep.subr.mxu0 0.0
    %6210 = vmatpush2.msra.mxu0 0.0
    %6211 = vmatprep.subr.mxu0 0.0
    %6212 = vmatpush2.msra.mxu0 0.0
    %6213 = vmatprep.subr.mxu0 0.0
    %6214 = vmatpush2.msra.mxu0 0.0
    %6215 = vmatprep.subr.mxu0 0.0
    %6216 = vmatpush2.msra.mxu0 0.0
    %6217 = vmatprep.subr.mxu0 0.0
    %6218 = vmatpush2.msra.mxu0 0.0
    %6219 = vmatprep.subr.mxu0 0.0
    %6220 = vmatpush2.msra.mxu0 0.0
    %6221 = vmatprep.subr.mxu0 0.0
    %6222 = vmatpush2.msra.mxu0 0.0
    %6223 = vmatprep.subr.mxu0 0.0
    %6224 = vmatpush2.msra.mxu0 0.0
    %6225 = vmatprep.subr.mxu0 0.0
    %6226 = vmatpush2.msra.mxu0 0.0
    %6227 = vmatprep.subr.mxu0 0.0
    %6228 = vmatpush2.msra.mxu0 0.0
    %6229 = vmatprep.mubr.f32.mxu0 0.0
    %6230 = vmatmul.mubr.f32.gmra.mxu0 %v6163
    %v6231 = vpop.f32.mrf.mxu0
    %v6232 = vadd.f32 %v6159, %v6231
    %v6233 = vpop.f32.mrf.mxu0
    %6234 = vdwg.mxu0
    %v6235 = vadd.f32 %v6232, %v873
    %v6236 = vmul.f32 %v6235, %v5944
    %v6237 = vsub.f32 1.0, %v6235
    %v6238 = vmul.f32 %v6237, %v5869
    %v6239 = vadd.f32 %v6236, %v6238
    %v6240 = vsub.f32 %v5569, %v5869
    %v6241 = vand.u32 2147483647, %v6240
    %v6242 = vsub.f32 %v5569, %v5944
    %v6243 = vand.u32 2147483647, %v6242
    %v6244 = vadd.f32 %v6241, %v6243
    %v6245 = vsub.f32 %v5569, %v6239
    %v6246 = vand.u32 2147483647, %v6245
    %v6247 = vadd.f32 %v6244, %v6246
    %v6248 = vmul.f32 %v6247, %v5571
    %v6249 = vsel %vm169, %v6248, 0.0
    %6250 = vadd.xlane.f32.xlu0 %v6249
    %v6251 = vpop.xlane.xlu0 %6250
    %v6252 = vrot.slane %v6251, 4
    %v6253 = vadd.f32 %v6251, %v6252
    %v6254 = vrot.slane %v6253, 2
    %v6255 = vadd.f32 %v6253, %v6254
    %v6256 = vrot.slane %v6255, 1
    %v6257 = vadd.f32 %v6255, %v6256
    %s6258 = vtos %v6257
    %v6259 = vsel %vm169, %v5571, 0.0
    %6260 = vadd.xlane.f32.xlu0 %v6259
    %v6261 = vpop.xlane.xlu0 %6260
    %v6262 = vrot.slane %v6261, 4
    %v6263 = vadd.f32 %v6261, %v6262
    %v6264 = vrot.slane %v6263, 2
    %v6265 = vadd.f32 %v6263, %v6264
    %v6266 = vrot.slane %v6265, 1
    %v6267 = vadd.f32 %v6265, %v6266
    %s6268 = vtos %v6267
    %s6269 = sadd.f32 %s6268, 1e-05
    %v6270 = vstv %s6269
    %v6271 = vrcp.pop %v6270
    %s6272 = vtos %v6271
    %s6273 = smul.f32 %s6258, %s6272
    %s6274 = sadd.f32 %s5386, %s6273
    %v6275 = vmul.f32 %v5871, %v6239
    %v6276 = vadd.f32 %v5870, %v6275
    %s6277 = scalar_lea.vmem %s14, 48
    %6278 = vst.msk [vmem:[%s6277] sm:$0xff] %vm169, %v6276
    %v6280 = vsel %vm169, %v6276, 0
    %6282 = vmatprep.subr.mxu0 0.0
    %6283 = vmatpush1.msra.mxu0 0.0
    %6284 = vmatprep.subr.mxu0 0.0
    %6285 = vmatpush1.msra.mxu0 0.0
    %6286 = vmatprep.subr.mxu0 0.0
    %6287 = vmatpush1.msra.mxu0 0.0
    %6288 = vmatprep.subr.mxu0 0.0
    %6289 = vmatpush1.msra.mxu0 0.0
    %6290 = vmatprep.subr.mxu0 0.0
    %6291 = vmatpush1.msra.mxu0 0.0
    %6292 = vmatprep.subr.mxu0 0.0
    %6293 = vmatpush1.msra.mxu0 0.0
    %6294 = vmatprep.subr.mxu0 0.0
    %6295 = vmatpush1.msra.mxu0 0.0
    %6296 = vmatprep.subr.mxu0 0.0
    %6297 = vmatpush1.msra.mxu0 0.0
    %6298 = vmatprep.subr.mxu0 0.0
    %6299 = vmatpush1.msra.mxu0 0.0
    %6300 = vmatprep.subr.mxu0 0.0
    %6301 = vmatpush1.msra.mxu0 0.0
    %6302 = vmatprep.subr.mxu0 0.0
    %6303 = vmatpush1.msra.mxu0 0.0
    %6304 = vmatprep.subr.mxu0 0.0
    %6305 = vmatpush1.msra.mxu0 0.0
    %6306 = vmatprep.subr.mxu0 0.0
    %6307 = vmatpush1.msra.mxu0 0.0
    %6308 = vmatprep.subr.mxu0 0.0
    %6309 = vmatpush1.msra.mxu0 0.0
    %6310 = vmatprep.subr.mxu0 0.0
    %6311 = vmatpush1.msra.mxu0 0.0
    %6312 = vmatprep.subr.mxu0 %v927
    %6313 = vmatpush1.msra.mxu0 %v925
    %6314 = vmatprep.subr.mxu0 0.0
    %6315 = vmatpush2.msra.mxu0 0.0
    %6316 = vmatprep.subr.mxu0 0.0
    %6317 = vmatpush2.msra.mxu0 0.0
    %6318 = vmatprep.subr.mxu0 0.0
    %6319 = vmatpush2.msra.mxu0 0.0
    %6320 = vmatprep.subr.mxu0 0.0
    %6321 = vmatpush2.msra.mxu0 0.0
    %6322 = vmatprep.subr.mxu0 0.0
    %6323 = vmatpush2.msra.mxu0 0.0
    %6324 = vmatprep.subr.mxu0 0.0
    %6325 = vmatpush2.msra.mxu0 0.0
    %6326 = vmatprep.subr.mxu0 0.0
    %6327 = vmatpush2.msra.mxu0 0.0
    %6328 = vmatprep.subr.mxu0 0.0
    %6329 = vmatpush2.msra.mxu0 0.0
    %6330 = vmatprep.subr.mxu0 0.0
    %6331 = vmatpush2.msra.mxu0 0.0
    %6332 = vmatprep.subr.mxu0 0.0
    %6333 = vmatpush2.msra.mxu0 0.0
    %6334 = vmatprep.subr.mxu0 0.0
    %6335 = vmatpush2.msra.mxu0 0.0
    %6336 = vmatprep.subr.mxu0 0.0
    %6337 = vmatpush2.msra.mxu0 0.0
    %6338 = vmatprep.subr.mxu0 0.0
    %6339 = vmatpush2.msra.mxu0 0.0
    %6340 = vmatprep.subr.mxu0 0.0
    %6341 = vmatpush2.msra.mxu0 0.0
    %6342 = vmatprep.subr.mxu0 0.0
    %6343 = vmatpush2.msra.mxu0 0.0
    %6344 = vmatprep.subr.mxu0 0.0
    %6345 = vmatpush2.msra.mxu0 0.0
    %6346 = vmatprep.mubr.f32.mxu0 0.0
    %6347 = vmatmul.mubr.f32.gmra.mxu0 %v6280
    %v6348 = vpop.f32.mrf.mxu0
    %v6349 = vadd.f32 %v6017, %v6348
    %v6350 = vpop.f32.mrf.mxu0
    %v6351 = vadd.f32 %v6019, %v6350
    %6352 = vdwg.mxu0
    %6353 = vmatprep.subr.mxu0 0.0
    %6354 = vmatpush1.msra.mxu0 0.0
    %6355 = vmatprep.subr.mxu0 0.0
    %6356 = vmatpush1.msra.mxu0 0.0
    %6357 = vmatprep.subr.mxu0 0.0
    %6358 = vmatpush1.msra.mxu0 0.0
    %6359 = vmatprep.subr.mxu0 0.0
    %6360 = vmatpush1.msra.mxu0 0.0
    %6361 = vmatprep.subr.mxu0 0.0
    %6362 = vmatpush1.msra.mxu0 0.0
    %6363 = vmatprep.subr.mxu0 0.0
    %6364 = vmatpush1.msra.mxu0 0.0
    %6365 = vmatprep.subr.mxu0 0.0
    %6366 = vmatpush1.msra.mxu0 0.0
    %6367 = vmatprep.subr.mxu0 0.0
    %6368 = vmatpush1.msra.mxu0 0.0
    %6369 = vmatprep.subr.mxu0 0.0
    %6370 = vmatpush1.msra.mxu0 0.0
    %6371 = vmatprep.subr.mxu0 0.0
    %6372 = vmatpush1.msra.mxu0 0.0
    %6373 = vmatprep.subr.mxu0 0.0
    %6374 = vmatpush1.msra.mxu0 0.0
    %6375 = vmatprep.subr.mxu0 0.0
    %6376 = vmatpush1.msra.mxu0 0.0
    %6377 = vmatprep.subr.mxu0 0.0
    %6378 = vmatpush1.msra.mxu0 0.0
    %6379 = vmatprep.subr.mxu0 0.0
    %6380 = vmatpush1.msra.mxu0 0.0
    %6381 = vmatprep.subr.mxu0 0.0
    %6382 = vmatpush1.msra.mxu0 0.0
    %6383 = vmatprep.subr.mxu0 %v931
    %6384 = vmatpush1.msra.mxu0 %v929
    %6385 = vmatprep.subr.mxu0 0.0
    %6386 = vmatpush2.msra.mxu0 0.0
    %6387 = vmatprep.subr.mxu0 0.0
    %6388 = vmatpush2.msra.mxu0 0.0
    %6389 = vmatprep.subr.mxu0 0.0
    %6390 = vmatpush2.msra.mxu0 0.0
    %6391 = vmatprep.subr.mxu0 0.0
    %6392 = vmatpush2.msra.mxu0 0.0
    %6393 = vmatprep.subr.mxu0 0.0
    %6394 = vmatpush2.msra.mxu0 0.0
    %6395 = vmatprep.subr.mxu0 0.0
    %6396 = vmatpush2.msra.mxu0 0.0
    %6397 = vmatprep.subr.mxu0 0.0
    %6398 = vmatpush2.msra.mxu0 0.0
    %6399 = vmatprep.subr.mxu0 0.0
    %6400 = vmatpush2.msra.mxu0 0.0
    %6401 = vmatprep.subr.mxu0 0.0
    %6402 = vmatpush2.msra.mxu0 0.0
    %6403 = vmatprep.subr.mxu0 0.0
    %6404 = vmatpush2.msra.mxu0 0.0
    %6405 = vmatprep.subr.mxu0 0.0
    %6406 = vmatpush2.msra.mxu0 0.0
    %6407 = vmatprep.subr.mxu0 0.0
    %6408 = vmatpush2.msra.mxu0 0.0
    %6409 = vmatprep.subr.mxu0 0.0
    %6410 = vmatpush2.msra.mxu0 0.0
    %6411 = vmatprep.subr.mxu0 0.0
    %6412 = vmatpush2.msra.mxu0 0.0
    %6413 = vmatprep.subr.mxu0 0.0
    %6414 = vmatpush2.msra.mxu0 0.0
    %6415 = vmatprep.subr.mxu0 0.0
    %6416 = vmatpush2.msra.mxu0 0.0
    %6417 = vmatprep.mubr.f32.mxu0 0.0
    %6418 = vmatmul.mubr.f32.gmra.mxu0 %v6280
    %v6419 = vpop.f32.mrf.mxu0
    %v6420 = vadd.f32 %v6088, %v6419
    %v6421 = vpop.f32.mrf.mxu0
    %v6422 = vadd.f32 %v6090, %v6421
    %6423 = vdwg.mxu0
    %v6424 = vadd.f32 %v6349, %v5724
    %v6425 = vadd.f32 %v6351, %v5726
    %v6426 = vadd.f32 %v6420, %v5795
    %v6427 = vadd.f32 %v6422, %v5797
    %v6428 = vadd.f32 %v6424, %v1083
    %v6429 = vadd.f32 %v6425, %v1087
    %v6430 = vadd.f32 %v6426, %v1091
    %v6431 = vadd.f32 %v6427, %v1095
    %v6432 = vxor.u32 %v6428, 2147483648
    %v6433 = vmul.f32 %v6432, 1.442695
    %v6434 = vpow.pop %v6433
    %v6435 = vadd.f32 %v6434, 1.0
    %v6436 = vrcp.pop %v6435
    %v6437 = vmul.f32 1.0, %v6436
    %v6438 = vxor.u32 %v6429, 2147483648
    %v6439 = vmul.f32 %v6438, 1.442695
    %v6440 = vpow.pop %v6439
    %v6441 = vadd.f32 %v6440, 1.0
    %v6442 = vrcp.pop %v6441
    %v6443 = vmul.f32 1.0, %v6442
    %v6444 = vtanh.pop %v6430
    %v6445 = vxor.u32 %v6431, 2147483648
    %v6446 = vmul.f32 %v6445, 1.442695
    %v6447 = vpow.pop %v6446
    %v6448 = vadd.f32 %v6447, 1.0
    %v6449 = vrcp.pop %v6448
    %v6450 = vmul.f32 1.0, %v6449
    %v6451 = vmul.f32 %v6443, %v5565
    %v6452 = vmul.f32 %v6437, %v6444
    %v6453 = vadd.f32 %v6451, %v6452
    %v6454 = vtanh.pop %v6453
    %v6455 = vmul.f32 %v6450, %v6454
    %s6456 = scalar_lea.vmem %s0, 56
    %v6457 = vld [vmem:[%s6456] sm:$0xff]
    %s6458 = scalar_lea.vmem %s1, 56
    %v6459 = vld [vmem:[%s6458] sm:$0xff]
    %s6460 = scalar_lea.vmem %s2, 56
    %v6461 = vld [vmem:[%s6460] sm:$0xff]
    %v6463 = vsel %vm169, %v6461, 0
    %6465 = vmatprep.subr.mxu0 0.0
    %6466 = vmatpush1.msra.mxu0 0.0
    %6467 = vmatprep.subr.mxu0 0.0
    %6468 = vmatpush1.msra.mxu0 0.0
    %6469 = vmatprep.subr.mxu0 0.0
    %6470 = vmatpush1.msra.mxu0 0.0
    %6471 = vmatprep.subr.mxu0 0.0
    %6472 = vmatpush1.msra.mxu0 0.0
    %6473 = vmatprep.subr.mxu0 0.0
    %6474 = vmatpush1.msra.mxu0 0.0
    %6475 = vmatprep.subr.mxu0 0.0
    %6476 = vmatpush1.msra.mxu0 0.0
    %6477 = vmatprep.subr.mxu0 0.0
    %6478 = vmatpush1.msra.mxu0 0.0
    %6479 = vmatprep.subr.mxu0 0.0
    %6480 = vmatpush1.msra.mxu0 0.0
    %6481 = vmatprep.subr.mxu0 0.0
    %6482 = vmatpush1.msra.mxu0 0.0
    %6483 = vmatprep.subr.mxu0 0.0
    %6484 = vmatpush1.msra.mxu0 0.0
    %6485 = vmatprep.subr.mxu0 0.0
    %6486 = vmatpush1.msra.mxu0 0.0
    %6487 = vmatprep.subr.mxu0 0.0
    %6488 = vmatpush1.msra.mxu0 0.0
    %6489 = vmatprep.subr.mxu0 0.0
    %6490 = vmatpush1.msra.mxu0 0.0
    %6491 = vmatprep.subr.mxu0 0.0
    %6492 = vmatpush1.msra.mxu0 0.0
    %6493 = vmatprep.subr.mxu0 0.0
    %6494 = vmatpush1.msra.mxu0 0.0
    %6495 = vmatprep.subr.mxu0 %v176
    %6496 = vmatpush1.msra.mxu0 %v174
    %6497 = vmatprep.subr.mxu0 0.0
    %6498 = vmatpush2.msra.mxu0 0.0
    %6499 = vmatprep.subr.mxu0 0.0
    %6500 = vmatpush2.msra.mxu0 0.0
    %6501 = vmatprep.subr.mxu0 0.0
    %6502 = vmatpush2.msra.mxu0 0.0
    %6503 = vmatprep.subr.mxu0 0.0
    %6504 = vmatpush2.msra.mxu0 0.0
    %6505 = vmatprep.subr.mxu0 0.0
    %6506 = vmatpush2.msra.mxu0 0.0
    %6507 = vmatprep.subr.mxu0 0.0
    %6508 = vmatpush2.msra.mxu0 0.0
    %6509 = vmatprep.subr.mxu0 0.0
    %6510 = vmatpush2.msra.mxu0 0.0
    %6511 = vmatprep.subr.mxu0 0.0
    %6512 = vmatpush2.msra.mxu0 0.0
    %6513 = vmatprep.subr.mxu0 0.0
    %6514 = vmatpush2.msra.mxu0 0.0
    %6515 = vmatprep.subr.mxu0 0.0
    %6516 = vmatpush2.msra.mxu0 0.0
    %6517 = vmatprep.subr.mxu0 0.0
    %6518 = vmatpush2.msra.mxu0 0.0
    %6519 = vmatprep.subr.mxu0 0.0
    %6520 = vmatpush2.msra.mxu0 0.0
    %6521 = vmatprep.subr.mxu0 0.0
    %6522 = vmatpush2.msra.mxu0 0.0
    %6523 = vmatprep.subr.mxu0 0.0
    %6524 = vmatpush2.msra.mxu0 0.0
    %6525 = vmatprep.subr.mxu0 0.0
    %6526 = vmatpush2.msra.mxu0 0.0
    %6527 = vmatprep.subr.mxu0 0.0
    %6528 = vmatpush2.msra.mxu0 0.0
    %6529 = vmatprep.mubr.f32.mxu0 0.0
    %6530 = vmatmul.mubr.f32.gmra.mxu0 %v6463
    %v6531 = vpop.f32.mrf.mxu0
    %v6532 = vadd.f32 %v160, %v6531
    %v6533 = vpop.f32.mrf.mxu0
    %v6534 = vadd.f32 %v164, %v6533
    %6535 = vdwg.mxu0
    %v6536 = vmax.f32 %v6532, 0.0
    %v6537 = vmax.f32 %v6534, 0.0
    %v6538 = vsub.f32 0.0, %v6536
    %v6539 = vsub.f32 0.0, %v6537
    %v6540 = vmul.f32 %v6538, 1.442695
    %v6541 = vpow.pop %v6540
    %v6542 = vmul.f32 %v6539, 1.442695
    %v6543 = vpow.pop %v6542
    %v6544 = vmul.f32 %v6455, %v6541
    %6545 = vmatprep.subr.mxu0 %v136
    %6546 = vmatpush1.msra.mxu0 %v135
    %6547 = vmatprep.subr.mxu0 %v131
    %6548 = vmatpush1.msra.mxu0 %v130
    %6549 = vmatprep.subr.mxu0 %v126
    %6550 = vmatpush1.msra.mxu0 %v125
    %6551 = vmatprep.subr.mxu0 %v121
    %6552 = vmatpush1.msra.mxu0 %v120
    %6553 = vmatprep.subr.mxu0 %v116
    %6554 = vmatpush1.msra.mxu0 %v115
    %6555 = vmatprep.subr.mxu0 %v111
    %6556 = vmatpush1.msra.mxu0 %v110
    %6557 = vmatprep.subr.mxu0 %v106
    %6558 = vmatpush1.msra.mxu0 %v105
    %6559 = vmatprep.subr.mxu0 %v101
    %6560 = vmatpush1.msra.mxu0 %v100
    %6561 = vmatprep.subr.mxu0 %v96
    %6562 = vmatpush1.msra.mxu0 %v95
    %6563 = vmatprep.subr.mxu0 %v91
    %6564 = vmatpush1.msra.mxu0 %v90
    %6565 = vmatprep.subr.mxu0 %v86
    %6566 = vmatpush1.msra.mxu0 %v85
    %6567 = vmatprep.subr.mxu0 %v81
    %6568 = vmatpush1.msra.mxu0 %v80
    %6569 = vmatprep.subr.mxu0 %v76
    %6570 = vmatpush1.msra.mxu0 %v75
    %6571 = vmatprep.subr.mxu0 %v71
    %6572 = vmatpush1.msra.mxu0 %v70
    %6573 = vmatprep.subr.mxu0 %v66
    %6574 = vmatpush1.msra.mxu0 %v65
    %6575 = vmatprep.subr.mxu0 %v61
    %6576 = vmatpush1.msra.mxu0 %v60
    %6577 = vmatprep.subr.mxu0 0.0
    %6578 = vmatpush2.msra.mxu0 0.0
    %6579 = vmatprep.subr.mxu0 0.0
    %6580 = vmatpush2.msra.mxu0 0.0
    %6581 = vmatprep.subr.mxu0 0.0
    %6582 = vmatpush2.msra.mxu0 0.0
    %6583 = vmatprep.subr.mxu0 0.0
    %6584 = vmatpush2.msra.mxu0 0.0
    %6585 = vmatprep.subr.mxu0 0.0
    %6586 = vmatpush2.msra.mxu0 0.0
    %6587 = vmatprep.subr.mxu0 0.0
    %6588 = vmatpush2.msra.mxu0 0.0
    %6589 = vmatprep.subr.mxu0 0.0
    %6590 = vmatpush2.msra.mxu0 0.0
    %6591 = vmatprep.subr.mxu0 0.0
    %6592 = vmatpush2.msra.mxu0 0.0
    %6593 = vmatprep.subr.mxu0 0.0
    %6594 = vmatpush2.msra.mxu0 0.0
    %6595 = vmatprep.subr.mxu0 0.0
    %6596 = vmatpush2.msra.mxu0 0.0
    %6597 = vmatprep.subr.mxu0 0.0
    %6598 = vmatpush2.msra.mxu0 0.0
    %6599 = vmatprep.subr.mxu0 0.0
    %6600 = vmatpush2.msra.mxu0 0.0
    %6601 = vmatprep.subr.mxu0 0.0
    %6602 = vmatpush2.msra.mxu0 0.0
    %6603 = vmatprep.subr.mxu0 0.0
    %6604 = vmatpush2.msra.mxu0 0.0
    %6605 = vmatprep.subr.mxu0 0.0
    %6606 = vmatpush2.msra.mxu0 0.0
    %6607 = vmatprep.subr.mxu0 0.0
    %6608 = vmatpush2.msra.mxu0 0.0
    %6609 = vmatprep.mubr.f32.mxu0 0.0
    %6610 = vmatmul.mubr.f32.gmra.mxu0 %v6544
    %v6611 = vpop.f32.mrf.mxu0
    %v6612 = vadd.f32 0.0, %v6611
    %v6613 = vpop.f32.mrf.mxu0
    %v6614 = vadd.f32 0.0, %v6613
    %6615 = vdwg.mxu0
    %6616 = vmatprep.subr.mxu0 %v138
    %6617 = vmatpush1.msra.mxu0 %v137
    %6618 = vmatprep.subr.mxu0 %v133
    %6619 = vmatpush1.msra.mxu0 %v132
    %6620 = vmatprep.subr.mxu0 %v128
    %6621 = vmatpush1.msra.mxu0 %v127
    %6622 = vmatprep.subr.mxu0 %v123
    %6623 = vmatpush1.msra.mxu0 %v122
    %6624 = vmatprep.subr.mxu0 %v118
    %6625 = vmatpush1.msra.mxu0 %v117
    %6626 = vmatprep.subr.mxu0 %v113
    %6627 = vmatpush1.msra.mxu0 %v112
    %6628 = vmatprep.subr.mxu0 %v108
    %6629 = vmatpush1.msra.mxu0 %v107
    %6630 = vmatprep.subr.mxu0 %v103
    %6631 = vmatpush1.msra.mxu0 %v102
    %6632 = vmatprep.subr.mxu0 %v98
    %6633 = vmatpush1.msra.mxu0 %v97
    %6634 = vmatprep.subr.mxu0 %v93
    %6635 = vmatpush1.msra.mxu0 %v92
    %6636 = vmatprep.subr.mxu0 %v88
    %6637 = vmatpush1.msra.mxu0 %v87
    %6638 = vmatprep.subr.mxu0 %v83
    %6639 = vmatpush1.msra.mxu0 %v82
    %6640 = vmatprep.subr.mxu0 %v78
    %6641 = vmatpush1.msra.mxu0 %v77
    %6642 = vmatprep.subr.mxu0 %v73
    %6643 = vmatpush1.msra.mxu0 %v72
    %6644 = vmatprep.subr.mxu0 %v68
    %6645 = vmatpush1.msra.mxu0 %v67
    %6646 = vmatprep.subr.mxu0 %v63
    %6647 = vmatpush1.msra.mxu0 %v62
    %6648 = vmatprep.subr.mxu0 0.0
    %6649 = vmatpush2.msra.mxu0 0.0
    %6650 = vmatprep.subr.mxu0 0.0
    %6651 = vmatpush2.msra.mxu0 0.0
    %6652 = vmatprep.subr.mxu0 0.0
    %6653 = vmatpush2.msra.mxu0 0.0
    %6654 = vmatprep.subr.mxu0 0.0
    %6655 = vmatpush2.msra.mxu0 0.0
    %6656 = vmatprep.subr.mxu0 0.0
    %6657 = vmatpush2.msra.mxu0 0.0
    %6658 = vmatprep.subr.mxu0 0.0
    %6659 = vmatpush2.msra.mxu0 0.0
    %6660 = vmatprep.subr.mxu0 0.0
    %6661 = vmatpush2.msra.mxu0 0.0
    %6662 = vmatprep.subr.mxu0 0.0
    %6663 = vmatpush2.msra.mxu0 0.0
    %6664 = vmatprep.subr.mxu0 0.0
    %6665 = vmatpush2.msra.mxu0 0.0
    %6666 = vmatprep.subr.mxu0 0.0
    %6667 = vmatpush2.msra.mxu0 0.0
    %6668 = vmatprep.subr.mxu0 0.0
    %6669 = vmatpush2.msra.mxu0 0.0
    %6670 = vmatprep.subr.mxu0 0.0
    %6671 = vmatpush2.msra.mxu0 0.0
    %6672 = vmatprep.subr.mxu0 0.0
    %6673 = vmatpush2.msra.mxu0 0.0
    %6674 = vmatprep.subr.mxu0 0.0
    %6675 = vmatpush2.msra.mxu0 0.0
    %6676 = vmatprep.subr.mxu0 0.0
    %6677 = vmatpush2.msra.mxu0 0.0
    %6678 = vmatprep.subr.mxu0 0.0
    %6679 = vmatpush2.msra.mxu0 0.0
    %6680 = vmatprep.mubr.f32.mxu0 0.0
    %6681 = vmatmul.mubr.f32.gmra.mxu0 %v6544
    %v6682 = vpop.f32.mrf.mxu0
    %v6683 = vadd.f32 0.0, %v6682
    %v6684 = vpop.f32.mrf.mxu0
    %v6685 = vadd.f32 0.0, %v6684
    %6686 = vdwg.mxu0
    %6687 = vmatprep.subr.mxu0 0.0
    %6688 = vmatpush1.msra.mxu0 %v139
    %6689 = vmatprep.subr.mxu0 0.0
    %6690 = vmatpush1.msra.mxu0 %v134
    %6691 = vmatprep.subr.mxu0 0.0
    %6692 = vmatpush1.msra.mxu0 %v129
    %6693 = vmatprep.subr.mxu0 0.0
    %6694 = vmatpush1.msra.mxu0 %v124
    %6695 = vmatprep.subr.mxu0 0.0
    %6696 = vmatpush1.msra.mxu0 %v119
    %6697 = vmatprep.subr.mxu0 0.0
    %6698 = vmatpush1.msra.mxu0 %v114
    %6699 = vmatprep.subr.mxu0 0.0
    %6700 = vmatpush1.msra.mxu0 %v109
    %6701 = vmatprep.subr.mxu0 0.0
    %6702 = vmatpush1.msra.mxu0 %v104
    %6703 = vmatprep.subr.mxu0 0.0
    %6704 = vmatpush1.msra.mxu0 %v99
    %6705 = vmatprep.subr.mxu0 0.0
    %6706 = vmatpush1.msra.mxu0 %v94
    %6707 = vmatprep.subr.mxu0 0.0
    %6708 = vmatpush1.msra.mxu0 %v89
    %6709 = vmatprep.subr.mxu0 0.0
    %6710 = vmatpush1.msra.mxu0 %v84
    %6711 = vmatprep.subr.mxu0 0.0
    %6712 = vmatpush1.msra.mxu0 %v79
    %6713 = vmatprep.subr.mxu0 0.0
    %6714 = vmatpush1.msra.mxu0 %v74
    %6715 = vmatprep.subr.mxu0 0.0
    %6716 = vmatpush1.msra.mxu0 %v69
    %6717 = vmatprep.subr.mxu0 0.0
    %6718 = vmatpush1.msra.mxu0 %v64
    %6719 = vmatprep.subr.mxu0 0.0
    %6720 = vmatpush2.msra.mxu0 0.0
    %6721 = vmatprep.subr.mxu0 0.0
    %6722 = vmatpush2.msra.mxu0 0.0
    %6723 = vmatprep.subr.mxu0 0.0
    %6724 = vmatpush2.msra.mxu0 0.0
    %6725 = vmatprep.subr.mxu0 0.0
    %6726 = vmatpush2.msra.mxu0 0.0
    %6727 = vmatprep.subr.mxu0 0.0
    %6728 = vmatpush2.msra.mxu0 0.0
    %6729 = vmatprep.subr.mxu0 0.0
    %6730 = vmatpush2.msra.mxu0 0.0
    %6731 = vmatprep.subr.mxu0 0.0
    %6732 = vmatpush2.msra.mxu0 0.0
    %6733 = vmatprep.subr.mxu0 0.0
    %6734 = vmatpush2.msra.mxu0 0.0
    %6735 = vmatprep.subr.mxu0 0.0
    %6736 = vmatpush2.msra.mxu0 0.0
    %6737 = vmatprep.subr.mxu0 0.0
    %6738 = vmatpush2.msra.mxu0 0.0
    %6739 = vmatprep.subr.mxu0 0.0
    %6740 = vmatpush2.msra.mxu0 0.0
    %6741 = vmatprep.subr.mxu0 0.0
    %6742 = vmatpush2.msra.mxu0 0.0
    %6743 = vmatprep.subr.mxu0 0.0
    %6744 = vmatpush2.msra.mxu0 0.0
    %6745 = vmatprep.subr.mxu0 0.0
    %6746 = vmatpush2.msra.mxu0 0.0
    %6747 = vmatprep.subr.mxu0 0.0
    %6748 = vmatpush2.msra.mxu0 0.0
    %6749 = vmatprep.subr.mxu0 0.0
    %6750 = vmatpush2.msra.mxu0 0.0
    %6751 = vmatprep.mubr.f32.mxu0 0.0
    %6752 = vmatmul.mubr.f32.gmra.mxu0 %v6544
    %v6753 = vpop.f32.mrf.mxu0
    %v6754 = vadd.f32 0.0, %v6753
    %v6755 = vpop.f32.mrf.mxu0
    %6756 = vdwg.mxu0
    %v6757 = vadd.f32 %v6754, %v474
    %v6758 = vmul.f32 %v6459, %v6457
    %v6759 = vsub.f32 1.0, %v6459
    %v6760 = vmul.f32 %v6759, %v6757
    %v6761 = vadd.f32 %v6758, %v6760
    %v6763 = vsel %vm169, %v6761, 0
    %6765 = vmatprep.subr.mxu0 0.0
    %6766 = vmatpush1.msra.mxu0 0.0
    %6767 = vmatprep.subr.mxu0 0.0
    %6768 = vmatpush1.msra.mxu0 0.0
    %6769 = vmatprep.subr.mxu0 0.0
    %6770 = vmatpush1.msra.mxu0 0.0
    %6771 = vmatprep.subr.mxu0 0.0
    %6772 = vmatpush1.msra.mxu0 0.0
    %6773 = vmatprep.subr.mxu0 0.0
    %6774 = vmatpush1.msra.mxu0 0.0
    %6775 = vmatprep.subr.mxu0 0.0
    %6776 = vmatpush1.msra.mxu0 0.0
    %6777 = vmatprep.subr.mxu0 0.0
    %6778 = vmatpush1.msra.mxu0 0.0
    %6779 = vmatprep.subr.mxu0 0.0
    %6780 = vmatpush1.msra.mxu0 0.0
    %6781 = vmatprep.subr.mxu0 0.0
    %6782 = vmatpush1.msra.mxu0 0.0
    %6783 = vmatprep.subr.mxu0 0.0
    %6784 = vmatpush1.msra.mxu0 0.0
    %6785 = vmatprep.subr.mxu0 0.0
    %6786 = vmatpush1.msra.mxu0 0.0
    %6787 = vmatprep.subr.mxu0 0.0
    %6788 = vmatpush1.msra.mxu0 0.0
    %6789 = vmatprep.subr.mxu0 0.0
    %6790 = vmatpush1.msra.mxu0 0.0
    %6791 = vmatprep.subr.mxu0 0.0
    %6792 = vmatpush1.msra.mxu0 0.0
    %6793 = vmatprep.subr.mxu0 0.0
    %6794 = vmatpush1.msra.mxu0 0.0
    %6795 = vmatprep.subr.mxu0 0.0
    %6796 = vmatpush1.msra.mxu0 %v491
    %6797 = vmatprep.subr.mxu0 0.0
    %6798 = vmatpush2.msra.mxu0 0.0
    %6799 = vmatprep.subr.mxu0 0.0
    %6800 = vmatpush2.msra.mxu0 0.0
    %6801 = vmatprep.subr.mxu0 0.0
    %6802 = vmatpush2.msra.mxu0 0.0
    %6803 = vmatprep.subr.mxu0 0.0
    %6804 = vmatpush2.msra.mxu0 0.0
    %6805 = vmatprep.subr.mxu0 0.0
    %6806 = vmatpush2.msra.mxu0 0.0
    %6807 = vmatprep.subr.mxu0 0.0
    %6808 = vmatpush2.msra.mxu0 0.0
    %6809 = vmatprep.subr.mxu0 0.0
    %6810 = vmatpush2.msra.mxu0 0.0
    %6811 = vmatprep.subr.mxu0 0.0
    %6812 = vmatpush2.msra.mxu0 0.0
    %6813 = vmatprep.subr.mxu0 0.0
    %6814 = vmatpush2.msra.mxu0 0.0
    %6815 = vmatprep.subr.mxu0 0.0
    %6816 = vmatpush2.msra.mxu0 0.0
    %6817 = vmatprep.subr.mxu0 0.0
    %6818 = vmatpush2.msra.mxu0 0.0
    %6819 = vmatprep.subr.mxu0 0.0
    %6820 = vmatpush2.msra.mxu0 0.0
    %6821 = vmatprep.subr.mxu0 0.0
    %6822 = vmatpush2.msra.mxu0 0.0
    %6823 = vmatprep.subr.mxu0 0.0
    %6824 = vmatpush2.msra.mxu0 0.0
    %6825 = vmatprep.subr.mxu0 0.0
    %6826 = vmatpush2.msra.mxu0 0.0
    %6827 = vmatprep.subr.mxu0 0.0
    %6828 = vmatpush2.msra.mxu0 0.0
    %6829 = vmatprep.mubr.f32.mxu0 0.0
    %6830 = vmatmul.mubr.f32.gmra.mxu0 %v6763
    %v6831 = vpop.f32.mrf.mxu0
    %v6832 = vadd.f32 %v485, %v6831
    %v6833 = vpop.f32.mrf.mxu0
    %6834 = vdwg.mxu0
    %v6836 = vsel %vm169, %v6459, 0
    %6838 = vmatprep.subr.mxu0 0.0
    %6839 = vmatpush1.msra.mxu0 0.0
    %6840 = vmatprep.subr.mxu0 0.0
    %6841 = vmatpush1.msra.mxu0 0.0
    %6842 = vmatprep.subr.mxu0 0.0
    %6843 = vmatpush1.msra.mxu0 0.0
    %6844 = vmatprep.subr.mxu0 0.0
    %6845 = vmatpush1.msra.mxu0 0.0
    %6846 = vmatprep.subr.mxu0 0.0
    %6847 = vmatpush1.msra.mxu0 0.0
    %6848 = vmatprep.subr.mxu0 0.0
    %6849 = vmatpush1.msra.mxu0 0.0
    %6850 = vmatprep.subr.mxu0 0.0
    %6851 = vmatpush1.msra.mxu0 0.0
    %6852 = vmatprep.subr.mxu0 0.0
    %6853 = vmatpush1.msra.mxu0 0.0
    %6854 = vmatprep.subr.mxu0 0.0
    %6855 = vmatpush1.msra.mxu0 0.0
    %6856 = vmatprep.subr.mxu0 0.0
    %6857 = vmatpush1.msra.mxu0 0.0
    %6858 = vmatprep.subr.mxu0 0.0
    %6859 = vmatpush1.msra.mxu0 0.0
    %6860 = vmatprep.subr.mxu0 0.0
    %6861 = vmatpush1.msra.mxu0 0.0
    %6862 = vmatprep.subr.mxu0 0.0
    %6863 = vmatpush1.msra.mxu0 0.0
    %6864 = vmatprep.subr.mxu0 0.0
    %6865 = vmatpush1.msra.mxu0 0.0
    %6866 = vmatprep.subr.mxu0 0.0
    %6867 = vmatpush1.msra.mxu0 0.0
    %6868 = vmatprep.subr.mxu0 %v573
    %6869 = vmatpush1.msra.mxu0 %v571
    %6870 = vmatprep.subr.mxu0 0.0
    %6871 = vmatpush2.msra.mxu0 0.0
    %6872 = vmatprep.subr.mxu0 0.0
    %6873 = vmatpush2.msra.mxu0 0.0
    %6874 = vmatprep.subr.mxu0 0.0
    %6875 = vmatpush2.msra.mxu0 0.0
    %6876 = vmatprep.subr.mxu0 0.0
    %6877 = vmatpush2.msra.mxu0 0.0
    %6878 = vmatprep.subr.mxu0 0.0
    %6879 = vmatpush2.msra.mxu0 0.0
    %6880 = vmatprep.subr.mxu0 0.0
    %6881 = vmatpush2.msra.mxu0 0.0
    %6882 = vmatprep.subr.mxu0 0.0
    %6883 = vmatpush2.msra.mxu0 0.0
    %6884 = vmatprep.subr.mxu0 0.0
    %6885 = vmatpush2.msra.mxu0 0.0
    %6886 = vmatprep.subr.mxu0 0.0
    %6887 = vmatpush2.msra.mxu0 0.0
    %6888 = vmatprep.subr.mxu0 0.0
    %6889 = vmatpush2.msra.mxu0 0.0
    %6890 = vmatprep.subr.mxu0 0.0
    %6891 = vmatpush2.msra.mxu0 0.0
    %6892 = vmatprep.subr.mxu0 0.0
    %6893 = vmatpush2.msra.mxu0 0.0
    %6894 = vmatprep.subr.mxu0 0.0
    %6895 = vmatpush2.msra.mxu0 0.0
    %6896 = vmatprep.subr.mxu0 0.0
    %6897 = vmatpush2.msra.mxu0 0.0
    %6898 = vmatprep.subr.mxu0 0.0
    %6899 = vmatpush2.msra.mxu0 0.0
    %6900 = vmatprep.subr.mxu0 0.0
    %6901 = vmatpush2.msra.mxu0 0.0
    %6902 = vmatprep.mubr.f32.mxu0 0.0
    %6903 = vmatmul.mubr.f32.gmra.mxu0 %v6836
    %v6904 = vpop.f32.mrf.mxu0
    %v6905 = vadd.f32 0.0, %v6904
    %v6906 = vpop.f32.mrf.mxu0
    %v6907 = vadd.f32 0.0, %v6906
    %6908 = vdwg.mxu0
    %6909 = vmatprep.subr.mxu0 0.0
    %6910 = vmatpush1.msra.mxu0 0.0
    %6911 = vmatprep.subr.mxu0 0.0
    %6912 = vmatpush1.msra.mxu0 0.0
    %6913 = vmatprep.subr.mxu0 0.0
    %6914 = vmatpush1.msra.mxu0 0.0
    %6915 = vmatprep.subr.mxu0 0.0
    %6916 = vmatpush1.msra.mxu0 0.0
    %6917 = vmatprep.subr.mxu0 0.0
    %6918 = vmatpush1.msra.mxu0 0.0
    %6919 = vmatprep.subr.mxu0 0.0
    %6920 = vmatpush1.msra.mxu0 0.0
    %6921 = vmatprep.subr.mxu0 0.0
    %6922 = vmatpush1.msra.mxu0 0.0
    %6923 = vmatprep.subr.mxu0 0.0
    %6924 = vmatpush1.msra.mxu0 0.0
    %6925 = vmatprep.subr.mxu0 0.0
    %6926 = vmatpush1.msra.mxu0 0.0
    %6927 = vmatprep.subr.mxu0 0.0
    %6928 = vmatpush1.msra.mxu0 0.0
    %6929 = vmatprep.subr.mxu0 0.0
    %6930 = vmatpush1.msra.mxu0 0.0
    %6931 = vmatprep.subr.mxu0 0.0
    %6932 = vmatpush1.msra.mxu0 0.0
    %6933 = vmatprep.subr.mxu0 0.0
    %6934 = vmatpush1.msra.mxu0 0.0
    %6935 = vmatprep.subr.mxu0 0.0
    %6936 = vmatpush1.msra.mxu0 0.0
    %6937 = vmatprep.subr.mxu0 0.0
    %6938 = vmatpush1.msra.mxu0 0.0
    %6939 = vmatprep.subr.mxu0 %v577
    %6940 = vmatpush1.msra.mxu0 %v575
    %6941 = vmatprep.subr.mxu0 0.0
    %6942 = vmatpush2.msra.mxu0 0.0
    %6943 = vmatprep.subr.mxu0 0.0
    %6944 = vmatpush2.msra.mxu0 0.0
    %6945 = vmatprep.subr.mxu0 0.0
    %6946 = vmatpush2.msra.mxu0 0.0
    %6947 = vmatprep.subr.mxu0 0.0
    %6948 = vmatpush2.msra.mxu0 0.0
    %6949 = vmatprep.subr.mxu0 0.0
    %6950 = vmatpush2.msra.mxu0 0.0
    %6951 = vmatprep.subr.mxu0 0.0
    %6952 = vmatpush2.msra.mxu0 0.0
    %6953 = vmatprep.subr.mxu0 0.0
    %6954 = vmatpush2.msra.mxu0 0.0
    %6955 = vmatprep.subr.mxu0 0.0
    %6956 = vmatpush2.msra.mxu0 0.0
    %6957 = vmatprep.subr.mxu0 0.0
    %6958 = vmatpush2.msra.mxu0 0.0
    %6959 = vmatprep.subr.mxu0 0.0
    %6960 = vmatpush2.msra.mxu0 0.0
    %6961 = vmatprep.subr.mxu0 0.0
    %6962 = vmatpush2.msra.mxu0 0.0
    %6963 = vmatprep.subr.mxu0 0.0
    %6964 = vmatpush2.msra.mxu0 0.0
    %6965 = vmatprep.subr.mxu0 0.0
    %6966 = vmatpush2.msra.mxu0 0.0
    %6967 = vmatprep.subr.mxu0 0.0
    %6968 = vmatpush2.msra.mxu0 0.0
    %6969 = vmatprep.subr.mxu0 0.0
    %6970 = vmatpush2.msra.mxu0 0.0
    %6971 = vmatprep.subr.mxu0 0.0
    %6972 = vmatpush2.msra.mxu0 0.0
    %6973 = vmatprep.mubr.f32.mxu0 0.0
    %6974 = vmatmul.mubr.f32.gmra.mxu0 %v6836
    %v6975 = vpop.f32.mrf.mxu0
    %v6976 = vadd.f32 0.0, %v6975
    %v6977 = vpop.f32.mrf.mxu0
    %v6978 = vadd.f32 0.0, %v6977
    %6979 = vdwg.mxu0
    %6980 = vmatprep.subr.mxu0 0.0
    %6981 = vmatpush1.msra.mxu0 0.0
    %6982 = vmatprep.subr.mxu0 0.0
    %6983 = vmatpush1.msra.mxu0 0.0
    %6984 = vmatprep.subr.mxu0 0.0
    %6985 = vmatpush1.msra.mxu0 0.0
    %6986 = vmatprep.subr.mxu0 0.0
    %6987 = vmatpush1.msra.mxu0 0.0
    %6988 = vmatprep.subr.mxu0 0.0
    %6989 = vmatpush1.msra.mxu0 0.0
    %6990 = vmatprep.subr.mxu0 0.0
    %6991 = vmatpush1.msra.mxu0 0.0
    %6992 = vmatprep.subr.mxu0 0.0
    %6993 = vmatpush1.msra.mxu0 0.0
    %6994 = vmatprep.subr.mxu0 0.0
    %6995 = vmatpush1.msra.mxu0 0.0
    %6996 = vmatprep.subr.mxu0 0.0
    %6997 = vmatpush1.msra.mxu0 0.0
    %6998 = vmatprep.subr.mxu0 0.0
    %6999 = vmatpush1.msra.mxu0 0.0
    %7000 = vmatprep.subr.mxu0 0.0
    %7001 = vmatpush1.msra.mxu0 0.0
    %7002 = vmatprep.subr.mxu0 0.0
    %7003 = vmatpush1.msra.mxu0 0.0
    %7004 = vmatprep.subr.mxu0 0.0
    %7005 = vmatpush1.msra.mxu0 0.0
    %7006 = vmatprep.subr.mxu0 0.0
    %7007 = vmatpush1.msra.mxu0 0.0
    %7008 = vmatprep.subr.mxu0 0.0
    %7009 = vmatpush1.msra.mxu0 0.0
    %7010 = vmatprep.subr.mxu0 0.0
    %7011 = vmatpush1.msra.mxu0 %v579
    %7012 = vmatprep.subr.mxu0 0.0
    %7013 = vmatpush2.msra.mxu0 0.0
    %7014 = vmatprep.subr.mxu0 0.0
    %7015 = vmatpush2.msra.mxu0 0.0
    %7016 = vmatprep.subr.mxu0 0.0
    %7017 = vmatpush2.msra.mxu0 0.0
    %7018 = vmatprep.subr.mxu0 0.0
    %7019 = vmatpush2.msra.mxu0 0.0
    %7020 = vmatprep.subr.mxu0 0.0
    %7021 = vmatpush2.msra.mxu0 0.0
    %7022 = vmatprep.subr.mxu0 0.0
    %7023 = vmatpush2.msra.mxu0 0.0
    %7024 = vmatprep.subr.mxu0 0.0
    %7025 = vmatpush2.msra.mxu0 0.0
    %7026 = vmatprep.subr.mxu0 0.0
    %7027 = vmatpush2.msra.mxu0 0.0
    %7028 = vmatprep.subr.mxu0 0.0
    %7029 = vmatpush2.msra.mxu0 0.0
    %7030 = vmatprep.subr.mxu0 0.0
    %7031 = vmatpush2.msra.mxu0 0.0
    %7032 = vmatprep.subr.mxu0 0.0
    %7033 = vmatpush2.msra.mxu0 0.0
    %7034 = vmatprep.subr.mxu0 0.0
    %7035 = vmatpush2.msra.mxu0 0.0
    %7036 = vmatprep.subr.mxu0 0.0
    %7037 = vmatpush2.msra.mxu0 0.0
    %7038 = vmatprep.subr.mxu0 0.0
    %7039 = vmatpush2.msra.mxu0 0.0
    %7040 = vmatprep.subr.mxu0 0.0
    %7041 = vmatpush2.msra.mxu0 0.0
    %7042 = vmatprep.subr.mxu0 0.0
    %7043 = vmatpush2.msra.mxu0 0.0
    %7044 = vmatprep.mubr.f32.mxu0 0.0
    %7045 = vmatmul.mubr.f32.gmra.mxu0 %v6836
    %v7046 = vpop.f32.mrf.mxu0
    %v7047 = vadd.f32 0.0, %v7046
    %v7048 = vpop.f32.mrf.mxu0
    %7049 = vdwg.mxu0
    %v7051 = vsel %vm169, %v6543, 0
    %7053 = vmatprep.subr.mxu0 0.0
    %7054 = vmatpush1.msra.mxu0 0.0
    %7055 = vmatprep.subr.mxu0 0.0
    %7056 = vmatpush1.msra.mxu0 0.0
    %7057 = vmatprep.subr.mxu0 0.0
    %7058 = vmatpush1.msra.mxu0 0.0
    %7059 = vmatprep.subr.mxu0 0.0
    %7060 = vmatpush1.msra.mxu0 0.0
    %7061 = vmatprep.subr.mxu0 0.0
    %7062 = vmatpush1.msra.mxu0 0.0
    %7063 = vmatprep.subr.mxu0 0.0
    %7064 = vmatpush1.msra.mxu0 0.0
    %7065 = vmatprep.subr.mxu0 0.0
    %7066 = vmatpush1.msra.mxu0 0.0
    %7067 = vmatprep.subr.mxu0 0.0
    %7068 = vmatpush1.msra.mxu0 0.0
    %7069 = vmatprep.subr.mxu0 0.0
    %7070 = vmatpush1.msra.mxu0 0.0
    %7071 = vmatprep.subr.mxu0 0.0
    %7072 = vmatpush1.msra.mxu0 0.0
    %7073 = vmatprep.subr.mxu0 0.0
    %7074 = vmatpush1.msra.mxu0 0.0
    %7075 = vmatprep.subr.mxu0 0.0
    %7076 = vmatpush1.msra.mxu0 0.0
    %7077 = vmatprep.subr.mxu0 0.0
    %7078 = vmatpush1.msra.mxu0 0.0
    %7079 = vmatprep.subr.mxu0 0.0
    %7080 = vmatpush1.msra.mxu0 0.0
    %7081 = vmatprep.subr.mxu0 0.0
    %7082 = vmatpush1.msra.mxu0 0.0
    %7083 = vmatprep.subr.mxu0 0.0
    %7084 = vmatpush1.msra.mxu0 %v797
    %7085 = vmatprep.subr.mxu0 0.0
    %7086 = vmatpush2.msra.mxu0 0.0
    %7087 = vmatprep.subr.mxu0 0.0
    %7088 = vmatpush2.msra.mxu0 0.0
    %7089 = vmatprep.subr.mxu0 0.0
    %7090 = vmatpush2.msra.mxu0 0.0
    %7091 = vmatprep.subr.mxu0 0.0
    %7092 = vmatpush2.msra.mxu0 0.0
    %7093 = vmatprep.subr.mxu0 0.0
    %7094 = vmatpush2.msra.mxu0 0.0
    %7095 = vmatprep.subr.mxu0 0.0
    %7096 = vmatpush2.msra.mxu0 0.0
    %7097 = vmatprep.subr.mxu0 0.0
    %7098 = vmatpush2.msra.mxu0 0.0
    %7099 = vmatprep.subr.mxu0 0.0
    %7100 = vmatpush2.msra.mxu0 0.0
    %7101 = vmatprep.subr.mxu0 0.0
    %7102 = vmatpush2.msra.mxu0 0.0
    %7103 = vmatprep.subr.mxu0 0.0
    %7104 = vmatpush2.msra.mxu0 0.0
    %7105 = vmatprep.subr.mxu0 0.0
    %7106 = vmatpush2.msra.mxu0 0.0
    %7107 = vmatprep.subr.mxu0 0.0
    %7108 = vmatpush2.msra.mxu0 0.0
    %7109 = vmatprep.subr.mxu0 0.0
    %7110 = vmatpush2.msra.mxu0 0.0
    %7111 = vmatprep.subr.mxu0 0.0
    %7112 = vmatpush2.msra.mxu0 0.0
    %7113 = vmatprep.subr.mxu0 0.0
    %7114 = vmatpush2.msra.mxu0 0.0
    %7115 = vmatprep.subr.mxu0 0.0
    %7116 = vmatpush2.msra.mxu0 0.0
    %7117 = vmatprep.mubr.f32.mxu0 0.0
    %7118 = vmatmul.mubr.f32.gmra.mxu0 %v7051
    %v7119 = vpop.f32.mrf.mxu0
    %v7120 = vadd.f32 %v7047, %v7119
    %v7121 = vpop.f32.mrf.mxu0
    %7122 = vdwg.mxu0
    %v7123 = vadd.f32 %v7120, %v873
    %v7124 = vmul.f32 %v7123, %v6832
    %v7125 = vsub.f32 1.0, %v7123
    %v7126 = vmul.f32 %v7125, %v6757
    %v7127 = vadd.f32 %v7124, %v7126
    %v7128 = vsub.f32 %v6457, %v6757
    %v7129 = vand.u32 2147483647, %v7128
    %v7130 = vsub.f32 %v6457, %v6832
    %v7131 = vand.u32 2147483647, %v7130
    %v7132 = vadd.f32 %v7129, %v7131
    %v7133 = vsub.f32 %v6457, %v7127
    %v7134 = vand.u32 2147483647, %v7133
    %v7135 = vadd.f32 %v7132, %v7134
    %v7136 = vmul.f32 %v7135, %v6459
    %v7137 = vsel %vm169, %v7136, 0.0
    %7138 = vadd.xlane.f32.xlu0 %v7137
    %v7139 = vpop.xlane.xlu0 %7138
    %v7140 = vrot.slane %v7139, 4
    %v7141 = vadd.f32 %v7139, %v7140
    %v7142 = vrot.slane %v7141, 2
    %v7143 = vadd.f32 %v7141, %v7142
    %v7144 = vrot.slane %v7143, 1
    %v7145 = vadd.f32 %v7143, %v7144
    %s7146 = vtos %v7145
    %v7147 = vsel %vm169, %v6459, 0.0
    %7148 = vadd.xlane.f32.xlu0 %v7147
    %v7149 = vpop.xlane.xlu0 %7148
    %v7150 = vrot.slane %v7149, 4
    %v7151 = vadd.f32 %v7149, %v7150
    %v7152 = vrot.slane %v7151, 2
    %v7153 = vadd.f32 %v7151, %v7152
    %v7154 = vrot.slane %v7153, 1
    %v7155 = vadd.f32 %v7153, %v7154
    %s7156 = vtos %v7155
    %s7157 = sadd.f32 %s7156, 1e-05
    %v7158 = vstv %s7157
    %v7159 = vrcp.pop %v7158
    %s7160 = vtos %v7159
    %s7161 = smul.f32 %s7146, %s7160
    %s7162 = sadd.f32 %s6274, %s7161
    %v7163 = vmul.f32 %v6759, %v7127
    %v7164 = vadd.f32 %v6758, %v7163
    %s7165 = scalar_lea.vmem %s14, 56
    %7166 = vst.msk [vmem:[%s7165] sm:$0xff] %vm169, %v7164
    %v7168 = vsel %vm169, %v7164, 0
    %7170 = vmatprep.subr.mxu0 0.0
    %7171 = vmatpush1.msra.mxu0 0.0
    %7172 = vmatprep.subr.mxu0 0.0
    %7173 = vmatpush1.msra.mxu0 0.0
    %7174 = vmatprep.subr.mxu0 0.0
    %7175 = vmatpush1.msra.mxu0 0.0
    %7176 = vmatprep.subr.mxu0 0.0
    %7177 = vmatpush1.msra.mxu0 0.0
    %7178 = vmatprep.subr.mxu0 0.0
    %7179 = vmatpush1.msra.mxu0 0.0
    %7180 = vmatprep.subr.mxu0 0.0
    %7181 = vmatpush1.msra.mxu0 0.0
    %7182 = vmatprep.subr.mxu0 0.0
    %7183 = vmatpush1.msra.mxu0 0.0
    %7184 = vmatprep.subr.mxu0 0.0
    %7185 = vmatpush1.msra.mxu0 0.0
    %7186 = vmatprep.subr.mxu0 0.0
    %7187 = vmatpush1.msra.mxu0 0.0
    %7188 = vmatprep.subr.mxu0 0.0
    %7189 = vmatpush1.msra.mxu0 0.0
    %7190 = vmatprep.subr.mxu0 0.0
    %7191 = vmatpush1.msra.mxu0 0.0
    %7192 = vmatprep.subr.mxu0 0.0
    %7193 = vmatpush1.msra.mxu0 0.0
    %7194 = vmatprep.subr.mxu0 0.0
    %7195 = vmatpush1.msra.mxu0 0.0
    %7196 = vmatprep.subr.mxu0 0.0
    %7197 = vmatpush1.msra.mxu0 0.0
    %7198 = vmatprep.subr.mxu0 0.0
    %7199 = vmatpush1.msra.mxu0 0.0
    %7200 = vmatprep.subr.mxu0 %v927
    %7201 = vmatpush1.msra.mxu0 %v925
    %7202 = vmatprep.subr.mxu0 0.0
    %7203 = vmatpush2.msra.mxu0 0.0
    %7204 = vmatprep.subr.mxu0 0.0
    %7205 = vmatpush2.msra.mxu0 0.0
    %7206 = vmatprep.subr.mxu0 0.0
    %7207 = vmatpush2.msra.mxu0 0.0
    %7208 = vmatprep.subr.mxu0 0.0
    %7209 = vmatpush2.msra.mxu0 0.0
    %7210 = vmatprep.subr.mxu0 0.0
    %7211 = vmatpush2.msra.mxu0 0.0
    %7212 = vmatprep.subr.mxu0 0.0
    %7213 = vmatpush2.msra.mxu0 0.0
    %7214 = vmatprep.subr.mxu0 0.0
    %7215 = vmatpush2.msra.mxu0 0.0
    %7216 = vmatprep.subr.mxu0 0.0
    %7217 = vmatpush2.msra.mxu0 0.0
    %7218 = vmatprep.subr.mxu0 0.0
    %7219 = vmatpush2.msra.mxu0 0.0
    %7220 = vmatprep.subr.mxu0 0.0
    %7221 = vmatpush2.msra.mxu0 0.0
    %7222 = vmatprep.subr.mxu0 0.0
    %7223 = vmatpush2.msra.mxu0 0.0
    %7224 = vmatprep.subr.mxu0 0.0
    %7225 = vmatpush2.msra.mxu0 0.0
    %7226 = vmatprep.subr.mxu0 0.0
    %7227 = vmatpush2.msra.mxu0 0.0
    %7228 = vmatprep.subr.mxu0 0.0
    %7229 = vmatpush2.msra.mxu0 0.0
    %7230 = vmatprep.subr.mxu0 0.0
    %7231 = vmatpush2.msra.mxu0 0.0
    %7232 = vmatprep.subr.mxu0 0.0
    %7233 = vmatpush2.msra.mxu0 0.0
    %7234 = vmatprep.mubr.f32.mxu0 0.0
    %7235 = vmatmul.mubr.f32.gmra.mxu0 %v7168
    %v7236 = vpop.f32.mrf.mxu0
    %v7237 = vadd.f32 %v6905, %v7236
    %v7238 = vpop.f32.mrf.mxu0
    %v7239 = vadd.f32 %v6907, %v7238
    %7240 = vdwg.mxu0
    %7241 = vmatprep.subr.mxu0 0.0
    %7242 = vmatpush1.msra.mxu0 0.0
    %7243 = vmatprep.subr.mxu0 0.0
    %7244 = vmatpush1.msra.mxu0 0.0
    %7245 = vmatprep.subr.mxu0 0.0
    %7246 = vmatpush1.msra.mxu0 0.0
    %7247 = vmatprep.subr.mxu0 0.0
    %7248 = vmatpush1.msra.mxu0 0.0
    %7249 = vmatprep.subr.mxu0 0.0
    %7250 = vmatpush1.msra.mxu0 0.0
    %7251 = vmatprep.subr.mxu0 0.0
    %7252 = vmatpush1.msra.mxu0 0.0
    %7253 = vmatprep.subr.mxu0 0.0
    %7254 = vmatpush1.msra.mxu0 0.0
    %7255 = vmatprep.subr.mxu0 0.0
    %7256 = vmatpush1.msra.mxu0 0.0
    %7257 = vmatprep.subr.mxu0 0.0
    %7258 = vmatpush1.msra.mxu0 0.0
    %7259 = vmatprep.subr.mxu0 0.0
    %7260 = vmatpush1.msra.mxu0 0.0
    %7261 = vmatprep.subr.mxu0 0.0
    %7262 = vmatpush1.msra.mxu0 0.0
    %7263 = vmatprep.subr.mxu0 0.0
    %7264 = vmatpush1.msra.mxu0 0.0
    %7265 = vmatprep.subr.mxu0 0.0
    %7266 = vmatpush1.msra.mxu0 0.0
    %7267 = vmatprep.subr.mxu0 0.0
    %7268 = vmatpush1.msra.mxu0 0.0
    %7269 = vmatprep.subr.mxu0 0.0
    %7270 = vmatpush1.msra.mxu0 0.0
    %7271 = vmatprep.subr.mxu0 %v931
    %7272 = vmatpush1.msra.mxu0 %v929
    %7273 = vmatprep.subr.mxu0 0.0
    %7274 = vmatpush2.msra.mxu0 0.0
    %7275 = vmatprep.subr.mxu0 0.0
    %7276 = vmatpush2.msra.mxu0 0.0
    %7277 = vmatprep.subr.mxu0 0.0
    %7278 = vmatpush2.msra.mxu0 0.0
    %7279 = vmatprep.subr.mxu0 0.0
    %7280 = vmatpush2.msra.mxu0 0.0
    %7281 = vmatprep.subr.mxu0 0.0
    %7282 = vmatpush2.msra.mxu0 0.0
    %7283 = vmatprep.subr.mxu0 0.0
    %7284 = vmatpush2.msra.mxu0 0.0
    %7285 = vmatprep.subr.mxu0 0.0
    %7286 = vmatpush2.msra.mxu0 0.0
    %7287 = vmatprep.subr.mxu0 0.0
    %7288 = vmatpush2.msra.mxu0 0.0
    %7289 = vmatprep.subr.mxu0 0.0
    %7290 = vmatpush2.msra.mxu0 0.0
    %7291 = vmatprep.subr.mxu0 0.0
    %7292 = vmatpush2.msra.mxu0 0.0
    %7293 = vmatprep.subr.mxu0 0.0
    %7294 = vmatpush2.msra.mxu0 0.0
    %7295 = vmatprep.subr.mxu0 0.0
    %7296 = vmatpush2.msra.mxu0 0.0
    %7297 = vmatprep.subr.mxu0 0.0
    %7298 = vmatpush2.msra.mxu0 0.0
    %7299 = vmatprep.subr.mxu0 0.0
    %7300 = vmatpush2.msra.mxu0 0.0
    %7301 = vmatprep.subr.mxu0 0.0
    %7302 = vmatpush2.msra.mxu0 0.0
    %7303 = vmatprep.subr.mxu0 0.0
    %7304 = vmatpush2.msra.mxu0 0.0
    %7305 = vmatprep.mubr.f32.mxu0 0.0
    %7306 = vmatmul.mubr.f32.gmra.mxu0 %v7168
    %v7307 = vpop.f32.mrf.mxu0
    %v7308 = vadd.f32 %v6976, %v7307
    %v7309 = vpop.f32.mrf.mxu0
    %v7310 = vadd.f32 %v6978, %v7309
    %7311 = vdwg.mxu0
    %v7312 = vadd.f32 %v7237, %v6612
    %v7313 = vadd.f32 %v7239, %v6614
    %v7314 = vadd.f32 %v7308, %v6683
    %v7315 = vadd.f32 %v7310, %v6685
    %v7316 = vadd.f32 %v7312, %v1083
    %v7317 = vadd.f32 %v7313, %v1087
    %v7318 = vadd.f32 %v7314, %v1091
    %v7319 = vadd.f32 %v7315, %v1095
    %v7320 = vxor.u32 %v7316, 2147483648
    %v7321 = vmul.f32 %v7320, 1.442695
    %v7322 = vpow.pop %v7321
    %v7323 = vadd.f32 %v7322, 1.0
    %v7324 = vrcp.pop %v7323
    %v7325 = vmul.f32 1.0, %v7324
    %v7326 = vxor.u32 %v7317, 2147483648
    %v7327 = vmul.f32 %v7326, 1.442695
    %v7328 = vpow.pop %v7327
    %v7329 = vadd.f32 %v7328, 1.0
    %v7330 = vrcp.pop %v7329
    %v7331 = vmul.f32 1.0, %v7330
    %v7332 = vtanh.pop %v7318
    %v7333 = vxor.u32 %v7319, 2147483648
    %v7334 = vmul.f32 %v7333, 1.442695
    %v7335 = vpow.pop %v7334
    %v7336 = vadd.f32 %v7335, 1.0
    %v7337 = vrcp.pop %v7336
    %v7338 = vmul.f32 1.0, %v7337
    %v7339 = vmul.f32 %v7331, %v6453
    %v7340 = vmul.f32 %v7325, %v7332
    %v7341 = vadd.f32 %v7339, %v7340
    %v7342 = vtanh.pop %v7341
    %v7343 = vmul.f32 %v7338, %v7342
    %7344 = vst [vmem:[#allocation2] sm:$0xff] %v7343
    %7345 = vst [vmem:[#allocation3] sm:$0xff] %v7341
    %v7346 = vld [vmem:[#allocation4] sm:$0x1]
    %v7347 = vstv %s7162
    %v7348 = vadd.f32 %v7346, %v7347
    %vm7349 = vcmask 0
    %7350 = vst.msk [vmem:[#allocation4] sm:$0x1] %vm7349, %v7348
    // Predicated region
    $region62: #{tpu_custom_call.1} parent=1 // pred_check
      _
    $region63: #{tpu_custom_call.1} parent=1 // pred_check_branch
      %7352 = sbr.rel (0) target = $region65
    $region64: #{tpu_custom_call.1} parent=1 // pred_region
      _
    $region65: #{tpu_custom_call.1} parent=1 // pred_fallthru
      _
    // Predicated region
    $region66: #{tpu_custom_call.1} parent=1 // pred_check
      _
    $region67: #{tpu_custom_call.1} parent=1 // pred_check_branch
      %7354 = sbr.rel (0) target = $region69
    $region68: #{tpu_custom_call.1} parent=1 // pred_region
      %s7356 = ssub.s32 16, 16
      %7357 = vsyncadd [#allocation5], %s7356
      %s7359 = sshll.u32 [#allocation4], 4
      %s7360 = int_to_ptr.vmem [resolvable:$true] %s7359
      %7362 = dma.vmem_to_hbm [thread:$0]  %s7360, 16, %s15, [#allocation5]
    $region69: #{tpu_custom_call.1} parent=1 // pred_fallthru
      _
    // Predicated region
    $region70: #{tpu_custom_call.1} parent=1 // pred_check
      _
    $region71: #{tpu_custom_call.1} parent=1 // pred_check_branch
      %7364 = sbr.rel (0) target = $region73
    $region72: #{tpu_custom_call.1} parent=1 // pred_region
      _
    $region73: #{tpu_custom_call.1} parent=1 // pred_fallthru
      _
    // Predicated region
    $region74: #{tpu_custom_call.1} parent=1 // pred_check
      _
    $region75: #{tpu_custom_call.1} parent=1 // pred_check_branch
      %7366 = sbr.rel (0) target = $region77
    $region76: #{tpu_custom_call.1} parent=1 // pred_region
      %7367 = dma.done [#allocation5], 16
    $region77: #{tpu_custom_call.1} parent=1 // pred_fallthru
      _
    %7368 = vsyncpa [#allocation5], 1

</llo_original>
